<compile_context>
chip_gen: v6e
topology: v6e:2x2x1
jax: 0.10.0
libtpu: 0.0.40
codegen_flags: <defaults>
</compile_context>

<pallas_src>
import functools

import jax
import jax.numpy as jnp
import numpy as np
from jax import lax
from jax.experimental import pallas as pl
from jax.experimental.pallas import tpu as pltpu

_EPS = 1e-5


# ------------------------------ fused kernel ------------------------------- #

def _inception_kernel(x_ref,
                      w1_ref, s1_ref, c1_ref,        # fused 1x1 (b1 | b2red | b3red)
                      w2_ref, s2_ref, c2_ref,        # b2 3x3
                      w3a_ref, s3a_ref, c3a_ref,     # b3 first 3x3
                      w3b_ref, s3b_ref, c3b_ref,     # b3 second 3x3
                      w4_ref, s4_ref, c4_ref,        # b4 1x1 (after max-pool)
                      o1_ref, o2_ref, o3_ref, o4_ref,
                      *, n1x1, n3x3red, n5x5red):
    _, H, W, Cin = x_ref.shape
    M = H * W
    x = x_ref[0]                                     # (H, W, Cin) f32, VMEM resident

    def taps_3x3(v_hwc, pad_val):
        """3x3 stride-1 pad-1 taps of v, each as an (M, C) slab (f32).

        The spatial halo is handled entirely in VMEM: pad two zero/-inf rows
        top & bottom (axis-0 concat), flatten rows, and read each tap as a
        static row-shifted slice; the column wrap across row boundaries is
        cancelled with an iota-based mask.
        """
        Hh, Ww, C = v_hwc.shape
        border = jnp.full((2, Ww, C), pad_val, v_hwc.dtype)
        flat = jnp.concatenate([border, v_hwc, border],
                               axis=0).reshape((Hh + 4) * Ww, C)
        col = lax.broadcasted_iota(jnp.int32, (Hh, Ww, C), 1).reshape(Hh * Ww, C)
        not_first = col >= 1          # valid where the tap reads column w-1
        not_last = col <= Ww - 2      # valid where the tap reads column w+1
        out = []
        for dy in range(3):
            for dx in range(3):
                k = (dy + 1) * Ww + (dx - 1)          # row shift in flattened space
                t = flat[k:k + Hh * Ww, :]
                if dx == 0:
                    t = jnp.where(not_first, t, pad_val)
                elif dx == 2:
                    t = jnp.where(not_last, t, pad_val)
                out.append(t)
        return out

    def conv3x3_bn_relu(v_hwc, w_ref, s_ref, b_ref):
        cout = w_ref.shape[-1]
        acc = jnp.zeros((M, cout), jnp.float32)
        for t, tap in enumerate(taps_3x3(v_hwc, 0.0)):
            acc = acc + jnp.dot(tap.astype(jnp.bfloat16), w_ref[t],
                                preferred_element_type=jnp.float32)
        return jnp.maximum(acc * s_ref[...] + b_ref[...], 0.0)

    # ---- fused 1x1 stage: branch1 + branch2-reduce + branch3-reduce (one dot)
    x2d = x.reshape(M, Cin)
    y = jnp.dot(x2d.astype(jnp.bfloat16), w1_ref[...],
                preferred_element_type=jnp.float32)
    y = jnp.maximum(y * s1_ref[...] + c1_ref[...], 0.0)
    o1 = y[:, :n1x1]
    r2 = y[:, n1x1:n1x1 + n3x3red].reshape(H, W, n3x3red)
    r3 = y[:, n1x1 + n3x3red:].reshape(H, W, n5x5red)

    # ---- branch 2: 1x1 reduce (above) -> 3x3, intermediate stays in VMEM
    o2 = conv3x3_bn_relu(r2, w2_ref, s2_ref, c2_ref)

    # ---- branch 3: 1x1 reduce -> 3x3 -> 3x3, intermediates stay in VMEM
    t3 = conv3x3_bn_relu(r3, w3a_ref, s3a_ref, c3a_ref)
    o3 = conv3x3_bn_relu(t3.reshape(H, W, t3.shape[-1]),
                         w3b_ref, s3b_ref, c3b_ref)

    # ---- branch 4: 3x3 max-pool (implicit -inf padding) fused with its 1x1
    ptaps = taps_3x3(x, -jnp.inf)
    pooled = ptaps[0]
    for t in range(1, 9):
        pooled = jnp.maximum(pooled, ptaps[t])
    y4 = jnp.dot(pooled.astype(jnp.bfloat16), w4_ref[...],
                 preferred_element_type=jnp.float32)
    o4 = jnp.maximum(y4 * s4_ref[...] + c4_ref[...], 0.0)

    o1_ref[0] = o1
    o2_ref[0] = o2
    o3_ref[0] = o3
    o4_ref[0] = o4


# ------------------------------ glue wrappers ------------------------------ #

def _const_spec(a):
    """Whole-array VMEM block with a constant index map (fetched once)."""
    if a.ndim == 2:
        return pl.BlockSpec(a.shape, lambda n: (0, 0))
    if a.ndim == 3:
        return pl.BlockSpec(a.shape, lambda n: (0, 0, 0))
    raise ValueError(f"unexpected weight rank {a.shape}")


def _pack_for_kernel(params):
    """Fold per-layer (w, scale, bias) params into the kernel operand list."""
    (w_b1, s_b1, b_b1), = params["b1"]
    (w_b2r, s_b2r, b_b2r), (w_b2, s_b2, b_b2) = params["b2"]
    ((w_b3r, s_b3r, b_b3r), (w_b3a, s_b3a, b_b3a),
     (w_b3b, s_b3b, b_b3b)) = params["b3"]
    (w_b4, s_b4, b_b4), = params["b4"]

    n1x1, n3x3red, n5x5red = w_b1.shape[1], w_b2r.shape[1], w_b3r.shape[1]

    # fused 1x1 weights: x is read once, one wide matmul for b1 | b2red | b3red
    w1 = jnp.concatenate([w_b1, w_b2r, w_b3r], axis=1).astype(jnp.bfloat16)
    s1 = jnp.concatenate([s_b1, s_b2r, s_b3r])[None, :].astype(jnp.float32)
    c1 = jnp.concatenate([b_b1, b_b2r, b_b3r])[None, :].astype(jnp.float32)

    def pack3x3(w, s, b):
        kh, kw, ci, co = w.shape
        return (w.reshape(kh * kw, ci, co).astype(jnp.bfloat16),
                s[None, :].astype(jnp.float32),
                b[None, :].astype(jnp.float32))

    w2, s2, c2 = pack3x3(w_b2, s_b2, b_b2)
    w3a, s3a, c3a = pack3x3(w_b3a, s_b3a, b_b3a)
    w3b, s3b, c3b = pack3x3(w_b3b, s_b3b, b_b3b)
    w4 = w_b4.astype(jnp.bfloat16)
    s4 = s_b4[None, :].astype(jnp.float32)
    c4 = b_b4[None, :].astype(jnp.float32)

    ops = (w1, s1, c1, w2, s2, c2, w3a, s3a, c3a, w3b, s3b, c3b, w4, s4, c4)
    return ops, (n1x1, n3x3red, n5x5red)


def inception_forward(x_nchw, params):
    N, Cin, H, W = x_nchw.shape
    assert W % 8 == 0, "kernel expects W to be a multiple of the sublane tile (8)"
    x = jnp.transpose(x_nchw, (0, 2, 3, 1)).astype(jnp.float32)   # NCHW -> NHWC

    ops, (n1x1, n3x3red, n5x5red) = _pack_for_kernel(params)
    n3x3 = ops[3].shape[-1]
    n5x5 = ops[9].shape[-1]
    pool_planes = ops[12].shape[-1]
    M = H * W
    branch_channels = (n1x1, n3x3, n5x5, pool_planes)

    kernel = functools.partial(_inception_kernel, n1x1=n1x1,
                               n3x3red=n3x3red, n5x5red=n5x5red)

    in_specs = ([pl.BlockSpec((1, H, W, Cin), lambda n: (n, 0, 0, 0))]
                + [_const_spec(a) for a in ops])
    out_specs = tuple(pl.BlockSpec((1, M, c), lambda n: (n, 0, 0))
                      for c in branch_channels)
    out_shape = tuple(jax.ShapeDtypeStruct((N, M, c), jnp.float32)
                      for c in branch_channels)

    o1, o2, o3, o4 = pl.pallas_call(
        kernel,
        grid=(N,),                                   # one image per grid step
        in_specs=in_specs,
        out_specs=out_specs,
        out_shape=out_shape,
        compiler_params=pltpu.CompilerParams(
            dimension_semantics=("parallel",)),      # megacore split on v7x
    )(x, *ops)

    out = jnp.concatenate([o1, o2, o3, o4], axis=-1).reshape(N, H, W, -1)
    return jnp.transpose(out, (0, 3, 1, 2))          # NHWC -> NCHW


inception_forward = jax.jit(inception_forward)


# ------------------------------- parameters -------------------------------- #

def make_conv_bn_params(key, cin, cout, ksize):
    ks = jax.random.split(key, 6)
    w = 0.1 * jax.random.normal(ks[0], (ksize, ksize, cin, cout), jnp.float32)
    conv_b = 0.1 * jax.random.normal(ks[1], (cout,), jnp.float32)
    gamma = 1.0 + 0.1 * jax.random.normal(ks[2], (cout,), jnp.float32)
    beta = 0.1 * jax.random.normal(ks[3], (cout,), jnp.float32)
    run_mean = 0.1 * jax.random.normal(ks[4], (cout,), jnp.float32)
    run_var = 0.5 + jnp.abs(jax.random.normal(ks[5], (cout,), jnp.float32))
    scale = gamma / jnp.sqrt(run_var + _EPS)
    bias = beta - run_mean * scale + conv_b * scale
    if ksize == 1:
        w = w.reshape(cin, cout)
    return (w, scale, bias)


def init_inception_params(key, in_planes, n1x1, n3x3red, n3x3,
                          n5x5red, n5x5, pool_planes):
    ks = jax.random.split(key, 7)
    return {
        "b1": [make_conv_bn_params(ks[0], in_planes, n1x1, 1)],
        "b2": [make_conv_bn_params(ks[1], in_planes, n3x3red, 1),
               make_conv_bn_params(ks[2], n3x3red, n3x3, 3)],
        "b3": [make_conv_bn_params(ks[3], in_planes, n5x5red, 1),
               make_conv_bn_params(ks[4], n5x5red, n5x5, 3),
               make_conv_bn_params(ks[5], n5x5, n5x5, 3)],
        "b4": [make_conv_bn_params(ks[6], in_planes, pool_planes, 1)],
    }


# ------------------------------- pure-JAX ref ------------------------------- #

def _ref_conv_bn_relu(x, w, scale, bias):
    if w.ndim == 2:      # 1x1 conv
        y = jnp.einsum("nhwc,cd->nhwd", x, w)
    else:                # 3x3 conv, pad=1
        y = lax.conv_general_dilated(
            x, w, (1, 1), ((1, 1), (1, 1)),
            dimension_numbers=("NHWC", "HWIO", "NHWC"))
    return jnp.maximum(y * scale + bias, 0.0)


def _ref_maxpool3x3(x):
    return lax.reduce_window(x, -jnp.inf, lax.max, (1, 3, 3, 1), (1, 1, 1, 1),
                             [(0, 0), (1, 1), (1, 1), (0, 0)])


def ref_forward(x_nchw, params):
    x = jnp.transpose(x_nchw, (0, 2, 3, 1))
    o1 = _ref_conv_bn_relu(x, *params["b1"][0])
    t = _ref_conv_bn_relu(x, *params["b2"][0])
    o2 = _ref_conv_bn_relu(t, *params["b2"][1])
    t = _ref_conv_bn_relu(x, *params["b3"][0])
    t = _ref_conv_bn_relu(t, *params["b3"][1])
    o3 = _ref_conv_bn_relu(t, *params["b3"][2])
    o4 = _ref_conv_bn_relu(_ref_maxpool3x3(x), *params["b4"][0])
    out = jnp.concatenate([o1, o2, o3, o4], axis=-1)
    return jnp.transpose(out, (0, 3, 1, 2))


# ----------------------------------- main ----------------------------------- #

if __name__ == "__main__":
    key = jax.random.PRNGKey(0)
    kx, kp = jax.random.split(key)

    N, in_planes, H, W = 2, 4, 16, 16
    n1x1, n3x3red, n3x3, n5x5red, n5x5, pool_planes = 8, 4, 8, 4, 8, 8

    x_nchw = jax.random.normal(kx, (N, in_planes, H, W), jnp.float32)
    params = init_inception_params(kp, in_planes, n1x1, n3x3red, n3x3,
                                   n5x5red, n5x5, pool_planes)

    out = jax.block_until_ready(inception_forward(x_nchw, params))
    assert out.shape == (N, n1x1 + n3x3 + n5x5 + pool_planes, H, W), out.shape

    ref = jax.block_until_ready(ref_forward(x_nchw, params))
    # bf16 matmul operands (f32 accumulation) -> compare with a bf16-appropriate
    # tolerance against the pure-f32 reference.
    np.testing.assert_allclose(np.asarray(out), np.asarray(ref),
                               atol=2e-2, rtol=2e-2)
    print("KERNEL_OK")
</pallas_src>

<mosaic_0001>
module attributes {stable_mosaic.version = 11 : i64} {
  func.func @_inception_kernel(%arg0: i32, %arg1: memref<1x16x16x4xf32, #tpu.memory_space<vmem>>, %arg2: memref<4x16xbf16, #tpu.memory_space<vmem>>, %arg3: memref<1x16xf32, #tpu.memory_space<vmem>>, %arg4: memref<1x16xf32, #tpu.memory_space<vmem>>, %arg5: memref<9x4x8xbf16, #tpu.memory_space<vmem>>, %arg6: memref<1x8xf32, #tpu.memory_space<vmem>>, %arg7: memref<1x8xf32, #tpu.memory_space<vmem>>, %arg8: memref<9x4x8xbf16, #tpu.memory_space<vmem>>, %arg9: memref<1x8xf32, #tpu.memory_space<vmem>>, %arg10: memref<1x8xf32, #tpu.memory_space<vmem>>, %arg11: memref<9x8x8xbf16, #tpu.memory_space<vmem>>, %arg12: memref<1x8xf32, #tpu.memory_space<vmem>>, %arg13: memref<1x8xf32, #tpu.memory_space<vmem>>, %arg14: memref<4x8xbf16, #tpu.memory_space<vmem>>, %arg15: memref<1x8xf32, #tpu.memory_space<vmem>>, %arg16: memref<1x8xf32, #tpu.memory_space<vmem>>, %arg17: memref<1x256x8xf32, #tpu.memory_space<vmem>>, %arg18: memref<1x256x8xf32, #tpu.memory_space<vmem>>, %arg19: memref<1x256x8xf32, #tpu.memory_space<vmem>>, %arg20: memref<1x256x8xf32, #tpu.memory_space<vmem>>) attributes {dimension_semantics = [#tpu.dimension_semantics<parallel>], iteration_bounds = array<i64: 2>, scalar_prefetch = 0 : i64, scratch_operands = 0 : i64, tpu.core_type = #tpu.core_type<tc>, window_params = [{transform_indices = @transform_0, window_bounds = array<i64: 1, 16, 16, 4>}, {pipeline_mode = #tpu.pipeline_mode<synchronous>, transform_indices = @transform_1, window_bounds = array<i64: 4, 16>}, {pipeline_mode = #tpu.pipeline_mode<synchronous>, transform_indices = @transform_2, window_bounds = array<i64: 1, 16>}, {pipeline_mode = #tpu.pipeline_mode<synchronous>, transform_indices = @transform_3, window_bounds = array<i64: 1, 16>}, {pipeline_mode = #tpu.pipeline_mode<synchronous>, transform_indices = @transform_4, window_bounds = array<i64: 9, 4, 8>}, {pipeline_mode = #tpu.pipeline_mode<synchronous>, transform_indices = @transform_5, window_bounds = array<i64: 1, 8>}, {pipeline_mode = #tpu.pipeline_mode<synchronous>, transform_indices = @transform_6, window_bounds = array<i64: 1, 8>}, {pipeline_mode = #tpu.pipeline_mode<synchronous>, transform_indices = @transform_7, window_bounds = array<i64: 9, 4, 8>}, {pipeline_mode = #tpu.pipeline_mode<synchronous>, transform_indices = @transform_8, window_bounds = array<i64: 1, 8>}, {pipeline_mode = #tpu.pipeline_mode<synchronous>, transform_indices = @transform_9, window_bounds = array<i64: 1, 8>}, {pipeline_mode = #tpu.pipeline_mode<synchronous>, transform_indices = @transform_10, window_bounds = array<i64: 9, 8, 8>}, {pipeline_mode = #tpu.pipeline_mode<synchronous>, transform_indices = @transform_11, window_bounds = array<i64: 1, 8>}, {pipeline_mode = #tpu.pipeline_mode<synchronous>, transform_indices = @transform_12, window_bounds = array<i64: 1, 8>}, {pipeline_mode = #tpu.pipeline_mode<synchronous>, transform_indices = @transform_13, window_bounds = array<i64: 4, 8>}, {pipeline_mode = #tpu.pipeline_mode<synchronous>, transform_indices = @transform_14, window_bounds = array<i64: 1, 8>}, {pipeline_mode = #tpu.pipeline_mode<synchronous>, transform_indices = @transform_15, window_bounds = array<i64: 1, 8>}, {transform_indices = @transform_16, window_bounds = array<i64: 1, 256, 8>}, {transform_indices = @transform_17, window_bounds = array<i64: 1, 256, 8>}, {transform_indices = @transform_18, window_bounds = array<i64: 1, 256, 8>}, {transform_indices = @transform_19, window_bounds = array<i64: 1, 256, 8>}]} {
    %c0 = arith.constant 0 : index
    %c0_0 = arith.constant 0 : index
    %c0_1 = arith.constant 0 : index
    %c0_2 = arith.constant 0 : index
    %0 = vector.load %arg1[%c0, %c0_0, %c0_1, %c0_2] : memref<1x16x16x4xf32, #tpu.memory_space<vmem>>, vector<1x16x16x4xf32>
    %1 = vector.shape_cast %0 : vector<1x16x16x4xf32> to vector<16x16x4xf32>
    %2 = vector.shape_cast %1 : vector<16x16x4xf32> to vector<256x4xf32>
    %3 = arith.truncf %2 : vector<256x4xf32> to vector<256x4xbf16>
    %c0_3 = arith.constant 0 : index
    %c0_4 = arith.constant 0 : index
    %4 = vector.load %arg2[%c0_3, %c0_4] : memref<4x16xbf16, #tpu.memory_space<vmem>>, vector<4x16xbf16>
    %cst = arith.constant dense<0.000000e+00> : vector<256x16xf32>
    %5 = tpu.matmul %3, %4, %cst {dimension_numbers = #tpu.dot_dimension_numbers<[1], [0], [0], [1], [0, 0, 1, 1], [], []>} : vector<256x4xbf16>, vector<4x16xbf16>, vector<256x16xf32> -> vector<256x16xf32>
    %c0_5 = arith.constant 0 : index
    %c0_6 = arith.constant 0 : index
    %6 = vector.load %arg3[%c0_5, %c0_6] : memref<1x16xf32, #tpu.memory_space<vmem>>, vector<1x16xf32>
    %7 = vector.broadcast %6 : vector<1x16xf32> to vector<256x16xf32>
    %8 = arith.mulf %5, %7 : vector<256x16xf32>
    %c0_7 = arith.constant 0 : index
    %c0_8 = arith.constant 0 : index
    %9 = vector.load %arg4[%c0_7, %c0_8] : memref<1x16xf32, #tpu.memory_space<vmem>>, vector<1x16xf32>
    %10 = vector.broadcast %9 : vector<1x16xf32> to vector<256x16xf32>
    %11 = arith.addf %8, %10 : vector<256x16xf32>
    %cst_9 = arith.constant 0.000000e+00 : f32
    %12 = vector.broadcast %cst_9 : f32 to vector<256x16xf32>
    %13 = arith.maximumf %11, %12 : vector<256x16xf32>
    %14 = vector.extract_strided_slice %13 {offsets = [0, 0], sizes = [256, 8], strides = [1, 1]} : vector<256x16xf32> to vector<256x8xf32>
    %15 = vector.extract_strided_slice %13 {offsets = [0, 8], sizes = [256, 4], strides = [1, 1]} : vector<256x16xf32> to vector<256x4xf32>
    %16 = vector.shape_cast %15 : vector<256x4xf32> to vector<16x16x4xf32>
    %17 = vector.extract_strided_slice %13 {offsets = [0, 12], sizes = [256, 4], strides = [1, 1]} : vector<256x16xf32> to vector<256x4xf32>
    %18 = vector.shape_cast %17 : vector<256x4xf32> to vector<16x16x4xf32>
    %cst_10 = arith.constant 0.000000e+00 : f32
    %19 = vector.broadcast %cst_10 : f32 to vector<256x8xf32>
    %cst_11 = arith.constant 0.000000e+00 : f32
    %20 = vector.broadcast %cst_11 : f32 to vector<2x16x4xf32>
    %21 = tpu.concatenate %20, %16, %20 in 0 : vector<2x16x4xf32>, vector<16x16x4xf32>, vector<2x16x4xf32> -> vector<20x16x4xf32>
    %22 = vector.shape_cast %21 : vector<20x16x4xf32> to vector<320x4xf32>
    %23 = tpu.iota {dimensions = array<i32: 1>} : vector<16x16x4xi32>
    %24 = vector.shape_cast %23 : vector<16x16x4xi32> to vector<256x4xi32>
    %c1_i32 = arith.constant 1 : i32
    %25 = vector.broadcast %c1_i32 : i32 to vector<256x4xi32>
    %26 = arith.cmpi sge, %24, %25 : vector<256x4xi32>
    %c14_i32 = arith.constant 14 : i32
    %27 = vector.broadcast %c14_i32 : i32 to vector<256x4xi32>
    %28 = arith.cmpi sle, %24, %27 : vector<256x4xi32>
    %29 = vector.extract_strided_slice %22 {offsets = [15, 0], sizes = [256, 4], strides = [1, 1]} : vector<320x4xf32> to vector<256x4xf32>
    %cst_12 = arith.constant 0.000000e+00 : f32
    %30 = vector.broadcast %cst_12 : f32 to vector<256x4xf32>
    %31 = arith.select %26, %29, %30 : vector<256x4xi1>, vector<256x4xf32>
    %32 = vector.extract_strided_slice %22 {offsets = [16, 0], sizes = [256, 4], strides = [1, 1]} : vector<320x4xf32> to vector<256x4xf32>
    %33 = vector.extract_strided_slice %22 {offsets = [17, 0], sizes = [256, 4], strides = [1, 1]} : vector<320x4xf32> to vector<256x4xf32>
    %cst_13 = arith.constant 0.000000e+00 : f32
    %34 = vector.broadcast %cst_13 : f32 to vector<256x4xf32>
    %35 = arith.select %28, %33, %34 : vector<256x4xi1>, vector<256x4xf32>
    %36 = vector.extract_strided_slice %22 {offsets = [31, 0], sizes = [256, 4], strides = [1, 1]} : vector<320x4xf32> to vector<256x4xf32>
    %cst_14 = arith.constant 0.000000e+00 : f32
    %37 = vector.broadcast %cst_14 : f32 to vector<256x4xf32>
    %38 = arith.select %26, %36, %37 : vector<256x4xi1>, vector<256x4xf32>
    %39 = vector.extract_strided_slice %22 {offsets = [32, 0], sizes = [256, 4], strides = [1, 1]} : vector<320x4xf32> to vector<256x4xf32>
    %40 = vector.extract_strided_slice %22 {offsets = [33, 0], sizes = [256, 4], strides = [1, 1]} : vector<320x4xf32> to vector<256x4xf32>
    %cst_15 = arith.constant 0.000000e+00 : f32
    %41 = vector.broadcast %cst_15 : f32 to vector<256x4xf32>
    %42 = arith.select %28, %40, %41 : vector<256x4xi1>, vector<256x4xf32>
    %43 = vector.extract_strided_slice %22 {offsets = [47, 0], sizes = [256, 4], strides = [1, 1]} : vector<320x4xf32> to vector<256x4xf32>
    %cst_16 = arith.constant 0.000000e+00 : f32
    %44 = vector.broadcast %cst_16 : f32 to vector<256x4xf32>
    %45 = arith.select %26, %43, %44 : vector<256x4xi1>, vector<256x4xf32>
    %46 = vector.extract_strided_slice %22 {offsets = [48, 0], sizes = [256, 4], strides = [1, 1]} : vector<320x4xf32> to vector<256x4xf32>
    %47 = vector.extract_strided_slice %22 {offsets = [49, 0], sizes = [256, 4], strides = [1, 1]} : vector<320x4xf32> to vector<256x4xf32>
    %cst_17 = arith.constant 0.000000e+00 : f32
    %48 = vector.broadcast %cst_17 : f32 to vector<256x4xf32>
    %49 = arith.select %28, %47, %48 : vector<256x4xi1>, vector<256x4xf32>
    %50 = arith.truncf %31 : vector<256x4xf32> to vector<256x4xbf16>
    %c0_18 = arith.constant 0 : index
    %c0_19 = arith.constant 0 : index
    %c0_20 = arith.constant 0 : index
    %51 = vector.load %arg5[%c0_18, %c0_19, %c0_20] : memref<9x4x8xbf16, #tpu.memory_space<vmem>>, vector<1x4x8xbf16>
    %52 = vector.shape_cast %51 : vector<1x4x8xbf16> to vector<4x8xbf16>
    %cst_21 = arith.constant dense<0.000000e+00> : vector<256x8xf32>
    %53 = tpu.matmul %50, %52, %cst_21 {dimension_numbers = #tpu.dot_dimension_numbers<[1], [0], [0], [1], [0, 0, 1, 1], [], []>} : vector<256x4xbf16>, vector<4x8xbf16>, vector<256x8xf32> -> vector<256x8xf32>
    %54 = arith.addf %19, %53 : vector<256x8xf32>
    %55 = arith.truncf %32 : vector<256x4xf32> to vector<256x4xbf16>
    %c1 = arith.constant 1 : index
    %c0_22 = arith.constant 0 : index
    %c0_23 = arith.constant 0 : index
    %56 = vector.load %arg5[%c1, %c0_22, %c0_23] : memref<9x4x8xbf16, #tpu.memory_space<vmem>>, vector<1x4x8xbf16>
    %57 = vector.shape_cast %56 : vector<1x4x8xbf16> to vector<4x8xbf16>
    %cst_24 = arith.constant dense<0.000000e+00> : vector<256x8xf32>
    %58 = tpu.matmul %55, %57, %cst_24 {dimension_numbers = #tpu.dot_dimension_numbers<[1], [0], [0], [1], [0, 0, 1, 1], [], []>} : vector<256x4xbf16>, vector<4x8xbf16>, vector<256x8xf32> -> vector<256x8xf32>
    %59 = arith.addf %54, %58 : vector<256x8xf32>
    %60 = arith.truncf %35 : vector<256x4xf32> to vector<256x4xbf16>
    %c2 = arith.constant 2 : index
    %c0_25 = arith.constant 0 : index
    %c0_26 = arith.constant 0 : index
    %61 = vector.load %arg5[%c2, %c0_25, %c0_26] : memref<9x4x8xbf16, #tpu.memory_space<vmem>>, vector<1x4x8xbf16>
    %62 = vector.shape_cast %61 : vector<1x4x8xbf16> to vector<4x8xbf16>
    %cst_27 = arith.constant dense<0.000000e+00> : vector<256x8xf32>
    %63 = tpu.matmul %60, %62, %cst_27 {dimension_numbers = #tpu.dot_dimension_numbers<[1], [0], [0], [1], [0, 0, 1, 1], [], []>} : vector<256x4xbf16>, vector<4x8xbf16>, vector<256x8xf32> -> vector<256x8xf32>
    %64 = arith.addf %59, %63 : vector<256x8xf32>
    %65 = arith.truncf %38 : vector<256x4xf32> to vector<256x4xbf16>
    %c3 = arith.constant 3 : index
    %c0_28 = arith.constant 0 : index
    %c0_29 = arith.constant 0 : index
    %66 = vector.load %arg5[%c3, %c0_28, %c0_29] : memref<9x4x8xbf16, #tpu.memory_space<vmem>>, vector<1x4x8xbf16>
    %67 = vector.shape_cast %66 : vector<1x4x8xbf16> to vector<4x8xbf16>
    %cst_30 = arith.constant dense<0.000000e+00> : vector<256x8xf32>
    %68 = tpu.matmul %65, %67, %cst_30 {dimension_numbers = #tpu.dot_dimension_numbers<[1], [0], [0], [1], [0, 0, 1, 1], [], []>} : vector<256x4xbf16>, vector<4x8xbf16>, vector<256x8xf32> -> vector<256x8xf32>
    %69 = arith.addf %64, %68 : vector<256x8xf32>
    %70 = arith.truncf %39 : vector<256x4xf32> to vector<256x4xbf16>
    %c4 = arith.constant 4 : index
    %c0_31 = arith.constant 0 : index
    %c0_32 = arith.constant 0 : index
    %71 = vector.load %arg5[%c4, %c0_31, %c0_32] : memref<9x4x8xbf16, #tpu.memory_space<vmem>>, vector<1x4x8xbf16>
    %72 = vector.shape_cast %71 : vector<1x4x8xbf16> to vector<4x8xbf16>
    %cst_33 = arith.constant dense<0.000000e+00> : vector<256x8xf32>
    %73 = tpu.matmul %70, %72, %cst_33 {dimension_numbers = #tpu.dot_dimension_numbers<[1], [0], [0], [1], [0, 0, 1, 1], [], []>} : vector<256x4xbf16>, vector<4x8xbf16>, vector<256x8xf32> -> vector<256x8xf32>
    %74 = arith.addf %69, %73 : vector<256x8xf32>
    %75 = arith.truncf %42 : vector<256x4xf32> to vector<256x4xbf16>
    %c5 = arith.constant 5 : index
    %c0_34 = arith.constant 0 : index
    %c0_35 = arith.constant 0 : index
    %76 = vector.load %arg5[%c5, %c0_34, %c0_35] : memref<9x4x8xbf16, #tpu.memory_space<vmem>>, vector<1x4x8xbf16>
    %77 = vector.shape_cast %76 : vector<1x4x8xbf16> to vector<4x8xbf16>
    %cst_36 = arith.constant dense<0.000000e+00> : vector<256x8xf32>
    %78 = tpu.matmul %75, %77, %cst_36 {dimension_numbers = #tpu.dot_dimension_numbers<[1], [0], [0], [1], [0, 0, 1, 1], [], []>} : vector<256x4xbf16>, vector<4x8xbf16>, vector<256x8xf32> -> vector<256x8xf32>
    %79 = arith.addf %74, %78 : vector<256x8xf32>
    %80 = arith.truncf %45 : vector<256x4xf32> to vector<256x4xbf16>
    %c6 = arith.constant 6 : index
    %c0_37 = arith.constant 0 : index
    %c0_38 = arith.constant 0 : index
    %81 = vector.load %arg5[%c6, %c0_37, %c0_38] : memref<9x4x8xbf16, #tpu.memory_space<vmem>>, vector<1x4x8xbf16>
    %82 = vector.shape_cast %81 : vector<1x4x8xbf16> to vector<4x8xbf16>
    %cst_39 = arith.constant dense<0.000000e+00> : vector<256x8xf32>
    %83 = tpu.matmul %80, %82, %cst_39 {dimension_numbers = #tpu.dot_dimension_numbers<[1], [0], [0], [1], [0, 0, 1, 1], [], []>} : vector<256x4xbf16>, vector<4x8xbf16>, vector<256x8xf32> -> vector<256x8xf32>
    %84 = arith.addf %79, %83 : vector<256x8xf32>
    %85 = arith.truncf %46 : vector<256x4xf32> to vector<256x4xbf16>
    %c7 = arith.constant 7 : index
    %c0_40 = arith.constant 0 : index
    %c0_41 = arith.constant 0 : index
    %86 = vector.load %arg5[%c7, %c0_40, %c0_41] : memref<9x4x8xbf16, #tpu.memory_space<vmem>>, vector<1x4x8xbf16>
    %87 = vector.shape_cast %86 : vector<1x4x8xbf16> to vector<4x8xbf16>
    %cst_42 = arith.constant dense<0.000000e+00> : vector<256x8xf32>
    %88 = tpu.matmul %85, %87, %cst_42 {dimension_numbers = #tpu.dot_dimension_numbers<[1], [0], [0], [1], [0, 0, 1, 1], [], []>} : vector<256x4xbf16>, vector<4x8xbf16>, vector<256x8xf32> -> vector<256x8xf32>
    %89 = arith.addf %84, %88 : vector<256x8xf32>
    %90 = arith.truncf %49 : vector<256x4xf32> to vector<256x4xbf16>
    %c8 = arith.constant 8 : index
    %c0_43 = arith.constant 0 : index
    %c0_44 = arith.constant 0 : index
    %91 = vector.load %arg5[%c8, %c0_43, %c0_44] : memref<9x4x8xbf16, #tpu.memory_space<vmem>>, vector<1x4x8xbf16>
    %92 = vector.shape_cast %91 : vector<1x4x8xbf16> to vector<4x8xbf16>
    %cst_45 = arith.constant dense<0.000000e+00> : vector<256x8xf32>
    %93 = tpu.matmul %90, %92, %cst_45 {dimension_numbers = #tpu.dot_dimension_numbers<[1], [0], [0], [1], [0, 0, 1, 1], [], []>} : vector<256x4xbf16>, vector<4x8xbf16>, vector<256x8xf32> -> vector<256x8xf32>
    %94 = arith.addf %89, %93 : vector<256x8xf32>
    %c0_46 = arith.constant 0 : index
    %c0_47 = arith.constant 0 : index
    %95 = vector.load %arg6[%c0_46, %c0_47] : memref<1x8xf32, #tpu.memory_space<vmem>>, vector<1x8xf32>
    %96 = vector.broadcast %95 : vector<1x8xf32> to vector<256x8xf32>
    %97 = arith.mulf %94, %96 : vector<256x8xf32>
    %c0_48 = arith.constant 0 : index
    %c0_49 = arith.constant 0 : index
    %98 = vector.load %arg7[%c0_48, %c0_49] : memref<1x8xf32, #tpu.memory_space<vmem>>, vector<1x8xf32>
    %99 = vector.broadcast %98 : vector<1x8xf32> to vector<256x8xf32>
    %100 = arith.addf %97, %99 : vector<256x8xf32>
    %cst_50 = arith.constant 0.000000e+00 : f32
    %101 = vector.broadcast %cst_50 : f32 to vector<256x8xf32>
    %102 = arith.maximumf %100, %101 : vector<256x8xf32>
    %cst_51 = arith.constant 0.000000e+00 : f32
    %103 = vector.broadcast %cst_51 : f32 to vector<256x8xf32>
    %cst_52 = arith.constant 0.000000e+00 : f32
    %104 = vector.broadcast %cst_52 : f32 to vector<2x16x4xf32>
    %105 = tpu.concatenate %104, %18, %104 in 0 : vector<2x16x4xf32>, vector<16x16x4xf32>, vector<2x16x4xf32> -> vector<20x16x4xf32>
    %106 = vector.shape_cast %105 : vector<20x16x4xf32> to vector<320x4xf32>
    %107 = tpu.iota {dimensions = array<i32: 1>} : vector<16x16x4xi32>
    %108 = vector.shape_cast %107 : vector<16x16x4xi32> to vector<256x4xi32>
    %c1_i32_53 = arith.constant 1 : i32
    %109 = vector.broadcast %c1_i32_53 : i32 to vector<256x4xi32>
    %110 = arith.cmpi sge, %108, %109 : vector<256x4xi32>
    %c14_i32_54 = arith.constant 14 : i32
    %111 = vector.broadcast %c14_i32_54 : i32 to vector<256x4xi32>
    %112 = arith.cmpi sle, %108, %111 : vector<256x4xi32>
    %113 = vector.extract_strided_slice %106 {offsets = [15, 0], sizes = [256, 4], strides = [1, 1]} : vector<320x4xf32> to vector<256x4xf32>
    %cst_55 = arith.constant 0.000000e+00 : f32
    %114 = vector.broadcast %cst_55 : f32 to vector<256x4xf32>
    %115 = arith.select %110, %113, %114 : vector<256x4xi1>, vector<256x4xf32>
    %116 = vector.extract_strided_slice %106 {offsets = [16, 0], sizes = [256, 4], strides = [1, 1]} : vector<320x4xf32> to vector<256x4xf32>
    %117 = vector.extract_strided_slice %106 {offsets = [17, 0], sizes = [256, 4], strides = [1, 1]} : vector<320x4xf32> to vector<256x4xf32>
    %cst_56 = arith.constant 0.000000e+00 : f32
    %118 = vector.broadcast %cst_56 : f32 to vector<256x4xf32>
    %119 = arith.select %112, %117, %118 : vector<256x4xi1>, vector<256x4xf32>
    %120 = vector.extract_strided_slice %106 {offsets = [31, 0], sizes = [256, 4], strides = [1, 1]} : vector<320x4xf32> to vector<256x4xf32>
    %cst_57 = arith.constant 0.000000e+00 : f32
    %121 = vector.broadcast %cst_57 : f32 to vector<256x4xf32>
    %122 = arith.select %110, %120, %121 : vector<256x4xi1>, vector<256x4xf32>
    %123 = vector.extract_strided_slice %106 {offsets = [32, 0], sizes = [256, 4], strides = [1, 1]} : vector<320x4xf32> to vector<256x4xf32>
    %124 = vector.extract_strided_slice %106 {offsets = [33, 0], sizes = [256, 4], strides = [1, 1]} : vector<320x4xf32> to vector<256x4xf32>
    %cst_58 = arith.constant 0.000000e+00 : f32
    %125 = vector.broadcast %cst_58 : f32 to vector<256x4xf32>
    %126 = arith.select %112, %124, %125 : vector<256x4xi1>, vector<256x4xf32>
    %127 = vector.extract_strided_slice %106 {offsets = [47, 0], sizes = [256, 4], strides = [1, 1]} : vector<320x4xf32> to vector<256x4xf32>
    %cst_59 = arith.constant 0.000000e+00 : f32
    %128 = vector.broadcast %cst_59 : f32 to vector<256x4xf32>
    %129 = arith.select %110, %127, %128 : vector<256x4xi1>, vector<256x4xf32>
    %130 = vector.extract_strided_slice %106 {offsets = [48, 0], sizes = [256, 4], strides = [1, 1]} : vector<320x4xf32> to vector<256x4xf32>
    %131 = vector.extract_strided_slice %106 {offsets = [49, 0], sizes = [256, 4], strides = [1, 1]} : vector<320x4xf32> to vector<256x4xf32>
    %cst_60 = arith.constant 0.000000e+00 : f32
    %132 = vector.broadcast %cst_60 : f32 to vector<256x4xf32>
    %133 = arith.select %112, %131, %132 : vector<256x4xi1>, vector<256x4xf32>
    %134 = arith.truncf %115 : vector<256x4xf32> to vector<256x4xbf16>
    %c0_61 = arith.constant 0 : index
    %c0_62 = arith.constant 0 : index
    %c0_63 = arith.constant 0 : index
    %135 = vector.load %arg8[%c0_61, %c0_62, %c0_63] : memref<9x4x8xbf16, #tpu.memory_space<vmem>>, vector<1x4x8xbf16>
    %136 = vector.shape_cast %135 : vector<1x4x8xbf16> to vector<4x8xbf16>
    %cst_64 = arith.constant dense<0.000000e+00> : vector<256x8xf32>
    %137 = tpu.matmul %134, %136, %cst_64 {dimension_numbers = #tpu.dot_dimension_numbers<[1], [0], [0], [1], [0, 0, 1, 1], [], []>} : vector<256x4xbf16>, vector<4x8xbf16>, vector<256x8xf32> -> vector<256x8xf32>
    %138 = arith.addf %103, %137 : vector<256x8xf32>
    %139 = arith.truncf %116 : vector<256x4xf32> to vector<256x4xbf16>
    %c1_65 = arith.constant 1 : index
    %c0_66 = arith.constant 0 : index
    %c0_67 = arith.constant 0 : index
    %140 = vector.load %arg8[%c1_65, %c0_66, %c0_67] : memref<9x4x8xbf16, #tpu.memory_space<vmem>>, vector<1x4x8xbf16>
    %141 = vector.shape_cast %140 : vector<1x4x8xbf16> to vector<4x8xbf16>
    %cst_68 = arith.constant dense<0.000000e+00> : vector<256x8xf32>
    %142 = tpu.matmul %139, %141, %cst_68 {dimension_numbers = #tpu.dot_dimension_numbers<[1], [0], [0], [1], [0, 0, 1, 1], [], []>} : vector<256x4xbf16>, vector<4x8xbf16>, vector<256x8xf32> -> vector<256x8xf32>
    %143 = arith.addf %138, %142 : vector<256x8xf32>
    %144 = arith.truncf %119 : vector<256x4xf32> to vector<256x4xbf16>
    %c2_69 = arith.constant 2 : index
    %c0_70 = arith.constant 0 : index
    %c0_71 = arith.constant 0 : index
    %145 = vector.load %arg8[%c2_69, %c0_70, %c0_71] : memref<9x4x8xbf16, #tpu.memory_space<vmem>>, vector<1x4x8xbf16>
    %146 = vector.shape_cast %145 : vector<1x4x8xbf16> to vector<4x8xbf16>
    %cst_72 = arith.constant dense<0.000000e+00> : vector<256x8xf32>
    %147 = tpu.matmul %144, %146, %cst_72 {dimension_numbers = #tpu.dot_dimension_numbers<[1], [0], [0], [1], [0, 0, 1, 1], [], []>} : vector<256x4xbf16>, vector<4x8xbf16>, vector<256x8xf32> -> vector<256x8xf32>
    %148 = arith.addf %143, %147 : vector<256x8xf32>
    %149 = arith.truncf %122 : vector<256x4xf32> to vector<256x4xbf16>
    %c3_73 = arith.constant 3 : index
    %c0_74 = arith.constant 0 : index
    %c0_75 = arith.constant 0 : index
    %150 = vector.load %arg8[%c3_73, %c0_74, %c0_75] : memref<9x4x8xbf16, #tpu.memory_space<vmem>>, vector<1x4x8xbf16>
    %151 = vector.shape_cast %150 : vector<1x4x8xbf16> to vector<4x8xbf16>
    %cst_76 = arith.constant dense<0.000000e+00> : vector<256x8xf32>
    %152 = tpu.matmul %149, %151, %cst_76 {dimension_numbers = #tpu.dot_dimension_numbers<[1], [0], [0], [1], [0, 0, 1, 1], [], []>} : vector<256x4xbf16>, vector<4x8xbf16>, vector<256x8xf32> -> vector<256x8xf32>
    %153 = arith.addf %148, %152 : vector<256x8xf32>
    %154 = arith.truncf %123 : vector<256x4xf32> to vector<256x4xbf16>
    %c4_77 = arith.constant 4 : index
    %c0_78 = arith.constant 0 : index
    %c0_79 = arith.constant 0 : index
    %155 = vector.load %arg8[%c4_77, %c0_78, %c0_79] : memref<9x4x8xbf16, #tpu.memory_space<vmem>>, vector<1x4x8xbf16>
    %156 = vector.shape_cast %155 : vector<1x4x8xbf16> to vector<4x8xbf16>
    %cst_80 = arith.constant dense<0.000000e+00> : vector<256x8xf32>
    %157 = tpu.matmul %154, %156, %cst_80 {dimension_numbers = #tpu.dot_dimension_numbers<[1], [0], [0], [1], [0, 0, 1, 1], [], []>} : vector<256x4xbf16>, vector<4x8xbf16>, vector<256x8xf32> -> vector<256x8xf32>
    %158 = arith.addf %153, %157 : vector<256x8xf32>
    %159 = arith.truncf %126 : vector<256x4xf32> to vector<256x4xbf16>
    %c5_81 = arith.constant 5 : index
    %c0_82 = arith.constant 0 : index
    %c0_83 = arith.constant 0 : index
    %160 = vector.load %arg8[%c5_81, %c0_82, %c0_83] : memref<9x4x8xbf16, #tpu.memory_space<vmem>>, vector<1x4x8xbf16>
    %161 = vector.shape_cast %160 : vector<1x4x8xbf16> to vector<4x8xbf16>
    %cst_84 = arith.constant dense<0.000000e+00> : vector<256x8xf32>
    %162 = tpu.matmul %159, %161, %cst_84 {dimension_numbers = #tpu.dot_dimension_numbers<[1], [0], [0], [1], [0, 0, 1, 1], [], []>} : vector<256x4xbf16>, vector<4x8xbf16>, vector<256x8xf32> -> vector<256x8xf32>
    %163 = arith.addf %158, %162 : vector<256x8xf32>
    %164 = arith.truncf %129 : vector<256x4xf32> to vector<256x4xbf16>
    %c6_85 = arith.constant 6 : index
    %c0_86 = arith.constant 0 : index
    %c0_87 = arith.constant 0 : index
    %165 = vector.load %arg8[%c6_85, %c0_86, %c0_87] : memref<9x4x8xbf16, #tpu.memory_space<vmem>>, vector<1x4x8xbf16>
    %166 = vector.shape_cast %165 : vector<1x4x8xbf16> to vector<4x8xbf16>
    %cst_88 = arith.constant dense<0.000000e+00> : vector<256x8xf32>
    %167 = tpu.matmul %164, %166, %cst_88 {dimension_numbers = #tpu.dot_dimension_numbers<[1], [0], [0], [1], [0, 0, 1, 1], [], []>} : vector<256x4xbf16>, vector<4x8xbf16>, vector<256x8xf32> -> vector<256x8xf32>
    %168 = arith.addf %163, %167 : vector<256x8xf32>
    %169 = arith.truncf %130 : vector<256x4xf32> to vector<256x4xbf16>
    %c7_89 = arith.constant 7 : index
    %c0_90 = arith.constant 0 : index
    %c0_91 = arith.constant 0 : index
    %170 = vector.load %arg8[%c7_89, %c0_90, %c0_91] : memref<9x4x8xbf16, #tpu.memory_space<vmem>>, vector<1x4x8xbf16>
    %171 = vector.shape_cast %170 : vector<1x4x8xbf16> to vector<4x8xbf16>
    %cst_92 = arith.constant dense<0.000000e+00> : vector<256x8xf32>
    %172 = tpu.matmul %169, %171, %cst_92 {dimension_numbers = #tpu.dot_dimension_numbers<[1], [0], [0], [1], [0, 0, 1, 1], [], []>} : vector<256x4xbf16>, vector<4x8xbf16>, vector<256x8xf32> -> vector<256x8xf32>
    %173 = arith.addf %168, %172 : vector<256x8xf32>
    %174 = arith.truncf %133 : vector<256x4xf32> to vector<256x4xbf16>
    %c8_93 = arith.constant 8 : index
    %c0_94 = arith.constant 0 : index
    %c0_95 = arith.constant 0 : index
    %175 = vector.load %arg8[%c8_93, %c0_94, %c0_95] : memref<9x4x8xbf16, #tpu.memory_space<vmem>>, vector<1x4x8xbf16>
    %176 = vector.shape_cast %175 : vector<1x4x8xbf16> to vector<4x8xbf16>
    %cst_96 = arith.constant dense<0.000000e+00> : vector<256x8xf32>
    %177 = tpu.matmul %174, %176, %cst_96 {dimension_numbers = #tpu.dot_dimension_numbers<[1], [0], [0], [1], [0, 0, 1, 1], [], []>} : vector<256x4xbf16>, vector<4x8xbf16>, vector<256x8xf32> -> vector<256x8xf32>
    %178 = arith.addf %173, %177 : vector<256x8xf32>
    %c0_97 = arith.constant 0 : index
    %c0_98 = arith.constant 0 : index
    %179 = vector.load %arg9[%c0_97, %c0_98] : memref<1x8xf32, #tpu.memory_space<vmem>>, vector<1x8xf32>
    %180 = vector.broadcast %179 : vector<1x8xf32> to vector<256x8xf32>
    %181 = arith.mulf %178, %180 : vector<256x8xf32>
    %c0_99 = arith.constant 0 : index
    %c0_100 = arith.constant 0 : index
    %182 = vector.load %arg10[%c0_99, %c0_100] : memref<1x8xf32, #tpu.memory_space<vmem>>, vector<1x8xf32>
    %183 = vector.broadcast %182 : vector<1x8xf32> to vector<256x8xf32>
    %184 = arith.addf %181, %183 : vector<256x8xf32>
    %cst_101 = arith.constant 0.000000e+00 : f32
    %185 = vector.broadcast %cst_101 : f32 to vector<256x8xf32>
    %186 = arith.maximumf %184, %185 : vector<256x8xf32>
    %187 = vector.shape_cast %186 : vector<256x8xf32> to vector<16x16x8xf32>
    %cst_102 = arith.constant 0.000000e+00 : f32
    %188 = vector.broadcast %cst_102 : f32 to vector<256x8xf32>
    %cst_103 = arith.constant 0.000000e+00 : f32
    %189 = vector.broadcast %cst_103 : f32 to vector<2x16x8xf32>
    %190 = tpu.concatenate %189, %187, %189 in 0 : vector<2x16x8xf32>, vector<16x16x8xf32>, vector<2x16x8xf32> -> vector<20x16x8xf32>
    %191 = vector.shape_cast %190 : vector<20x16x8xf32> to vector<320x8xf32>
    %192 = tpu.iota {dimensions = array<i32: 1>} : vector<16x16x8xi32>
    %193 = vector.shape_cast %192 : vector<16x16x8xi32> to vector<256x8xi32>
    %c1_i32_104 = arith.constant 1 : i32
    %194 = vector.broadcast %c1_i32_104 : i32 to vector<256x8xi32>
    %195 = arith.cmpi sge, %193, %194 : vector<256x8xi32>
    %c14_i32_105 = arith.constant 14 : i32
    %196 = vector.broadcast %c14_i32_105 : i32 to vector<256x8xi32>
    %197 = arith.cmpi sle, %193, %196 : vector<256x8xi32>
    %198 = vector.extract_strided_slice %191 {offsets = [15, 0], sizes = [256, 8], strides = [1, 1]} : vector<320x8xf32> to vector<256x8xf32>
    %cst_106 = arith.constant 0.000000e+00 : f32
    %199 = vector.broadcast %cst_106 : f32 to vector<256x8xf32>
    %200 = arith.select %195, %198, %199 : vector<256x8xi1>, vector<256x8xf32>
    %201 = vector.extract_strided_slice %191 {offsets = [16, 0], sizes = [256, 8], strides = [1, 1]} : vector<320x8xf32> to vector<256x8xf32>
    %202 = vector.extract_strided_slice %191 {offsets = [17, 0], sizes = [256, 8], strides = [1, 1]} : vector<320x8xf32> to vector<256x8xf32>
    %cst_107 = arith.constant 0.000000e+00 : f32
    %203 = vector.broadcast %cst_107 : f32 to vector<256x8xf32>
    %204 = arith.select %197, %202, %203 : vector<256x8xi1>, vector<256x8xf32>
    %205 = vector.extract_strided_slice %191 {offsets = [31, 0], sizes = [256, 8], strides = [1, 1]} : vector<320x8xf32> to vector<256x8xf32>
    %cst_108 = arith.constant 0.000000e+00 : f32
    %206 = vector.broadcast %cst_108 : f32 to vector<256x8xf32>
    %207 = arith.select %195, %205, %206 : vector<256x8xi1>, vector<256x8xf32>
    %208 = vector.extract_strided_slice %191 {offsets = [32, 0], sizes = [256, 8], strides = [1, 1]} : vector<320x8xf32> to vector<256x8xf32>
    %209 = vector.extract_strided_slice %191 {offsets = [33, 0], sizes = [256, 8], strides = [1, 1]} : vector<320x8xf32> to vector<256x8xf32>
    %cst_109 = arith.constant 0.000000e+00 : f32
    %210 = vector.broadcast %cst_109 : f32 to vector<256x8xf32>
    %211 = arith.select %197, %209, %210 : vector<256x8xi1>, vector<256x8xf32>
    %212 = vector.extract_strided_slice %191 {offsets = [47, 0], sizes = [256, 8], strides = [1, 1]} : vector<320x8xf32> to vector<256x8xf32>
    %cst_110 = arith.constant 0.000000e+00 : f32
    %213 = vector.broadcast %cst_110 : f32 to vector<256x8xf32>
    %214 = arith.select %195, %212, %213 : vector<256x8xi1>, vector<256x8xf32>
    %215 = vector.extract_strided_slice %191 {offsets = [48, 0], sizes = [256, 8], strides = [1, 1]} : vector<320x8xf32> to vector<256x8xf32>
    %216 = vector.extract_strided_slice %191 {offsets = [49, 0], sizes = [256, 8], strides = [1, 1]} : vector<320x8xf32> to vector<256x8xf32>
    %cst_111 = arith.constant 0.000000e+00 : f32
    %217 = vector.broadcast %cst_111 : f32 to vector<256x8xf32>
    %218 = arith.select %197, %216, %217 : vector<256x8xi1>, vector<256x8xf32>
    %219 = arith.truncf %200 : vector<256x8xf32> to vector<256x8xbf16>
    %c0_112 = arith.constant 0 : index
    %c0_113 = arith.constant 0 : index
    %c0_114 = arith.constant 0 : index
    %220 = vector.load %arg11[%c0_112, %c0_113, %c0_114] : memref<9x8x8xbf16, #tpu.memory_space<vmem>>, vector<1x8x8xbf16>
    %221 = vector.shape_cast %220 : vector<1x8x8xbf16> to vector<8x8xbf16>
    %cst_115 = arith.constant dense<0.000000e+00> : vector<256x8xf32>
    %222 = tpu.matmul %219, %221, %cst_115 {dimension_numbers = #tpu.dot_dimension_numbers<[1], [0], [0], [1], [0, 0, 1, 1], [], []>} : vector<256x8xbf16>, vector<8x8xbf16>, vector<256x8xf32> -> vector<256x8xf32>
    %223 = arith.addf %188, %222 : vector<256x8xf32>
    %224 = arith.truncf %201 : vector<256x8xf32> to vector<256x8xbf16>
    %c1_116 = arith.constant 1 : index
    %c0_117 = arith.constant 0 : index
    %c0_118 = arith.constant 0 : index
    %225 = vector.load %arg11[%c1_116, %c0_117, %c0_118] : memref<9x8x8xbf16, #tpu.memory_space<vmem>>, vector<1x8x8xbf16>
    %226 = vector.shape_cast %225 : vector<1x8x8xbf16> to vector<8x8xbf16>
    %cst_119 = arith.constant dense<0.000000e+00> : vector<256x8xf32>
    %227 = tpu.matmul %224, %226, %cst_119 {dimension_numbers = #tpu.dot_dimension_numbers<[1], [0], [0], [1], [0, 0, 1, 1], [], []>} : vector<256x8xbf16>, vector<8x8xbf16>, vector<256x8xf32> -> vector<256x8xf32>
    %228 = arith.addf %223, %227 : vector<256x8xf32>
    %229 = arith.truncf %204 : vector<256x8xf32> to vector<256x8xbf16>
    %c2_120 = arith.constant 2 : index
    %c0_121 = arith.constant 0 : index
    %c0_122 = arith.constant 0 : index
    %230 = vector.load %arg11[%c2_120, %c0_121, %c0_122] : memref<9x8x8xbf16, #tpu.memory_space<vmem>>, vector<1x8x8xbf16>
    %231 = vector.shape_cast %230 : vector<1x8x8xbf16> to vector<8x8xbf16>
    %cst_123 = arith.constant dense<0.000000e+00> : vector<256x8xf32>
    %232 = tpu.matmul %229, %231, %cst_123 {dimension_numbers = #tpu.dot_dimension_numbers<[1], [0], [0], [1], [0, 0, 1, 1], [], []>} : vector<256x8xbf16>, vector<8x8xbf16>, vector<256x8xf32> -> vector<256x8xf32>
    %233 = arith.addf %228, %232 : vector<256x8xf32>
    %234 = arith.truncf %207 : vector<256x8xf32> to vector<256x8xbf16>
    %c3_124 = arith.constant 3 : index
    %c0_125 = arith.constant 0 : index
    %c0_126 = arith.constant 0 : index
    %235 = vector.load %arg11[%c3_124, %c0_125, %c0_126] : memref<9x8x8xbf16, #tpu.memory_space<vmem>>, vector<1x8x8xbf16>
    %236 = vector.shape_cast %235 : vector<1x8x8xbf16> to vector<8x8xbf16>
    %cst_127 = arith.constant dense<0.000000e+00> : vector<256x8xf32>
    %237 = tpu.matmul %234, %236, %cst_127 {dimension_numbers = #tpu.dot_dimension_numbers<[1], [0], [0], [1], [0, 0, 1, 1], [], []>} : vector<256x8xbf16>, vector<8x8xbf16>, vector<256x8xf32> -> vector<256x8xf32>
    %238 = arith.addf %233, %237 : vector<256x8xf32>
    %239 = arith.truncf %208 : vector<256x8xf32> to vector<256x8xbf16>
    %c4_128 = arith.constant 4 : index
    %c0_129 = arith.constant 0 : index
    %c0_130 = arith.constant 0 : index
    %240 = vector.load %arg11[%c4_128, %c0_129, %c0_130] : memref<9x8x8xbf16, #tpu.memory_space<vmem>>, vector<1x8x8xbf16>
    %241 = vector.shape_cast %240 : vector<1x8x8xbf16> to vector<8x8xbf16>
    %cst_131 = arith.constant dense<0.000000e+00> : vector<256x8xf32>
    %242 = tpu.matmul %239, %241, %cst_131 {dimension_numbers = #tpu.dot_dimension_numbers<[1], [0], [0], [1], [0, 0, 1, 1], [], []>} : vector<256x8xbf16>, vector<8x8xbf16>, vector<256x8xf32> -> vector<256x8xf32>
    %243 = arith.addf %238, %242 : vector<256x8xf32>
    %244 = arith.truncf %211 : vector<256x8xf32> to vector<256x8xbf16>
    %c5_132 = arith.constant 5 : index
    %c0_133 = arith.constant 0 : index
    %c0_134 = arith.constant 0 : index
    %245 = vector.load %arg11[%c5_132, %c0_133, %c0_134] : memref<9x8x8xbf16, #tpu.memory_space<vmem>>, vector<1x8x8xbf16>
    %246 = vector.shape_cast %245 : vector<1x8x8xbf16> to vector<8x8xbf16>
    %cst_135 = arith.constant dense<0.000000e+00> : vector<256x8xf32>
    %247 = tpu.matmul %244, %246, %cst_135 {dimension_numbers = #tpu.dot_dimension_numbers<[1], [0], [0], [1], [0, 0, 1, 1], [], []>} : vector<256x8xbf16>, vector<8x8xbf16>, vector<256x8xf32> -> vector<256x8xf32>
    %248 = arith.addf %243, %247 : vector<256x8xf32>
    %249 = arith.truncf %214 : vector<256x8xf32> to vector<256x8xbf16>
    %c6_136 = arith.constant 6 : index
    %c0_137 = arith.constant 0 : index
    %c0_138 = arith.constant 0 : index
    %250 = vector.load %arg11[%c6_136, %c0_137, %c0_138] : memref<9x8x8xbf16, #tpu.memory_space<vmem>>, vector<1x8x8xbf16>
    %251 = vector.shape_cast %250 : vector<1x8x8xbf16> to vector<8x8xbf16>
    %cst_139 = arith.constant dense<0.000000e+00> : vector<256x8xf32>
    %252 = tpu.matmul %249, %251, %cst_139 {dimension_numbers = #tpu.dot_dimension_numbers<[1], [0], [0], [1], [0, 0, 1, 1], [], []>} : vector<256x8xbf16>, vector<8x8xbf16>, vector<256x8xf32> -> vector<256x8xf32>
    %253 = arith.addf %248, %252 : vector<256x8xf32>
    %254 = arith.truncf %215 : vector<256x8xf32> to vector<256x8xbf16>
    %c7_140 = arith.constant 7 : index
    %c0_141 = arith.constant 0 : index
    %c0_142 = arith.constant 0 : index
    %255 = vector.load %arg11[%c7_140, %c0_141, %c0_142] : memref<9x8x8xbf16, #tpu.memory_space<vmem>>, vector<1x8x8xbf16>
    %256 = vector.shape_cast %255 : vector<1x8x8xbf16> to vector<8x8xbf16>
    %cst_143 = arith.constant dense<0.000000e+00> : vector<256x8xf32>
    %257 = tpu.matmul %254, %256, %cst_143 {dimension_numbers = #tpu.dot_dimension_numbers<[1], [0], [0], [1], [0, 0, 1, 1], [], []>} : vector<256x8xbf16>, vector<8x8xbf16>, vector<256x8xf32> -> vector<256x8xf32>
    %258 = arith.addf %253, %257 : vector<256x8xf32>
    %259 = arith.truncf %218 : vector<256x8xf32> to vector<256x8xbf16>
    %c8_144 = arith.constant 8 : index
    %c0_145 = arith.constant 0 : index
    %c0_146 = arith.constant 0 : index
    %260 = vector.load %arg11[%c8_144, %c0_145, %c0_146] : memref<9x8x8xbf16, #tpu.memory_space<vmem>>, vector<1x8x8xbf16>
    %261 = vector.shape_cast %260 : vector<1x8x8xbf16> to vector<8x8xbf16>
    %cst_147 = arith.constant dense<0.000000e+00> : vector<256x8xf32>
    %262 = tpu.matmul %259, %261, %cst_147 {dimension_numbers = #tpu.dot_dimension_numbers<[1], [0], [0], [1], [0, 0, 1, 1], [], []>} : vector<256x8xbf16>, vector<8x8xbf16>, vector<256x8xf32> -> vector<256x8xf32>
    %263 = arith.addf %258, %262 : vector<256x8xf32>
    %c0_148 = arith.constant 0 : index
    %c0_149 = arith.constant 0 : index
    %264 = vector.load %arg12[%c0_148, %c0_149] : memref<1x8xf32, #tpu.memory_space<vmem>>, vector<1x8xf32>
    %265 = vector.broadcast %264 : vector<1x8xf32> to vector<256x8xf32>
    %266 = arith.mulf %263, %265 : vector<256x8xf32>
    %c0_150 = arith.constant 0 : index
    %c0_151 = arith.constant 0 : index
    %267 = vector.load %arg13[%c0_150, %c0_151] : memref<1x8xf32, #tpu.memory_space<vmem>>, vector<1x8xf32>
    %268 = vector.broadcast %267 : vector<1x8xf32> to vector<256x8xf32>
    %269 = arith.addf %266, %268 : vector<256x8xf32>
    %cst_152 = arith.constant 0.000000e+00 : f32
    %270 = vector.broadcast %cst_152 : f32 to vector<256x8xf32>
    %271 = arith.maximumf %269, %270 : vector<256x8xf32>
    %cst_153 = arith.constant 0xFF800000 : f32
    %272 = vector.broadcast %cst_153 : f32 to vector<2x16x4xf32>
    %273 = tpu.concatenate %272, %1, %272 in 0 : vector<2x16x4xf32>, vector<16x16x4xf32>, vector<2x16x4xf32> -> vector<20x16x4xf32>
    %274 = vector.shape_cast %273 : vector<20x16x4xf32> to vector<320x4xf32>
    %275 = tpu.iota {dimensions = array<i32: 1>} : vector<16x16x4xi32>
    %276 = vector.shape_cast %275 : vector<16x16x4xi32> to vector<256x4xi32>
    %c1_i32_154 = arith.constant 1 : i32
    %277 = vector.broadcast %c1_i32_154 : i32 to vector<256x4xi32>
    %278 = arith.cmpi sge, %276, %277 : vector<256x4xi32>
    %c14_i32_155 = arith.constant 14 : i32
    %279 = vector.broadcast %c14_i32_155 : i32 to vector<256x4xi32>
    %280 = arith.cmpi sle, %276, %279 : vector<256x4xi32>
    %281 = vector.extract_strided_slice %274 {offsets = [15, 0], sizes = [256, 4], strides = [1, 1]} : vector<320x4xf32> to vector<256x4xf32>
    %cst_156 = arith.constant 0xFF800000 : f32
    %282 = vector.broadcast %cst_156 : f32 to vector<256x4xf32>
    %283 = arith.select %278, %281, %282 : vector<256x4xi1>, vector<256x4xf32>
    %284 = vector.extract_strided_slice %274 {offsets = [16, 0], sizes = [256, 4], strides = [1, 1]} : vector<320x4xf32> to vector<256x4xf32>
    %285 = vector.extract_strided_slice %274 {offsets = [17, 0], sizes = [256, 4], strides = [1, 1]} : vector<320x4xf32> to vector<256x4xf32>
    %cst_157 = arith.constant 0xFF800000 : f32
    %286 = vector.broadcast %cst_157 : f32 to vector<256x4xf32>
    %287 = arith.select %280, %285, %286 : vector<256x4xi1>, vector<256x4xf32>
    %288 = vector.extract_strided_slice %274 {offsets = [31, 0], sizes = [256, 4], strides = [1, 1]} : vector<320x4xf32> to vector<256x4xf32>
    %cst_158 = arith.constant 0xFF800000 : f32
    %289 = vector.broadcast %cst_158 : f32 to vector<256x4xf32>
    %290 = arith.select %278, %288, %289 : vector<256x4xi1>, vector<256x4xf32>
    %291 = vector.extract_strided_slice %274 {offsets = [32, 0], sizes = [256, 4], strides = [1, 1]} : vector<320x4xf32> to vector<256x4xf32>
    %292 = vector.extract_strided_slice %274 {offsets = [33, 0], sizes = [256, 4], strides = [1, 1]} : vector<320x4xf32> to vector<256x4xf32>
    %cst_159 = arith.constant 0xFF800000 : f32
    %293 = vector.broadcast %cst_159 : f32 to vector<256x4xf32>
    %294 = arith.select %280, %292, %293 : vector<256x4xi1>, vector<256x4xf32>
    %295 = vector.extract_strided_slice %274 {offsets = [47, 0], sizes = [256, 4], strides = [1, 1]} : vector<320x4xf32> to vector<256x4xf32>
    %cst_160 = arith.constant 0xFF800000 : f32
    %296 = vector.broadcast %cst_160 : f32 to vector<256x4xf32>
    %297 = arith.select %278, %295, %296 : vector<256x4xi1>, vector<256x4xf32>
    %298 = vector.extract_strided_slice %274 {offsets = [48, 0], sizes = [256, 4], strides = [1, 1]} : vector<320x4xf32> to vector<256x4xf32>
    %299 = vector.extract_strided_slice %274 {offsets = [49, 0], sizes = [256, 4], strides = [1, 1]} : vector<320x4xf32> to vector<256x4xf32>
    %cst_161 = arith.constant 0xFF800000 : f32
    %300 = vector.broadcast %cst_161 : f32 to vector<256x4xf32>
    %301 = arith.select %280, %299, %300 : vector<256x4xi1>, vector<256x4xf32>
    %302 = arith.maximumf %283, %284 : vector<256x4xf32>
    %303 = arith.maximumf %302, %287 : vector<256x4xf32>
    %304 = arith.maximumf %303, %290 : vector<256x4xf32>
    %305 = arith.maximumf %304, %291 : vector<256x4xf32>
    %306 = arith.maximumf %305, %294 : vector<256x4xf32>
    %307 = arith.maximumf %306, %297 : vector<256x4xf32>
    %308 = arith.maximumf %307, %298 : vector<256x4xf32>
    %309 = arith.maximumf %308, %301 : vector<256x4xf32>
    %310 = arith.truncf %309 : vector<256x4xf32> to vector<256x4xbf16>
    %c0_162 = arith.constant 0 : index
    %c0_163 = arith.constant 0 : index
    %311 = vector.load %arg14[%c0_162, %c0_163] : memref<4x8xbf16, #tpu.memory_space<vmem>>, vector<4x8xbf16>
    %cst_164 = arith.constant dense<0.000000e+00> : vector<256x8xf32>
    %312 = tpu.matmul %310, %311, %cst_164 {dimension_numbers = #tpu.dot_dimension_numbers<[1], [0], [0], [1], [0, 0, 1, 1], [], []>} : vector<256x4xbf16>, vector<4x8xbf16>, vector<256x8xf32> -> vector<256x8xf32>
    %c0_165 = arith.constant 0 : index
    %c0_166 = arith.constant 0 : index
    %313 = vector.load %arg15[%c0_165, %c0_166] : memref<1x8xf32, #tpu.memory_space<vmem>>, vector<1x8xf32>
    %314 = vector.broadcast %313 : vector<1x8xf32> to vector<256x8xf32>
    %315 = arith.mulf %312, %314 : vector<256x8xf32>
    %c0_167 = arith.constant 0 : index
    %c0_168 = arith.constant 0 : index
    %316 = vector.load %arg16[%c0_167, %c0_168] : memref<1x8xf32, #tpu.memory_space<vmem>>, vector<1x8xf32>
    %317 = vector.broadcast %316 : vector<1x8xf32> to vector<256x8xf32>
    %318 = arith.addf %315, %317 : vector<256x8xf32>
    %cst_169 = arith.constant 0.000000e+00 : f32
    %319 = vector.broadcast %cst_169 : f32 to vector<256x8xf32>
    %320 = arith.maximumf %318, %319 : vector<256x8xf32>
    %c0_170 = arith.constant 0 : index
    %c0_171 = arith.constant 0 : index
    %c0_172 = arith.constant 0 : index
    %321 = vector.load %arg17[%c0_170, %c0_171, %c0_172] : memref<1x256x8xf32, #tpu.memory_space<vmem>>, vector<1x256x8xf32>
    %322 = vector.shape_cast %321 : vector<1x256x8xf32> to vector<256x8xf32>
    %323 = vector.shape_cast %14 : vector<256x8xf32> to vector<1x256x8xf32>
    tpu.vector_store %arg17[%c0_170, %c0_171, %c0_172], %323 {strides = array<i32>} : memref<1x256x8xf32, #tpu.memory_space<vmem>>, vector<1x256x8xf32>,
    %c0_173 = arith.constant 0 : index
    %c0_174 = arith.constant 0 : index
    %c0_175 = arith.constant 0 : index
    %324 = vector.load %arg18[%c0_173, %c0_174, %c0_175] : memref<1x256x8xf32, #tpu.memory_space<vmem>>, vector<1x256x8xf32>
    %325 = vector.shape_cast %324 : vector<1x256x8xf32> to vector<256x8xf32>
    %326 = vector.shape_cast %102 : vector<256x8xf32> to vector<1x256x8xf32>
    tpu.vector_store %arg18[%c0_173, %c0_174, %c0_175], %326 {strides = array<i32>} : memref<1x256x8xf32, #tpu.memory_space<vmem>>, vector<1x256x8xf32>,
    %c0_176 = arith.constant 0 : index
    %c0_177 = arith.constant 0 : index
    %c0_178 = arith.constant 0 : index
    %327 = vector.load %arg19[%c0_176, %c0_177, %c0_178] : memref<1x256x8xf32, #tpu.memory_space<vmem>>, vector<1x256x8xf32>
    %328 = vector.shape_cast %327 : vector<1x256x8xf32> to vector<256x8xf32>
    %329 = vector.shape_cast %271 : vector<256x8xf32> to vector<1x256x8xf32>
    tpu.vector_store %arg19[%c0_176, %c0_177, %c0_178], %329 {strides = array<i32>} : memref<1x256x8xf32, #tpu.memory_space<vmem>>, vector<1x256x8xf32>,
    %c0_179 = arith.constant 0 : index
    %c0_180 = arith.constant 0 : index
    %c0_181 = arith.constant 0 : index
    %330 = vector.load %arg20[%c0_179, %c0_180, %c0_181] : memref<1x256x8xf32, #tpu.memory_space<vmem>>, vector<1x256x8xf32>
    %331 = vector.shape_cast %330 : vector<1x256x8xf32> to vector<256x8xf32>
    %332 = vector.shape_cast %320 : vector<256x8xf32> to vector<1x256x8xf32>
    tpu.vector_store %arg20[%c0_179, %c0_180, %c0_181], %332 {strides = array<i32>} : memref<1x256x8xf32, #tpu.memory_space<vmem>>, vector<1x256x8xf32>,
    return
  }
  func.func @transform_0(%arg0: i32) -> (i32, i32, i32, i32) {
    %c0_i32 = arith.constant 0 : i32
    %c0_i32_0 = arith.constant 0 : i32
    %c0_i32_1 = arith.constant 0 : i32
    %c0_i32_2 = arith.constant 0 : i32
    return %arg0, %c0_i32, %c0_i32_0, %c0_i32_1 : i32, i32, i32, i32
  }
  func.func @transform_1(%arg0: i32) -> (i32, i32) {
    %c0_i32 = arith.constant 0 : i32
    %c0_i32_0 = arith.constant 0 : i32
    %c0_i32_1 = arith.constant 0 : i32
    return %c0_i32, %c0_i32_0 : i32, i32
  }
  func.func @transform_2(%arg0: i32) -> (i32, i32) {
    %c0_i32 = arith.constant 0 : i32
    %c0_i32_0 = arith.constant 0 : i32
    %c0_i32_1 = arith.constant 0 : i32
    return %c0_i32, %c0_i32_0 : i32, i32
  }
  func.func @transform_3(%arg0: i32) -> (i32, i32) {
    %c0_i32 = arith.constant 0 : i32
    %c0_i32_0 = arith.constant 0 : i32
    %c0_i32_1 = arith.constant 0 : i32
    return %c0_i32, %c0_i32_0 : i32, i32
  }
  func.func @transform_4(%arg0: i32) -> (i32, i32, i32) {
    %c0_i32 = arith.constant 0 : i32
    %c0_i32_0 = arith.constant 0 : i32
    %c0_i32_1 = arith.constant 0 : i32
    %c0_i32_2 = arith.constant 0 : i32
    return %c0_i32, %c0_i32_0, %c0_i32_1 : i32, i32, i32
  }
  func.func @transform_5(%arg0: i32) -> (i32, i32) {
    %c0_i32 = arith.constant 0 : i32
    %c0_i32_0 = arith.constant 0 : i32
    %c0_i32_1 = arith.constant 0 : i32
    return %c0_i32, %c0_i32_0 : i32, i32
  }
  func.func @transform_6(%arg0: i32) -> (i32, i32) {
    %c0_i32 = arith.constant 0 : i32
    %c0_i32_0 = arith.constant 0 : i32
    %c0_i32_1 = arith.constant 0 : i32
    return %c0_i32, %c0_i32_0 : i32, i32
  }
  func.func @transform_7(%arg0: i32) -> (i32, i32, i32) {
    %c0_i32 = arith.constant 0 : i32
    %c0_i32_0 = arith.constant 0 : i32
    %c0_i32_1 = arith.constant 0 : i32
    %c0_i32_2 = arith.constant 0 : i32
    return %c0_i32, %c0_i32_0, %c0_i32_1 : i32, i32, i32
  }
  func.func @transform_8(%arg0: i32) -> (i32, i32) {
    %c0_i32 = arith.constant 0 : i32
    %c0_i32_0 = arith.constant 0 : i32
    %c0_i32_1 = arith.constant 0 : i32
    return %c0_i32, %c0_i32_0 : i32, i32
  }
  func.func @transform_9(%arg0: i32) -> (i32, i32) {
    %c0_i32 = arith.constant 0 : i32
    %c0_i32_0 = arith.constant 0 : i32
    %c0_i32_1 = arith.constant 0 : i32
    return %c0_i32, %c0_i32_0 : i32, i32
  }
  func.func @transform_10(%arg0: i32) -> (i32, i32, i32) {
    %c0_i32 = arith.constant 0 : i32
    %c0_i32_0 = arith.constant 0 : i32
    %c0_i32_1 = arith.constant 0 : i32
    %c0_i32_2 = arith.constant 0 : i32
    return %c0_i32, %c0_i32_0, %c0_i32_1 : i32, i32, i32
  }
  func.func @transform_11(%arg0: i32) -> (i32, i32) {
    %c0_i32 = arith.constant 0 : i32
    %c0_i32_0 = arith.constant 0 : i32
    %c0_i32_1 = arith.constant 0 : i32
    return %c0_i32, %c0_i32_0 : i32, i32
  }
  func.func @transform_12(%arg0: i32) -> (i32, i32) {
    %c0_i32 = arith.constant 0 : i32
    %c0_i32_0 = arith.constant 0 : i32
    %c0_i32_1 = arith.constant 0 : i32
    return %c0_i32, %c0_i32_0 : i32, i32
  }
  func.func @transform_13(%arg0: i32) -> (i32, i32) {
    %c0_i32 = arith.constant 0 : i32
    %c0_i32_0 = arith.constant 0 : i32
    %c0_i32_1 = arith.constant 0 : i32
    return %c0_i32, %c0_i32_0 : i32, i32
  }
  func.func @transform_14(%arg0: i32) -> (i32, i32) {
    %c0_i32 = arith.constant 0 : i32
    %c0_i32_0 = arith.constant 0 : i32
    %c0_i32_1 = arith.constant 0 : i32
    return %c0_i32, %c0_i32_0 : i32, i32
  }
  func.func @transform_15(%arg0: i32) -> (i32, i32) {
    %c0_i32 = arith.constant 0 : i32
    %c0_i32_0 = arith.constant 0 : i32
    %c0_i32_1 = arith.constant 0 : i32
    return %c0_i32, %c0_i32_0 : i32, i32
  }
  func.func @transform_16(%arg0: i32) -> (i32, i32, i32) {
    %c0_i32 = arith.constant 0 : i32
    %c0_i32_0 = arith.constant 0 : i32
    %c0_i32_1 = arith.constant 0 : i32
    return %arg0, %c0_i32, %c0_i32_0 : i32, i32, i32
  }
  func.func @transform_17(%arg0: i32) -> (i32, i32, i32) {
    %c0_i32 = arith.constant 0 : i32
    %c0_i32_0 = arith.constant 0 : i32
    %c0_i32_1 = arith.constant 0 : i32
    return %arg0, %c0_i32, %c0_i32_0 : i32, i32, i32
  }
  func.func @transform_18(%arg0: i32) -> (i32, i32, i32) {
    %c0_i32 = arith.constant 0 : i32
    %c0_i32_0 = arith.constant 0 : i32
    %c0_i32_1 = arith.constant 0 : i32
    return %arg0, %c0_i32, %c0_i32_0 : i32, i32, i32
  }
  func.func @transform_19(%arg0: i32) -> (i32, i32, i32) {
    %c0_i32 = arith.constant 0 : i32
    %c0_i32_0 = arith.constant 0 : i32
    %c0_i32_1 = arith.constant 0 : i32
    return %arg0, %c0_i32, %c0_i32_0 : i32, i32, i32
  }
}

</mosaic_0001>

<llo_original>
// kernel: inception_forward.1
$region0: #{inception_forward.1}
  #allocation0 [shape = 'u32[]', space=smem, size = 0x4, offset = 0x4, fixed_abs, tag = 'smem constant byte address 0x4 - core index']
  #allocation1 [shape = 'u32[144,128]{1,0:T(1,128)}', space=vmem, size = 0x12000, scoped, tag = 'internal scratch']
  %s0 = inlined_call_operand.vmem [shape: f32[2,16,16,4], index: 0, kind: input, shape index: {}]
  %s1 = inlined_call_operand.vmem [shape: bf16[4,16], index: 1, kind: input, shape index: {}]
  %s2 = inlined_call_operand.vmem [shape: f32[1,16], index: 2, kind: input, shape index: {}]
  %s3 = inlined_call_operand.vmem [shape: f32[1,16], index: 3, kind: input, shape index: {}]
  %s4 = inlined_call_operand.vmem [shape: bf16[9,4,8], index: 4, kind: input, shape index: {}]
  %s5 = inlined_call_operand.vmem [shape: f32[1,8], index: 5, kind: input, shape index: {}]
  %s6 = inlined_call_operand.vmem [shape: f32[1,8], index: 6, kind: input, shape index: {}]
  %s7 = inlined_call_operand.vmem [shape: bf16[9,4,8], index: 7, kind: input, shape index: {}]
  %s8 = inlined_call_operand.vmem [shape: f32[1,8], index: 8, kind: input, shape index: {}]
  %s9 = inlined_call_operand.vmem [shape: f32[1,8], index: 9, kind: input, shape index: {}]
  %s10 = inlined_call_operand.vmem [shape: bf16[9,8,8], index: 10, kind: input, shape index: {}]
  %s11 = inlined_call_operand.vmem [shape: f32[1,8], index: 11, kind: input, shape index: {}]
  %s12 = inlined_call_operand.vmem [shape: f32[1,8], index: 12, kind: input, shape index: {}]
  %s13 = inlined_call_operand.vmem [shape: bf16[4,8], index: 13, kind: input, shape index: {}]
  %s14 = inlined_call_operand.vmem [shape: f32[1,8], index: 14, kind: input, shape index: {}]
  %s15 = inlined_call_operand.vmem [shape: f32[1,8], index: 15, kind: input, shape index: {}]
  %s16 = inlined_call_operand.vmem [shape: f32[2,256,8], index: 16, kind: output, shape index: {0}]
  %s17 = inlined_call_operand.vmem [shape: f32[2,256,8], index: 17, kind: output, shape index: {1}]
  %s18 = inlined_call_operand.vmem [shape: f32[2,256,8], index: 18, kind: output, shape index: {2}]
  %s19 = inlined_call_operand.vmem [shape: f32[2,256,8], index: 19, kind: output, shape index: {3}]
  %20 = xla_tuple %s16, %s17, %s18, %s19
  %s21 = sld [smem:[#allocation0]]
  $region121: #{inception_forward.1} parent=0
    _
  %s23 = ssub.s32 1, %s21
  %s24 = scalar_select 0, %s23, %s21
  loop: start=0, step=1, limit=4
  $region2: #{inception_forward.1} parent=0 // loop_pre_header
    _
  $region3: #{inception_forward.1} parent=0 // loop_header
    %s26 = sphi 0, %s30
    %p27 = scmp.ge.s32.totalorder %s26, 4
    %s36 = sphi 0, %s38
    %s39 = sphi 0, %s36
    %s40 = sphi 0, %s39
    %s56 = sphi 0, %s40
    %s60 = sphi 0, %s60
    %s62 = sphi 0, %s60
    %s63 = sphi 0, %s62
    %s77 = sphi 0, %s63
    %s81 = sphi 0, %s81
    %s83 = sphi 0, %s81
    %s84 = sphi 0, %s83
    %s98 = sphi 0, %s84
    %s102 = sphi 0, %s102
    %s104 = sphi 0, %s102
    %s105 = sphi 0, %s104
    %s119 = sphi 0, %s105
    %s123 = sphi 0, %s123
    %s125 = sphi 0, %s123
    %s126 = sphi 0, %s125
    %s140 = sphi 0, %s126
    %s144 = sphi 0, %s144
    %s146 = sphi 0, %s144
    %s147 = sphi 0, %s146
    %s161 = sphi 0, %s147
    %s165 = sphi 0, %s165
    %s167 = sphi 0, %s165
    %s168 = sphi 0, %s167
    %s182 = sphi 0, %s168
    %s186 = sphi 0, %s186
    %s188 = sphi 0, %s186
    %s189 = sphi 0, %s188
    %s203 = sphi 0, %s189
    %s207 = sphi 0, %s207
    %s209 = sphi 0, %s207
    %s210 = sphi 0, %s209
    %s224 = sphi 0, %s210
    %s228 = sphi 0, %s228
    %s230 = sphi 0, %s228
    %s231 = sphi 0, %s230
    %s245 = sphi 0, %s231
    %s249 = sphi 0, %s249
    %s251 = sphi 0, %s249
    %s252 = sphi 0, %s251
    %s266 = sphi 0, %s252
    %s270 = sphi 0, %s270
    %s272 = sphi 0, %s270
    %s273 = sphi 0, %s272
    %s287 = sphi 0, %s273
    %s291 = sphi 0, %s291
    %s293 = sphi 0, %s291
    %s294 = sphi 0, %s293
    %s308 = sphi 0, %s294
    %s312 = sphi 0, %s312
    %s314 = sphi 0, %s312
    %s315 = sphi 0, %s314
    %s329 = sphi 0, %s315
    %s333 = sphi 0, %s333
    %s335 = sphi 0, %s333
    %s336 = sphi 0, %s335
    %s350 = sphi 0, %s336
    %s354 = sphi 0, %s354
    %s356 = sphi 0, %s354
    %s357 = sphi 0, %s356
    %s371 = sphi 0, %s357
    %s377 = sphi 0, %s379
    %s380 = sphi 0, %s377
    %s381 = sphi 0, %s380
    %s397 = sphi 0, %s381
    %s403 = sphi 0, %s405
    %s406 = sphi 0, %s403
    %s407 = sphi 0, %s406
    %s423 = sphi 0, %s407
    %s429 = sphi 0, %s431
    %s432 = sphi 0, %s429
    %s433 = sphi 0, %s432
    %s449 = sphi 0, %s433
    %s455 = sphi 0, %s457
    %s458 = sphi 0, %s455
    %s459 = sphi 0, %s458
    %s475 = sphi 0, %s459
  $region4: #{inception_forward.1} parent=0 // loop_header_branch
    %29 = sbr.rel (%p27) target = $region8
  $region5: #{inception_forward.1} parent=0 // loop_body
    %s31 = ssub.s32 %s26, 1
    %s32 = ssub.s32 %s26, 2
    %s33 = sadd.s32 %s26, 1
    %s34 = ssub.s32 %s26, %s33
    %p35 = scmp.eq.s32.totalorder %s34, 0
    %s37 = sadd.s32 %s36, 1
    %s38 = scalar_select %p35, %s36, %s37
    %p41 = pneg %p35
    %p42 = scmp.eq.s32.totalorder %s26, 1
    %p43 = por %p41, %p42
    %p44 = scmp.ne.s32.totalorder %s36, %s39
    %p45 = scmp.eq.s32.totalorder %s26, 0
    %p46 = por %p44, %p45
    %p47 = scmp.ne.s32.totalorder %s36, %s39
    %p48 = scmp.eq.s32.totalorder %s31, 1
    %p49 = por %p47, %p48
    %p50 = scmp.ne.s32.totalorder %s39, %s40
    %p51 = scmp.eq.s32.totalorder %s31, 0
    %p52 = por %p50, %p51
    %p53 = scmp.ne.s32.totalorder %s39, %s40
    %p54 = scmp.eq.s32.totalorder %s32, 1
    %p55 = por %p53, %p54
    %p57 = scmp.ne.s32.totalorder %s40, %s56
    %p58 = scmp.eq.s32.totalorder %s32, 0
    %p59 = por %p57, %p58
    %s61 = sadd.s32 %s60, 1
    %p64 = scmp.eq.s32.totalorder %s26, 1
    %p65 = scmp.ne.s32.totalorder %s60, %s62
    %p66 = scmp.eq.s32.totalorder %s26, 0
    %p67 = por %p65, %p66
    %p68 = scmp.ne.s32.totalorder %s60, %s62
    %p69 = scmp.eq.s32.totalorder %s31, 1
    %p70 = por %p68, %p69
    %p71 = scmp.ne.s32.totalorder %s62, %s63
    %p72 = scmp.eq.s32.totalorder %s31, 0
    %p73 = por %p71, %p72
    %p74 = scmp.ne.s32.totalorder %s62, %s63
    %p75 = scmp.eq.s32.totalorder %s32, 1
    %p76 = por %p74, %p75
    %p78 = scmp.ne.s32.totalorder %s63, %s77
    %p79 = scmp.eq.s32.totalorder %s32, 0
    %p80 = por %p78, %p79
    %s82 = sadd.s32 %s81, 1
    %p85 = scmp.eq.s32.totalorder %s26, 1
    %p86 = scmp.ne.s32.totalorder %s81, %s83
    %p87 = scmp.eq.s32.totalorder %s26, 0
    %p88 = por %p86, %p87
    %p89 = scmp.ne.s32.totalorder %s81, %s83
    %p90 = scmp.eq.s32.totalorder %s31, 1
    %p91 = por %p89, %p90
    %p92 = scmp.ne.s32.totalorder %s83, %s84
    %p93 = scmp.eq.s32.totalorder %s31, 0
    %p94 = por %p92, %p93
    %p95 = scmp.ne.s32.totalorder %s83, %s84
    %p96 = scmp.eq.s32.totalorder %s32, 1
    %p97 = por %p95, %p96
    %p99 = scmp.ne.s32.totalorder %s84, %s98
    %p100 = scmp.eq.s32.totalorder %s32, 0
    %p101 = por %p99, %p100
    %s103 = sadd.s32 %s102, 1
    %p106 = scmp.eq.s32.totalorder %s26, 1
    %p107 = scmp.ne.s32.totalorder %s102, %s104
    %p108 = scmp.eq.s32.totalorder %s26, 0
    %p109 = por %p107, %p108
    %p110 = scmp.ne.s32.totalorder %s102, %s104
    %p111 = scmp.eq.s32.totalorder %s31, 1
    %p112 = por %p110, %p111
    %p113 = scmp.ne.s32.totalorder %s104, %s105
    %p114 = scmp.eq.s32.totalorder %s31, 0
    %p115 = por %p113, %p114
    %p116 = scmp.ne.s32.totalorder %s104, %s105
    %p117 = scmp.eq.s32.totalorder %s32, 1
    %p118 = por %p116, %p117
    %p120 = scmp.ne.s32.totalorder %s105, %s119
    %p121 = scmp.eq.s32.totalorder %s32, 0
    %p122 = por %p120, %p121
    %s124 = sadd.s32 %s123, 1
    %p127 = scmp.eq.s32.totalorder %s26, 1
    %p128 = scmp.ne.s32.totalorder %s123, %s125
    %p129 = scmp.eq.s32.totalorder %s26, 0
    %p130 = por %p128, %p129
    %p131 = scmp.ne.s32.totalorder %s123, %s125
    %p132 = scmp.eq.s32.totalorder %s31, 1
    %p133 = por %p131, %p132
    %p134 = scmp.ne.s32.totalorder %s125, %s126
    %p135 = scmp.eq.s32.totalorder %s31, 0
    %p136 = por %p134, %p135
    %p137 = scmp.ne.s32.totalorder %s125, %s126
    %p138 = scmp.eq.s32.totalorder %s32, 1
    %p139 = por %p137, %p138
    %p141 = scmp.ne.s32.totalorder %s126, %s140
    %p142 = scmp.eq.s32.totalorder %s32, 0
    %p143 = por %p141, %p142
    %s145 = sadd.s32 %s144, 1
    %p148 = scmp.eq.s32.totalorder %s26, 1
    %p149 = scmp.ne.s32.totalorder %s144, %s146
    %p150 = scmp.eq.s32.totalorder %s26, 0
    %p151 = por %p149, %p150
    %p152 = scmp.ne.s32.totalorder %s144, %s146
    %p153 = scmp.eq.s32.totalorder %s31, 1
    %p154 = por %p152, %p153
    %p155 = scmp.ne.s32.totalorder %s146, %s147
    %p156 = scmp.eq.s32.totalorder %s31, 0
    %p157 = por %p155, %p156
    %p158 = scmp.ne.s32.totalorder %s146, %s147
    %p159 = scmp.eq.s32.totalorder %s32, 1
    %p160 = por %p158, %p159
    %p162 = scmp.ne.s32.totalorder %s147, %s161
    %p163 = scmp.eq.s32.totalorder %s32, 0
    %p164 = por %p162, %p163
    %s166 = sadd.s32 %s165, 1
    %p169 = scmp.eq.s32.totalorder %s26, 1
    %p170 = scmp.ne.s32.totalorder %s165, %s167
    %p171 = scmp.eq.s32.totalorder %s26, 0
    %p172 = por %p170, %p171
    %p173 = scmp.ne.s32.totalorder %s165, %s167
    %p174 = scmp.eq.s32.totalorder %s31, 1
    %p175 = por %p173, %p174
    %p176 = scmp.ne.s32.totalorder %s167, %s168
    %p177 = scmp.eq.s32.totalorder %s31, 0
    %p178 = por %p176, %p177
    %p179 = scmp.ne.s32.totalorder %s167, %s168
    %p180 = scmp.eq.s32.totalorder %s32, 1
    %p181 = por %p179, %p180
    %p183 = scmp.ne.s32.totalorder %s168, %s182
    %p184 = scmp.eq.s32.totalorder %s32, 0
    %p185 = por %p183, %p184
    %s187 = sadd.s32 %s186, 1
    %p190 = scmp.eq.s32.totalorder %s26, 1
    %p191 = scmp.ne.s32.totalorder %s186, %s188
    %p192 = scmp.eq.s32.totalorder %s26, 0
    %p193 = por %p191, %p192
    %p194 = scmp.ne.s32.totalorder %s186, %s188
    %p195 = scmp.eq.s32.totalorder %s31, 1
    %p196 = por %p194, %p195
    %p197 = scmp.ne.s32.totalorder %s188, %s189
    %p198 = scmp.eq.s32.totalorder %s31, 0
    %p199 = por %p197, %p198
    %p200 = scmp.ne.s32.totalorder %s188, %s189
    %p201 = scmp.eq.s32.totalorder %s32, 1
    %p202 = por %p200, %p201
    %p204 = scmp.ne.s32.totalorder %s189, %s203
    %p205 = scmp.eq.s32.totalorder %s32, 0
    %p206 = por %p204, %p205
    %s208 = sadd.s32 %s207, 1
    %p211 = scmp.eq.s32.totalorder %s26, 1
    %p212 = scmp.ne.s32.totalorder %s207, %s209
    %p213 = scmp.eq.s32.totalorder %s26, 0
    %p214 = por %p212, %p213
    %p215 = scmp.ne.s32.totalorder %s207, %s209
    %p216 = scmp.eq.s32.totalorder %s31, 1
    %p217 = por %p215, %p216
    %p218 = scmp.ne.s32.totalorder %s209, %s210
    %p219 = scmp.eq.s32.totalorder %s31, 0
    %p220 = por %p218, %p219
    %p221 = scmp.ne.s32.totalorder %s209, %s210
    %p222 = scmp.eq.s32.totalorder %s32, 1
    %p223 = por %p221, %p222
    %p225 = scmp.ne.s32.totalorder %s210, %s224
    %p226 = scmp.eq.s32.totalorder %s32, 0
    %p227 = por %p225, %p226
    %s229 = sadd.s32 %s228, 1
    %p232 = scmp.eq.s32.totalorder %s26, 1
    %p233 = scmp.ne.s32.totalorder %s228, %s230
    %p234 = scmp.eq.s32.totalorder %s26, 0
    %p235 = por %p233, %p234
    %p236 = scmp.ne.s32.totalorder %s228, %s230
    %p237 = scmp.eq.s32.totalorder %s31, 1
    %p238 = por %p236, %p237
    %p239 = scmp.ne.s32.totalorder %s230, %s231
    %p240 = scmp.eq.s32.totalorder %s31, 0
    %p241 = por %p239, %p240
    %p242 = scmp.ne.s32.totalorder %s230, %s231
    %p243 = scmp.eq.s32.totalorder %s32, 1
    %p244 = por %p242, %p243
    %p246 = scmp.ne.s32.totalorder %s231, %s245
    %p247 = scmp.eq.s32.totalorder %s32, 0
    %p248 = por %p246, %p247
    %s250 = sadd.s32 %s249, 1
    %p253 = scmp.eq.s32.totalorder %s26, 1
    %p254 = scmp.ne.s32.totalorder %s249, %s251
    %p255 = scmp.eq.s32.totalorder %s26, 0
    %p256 = por %p254, %p255
    %p257 = scmp.ne.s32.totalorder %s249, %s251
    %p258 = scmp.eq.s32.totalorder %s31, 1
    %p259 = por %p257, %p258
    %p260 = scmp.ne.s32.totalorder %s251, %s252
    %p261 = scmp.eq.s32.totalorder %s31, 0
    %p262 = por %p260, %p261
    %p263 = scmp.ne.s32.totalorder %s251, %s252
    %p264 = scmp.eq.s32.totalorder %s32, 1
    %p265 = por %p263, %p264
    %p267 = scmp.ne.s32.totalorder %s252, %s266
    %p268 = scmp.eq.s32.totalorder %s32, 0
    %p269 = por %p267, %p268
    %s271 = sadd.s32 %s270, 1
    %p274 = scmp.eq.s32.totalorder %s26, 1
    %p275 = scmp.ne.s32.totalorder %s270, %s272
    %p276 = scmp.eq.s32.totalorder %s26, 0
    %p277 = por %p275, %p276
    %p278 = scmp.ne.s32.totalorder %s270, %s272
    %p279 = scmp.eq.s32.totalorder %s31, 1
    %p280 = por %p278, %p279
    %p281 = scmp.ne.s32.totalorder %s272, %s273
    %p282 = scmp.eq.s32.totalorder %s31, 0
    %p283 = por %p281, %p282
    %p284 = scmp.ne.s32.totalorder %s272, %s273
    %p285 = scmp.eq.s32.totalorder %s32, 1
    %p286 = por %p284, %p285
    %p288 = scmp.ne.s32.totalorder %s273, %s287
    %p289 = scmp.eq.s32.totalorder %s32, 0
    %p290 = por %p288, %p289
    %s292 = sadd.s32 %s291, 1
    %p295 = scmp.eq.s32.totalorder %s26, 1
    %p296 = scmp.ne.s32.totalorder %s291, %s293
    %p297 = scmp.eq.s32.totalorder %s26, 0
    %p298 = por %p296, %p297
    %p299 = scmp.ne.s32.totalorder %s291, %s293
    %p300 = scmp.eq.s32.totalorder %s31, 1
    %p301 = por %p299, %p300
    %p302 = scmp.ne.s32.totalorder %s293, %s294
    %p303 = scmp.eq.s32.totalorder %s31, 0
    %p304 = por %p302, %p303
    %p305 = scmp.ne.s32.totalorder %s293, %s294
    %p306 = scmp.eq.s32.totalorder %s32, 1
    %p307 = por %p305, %p306
    %p309 = scmp.ne.s32.totalorder %s294, %s308
    %p310 = scmp.eq.s32.totalorder %s32, 0
    %p311 = por %p309, %p310
    %s313 = sadd.s32 %s312, 1
    %p316 = scmp.eq.s32.totalorder %s26, 1
    %p317 = scmp.ne.s32.totalorder %s312, %s314
    %p318 = scmp.eq.s32.totalorder %s26, 0
    %p319 = por %p317, %p318
    %p320 = scmp.ne.s32.totalorder %s312, %s314
    %p321 = scmp.eq.s32.totalorder %s31, 1
    %p322 = por %p320, %p321
    %p323 = scmp.ne.s32.totalorder %s314, %s315
    %p324 = scmp.eq.s32.totalorder %s31, 0
    %p325 = por %p323, %p324
    %p326 = scmp.ne.s32.totalorder %s314, %s315
    %p327 = scmp.eq.s32.totalorder %s32, 1
    %p328 = por %p326, %p327
    %p330 = scmp.ne.s32.totalorder %s315, %s329
    %p331 = scmp.eq.s32.totalorder %s32, 0
    %p332 = por %p330, %p331
    %s334 = sadd.s32 %s333, 1
    %p337 = scmp.eq.s32.totalorder %s26, 1
    %p338 = scmp.ne.s32.totalorder %s333, %s335
    %p339 = scmp.eq.s32.totalorder %s26, 0
    %p340 = por %p338, %p339
    %p341 = scmp.ne.s32.totalorder %s333, %s335
    %p342 = scmp.eq.s32.totalorder %s31, 1
    %p343 = por %p341, %p342
    %p344 = scmp.ne.s32.totalorder %s335, %s336
    %p345 = scmp.eq.s32.totalorder %s31, 0
    %p346 = por %p344, %p345
    %p347 = scmp.ne.s32.totalorder %s335, %s336
    %p348 = scmp.eq.s32.totalorder %s32, 1
    %p349 = por %p347, %p348
    %p351 = scmp.ne.s32.totalorder %s336, %s350
    %p352 = scmp.eq.s32.totalorder %s32, 0
    %p353 = por %p351, %p352
    %s355 = sadd.s32 %s354, 1
    %p358 = scmp.eq.s32.totalorder %s26, 1
    %p359 = scmp.ne.s32.totalorder %s354, %s356
    %p360 = scmp.eq.s32.totalorder %s26, 0
    %p361 = por %p359, %p360
    %p362 = scmp.ne.s32.totalorder %s354, %s356
    %p363 = scmp.eq.s32.totalorder %s31, 1
    %p364 = por %p362, %p363
    %p365 = scmp.ne.s32.totalorder %s356, %s357
    %p366 = scmp.eq.s32.totalorder %s31, 0
    %p367 = por %p365, %p366
    %p368 = scmp.ne.s32.totalorder %s356, %s357
    %p369 = scmp.eq.s32.totalorder %s32, 1
    %p370 = por %p368, %p369
    %p372 = scmp.ne.s32.totalorder %s357, %s371
    %p373 = scmp.eq.s32.totalorder %s32, 0
    %p374 = por %p372, %p373
    %s375 = ssub.s32 %s26, %s33
    %p376 = scmp.eq.s32.totalorder %s375, 0
    %s378 = sadd.s32 %s377, 1
    %s379 = scalar_select %p376, %s377, %s378
    %p382 = pneg %p376
    %p383 = scmp.eq.s32.totalorder %s26, 1
    %p384 = por %p382, %p383
    %p385 = scmp.ne.s32.totalorder %s377, %s380
    %p386 = scmp.eq.s32.totalorder %s26, 0
    %p387 = por %p385, %p386
    %p388 = scmp.ne.s32.totalorder %s377, %s380
    %p389 = scmp.eq.s32.totalorder %s31, 1
    %p390 = por %p388, %p389
    %p391 = scmp.ne.s32.totalorder %s380, %s381
    %p392 = scmp.eq.s32.totalorder %s31, 0
    %p393 = por %p391, %p392
    %p394 = scmp.ne.s32.totalorder %s380, %s381
    %p395 = scmp.eq.s32.totalorder %s32, 1
    %p396 = por %p394, %p395
    %p398 = scmp.ne.s32.totalorder %s381, %s397
    %p399 = scmp.eq.s32.totalorder %s32, 0
    %p400 = por %p398, %p399
    %s401 = ssub.s32 %s26, %s33
    %p402 = scmp.eq.s32.totalorder %s401, 0
    %s404 = sadd.s32 %s403, 1
    %s405 = scalar_select %p402, %s403, %s404
    %p408 = pneg %p402
    %p409 = scmp.eq.s32.totalorder %s26, 1
    %p410 = por %p408, %p409
    %p411 = scmp.ne.s32.totalorder %s403, %s406
    %p412 = scmp.eq.s32.totalorder %s26, 0
    %p413 = por %p411, %p412
    %p414 = scmp.ne.s32.totalorder %s403, %s406
    %p415 = scmp.eq.s32.totalorder %s31, 1
    %p416 = por %p414, %p415
    %p417 = scmp.ne.s32.totalorder %s406, %s407
    %p418 = scmp.eq.s32.totalorder %s31, 0
    %p419 = por %p417, %p418
    %p420 = scmp.ne.s32.totalorder %s406, %s407
    %p421 = scmp.eq.s32.totalorder %s32, 1
    %p422 = por %p420, %p421
    %p424 = scmp.ne.s32.totalorder %s407, %s423
    %p425 = scmp.eq.s32.totalorder %s32, 0
    %p426 = por %p424, %p425
    %s427 = ssub.s32 %s26, %s33
    %p428 = scmp.eq.s32.totalorder %s427, 0
    %s430 = sadd.s32 %s429, 1
    %s431 = scalar_select %p428, %s429, %s430
    %p434 = pneg %p428
    %p435 = scmp.eq.s32.totalorder %s26, 1
    %p436 = por %p434, %p435
    %p437 = scmp.ne.s32.totalorder %s429, %s432
    %p438 = scmp.eq.s32.totalorder %s26, 0
    %p439 = por %p437, %p438
    %p440 = scmp.ne.s32.totalorder %s429, %s432
    %p441 = scmp.eq.s32.totalorder %s31, 1
    %p442 = por %p440, %p441
    %p443 = scmp.ne.s32.totalorder %s432, %s433
    %p444 = scmp.eq.s32.totalorder %s31, 0
    %p445 = por %p443, %p444
    %p446 = scmp.ne.s32.totalorder %s432, %s433
    %p447 = scmp.eq.s32.totalorder %s32, 1
    %p448 = por %p446, %p447
    %p450 = scmp.ne.s32.totalorder %s433, %s449
    %p451 = scmp.eq.s32.totalorder %s32, 0
    %p452 = por %p450, %p451
    %s453 = ssub.s32 %s26, %s33
    %p454 = scmp.eq.s32.totalorder %s453, 0
    %s456 = sadd.s32 %s455, 1
    %s457 = scalar_select %p454, %s455, %s456
    %p460 = pneg %p454
    %p461 = scmp.eq.s32.totalorder %s26, 1
    %p462 = por %p460, %p461
    %p463 = scmp.ne.s32.totalorder %s455, %s458
    %p464 = scmp.eq.s32.totalorder %s26, 0
    %p465 = por %p463, %p464
    %p466 = scmp.ne.s32.totalorder %s455, %s458
    %p467 = scmp.eq.s32.totalorder %s31, 1
    %p468 = por %p466, %p467
    %p469 = scmp.ne.s32.totalorder %s458, %s459
    %p470 = scmp.eq.s32.totalorder %s31, 0
    %p471 = por %p469, %p470
    %p472 = scmp.ne.s32.totalorder %s458, %s459
    %p473 = scmp.eq.s32.totalorder %s32, 1
    %p474 = por %p472, %p473
    %p476 = scmp.ne.s32.totalorder %s459, %s475
    %p477 = scmp.eq.s32.totalorder %s32, 0
    %p478 = por %p476, %p477
    %p479 = scmp.le.s32.totalorder 1, %s26
    %p480 = scmp.lt.s32.totalorder %s26, 3
    %p481 = pnand %p479, %p480
    %p482 = pneg %p481
    // Predicated region
    $region9: #{inception_forward.1} parent=5 // pred_check
      _
    $region10: #{inception_forward.1} parent=5 // pred_check_branch
      %484 = sbr.rel (%p481) target = $region12
    $region11: #{inception_forward.1} parent=5 // pred_region
      %s485 = ssub.s32 %s26, 1
      // Predicated region
      $region13: #{inception_forward.1} parent=11 // pred_check
        %p486 = pneg %p73
      $region14: #{inception_forward.1} parent=11 // pred_check_branch
        %488 = sbr.rel (%p486) target = $region16
      $region15: #{inception_forward.1} parent=11 // pred_region
        _
      $region16: #{inception_forward.1} parent=11 // pred_fallthru
        _
      // Predicated region
      $region17: #{inception_forward.1} parent=11 // pred_check
        %p489 = pneg %p94
      $region18: #{inception_forward.1} parent=11 // pred_check_branch
        %491 = sbr.rel (%p489) target = $region20
      $region19: #{inception_forward.1} parent=11 // pred_region
        _
      $region20: #{inception_forward.1} parent=11 // pred_fallthru
        _
      // Predicated region
      $region21: #{inception_forward.1} parent=11 // pred_check
        %p492 = pneg %p115
      $region22: #{inception_forward.1} parent=11 // pred_check_branch
        %494 = sbr.rel (%p492) target = $region24
      $region23: #{inception_forward.1} parent=11 // pred_region
        _
      $region24: #{inception_forward.1} parent=11 // pred_fallthru
        _
      // Predicated region
      $region25: #{inception_forward.1} parent=11 // pred_check
        %p495 = pneg %p136
      $region26: #{inception_forward.1} parent=11 // pred_check_branch
        %497 = sbr.rel (%p495) target = $region28
      $region27: #{inception_forward.1} parent=11 // pred_region
        _
      $region28: #{inception_forward.1} parent=11 // pred_fallthru
        _
      // Predicated region
      $region29: #{inception_forward.1} parent=11 // pred_check
        %p498 = pneg %p157
      $region30: #{inception_forward.1} parent=11 // pred_check_branch
        %500 = sbr.rel (%p498) target = $region32
      $region31: #{inception_forward.1} parent=11 // pred_region
        _
      $region32: #{inception_forward.1} parent=11 // pred_fallthru
        _
      // Predicated region
      $region33: #{inception_forward.1} parent=11 // pred_check
        %p501 = pneg %p178
      $region34: #{inception_forward.1} parent=11 // pred_check_branch
        %503 = sbr.rel (%p501) target = $region36
      $region35: #{inception_forward.1} parent=11 // pred_region
        _
      $region36: #{inception_forward.1} parent=11 // pred_fallthru
        _
      // Predicated region
      $region37: #{inception_forward.1} parent=11 // pred_check
        %p504 = pneg %p199
      $region38: #{inception_forward.1} parent=11 // pred_check_branch
        %506 = sbr.rel (%p504) target = $region40
      $region39: #{inception_forward.1} parent=11 // pred_region
        _
      $region40: #{inception_forward.1} parent=11 // pred_fallthru
        _
      // Predicated region
      $region41: #{inception_forward.1} parent=11 // pred_check
        %p507 = pneg %p220
      $region42: #{inception_forward.1} parent=11 // pred_check_branch
        %509 = sbr.rel (%p507) target = $region44
      $region43: #{inception_forward.1} parent=11 // pred_region
        _
      $region44: #{inception_forward.1} parent=11 // pred_fallthru
        _
      // Predicated region
      $region45: #{inception_forward.1} parent=11 // pred_check
        %p510 = pneg %p241
      $region46: #{inception_forward.1} parent=11 // pred_check_branch
        %512 = sbr.rel (%p510) target = $region48
      $region47: #{inception_forward.1} parent=11 // pred_region
        _
      $region48: #{inception_forward.1} parent=11 // pred_fallthru
        _
      // Predicated region
      $region49: #{inception_forward.1} parent=11 // pred_check
        %p513 = pneg %p262
      $region50: #{inception_forward.1} parent=11 // pred_check_branch
        %515 = sbr.rel (%p513) target = $region52
      $region51: #{inception_forward.1} parent=11 // pred_region
        _
      $region52: #{inception_forward.1} parent=11 // pred_fallthru
        _
      // Predicated region
      $region53: #{inception_forward.1} parent=11 // pred_check
        %p516 = pneg %p283
      $region54: #{inception_forward.1} parent=11 // pred_check_branch
        %518 = sbr.rel (%p516) target = $region56
      $region55: #{inception_forward.1} parent=11 // pred_region
        _
      $region56: #{inception_forward.1} parent=11 // pred_fallthru
        _
      // Predicated region
      $region57: #{inception_forward.1} parent=11 // pred_check
        %p519 = pneg %p304
      $region58: #{inception_forward.1} parent=11 // pred_check_branch
        %521 = sbr.rel (%p519) target = $region60
      $region59: #{inception_forward.1} parent=11 // pred_region
        _
      $region60: #{inception_forward.1} parent=11 // pred_fallthru
        _
      // Predicated region
      $region61: #{inception_forward.1} parent=11 // pred_check
        %p522 = pneg %p325
      $region62: #{inception_forward.1} parent=11 // pred_check_branch
        %524 = sbr.rel (%p522) target = $region64
      $region63: #{inception_forward.1} parent=11 // pred_region
        _
      $region64: #{inception_forward.1} parent=11 // pred_fallthru
        _
      // Predicated region
      $region65: #{inception_forward.1} parent=11 // pred_check
        %p525 = pneg %p346
      $region66: #{inception_forward.1} parent=11 // pred_check_branch
        %527 = sbr.rel (%p525) target = $region68
      $region67: #{inception_forward.1} parent=11 // pred_region
        _
      $region68: #{inception_forward.1} parent=11 // pred_fallthru
        _
      // Predicated region
      $region69: #{inception_forward.1} parent=11 // pred_check
        %p528 = pneg %p367
      $region70: #{inception_forward.1} parent=11 // pred_check_branch
        %530 = sbr.rel (%p528) target = $region72
      $region71: #{inception_forward.1} parent=11 // pred_region
        _
      $region72: #{inception_forward.1} parent=11 // pred_fallthru
        _
    $region12: #{inception_forward.1} parent=5 // pred_fallthru
      _
    %p531 = scmp.lt.s32.totalorder %s26, 2
    // Predicated region
    $region73: #{inception_forward.1} parent=5 // pred_check
      %p532 = pneg %p531
    $region74: #{inception_forward.1} parent=5 // pred_check_branch
      %534 = sbr.rel (%p532) target = $region76
    $region75: #{inception_forward.1} parent=5 // pred_region
      // Predicated region
      $region77: #{inception_forward.1} parent=75 // pred_check
        %p535 = pneg %p46
      $region78: #{inception_forward.1} parent=75 // pred_check_branch
        %537 = sbr.rel (%p535) target = $region80
      $region79: #{inception_forward.1} parent=75 // pred_region
        %p538 = scmp.lt.s32.totalorder %s26, 1
        %s539 = scalar_select %p538, %s26, 1
        %s540 = smul.addr %s539, 32
        %s541 = smul.addr %s540, 8
        %s542 = scalar_lea.vmem %s0, %s541
      $region80: #{inception_forward.1} parent=75 // pred_fallthru
        _
    $region76: #{inception_forward.1} parent=5 // pred_fallthru
      _
    %p543 = scmp.le.s32.totalorder 1, %s26
    %p544 = scmp.lt.s32.totalorder %s26, 3
    %p545 = pnand %p543, %p544
    %p546 = pneg %p545
    // Predicated region
    $region81: #{inception_forward.1} parent=5 // pred_check
      _
    $region82: #{inception_forward.1} parent=5 // pred_check_branch
      %548 = sbr.rel (%p545) target = $region84
    $region83: #{inception_forward.1} parent=5 // pred_region
      %s549 = ssub.s32 %s26, 1
      %p550 = scmp.lt.s32.totalorder %s31, 1
      %s551 = scalar_select %p550, %s31, 1
      %s552 = smul.addr %s551, 32
      %s553 = smul.addr %s552, 8
      %s554 = scalar_lea.vmem %s0, %s553
      %p555 = pneg %p52
      %p556 = pneg %p49
      %p557 = pneg %p73
      %p558 = pneg %p70
      %p559 = pneg %p94
      %p560 = pneg %p91
      %p561 = pneg %p115
      %p562 = pneg %p112
      %p563 = pneg %p136
      %p564 = pneg %p133
      %p565 = pneg %p157
      %p566 = pneg %p154
      %p567 = pneg %p178
      %p568 = pneg %p175
      %p569 = pneg %p199
      %p570 = pneg %p196
      %p571 = pneg %p220
      %p572 = pneg %p217
      %p573 = pneg %p241
      %p574 = pneg %p238
      %p575 = pneg %p262
      %p576 = pneg %p259
      %p577 = pneg %p283
      %p578 = pneg %p280
      %p579 = pneg %p304
      %p580 = pneg %p301
      %p581 = pneg %p325
      %p582 = pneg %p322
      %p583 = pneg %p346
      %p584 = pneg %p343
      %p585 = pneg %p367
      %p586 = pneg %p364
      %p587 = pneg %p393
      %p588 = pneg %p390
      %p589 = scmp.lt.s32.totalorder %s31, 1
      %s590 = scalar_select %p589, %s31, 1
      %s591 = smul.addr %s590, 32
      %s592 = smul.addr %s591, 8
      %s593 = scalar_lea.vmem %s16, %s592
      %p594 = pneg %p419
      %p595 = pneg %p416
      %p596 = scmp.lt.s32.totalorder %s31, 1
      %s597 = scalar_select %p596, %s31, 1
      %s598 = smul.addr %s597, 32
      %s599 = smul.addr %s598, 8
      %s600 = scalar_lea.vmem %s17, %s599
      %p601 = pneg %p445
      %p602 = pneg %p442
      %p603 = scmp.lt.s32.totalorder %s31, 1
      %s604 = scalar_select %p603, %s31, 1
      %s605 = smul.addr %s604, 32
      %s606 = smul.addr %s605, 8
      %s607 = scalar_lea.vmem %s18, %s606
      %p608 = pneg %p471
      %p609 = pneg %p468
      %p610 = scmp.lt.s32.totalorder %s31, 1
      %s611 = scalar_select %p610, %s31, 1
      %s612 = smul.addr %s611, 32
      %s613 = smul.addr %s612, 8
      %s614 = scalar_lea.vmem %s19, %s613
      %p615 = scmp.lt.s32.totalorder %s31, 1
      %s616 = scalar_select %p615, %s31, 1
      %s617 = smul.addr %s616, 32
      %s618 = smul.addr %s617, 8
      %s619 = scalar_lea.vmem %s0, %s618
      %p620 = scmp.lt.s32.totalorder %s31, 1
      %s621 = scalar_select %p620, %s31, 1
      %s622 = smul.addr %s621, 32
      %s623 = smul.addr %s622, 8
      %s624 = scalar_lea.vmem %s16, %s623
      %p625 = scmp.lt.s32.totalorder %s31, 1
      %s626 = scalar_select %p625, %s31, 1
      %s627 = smul.addr %s626, 32
      %s628 = smul.addr %s627, 8
      %s629 = scalar_lea.vmem %s17, %s628
      %p630 = scmp.lt.s32.totalorder %s31, 1
      %s631 = scalar_select %p630, %s31, 1
      %s632 = smul.addr %s631, 32
      %s633 = smul.addr %s632, 8
      %s634 = scalar_lea.vmem %s18, %s633
      %p635 = scmp.lt.s32.totalorder %s31, 1
      %s636 = scalar_select %p635, %s31, 1
      %s637 = smul.addr %s636, 32
      %s638 = smul.addr %s637, 8
      %s639 = scalar_lea.vmem %s19, %s638
      %v641 = vld [vmem:[%s619] sm:$0xff]
      %v642 = vld [vmem:[%s619 + $0x8] sm:$0xff]
      %v643 = vld [vmem:[%s619 + $0x10] sm:$0xff]
      %v644 = vld [vmem:[%s619 + $0x18] sm:$0xff]
      %v645 = vld [vmem:[%s619 + $0x20] sm:$0xff]
      %v646 = vld [vmem:[%s619 + $0x28] sm:$0xff]
      %v647 = vld [vmem:[%s619 + $0x30] sm:$0xff]
      %v648 = vld [vmem:[%s619 + $0x38] sm:$0xff]
      %v649 = vld [vmem:[%s619 + $0x40] sm:$0xff]
      %v650 = vld [vmem:[%s619 + $0x48] sm:$0xff]
      %v651 = vld [vmem:[%s619 + $0x50] sm:$0xff]
      %v652 = vld [vmem:[%s619 + $0x58] sm:$0xff]
      %v653 = vld [vmem:[%s619 + $0x60] sm:$0xff]
      %v654 = vld [vmem:[%s619 + $0x68] sm:$0xff]
      %v655 = vld [vmem:[%s619 + $0x70] sm:$0xff]
      %v656 = vld [vmem:[%s619 + $0x78] sm:$0xff]
      %v657 = vld [vmem:[%s619 + $0x80] sm:$0xff]
      %v658 = vld [vmem:[%s619 + $0x88] sm:$0xff]
      %v659 = vld [vmem:[%s619 + $0x90] sm:$0xff]
      %v660 = vld [vmem:[%s619 + $0x98] sm:$0xff]
      %v661 = vld [vmem:[%s619 + $0xa0] sm:$0xff]
      %v662 = vld [vmem:[%s619 + $0xa8] sm:$0xff]
      %v663 = vld [vmem:[%s619 + $0xb0] sm:$0xff]
      %v664 = vld [vmem:[%s619 + $0xb8] sm:$0xff]
      %v665 = vld [vmem:[%s619 + $0xc0] sm:$0xff]
      %v666 = vld [vmem:[%s619 + $0xc8] sm:$0xff]
      %v667 = vld [vmem:[%s619 + $0xd0] sm:$0xff]
      %v668 = vld [vmem:[%s619 + $0xd8] sm:$0xff]
      %v669 = vld [vmem:[%s619 + $0xe0] sm:$0xff]
      %v670 = vld [vmem:[%s619 + $0xe8] sm:$0xff]
      %v671 = vld [vmem:[%s619 + $0xf0] sm:$0xff]
      %v672 = vld [vmem:[%s619 + $0xf8] sm:$0xff]
      %v673 = vpack.c.bf16 %v642, %v641
      %v674 = vpack.c.bf16 %v644, %v643
      %v675 = vpack.c.bf16 %v646, %v645
      %v676 = vpack.c.bf16 %v648, %v647
      %v677 = vpack.c.bf16 %v650, %v649
      %v678 = vpack.c.bf16 %v652, %v651
      %v679 = vpack.c.bf16 %v654, %v653
      %v680 = vpack.c.bf16 %v656, %v655
      %v681 = vpack.c.bf16 %v658, %v657
      %v682 = vpack.c.bf16 %v660, %v659
      %v683 = vpack.c.bf16 %v662, %v661
      %v684 = vpack.c.bf16 %v664, %v663
      %v685 = vpack.c.bf16 %v666, %v665
      %v686 = vpack.c.bf16 %v668, %v667
      %v687 = vpack.c.bf16 %v670, %v669
      %v688 = vpack.c.bf16 %v672, %v671
      %v689 = vld [vmem:[%s1] sm:$0x3]
      %vm690 = vcmask 31744
      %v692 = vsel %vm690, %v673, 0
      %v695 = vsel %vm690, %v674, 0
      %v698 = vsel %vm690, %v675, 0
      %v701 = vsel %vm690, %v676, 0
      %v704 = vsel %vm690, %v677, 0
      %v707 = vsel %vm690, %v678, 0
      %v710 = vsel %vm690, %v679, 0
      %v713 = vsel %vm690, %v680, 0
      %v716 = vsel %vm690, %v681, 0
      %v719 = vsel %vm690, %v682, 0
      %v722 = vsel %vm690, %v683, 0
      %v725 = vsel %vm690, %v684, 0
      %v728 = vsel %vm690, %v685, 0
      %v731 = vsel %vm690, %v686, 0
      %v734 = vsel %vm690, %v687, 0
      %v737 = vsel %vm690, %v688, 0
      %vm739 = vcmask 1041408
      %v741 = vsel %vm739, %v689, 0
      %743 = vmatprep.subr.bf16.mxu0 0
      %744 = vmatpush1.bf16.msra.mxu0 0
      %745 = vmatprep.subr.bf16.mxu0 0
      %746 = vmatpush1.bf16.msra.mxu0 0
      %747 = vmatprep.subr.bf16.mxu0 0
      %748 = vmatpush1.bf16.msra.mxu0 0
      %749 = vmatprep.subr.bf16.mxu0 0
      %750 = vmatpush1.bf16.msra.mxu0 0
      %751 = vmatprep.subr.bf16.mxu0 0
      %752 = vmatpush1.bf16.msra.mxu0 0
      %753 = vmatprep.subr.bf16.mxu0 0
      %754 = vmatpush1.bf16.msra.mxu0 0
      %755 = vmatprep.subr.bf16.mxu0 0
      %756 = vmatpush1.bf16.msra.mxu0 0
      %757 = vmatprep.subr.bf16.mxu0 0
      %758 = vmatpush1.bf16.msra.mxu0 %v741
      %759 = vmatprep.subr.bf16.mxu0 0
      %760 = vmatpush2.bf16.msra.mxu0 0
      %761 = vmatprep.subr.bf16.mxu0 0
      %762 = vmatpush2.bf16.msra.mxu0 0
      %763 = vmatprep.subr.bf16.mxu0 0
      %764 = vmatpush2.bf16.msra.mxu0 0
      %765 = vmatprep.subr.bf16.mxu0 0
      %766 = vmatpush2.bf16.msra.mxu0 0
      %767 = vmatprep.subr.bf16.mxu0 0
      %768 = vmatpush2.bf16.msra.mxu0 0
      %769 = vmatprep.subr.bf16.mxu0 0
      %770 = vmatpush2.bf16.msra.mxu0 0
      %771 = vmatprep.subr.bf16.mxu0 0
      %772 = vmatpush2.bf16.msra.mxu0 0
      %773 = vmatprep.subr.bf16.mxu0 0
      %774 = vmatpush2.bf16.msra.mxu0 0
      %775 = vmatprep.mubr.bf16.mxu0 0
      %776 = vmatmul.mubr.bf16.gmra.mxu0 %v692
      %v777 = vpop.f32.mrf.mxu0
      %v778 = vadd.f32 0.0, %v777
      %v779 = vpop.f32.mrf.mxu0
      %v780 = vpop.f32.mrf.mxu0
      %v781 = vadd.f32 0.0, %v780
      %v782 = vpop.f32.mrf.mxu0
      %783 = vmatprep.mubr.bf16.mxu0 0
      %784 = vmatmul.mubr.bf16.gmra.mxu0 %v695
      %v785 = vpop.f32.mrf.mxu0
      %v786 = vadd.f32 0.0, %v785
      %v787 = vpop.f32.mrf.mxu0
      %v788 = vpop.f32.mrf.mxu0
      %v789 = vadd.f32 0.0, %v788
      %v790 = vpop.f32.mrf.mxu0
      %791 = vmatprep.mubr.bf16.mxu0 0
      %792 = vmatmul.mubr.bf16.gmra.mxu0 %v698
      %v793 = vpop.f32.mrf.mxu0
      %v794 = vadd.f32 0.0, %v793
      %v795 = vpop.f32.mrf.mxu0
      %v796 = vpop.f32.mrf.mxu0
      %v797 = vadd.f32 0.0, %v796
      %v798 = vpop.f32.mrf.mxu0
      %799 = vmatprep.mubr.bf16.mxu0 0
      %800 = vmatmul.mubr.bf16.gmra.mxu0 %v701
      %v801 = vpop.f32.mrf.mxu0
      %v802 = vadd.f32 0.0, %v801
      %v803 = vpop.f32.mrf.mxu0
      %v804 = vpop.f32.mrf.mxu0
      %v805 = vadd.f32 0.0, %v804
      %v806 = vpop.f32.mrf.mxu0
      %807 = vmatprep.mubr.bf16.mxu0 0
      %808 = vmatmul.mubr.bf16.gmra.mxu0 %v704
      %v809 = vpop.f32.mrf.mxu0
      %v810 = vadd.f32 0.0, %v809
      %v811 = vpop.f32.mrf.mxu0
      %v812 = vpop.f32.mrf.mxu0
      %v813 = vadd.f32 0.0, %v812
      %v814 = vpop.f32.mrf.mxu0
      %815 = vmatprep.mubr.bf16.mxu0 0
      %816 = vmatmul.mubr.bf16.gmra.mxu0 %v707
      %v817 = vpop.f32.mrf.mxu0
      %v818 = vadd.f32 0.0, %v817
      %v819 = vpop.f32.mrf.mxu0
      %v820 = vpop.f32.mrf.mxu0
      %v821 = vadd.f32 0.0, %v820
      %v822 = vpop.f32.mrf.mxu0
      %823 = vmatprep.mubr.bf16.mxu0 0
      %824 = vmatmul.mubr.bf16.gmra.mxu0 %v710
      %v825 = vpop.f32.mrf.mxu0
      %v826 = vadd.f32 0.0, %v825
      %v827 = vpop.f32.mrf.mxu0
      %v828 = vpop.f32.mrf.mxu0
      %v829 = vadd.f32 0.0, %v828
      %v830 = vpop.f32.mrf.mxu0
      %831 = vmatprep.mubr.bf16.mxu0 0
      %832 = vmatmul.mubr.bf16.gmra.mxu0 %v713
      %v833 = vpop.f32.mrf.mxu0
      %v834 = vadd.f32 0.0, %v833
      %v835 = vpop.f32.mrf.mxu0
      %v836 = vpop.f32.mrf.mxu0
      %v837 = vadd.f32 0.0, %v836
      %v838 = vpop.f32.mrf.mxu0
      %839 = vmatprep.mubr.bf16.mxu0 0
      %840 = vmatmul.mubr.bf16.gmra.mxu0 %v716
      %v841 = vpop.f32.mrf.mxu0
      %v842 = vadd.f32 0.0, %v841
      %v843 = vpop.f32.mrf.mxu0
      %v844 = vpop.f32.mrf.mxu0
      %v845 = vadd.f32 0.0, %v844
      %v846 = vpop.f32.mrf.mxu0
      %847 = vmatprep.mubr.bf16.mxu0 0
      %848 = vmatmul.mubr.bf16.gmra.mxu0 %v719
      %v849 = vpop.f32.mrf.mxu0
      %v850 = vadd.f32 0.0, %v849
      %v851 = vpop.f32.mrf.mxu0
      %v852 = vpop.f32.mrf.mxu0
      %v853 = vadd.f32 0.0, %v852
      %v854 = vpop.f32.mrf.mxu0
      %855 = vmatprep.mubr.bf16.mxu0 0
      %856 = vmatmul.mubr.bf16.gmra.mxu0 %v722
      %v857 = vpop.f32.mrf.mxu0
      %v858 = vadd.f32 0.0, %v857
      %v859 = vpop.f32.mrf.mxu0
      %v860 = vpop.f32.mrf.mxu0
      %v861 = vadd.f32 0.0, %v860
      %v862 = vpop.f32.mrf.mxu0
      %863 = vmatprep.mubr.bf16.mxu0 0
      %864 = vmatmul.mubr.bf16.gmra.mxu0 %v725
      %v865 = vpop.f32.mrf.mxu0
      %v866 = vadd.f32 0.0, %v865
      %v867 = vpop.f32.mrf.mxu0
      %v868 = vpop.f32.mrf.mxu0
      %v869 = vadd.f32 0.0, %v868
      %v870 = vpop.f32.mrf.mxu0
      %871 = vmatprep.mubr.bf16.mxu0 0
      %872 = vmatmul.mubr.bf16.gmra.mxu0 %v728
      %v873 = vpop.f32.mrf.mxu0
      %v874 = vadd.f32 0.0, %v873
      %v875 = vpop.f32.mrf.mxu0
      %v876 = vpop.f32.mrf.mxu0
      %v877 = vadd.f32 0.0, %v876
      %v878 = vpop.f32.mrf.mxu0
      %879 = vmatprep.mubr.bf16.mxu0 0
      %880 = vmatmul.mubr.bf16.gmra.mxu0 %v731
      %v881 = vpop.f32.mrf.mxu0
      %v882 = vadd.f32 0.0, %v881
      %v883 = vpop.f32.mrf.mxu0
      %v884 = vpop.f32.mrf.mxu0
      %v885 = vadd.f32 0.0, %v884
      %v886 = vpop.f32.mrf.mxu0
      %887 = vmatprep.mubr.bf16.mxu0 0
      %888 = vmatmul.mubr.bf16.gmra.mxu0 %v734
      %v889 = vpop.f32.mrf.mxu0
      %v890 = vadd.f32 0.0, %v889
      %v891 = vpop.f32.mrf.mxu0
      %v892 = vpop.f32.mrf.mxu0
      %v893 = vadd.f32 0.0, %v892
      %v894 = vpop.f32.mrf.mxu0
      %895 = vmatprep.mubr.bf16.mxu0 0
      %896 = vmatmul.mubr.bf16.gmra.mxu0 %v737
      %v897 = vpop.f32.mrf.mxu0
      %v898 = vadd.f32 0.0, %v897
      %v899 = vpop.f32.mrf.mxu0
      %v900 = vpop.f32.mrf.mxu0
      %v901 = vadd.f32 0.0, %v900
      %v902 = vpop.f32.mrf.mxu0
      %903 = vdwg.mxu0
      %v904 = vld [vmem:[%s2] sm:$0x1]
      %v906 = vlaneseq
      %v907 = vshrl.u32 %v906, 7
      %v908 = vsub.s32 0, %v907
      %v909 = vrot.slane %v904, %v908
      %v911 = vmul.f32 %v778, %v909
      %v912 = vmul.f32 %v781, %v909
      %v913 = vmul.f32 %v786, %v909
      %v914 = vmul.f32 %v789, %v909
      %v915 = vmul.f32 %v794, %v909
      %v916 = vmul.f32 %v797, %v909
      %v917 = vmul.f32 %v802, %v909
      %v918 = vmul.f32 %v805, %v909
      %v919 = vmul.f32 %v810, %v909
      %v920 = vmul.f32 %v813, %v909
      %v921 = vmul.f32 %v818, %v909
      %v922 = vmul.f32 %v821, %v909
      %v923 = vmul.f32 %v826, %v909
      %v924 = vmul.f32 %v829, %v909
      %v925 = vmul.f32 %v834, %v909
      %v926 = vmul.f32 %v837, %v909
      %v927 = vmul.f32 %v842, %v909
      %v928 = vmul.f32 %v845, %v909
      %v929 = vmul.f32 %v850, %v909
      %v930 = vmul.f32 %v853, %v909
      %v931 = vmul.f32 %v858, %v909
      %v932 = vmul.f32 %v861, %v909
      %v933 = vmul.f32 %v866, %v909
      %v934 = vmul.f32 %v869, %v909
      %v935 = vmul.f32 %v874, %v909
      %v936 = vmul.f32 %v877, %v909
      %v937 = vmul.f32 %v882, %v909
      %v938 = vmul.f32 %v885, %v909
      %v939 = vmul.f32 %v890, %v909
      %v940 = vmul.f32 %v893, %v909
      %v941 = vmul.f32 %v898, %v909
      %v942 = vmul.f32 %v901, %v909
      %v943 = vld [vmem:[%s3] sm:$0x1]
      %v945 = vlaneseq
      %v946 = vshrl.u32 %v945, 7
      %v947 = vsub.s32 0, %v946
      %v948 = vrot.slane %v943, %v947
      %v950 = vadd.f32 %v911, %v948
      %v951 = vadd.f32 %v912, %v948
      %v952 = vadd.f32 %v913, %v948
      %v953 = vadd.f32 %v914, %v948
      %v954 = vadd.f32 %v915, %v948
      %v955 = vadd.f32 %v916, %v948
      %v956 = vadd.f32 %v917, %v948
      %v957 = vadd.f32 %v918, %v948
      %v958 = vadd.f32 %v919, %v948
      %v959 = vadd.f32 %v920, %v948
      %v960 = vadd.f32 %v921, %v948
      %v961 = vadd.f32 %v922, %v948
      %v962 = vadd.f32 %v923, %v948
      %v963 = vadd.f32 %v924, %v948
      %v964 = vadd.f32 %v925, %v948
      %v965 = vadd.f32 %v926, %v948
      %v966 = vadd.f32 %v927, %v948
      %v967 = vadd.f32 %v928, %v948
      %v968 = vadd.f32 %v929, %v948
      %v969 = vadd.f32 %v930, %v948
      %v970 = vadd.f32 %v931, %v948
      %v971 = vadd.f32 %v932, %v948
      %v972 = vadd.f32 %v933, %v948
      %v973 = vadd.f32 %v934, %v948
      %v974 = vadd.f32 %v935, %v948
      %v975 = vadd.f32 %v936, %v948
      %v976 = vadd.f32 %v937, %v948
      %v977 = vadd.f32 %v938, %v948
      %v978 = vadd.f32 %v939, %v948
      %v979 = vadd.f32 %v940, %v948
      %v980 = vadd.f32 %v941, %v948
      %v981 = vadd.f32 %v942, %v948
      %v982 = vmax.f32 %v950, 0.0
      %v983 = vmax.f32 %v951, 0.0
      %v984 = vmax.f32 %v952, 0.0
      %v985 = vmax.f32 %v953, 0.0
      %v986 = vmax.f32 %v954, 0.0
      %v987 = vmax.f32 %v955, 0.0
      %v988 = vmax.f32 %v956, 0.0
      %v989 = vmax.f32 %v957, 0.0
      %v990 = vmax.f32 %v958, 0.0
      %v991 = vmax.f32 %v959, 0.0
      %v992 = vmax.f32 %v960, 0.0
      %v993 = vmax.f32 %v961, 0.0
      %v994 = vmax.f32 %v962, 0.0
      %v995 = vmax.f32 %v963, 0.0
      %v996 = vmax.f32 %v964, 0.0
      %v997 = vmax.f32 %v965, 0.0
      %v998 = vmax.f32 %v966, 0.0
      %v999 = vmax.f32 %v967, 0.0
      %v1000 = vmax.f32 %v968, 0.0
      %v1001 = vmax.f32 %v969, 0.0
      %v1002 = vmax.f32 %v970, 0.0
      %v1003 = vmax.f32 %v971, 0.0
      %v1004 = vmax.f32 %v972, 0.0
      %v1005 = vmax.f32 %v973, 0.0
      %v1006 = vmax.f32 %v974, 0.0
      %v1007 = vmax.f32 %v975, 0.0
      %v1008 = vmax.f32 %v976, 0.0
      %v1009 = vmax.f32 %v977, 0.0
      %v1010 = vmax.f32 %v978, 0.0
      %v1011 = vmax.f32 %v979, 0.0
      %v1012 = vmax.f32 %v980, 0.0
      %v1013 = vmax.f32 %v981, 0.0
      %1046 = vrot.lane.b32.xlu0 %v982, 120
      %v1047 = vpop.permute.xlu0 %1046
      %1048 = vrot.lane.b32.xlu0 %v983, 120
      %v1049 = vpop.permute.xlu0 %1048
      %1050 = vrot.lane.b32.xlu0 %v984, 120
      %v1051 = vpop.permute.xlu0 %1050
      %1052 = vrot.lane.b32.xlu0 %v985, 120
      %v1053 = vpop.permute.xlu0 %1052
      %1054 = vrot.lane.b32.xlu0 %v986, 120
      %v1055 = vpop.permute.xlu0 %1054
      %1056 = vrot.lane.b32.xlu0 %v987, 120
      %v1057 = vpop.permute.xlu0 %1056
      %1058 = vrot.lane.b32.xlu0 %v988, 120
      %v1059 = vpop.permute.xlu0 %1058
      %1060 = vrot.lane.b32.xlu0 %v989, 120
      %v1061 = vpop.permute.xlu0 %1060
      %1062 = vrot.lane.b32.xlu0 %v990, 120
      %v1063 = vpop.permute.xlu0 %1062
      %1064 = vrot.lane.b32.xlu0 %v991, 120
      %v1065 = vpop.permute.xlu0 %1064
      %1066 = vrot.lane.b32.xlu0 %v992, 120
      %v1067 = vpop.permute.xlu0 %1066
      %1068 = vrot.lane.b32.xlu0 %v993, 120
      %v1069 = vpop.permute.xlu0 %1068
      %1070 = vrot.lane.b32.xlu0 %v994, 120
      %v1071 = vpop.permute.xlu0 %1070
      %1072 = vrot.lane.b32.xlu0 %v995, 120
      %v1073 = vpop.permute.xlu0 %1072
      %1074 = vrot.lane.b32.xlu0 %v996, 120
      %v1075 = vpop.permute.xlu0 %1074
      %1076 = vrot.lane.b32.xlu0 %v997, 120
      %v1077 = vpop.permute.xlu0 %1076
      %1078 = vrot.lane.b32.xlu0 %v998, 120
      %v1079 = vpop.permute.xlu0 %1078
      %1080 = vrot.lane.b32.xlu0 %v999, 120
      %v1081 = vpop.permute.xlu0 %1080
      %1082 = vrot.lane.b32.xlu0 %v1000, 120
      %v1083 = vpop.permute.xlu0 %1082
      %1084 = vrot.lane.b32.xlu0 %v1001, 120
      %v1085 = vpop.permute.xlu0 %1084
      %1086 = vrot.lane.b32.xlu0 %v1002, 120
      %v1087 = vpop.permute.xlu0 %1086
      %1088 = vrot.lane.b32.xlu0 %v1003, 120
      %v1089 = vpop.permute.xlu0 %1088
      %1090 = vrot.lane.b32.xlu0 %v1004, 120
      %v1091 = vpop.permute.xlu0 %1090
      %1092 = vrot.lane.b32.xlu0 %v1005, 120
      %v1093 = vpop.permute.xlu0 %1092
      %1094 = vrot.lane.b32.xlu0 %v1006, 120
      %v1095 = vpop.permute.xlu0 %1094
      %1096 = vrot.lane.b32.xlu0 %v1007, 120
      %v1097 = vpop.permute.xlu0 %1096
      %1098 = vrot.lane.b32.xlu0 %v1008, 120
      %v1099 = vpop.permute.xlu0 %1098
      %1100 = vrot.lane.b32.xlu0 %v1009, 120
      %v1101 = vpop.permute.xlu0 %1100
      %1102 = vrot.lane.b32.xlu0 %v1010, 120
      %v1103 = vpop.permute.xlu0 %1102
      %1104 = vrot.lane.b32.xlu0 %v1011, 120
      %v1105 = vpop.permute.xlu0 %1104
      %1106 = vrot.lane.b32.xlu0 %v1012, 120
      %v1107 = vpop.permute.xlu0 %1106
      %1108 = vrot.lane.b32.xlu0 %v1013, 120
      %v1109 = vpop.permute.xlu0 %1108
      %v1142 = vlaneseq
      %v1143 = vshrl.u32 %v1142, 7
      %v1144 = vadd.s32 %v1143, 8
      %vm1145 = vcmp.ge.s32.totalorder %v1143, 1
      %vm1146 = vcmp.ge.s32.totalorder %v1144, 1
      %vm1147 = vcmp.le.s32.totalorder %v1143, 14
      %vm1148 = vcmp.le.s32.totalorder %v1144, 14
      %vm1150 = vcmask 1040384
      %v1151 = vrot.slane 0.0, 7
      %v1152 = vsel %vm1150, %v1151, %v1151
      %v1153 = vrot.slane %v1047, 7
      %v1154 = vsel %vm1150, %v1151, %v1153
      %v1155 = vrot.slane %v1049, 7
      %v1156 = vsel %vm1150, %v1153, %v1155
      %v1157 = vrot.slane %v1051, 7
      %v1158 = vsel %vm1150, %v1155, %v1157
      %v1159 = vrot.slane %v1053, 7
      %v1160 = vsel %vm1150, %v1157, %v1159
      %v1161 = vrot.slane %v1055, 7
      %v1162 = vsel %vm1150, %v1159, %v1161
      %v1163 = vrot.slane %v1057, 7
      %v1164 = vsel %vm1150, %v1161, %v1163
      %v1165 = vrot.slane %v1059, 7
      %v1166 = vsel %vm1150, %v1163, %v1165
      %v1167 = vrot.slane %v1061, 7
      %v1168 = vsel %vm1150, %v1165, %v1167
      %v1169 = vrot.slane %v1063, 7
      %v1170 = vsel %vm1150, %v1167, %v1169
      %v1171 = vrot.slane %v1065, 7
      %v1172 = vsel %vm1150, %v1169, %v1171
      %v1173 = vrot.slane %v1067, 7
      %v1174 = vsel %vm1150, %v1171, %v1173
      %v1175 = vrot.slane %v1069, 7
      %v1176 = vsel %vm1150, %v1173, %v1175
      %v1177 = vrot.slane %v1071, 7
      %v1178 = vsel %vm1150, %v1175, %v1177
      %v1179 = vrot.slane %v1073, 7
      %v1180 = vsel %vm1150, %v1177, %v1179
      %v1181 = vrot.slane %v1075, 7
      %v1182 = vsel %vm1150, %v1179, %v1181
      %v1183 = vrot.slane %v1077, 7
      %v1184 = vsel %vm1150, %v1181, %v1183
      %v1185 = vrot.slane %v1079, 7
      %v1186 = vsel %vm1150, %v1183, %v1185
      %v1187 = vrot.slane %v1081, 7
      %v1188 = vsel %vm1150, %v1185, %v1187
      %v1189 = vrot.slane %v1083, 7
      %v1190 = vsel %vm1150, %v1187, %v1189
      %v1191 = vrot.slane %v1085, 7
      %v1192 = vsel %vm1150, %v1189, %v1191
      %v1193 = vrot.slane %v1087, 7
      %v1194 = vsel %vm1150, %v1191, %v1193
      %v1195 = vrot.slane %v1089, 7
      %v1196 = vsel %vm1150, %v1193, %v1195
      %v1197 = vrot.slane %v1091, 7
      %v1198 = vsel %vm1150, %v1195, %v1197
      %v1199 = vrot.slane %v1093, 7
      %v1200 = vsel %vm1150, %v1197, %v1199
      %v1201 = vrot.slane %v1095, 7
      %v1202 = vsel %vm1150, %v1199, %v1201
      %v1203 = vrot.slane %v1097, 7
      %v1204 = vsel %vm1150, %v1201, %v1203
      %v1205 = vrot.slane %v1099, 7
      %v1206 = vsel %vm1150, %v1203, %v1205
      %v1207 = vrot.slane %v1101, 7
      %v1208 = vsel %vm1150, %v1205, %v1207
      %v1209 = vrot.slane %v1103, 7
      %v1210 = vsel %vm1150, %v1207, %v1209
      %v1211 = vrot.slane %v1105, 7
      %v1212 = vsel %vm1150, %v1209, %v1211
      %v1244 = vsel %vm1145, %v1152, 0.0
      %v1245 = vsel %vm1146, %v1152, 0.0
      %v1246 = vsel %vm1145, %v1154, 0.0
      %v1247 = vsel %vm1146, %v1156, 0.0
      %v1248 = vsel %vm1145, %v1158, 0.0
      %v1249 = vsel %vm1146, %v1160, 0.0
      %v1250 = vsel %vm1145, %v1162, 0.0
      %v1251 = vsel %vm1146, %v1164, 0.0
      %v1252 = vsel %vm1145, %v1166, 0.0
      %v1253 = vsel %vm1146, %v1168, 0.0
      %v1254 = vsel %vm1145, %v1170, 0.0
      %v1255 = vsel %vm1146, %v1172, 0.0
      %v1256 = vsel %vm1145, %v1174, 0.0
      %v1257 = vsel %vm1146, %v1176, 0.0
      %v1258 = vsel %vm1145, %v1178, 0.0
      %v1259 = vsel %vm1146, %v1180, 0.0
      %v1260 = vsel %vm1145, %v1182, 0.0
      %v1261 = vsel %vm1146, %v1184, 0.0
      %v1262 = vsel %vm1145, %v1186, 0.0
      %v1263 = vsel %vm1146, %v1188, 0.0
      %v1264 = vsel %vm1145, %v1190, 0.0
      %v1265 = vsel %vm1146, %v1192, 0.0
      %v1266 = vsel %vm1145, %v1194, 0.0
      %v1267 = vsel %vm1146, %v1196, 0.0
      %v1268 = vsel %vm1145, %v1198, 0.0
      %v1269 = vsel %vm1146, %v1200, 0.0
      %v1270 = vsel %vm1145, %v1202, 0.0
      %v1271 = vsel %vm1146, %v1204, 0.0
      %v1272 = vsel %vm1145, %v1206, 0.0
      %v1273 = vsel %vm1146, %v1208, 0.0
      %v1274 = vsel %vm1145, %v1210, 0.0
      %v1275 = vsel %vm1146, %v1212, 0.0
      %vm1276 = vcmask 1046528
      %v1277 = vrot.slane 0.0, 1
      %v1278 = vsel %vm1276, %v1277, %v1277
      %v1279 = vrot.slane %v1047, 1
      %v1280 = vsel %vm1276, %v1277, %v1279
      %v1281 = vrot.slane %v1049, 1
      %v1282 = vsel %vm1276, %v1279, %v1281
      %v1283 = vrot.slane %v1051, 1
      %v1284 = vsel %vm1276, %v1281, %v1283
      %v1285 = vrot.slane %v1053, 1
      %v1286 = vsel %vm1276, %v1283, %v1285
      %v1287 = vrot.slane %v1055, 1
      %v1288 = vsel %vm1276, %v1285, %v1287
      %v1289 = vrot.slane %v1057, 1
      %v1290 = vsel %vm1276, %v1287, %v1289
      %v1291 = vrot.slane %v1059, 1
      %v1292 = vsel %vm1276, %v1289, %v1291
      %v1293 = vrot.slane %v1061, 1
      %v1294 = vsel %vm1276, %v1291, %v1293
      %v1295 = vrot.slane %v1063, 1
      %v1296 = vsel %vm1276, %v1293, %v1295
      %v1297 = vrot.slane %v1065, 1
      %v1298 = vsel %vm1276, %v1295, %v1297
      %v1299 = vrot.slane %v1067, 1
      %v1300 = vsel %vm1276, %v1297, %v1299
      %v1301 = vrot.slane %v1069, 1
      %v1302 = vsel %vm1276, %v1299, %v1301
      %v1303 = vrot.slane %v1071, 1
      %v1304 = vsel %vm1276, %v1301, %v1303
      %v1305 = vrot.slane %v1073, 1
      %v1306 = vsel %vm1276, %v1303, %v1305
      %v1307 = vrot.slane %v1075, 1
      %v1308 = vsel %vm1276, %v1305, %v1307
      %v1309 = vrot.slane %v1077, 1
      %v1310 = vsel %vm1276, %v1307, %v1309
      %v1311 = vrot.slane %v1079, 1
      %v1312 = vsel %vm1276, %v1309, %v1311
      %v1313 = vrot.slane %v1081, 1
      %v1314 = vsel %vm1276, %v1311, %v1313
      %v1315 = vrot.slane %v1083, 1
      %v1316 = vsel %vm1276, %v1313, %v1315
      %v1317 = vrot.slane %v1085, 1
      %v1318 = vsel %vm1276, %v1315, %v1317
      %v1319 = vrot.slane %v1087, 1
      %v1320 = vsel %vm1276, %v1317, %v1319
      %v1321 = vrot.slane %v1089, 1
      %v1322 = vsel %vm1276, %v1319, %v1321
      %v1323 = vrot.slane %v1091, 1
      %v1324 = vsel %vm1276, %v1321, %v1323
      %v1325 = vrot.slane %v1093, 1
      %v1326 = vsel %vm1276, %v1323, %v1325
      %v1327 = vrot.slane %v1095, 1
      %v1328 = vsel %vm1276, %v1325, %v1327
      %v1329 = vrot.slane %v1097, 1
      %v1330 = vsel %vm1276, %v1327, %v1329
      %v1331 = vrot.slane %v1099, 1
      %v1332 = vsel %vm1276, %v1329, %v1331
      %v1333 = vrot.slane %v1101, 1
      %v1334 = vsel %vm1276, %v1331, %v1333
      %v1335 = vrot.slane %v1103, 1
      %v1336 = vsel %vm1276, %v1333, %v1335
      %v1337 = vrot.slane %v1105, 1
      %v1338 = vsel %vm1276, %v1335, %v1337
      %v1339 = vrot.slane %v1107, 1
      %v1340 = vsel %vm1276, %v1337, %v1339
      %v1373 = vsel %vm1147, %v1278, 0.0
      %v1374 = vsel %vm1148, %v1280, 0.0
      %v1375 = vsel %vm1147, %v1282, 0.0
      %v1376 = vsel %vm1148, %v1284, 0.0
      %v1377 = vsel %vm1147, %v1286, 0.0
      %v1378 = vsel %vm1148, %v1288, 0.0
      %v1379 = vsel %vm1147, %v1290, 0.0
      %v1380 = vsel %vm1148, %v1292, 0.0
      %v1381 = vsel %vm1147, %v1294, 0.0
      %v1382 = vsel %vm1148, %v1296, 0.0
      %v1383 = vsel %vm1147, %v1298, 0.0
      %v1384 = vsel %vm1148, %v1300, 0.0
      %v1385 = vsel %vm1147, %v1302, 0.0
      %v1386 = vsel %vm1148, %v1304, 0.0
      %v1387 = vsel %vm1147, %v1306, 0.0
      %v1388 = vsel %vm1148, %v1308, 0.0
      %v1389 = vsel %vm1147, %v1310, 0.0
      %v1390 = vsel %vm1148, %v1312, 0.0
      %v1391 = vsel %vm1147, %v1314, 0.0
      %v1392 = vsel %vm1148, %v1316, 0.0
      %v1393 = vsel %vm1147, %v1318, 0.0
      %v1394 = vsel %vm1148, %v1320, 0.0
      %v1395 = vsel %vm1147, %v1322, 0.0
      %v1396 = vsel %vm1148, %v1324, 0.0
      %v1397 = vsel %vm1147, %v1326, 0.0
      %v1398 = vsel %vm1148, %v1328, 0.0
      %v1399 = vsel %vm1147, %v1330, 0.0
      %v1400 = vsel %vm1148, %v1332, 0.0
      %v1401 = vsel %vm1147, %v1334, 0.0
      %v1402 = vsel %vm1148, %v1336, 0.0
      %v1403 = vsel %vm1147, %v1338, 0.0
      %v1404 = vsel %vm1148, %v1340, 0.0
      %v1405 = vrot.slane %v1107, 7
      %v1406 = vsel %vm1150, %v1211, %v1405
      %v1407 = vrot.slane %v1109, 7
      %v1408 = vsel %vm1150, %v1405, %v1407
      %v1411 = vsel %vm1145, %v1406, 0.0
      %v1412 = vsel %vm1146, %v1408, 0.0
      %v1413 = vrot.slane %v1109, 1
      %v1414 = vsel %vm1276, %v1339, %v1413
      %v1415 = vsel %vm1276, %v1413, %v1277
      %v1418 = vsel %vm1147, %v1414, 0.0
      %v1419 = vsel %vm1148, %v1415, 0.0
      %v1420 = vsel %vm1150, %v1407, %v1151
      %v1422 = vsel %vm1145, %v1420, 0.0
      %v1423 = vsel %vm1148, %v1278, 0.0
      %v1424 = vpack.c.bf16 %v1245, %v1244
      %v1425 = vpack.c.bf16 %v1247, %v1246
      %v1426 = vpack.c.bf16 %v1249, %v1248
      %v1427 = vpack.c.bf16 %v1251, %v1250
      %v1428 = vpack.c.bf16 %v1253, %v1252
      %v1429 = vpack.c.bf16 %v1255, %v1254
      %v1430 = vpack.c.bf16 %v1257, %v1256
      %v1431 = vpack.c.bf16 %v1259, %v1258
      %v1432 = vpack.c.bf16 %v1261, %v1260
      %v1433 = vpack.c.bf16 %v1263, %v1262
      %v1434 = vpack.c.bf16 %v1265, %v1264
      %v1435 = vpack.c.bf16 %v1267, %v1266
      %v1436 = vpack.c.bf16 %v1269, %v1268
      %v1437 = vpack.c.bf16 %v1271, %v1270
      %v1438 = vpack.c.bf16 %v1273, %v1272
      %v1439 = vpack.c.bf16 %v1275, %v1274
      %v1440 = vld [vmem:[%s4] sm:$0x3]
      %v1441 = vpack.c.bf16 0.0, 0.0
      %v1442 = vpack.c.bf16 %v1049, %v1047
      %v1443 = vpack.c.bf16 %v1053, %v1051
      %v1444 = vpack.c.bf16 %v1057, %v1055
      %v1445 = vpack.c.bf16 %v1061, %v1059
      %v1446 = vpack.c.bf16 %v1065, %v1063
      %v1447 = vpack.c.bf16 %v1069, %v1067
      %v1448 = vpack.c.bf16 %v1073, %v1071
      %v1449 = vpack.c.bf16 %v1077, %v1075
      %v1450 = vpack.c.bf16 %v1081, %v1079
      %v1451 = vpack.c.bf16 %v1085, %v1083
      %v1452 = vpack.c.bf16 %v1089, %v1087
      %v1453 = vpack.c.bf16 %v1093, %v1091
      %v1454 = vpack.c.bf16 %v1097, %v1095
      %v1455 = vpack.c.bf16 %v1101, %v1099
      %v1456 = vpack.c.bf16 %v1105, %v1103
      %s1457 = scalar_lea.vmem %s4, 2
      %v1458 = vld [vmem:[%s1457] sm:$0x3]
      %v1460 = vsel %vm690, %v1441, 0
      %v1463 = vsel %vm690, %v1442, 0
      %v1466 = vsel %vm690, %v1443, 0
      %v1469 = vsel %vm690, %v1444, 0
      %v1472 = vsel %vm690, %v1445, 0
      %v1475 = vsel %vm690, %v1446, 0
      %v1478 = vsel %vm690, %v1447, 0
      %v1481 = vsel %vm690, %v1448, 0
      %v1484 = vsel %vm690, %v1449, 0
      %v1487 = vsel %vm690, %v1450, 0
      %v1490 = vsel %vm690, %v1451, 0
      %v1493 = vsel %vm690, %v1452, 0
      %v1496 = vsel %vm690, %v1453, 0
      %v1499 = vsel %vm690, %v1454, 0
      %v1502 = vsel %vm690, %v1455, 0
      %v1505 = vsel %vm690, %v1456, 0
      %v1508 = vsel %vm739, %v1458, 0
      %1510 = vmatprep.subr.bf16.mxu0 0
      %1511 = vmatpush1.bf16.msra.mxu0 0
      %1512 = vmatprep.subr.bf16.mxu0 0
      %1513 = vmatpush1.bf16.msra.mxu0 0
      %1514 = vmatprep.subr.bf16.mxu0 0
      %1515 = vmatpush1.bf16.msra.mxu0 0
      %1516 = vmatprep.subr.bf16.mxu0 0
      %1517 = vmatpush1.bf16.msra.mxu0 0
      %1518 = vmatprep.subr.bf16.mxu0 0
      %1519 = vmatpush1.bf16.msra.mxu0 0
      %1520 = vmatprep.subr.bf16.mxu0 0
      %1521 = vmatpush1.bf16.msra.mxu0 0
      %1522 = vmatprep.subr.bf16.mxu0 0
      %1523 = vmatpush1.bf16.msra.mxu0 0
      %1524 = vmatprep.subr.bf16.mxu0 0
      %1525 = vmatpush1.bf16.msra.mxu0 %v1508
      %1526 = vmatprep.subr.bf16.mxu0 0
      %1527 = vmatpush2.bf16.msra.mxu0 0
      %1528 = vmatprep.subr.bf16.mxu0 0
      %1529 = vmatpush2.bf16.msra.mxu0 0
      %1530 = vmatprep.subr.bf16.mxu0 0
      %1531 = vmatpush2.bf16.msra.mxu0 0
      %1532 = vmatprep.subr.bf16.mxu0 0
      %1533 = vmatpush2.bf16.msra.mxu0 0
      %1534 = vmatprep.subr.bf16.mxu0 0
      %1535 = vmatpush2.bf16.msra.mxu0 0
      %1536 = vmatprep.subr.bf16.mxu0 0
      %1537 = vmatpush2.bf16.msra.mxu0 0
      %1538 = vmatprep.subr.bf16.mxu0 0
      %1539 = vmatpush2.bf16.msra.mxu0 0
      %1540 = vmatprep.subr.bf16.mxu0 0
      %1541 = vmatpush2.bf16.msra.mxu0 0
      %1542 = vmatprep.mubr.bf16.mxu0 0
      %1543 = vmatmul.mubr.bf16.gmra.mxu0 %v1460
      %v1544 = vpop.f32.mrf.mxu0
      %v1545 = vadd.f32 0.0, %v1544
      %v1546 = vpop.f32.mrf.mxu0
      %v1547 = vpop.f32.mrf.mxu0
      %v1548 = vadd.f32 0.0, %v1547
      %v1549 = vpop.f32.mrf.mxu0
      %1550 = vmatprep.mubr.bf16.mxu0 0
      %1551 = vmatmul.mubr.bf16.gmra.mxu0 %v1463
      %v1552 = vpop.f32.mrf.mxu0
      %v1553 = vadd.f32 0.0, %v1552
      %v1554 = vpop.f32.mrf.mxu0
      %v1555 = vpop.f32.mrf.mxu0
      %v1556 = vadd.f32 0.0, %v1555
      %v1557 = vpop.f32.mrf.mxu0
      %1558 = vmatprep.mubr.bf16.mxu0 0
      %1559 = vmatmul.mubr.bf16.gmra.mxu0 %v1466
      %v1560 = vpop.f32.mrf.mxu0
      %v1561 = vadd.f32 0.0, %v1560
      %v1562 = vpop.f32.mrf.mxu0
      %v1563 = vpop.f32.mrf.mxu0
      %v1564 = vadd.f32 0.0, %v1563
      %v1565 = vpop.f32.mrf.mxu0
      %1566 = vmatprep.mubr.bf16.mxu0 0
      %1567 = vmatmul.mubr.bf16.gmra.mxu0 %v1469
      %v1568 = vpop.f32.mrf.mxu0
      %v1569 = vadd.f32 0.0, %v1568
      %v1570 = vpop.f32.mrf.mxu0
      %v1571 = vpop.f32.mrf.mxu0
      %v1572 = vadd.f32 0.0, %v1571
      %v1573 = vpop.f32.mrf.mxu0
      %1574 = vmatprep.mubr.bf16.mxu0 0
      %1575 = vmatmul.mubr.bf16.gmra.mxu0 %v1472
      %v1576 = vpop.f32.mrf.mxu0
      %v1577 = vadd.f32 0.0, %v1576
      %v1578 = vpop.f32.mrf.mxu0
      %v1579 = vpop.f32.mrf.mxu0
      %v1580 = vadd.f32 0.0, %v1579
      %v1581 = vpop.f32.mrf.mxu0
      %1582 = vmatprep.mubr.bf16.mxu0 0
      %1583 = vmatmul.mubr.bf16.gmra.mxu0 %v1475
      %v1584 = vpop.f32.mrf.mxu0
      %v1585 = vadd.f32 0.0, %v1584
      %v1586 = vpop.f32.mrf.mxu0
      %v1587 = vpop.f32.mrf.mxu0
      %v1588 = vadd.f32 0.0, %v1587
      %v1589 = vpop.f32.mrf.mxu0
      %1590 = vmatprep.mubr.bf16.mxu0 0
      %1591 = vmatmul.mubr.bf16.gmra.mxu0 %v1478
      %v1592 = vpop.f32.mrf.mxu0
      %v1593 = vadd.f32 0.0, %v1592
      %v1594 = vpop.f32.mrf.mxu0
      %v1595 = vpop.f32.mrf.mxu0
      %v1596 = vadd.f32 0.0, %v1595
      %v1597 = vpop.f32.mrf.mxu0
      %1598 = vmatprep.mubr.bf16.mxu0 0
      %1599 = vmatmul.mubr.bf16.gmra.mxu0 %v1481
      %v1600 = vpop.f32.mrf.mxu0
      %v1601 = vadd.f32 0.0, %v1600
      %v1602 = vpop.f32.mrf.mxu0
      %v1603 = vpop.f32.mrf.mxu0
      %v1604 = vadd.f32 0.0, %v1603
      %v1605 = vpop.f32.mrf.mxu0
      %1606 = vmatprep.mubr.bf16.mxu0 0
      %1607 = vmatmul.mubr.bf16.gmra.mxu0 %v1484
      %v1608 = vpop.f32.mrf.mxu0
      %v1609 = vadd.f32 0.0, %v1608
      %v1610 = vpop.f32.mrf.mxu0
      %v1611 = vpop.f32.mrf.mxu0
      %v1612 = vadd.f32 0.0, %v1611
      %v1613 = vpop.f32.mrf.mxu0
      %1614 = vmatprep.mubr.bf16.mxu0 0
      %1615 = vmatmul.mubr.bf16.gmra.mxu0 %v1487
      %v1616 = vpop.f32.mrf.mxu0
      %v1617 = vadd.f32 0.0, %v1616
      %v1618 = vpop.f32.mrf.mxu0
      %v1619 = vpop.f32.mrf.mxu0
      %v1620 = vadd.f32 0.0, %v1619
      %v1621 = vpop.f32.mrf.mxu0
      %1622 = vmatprep.mubr.bf16.mxu0 0
      %1623 = vmatmul.mubr.bf16.gmra.mxu0 %v1490
      %v1624 = vpop.f32.mrf.mxu0
      %v1625 = vadd.f32 0.0, %v1624
      %v1626 = vpop.f32.mrf.mxu0
      %v1627 = vpop.f32.mrf.mxu0
      %v1628 = vadd.f32 0.0, %v1627
      %v1629 = vpop.f32.mrf.mxu0
      %1630 = vmatprep.mubr.bf16.mxu0 0
      %1631 = vmatmul.mubr.bf16.gmra.mxu0 %v1493
      %v1632 = vpop.f32.mrf.mxu0
      %v1633 = vadd.f32 0.0, %v1632
      %v1634 = vpop.f32.mrf.mxu0
      %v1635 = vpop.f32.mrf.mxu0
      %v1636 = vadd.f32 0.0, %v1635
      %v1637 = vpop.f32.mrf.mxu0
      %1638 = vmatprep.mubr.bf16.mxu0 0
      %1639 = vmatmul.mubr.bf16.gmra.mxu0 %v1496
      %v1640 = vpop.f32.mrf.mxu0
      %v1641 = vadd.f32 0.0, %v1640
      %v1642 = vpop.f32.mrf.mxu0
      %v1643 = vpop.f32.mrf.mxu0
      %v1644 = vadd.f32 0.0, %v1643
      %v1645 = vpop.f32.mrf.mxu0
      %1646 = vmatprep.mubr.bf16.mxu0 0
      %1647 = vmatmul.mubr.bf16.gmra.mxu0 %v1499
      %v1648 = vpop.f32.mrf.mxu0
      %v1649 = vadd.f32 0.0, %v1648
      %v1650 = vpop.f32.mrf.mxu0
      %v1651 = vpop.f32.mrf.mxu0
      %v1652 = vadd.f32 0.0, %v1651
      %v1653 = vpop.f32.mrf.mxu0
      %1654 = vmatprep.mubr.bf16.mxu0 0
      %1655 = vmatmul.mubr.bf16.gmra.mxu0 %v1502
      %v1656 = vpop.f32.mrf.mxu0
      %v1657 = vadd.f32 0.0, %v1656
      %v1658 = vpop.f32.mrf.mxu0
      %v1659 = vpop.f32.mrf.mxu0
      %v1660 = vadd.f32 0.0, %v1659
      %v1661 = vpop.f32.mrf.mxu0
      %1662 = vmatprep.mubr.bf16.mxu0 0
      %1663 = vmatmul.mubr.bf16.gmra.mxu0 %v1505
      %v1664 = vpop.f32.mrf.mxu0
      %v1665 = vadd.f32 0.0, %v1664
      %v1666 = vpop.f32.mrf.mxu0
      %v1667 = vpop.f32.mrf.mxu0
      %v1668 = vadd.f32 0.0, %v1667
      %v1669 = vpop.f32.mrf.mxu0
      %1670 = vdwg.mxu0
      %v1672 = vsel %vm690, %v1424, 0
      %v1675 = vsel %vm690, %v1425, 0
      %v1678 = vsel %vm690, %v1426, 0
      %v1681 = vsel %vm690, %v1427, 0
      %v1684 = vsel %vm690, %v1428, 0
      %v1687 = vsel %vm690, %v1429, 0
      %v1690 = vsel %vm690, %v1430, 0
      %v1693 = vsel %vm690, %v1431, 0
      %v1696 = vsel %vm690, %v1432, 0
      %v1699 = vsel %vm690, %v1433, 0
      %v1702 = vsel %vm690, %v1434, 0
      %v1705 = vsel %vm690, %v1435, 0
      %v1708 = vsel %vm690, %v1436, 0
      %v1711 = vsel %vm690, %v1437, 0
      %v1714 = vsel %vm690, %v1438, 0
      %v1717 = vsel %vm690, %v1439, 0
      %v1720 = vsel %vm739, %v1440, 0
      %1722 = vmatprep.subr.bf16.mxu0 0
      %1723 = vmatpush1.bf16.msra.mxu0 0
      %1724 = vmatprep.subr.bf16.mxu0 0
      %1725 = vmatpush1.bf16.msra.mxu0 0
      %1726 = vmatprep.subr.bf16.mxu0 0
      %1727 = vmatpush1.bf16.msra.mxu0 0
      %1728 = vmatprep.subr.bf16.mxu0 0
      %1729 = vmatpush1.bf16.msra.mxu0 0
      %1730 = vmatprep.subr.bf16.mxu0 0
      %1731 = vmatpush1.bf16.msra.mxu0 0
      %1732 = vmatprep.subr.bf16.mxu0 0
      %1733 = vmatpush1.bf16.msra.mxu0 0
      %1734 = vmatprep.subr.bf16.mxu0 0
      %1735 = vmatpush1.bf16.msra.mxu0 0
      %1736 = vmatprep.subr.bf16.mxu0 0
      %1737 = vmatpush1.bf16.msra.mxu0 %v1720
      %1738 = vmatprep.subr.bf16.mxu0 0
      %1739 = vmatpush2.bf16.msra.mxu0 0
      %1740 = vmatprep.subr.bf16.mxu0 0
      %1741 = vmatpush2.bf16.msra.mxu0 0
      %1742 = vmatprep.subr.bf16.mxu0 0
      %1743 = vmatpush2.bf16.msra.mxu0 0
      %1744 = vmatprep.subr.bf16.mxu0 0
      %1745 = vmatpush2.bf16.msra.mxu0 0
      %1746 = vmatprep.subr.bf16.mxu0 0
      %1747 = vmatpush2.bf16.msra.mxu0 0
      %1748 = vmatprep.subr.bf16.mxu0 0
      %1749 = vmatpush2.bf16.msra.mxu0 0
      %1750 = vmatprep.subr.bf16.mxu0 0
      %1751 = vmatpush2.bf16.msra.mxu0 0
      %1752 = vmatprep.subr.bf16.mxu0 0
      %1753 = vmatpush2.bf16.msra.mxu0 0
      %1754 = vmatprep.mubr.bf16.mxu0 0
      %1755 = vmatmul.mubr.bf16.gmra.mxu0 %v1672
      %v1756 = vpop.f32.mrf.mxu0
      %v1757 = vadd.f32 %v1545, %v1756
      %v1758 = vpop.f32.mrf.mxu0
      %v1759 = vpop.f32.mrf.mxu0
      %v1760 = vadd.f32 %v1548, %v1759
      %v1761 = vpop.f32.mrf.mxu0
      %1762 = vmatprep.mubr.bf16.mxu0 0
      %1763 = vmatmul.mubr.bf16.gmra.mxu0 %v1675
      %v1764 = vpop.f32.mrf.mxu0
      %v1765 = vadd.f32 %v1553, %v1764
      %v1766 = vpop.f32.mrf.mxu0
      %v1767 = vpop.f32.mrf.mxu0
      %v1768 = vadd.f32 %v1556, %v1767
      %v1769 = vpop.f32.mrf.mxu0
      %1770 = vmatprep.mubr.bf16.mxu0 0
      %1771 = vmatmul.mubr.bf16.gmra.mxu0 %v1678
      %v1772 = vpop.f32.mrf.mxu0
      %v1773 = vadd.f32 %v1561, %v1772
      %v1774 = vpop.f32.mrf.mxu0
      %v1775 = vpop.f32.mrf.mxu0
      %v1776 = vadd.f32 %v1564, %v1775
      %v1777 = vpop.f32.mrf.mxu0
      %1778 = vmatprep.mubr.bf16.mxu0 0
      %1779 = vmatmul.mubr.bf16.gmra.mxu0 %v1681
      %v1780 = vpop.f32.mrf.mxu0
      %v1781 = vadd.f32 %v1569, %v1780
      %v1782 = vpop.f32.mrf.mxu0
      %v1783 = vpop.f32.mrf.mxu0
      %v1784 = vadd.f32 %v1572, %v1783
      %v1785 = vpop.f32.mrf.mxu0
      %1786 = vmatprep.mubr.bf16.mxu0 0
      %1787 = vmatmul.mubr.bf16.gmra.mxu0 %v1684
      %v1788 = vpop.f32.mrf.mxu0
      %v1789 = vadd.f32 %v1577, %v1788
      %v1790 = vpop.f32.mrf.mxu0
      %v1791 = vpop.f32.mrf.mxu0
      %v1792 = vadd.f32 %v1580, %v1791
      %v1793 = vpop.f32.mrf.mxu0
      %1794 = vmatprep.mubr.bf16.mxu0 0
      %1795 = vmatmul.mubr.bf16.gmra.mxu0 %v1687
      %v1796 = vpop.f32.mrf.mxu0
      %v1797 = vadd.f32 %v1585, %v1796
      %v1798 = vpop.f32.mrf.mxu0
      %v1799 = vpop.f32.mrf.mxu0
      %v1800 = vadd.f32 %v1588, %v1799
      %v1801 = vpop.f32.mrf.mxu0
      %1802 = vmatprep.mubr.bf16.mxu0 0
      %1803 = vmatmul.mubr.bf16.gmra.mxu0 %v1690
      %v1804 = vpop.f32.mrf.mxu0
      %v1805 = vadd.f32 %v1593, %v1804
      %v1806 = vpop.f32.mrf.mxu0
      %v1807 = vpop.f32.mrf.mxu0
      %v1808 = vadd.f32 %v1596, %v1807
      %v1809 = vpop.f32.mrf.mxu0
      %1810 = vmatprep.mubr.bf16.mxu0 0
      %1811 = vmatmul.mubr.bf16.gmra.mxu0 %v1693
      %v1812 = vpop.f32.mrf.mxu0
      %v1813 = vadd.f32 %v1601, %v1812
      %v1814 = vpop.f32.mrf.mxu0
      %v1815 = vpop.f32.mrf.mxu0
      %v1816 = vadd.f32 %v1604, %v1815
      %v1817 = vpop.f32.mrf.mxu0
      %1818 = vmatprep.mubr.bf16.mxu0 0
      %1819 = vmatmul.mubr.bf16.gmra.mxu0 %v1696
      %v1820 = vpop.f32.mrf.mxu0
      %v1821 = vadd.f32 %v1609, %v1820
      %v1822 = vpop.f32.mrf.mxu0
      %v1823 = vpop.f32.mrf.mxu0
      %v1824 = vadd.f32 %v1612, %v1823
      %v1825 = vpop.f32.mrf.mxu0
      %1826 = vmatprep.mubr.bf16.mxu0 0
      %1827 = vmatmul.mubr.bf16.gmra.mxu0 %v1699
      %v1828 = vpop.f32.mrf.mxu0
      %v1829 = vadd.f32 %v1617, %v1828
      %v1830 = vpop.f32.mrf.mxu0
      %v1831 = vpop.f32.mrf.mxu0
      %v1832 = vadd.f32 %v1620, %v1831
      %v1833 = vpop.f32.mrf.mxu0
      %1834 = vmatprep.mubr.bf16.mxu0 0
      %1835 = vmatmul.mubr.bf16.gmra.mxu0 %v1702
      %v1836 = vpop.f32.mrf.mxu0
      %v1837 = vadd.f32 %v1625, %v1836
      %v1838 = vpop.f32.mrf.mxu0
      %v1839 = vpop.f32.mrf.mxu0
      %v1840 = vadd.f32 %v1628, %v1839
      %v1841 = vpop.f32.mrf.mxu0
      %1842 = vmatprep.mubr.bf16.mxu0 0
      %1843 = vmatmul.mubr.bf16.gmra.mxu0 %v1705
      %v1844 = vpop.f32.mrf.mxu0
      %v1845 = vadd.f32 %v1633, %v1844
      %v1846 = vpop.f32.mrf.mxu0
      %v1847 = vpop.f32.mrf.mxu0
      %v1848 = vadd.f32 %v1636, %v1847
      %v1849 = vpop.f32.mrf.mxu0
      %1850 = vmatprep.mubr.bf16.mxu0 0
      %1851 = vmatmul.mubr.bf16.gmra.mxu0 %v1708
      %v1852 = vpop.f32.mrf.mxu0
      %v1853 = vadd.f32 %v1641, %v1852
      %v1854 = vpop.f32.mrf.mxu0
      %v1855 = vpop.f32.mrf.mxu0
      %v1856 = vadd.f32 %v1644, %v1855
      %v1857 = vpop.f32.mrf.mxu0
      %1858 = vmatprep.mubr.bf16.mxu0 0
      %1859 = vmatmul.mubr.bf16.gmra.mxu0 %v1711
      %v1860 = vpop.f32.mrf.mxu0
      %v1861 = vadd.f32 %v1649, %v1860
      %v1862 = vpop.f32.mrf.mxu0
      %v1863 = vpop.f32.mrf.mxu0
      %v1864 = vadd.f32 %v1652, %v1863
      %v1865 = vpop.f32.mrf.mxu0
      %1866 = vmatprep.mubr.bf16.mxu0 0
      %1867 = vmatmul.mubr.bf16.gmra.mxu0 %v1714
      %v1868 = vpop.f32.mrf.mxu0
      %v1869 = vadd.f32 %v1657, %v1868
      %v1870 = vpop.f32.mrf.mxu0
      %v1871 = vpop.f32.mrf.mxu0
      %v1872 = vadd.f32 %v1660, %v1871
      %v1873 = vpop.f32.mrf.mxu0
      %1874 = vmatprep.mubr.bf16.mxu0 0
      %1875 = vmatmul.mubr.bf16.gmra.mxu0 %v1717
      %v1876 = vpop.f32.mrf.mxu0
      %v1877 = vadd.f32 %v1665, %v1876
      %v1878 = vpop.f32.mrf.mxu0
      %v1879 = vpop.f32.mrf.mxu0
      %v1880 = vadd.f32 %v1668, %v1879
      %v1881 = vpop.f32.mrf.mxu0
      %1882 = vdwg.mxu0
      %v1883 = vpack.c.bf16 %v1374, %v1373
      %v1884 = vpack.c.bf16 %v1376, %v1375
      %v1885 = vpack.c.bf16 %v1378, %v1377
      %v1886 = vpack.c.bf16 %v1380, %v1379
      %v1887 = vpack.c.bf16 %v1382, %v1381
      %v1888 = vpack.c.bf16 %v1384, %v1383
      %v1889 = vpack.c.bf16 %v1386, %v1385
      %v1890 = vpack.c.bf16 %v1388, %v1387
      %v1891 = vpack.c.bf16 %v1390, %v1389
      %v1892 = vpack.c.bf16 %v1392, %v1391
      %v1893 = vpack.c.bf16 %v1394, %v1393
      %v1894 = vpack.c.bf16 %v1396, %v1395
      %v1895 = vpack.c.bf16 %v1398, %v1397
      %v1896 = vpack.c.bf16 %v1400, %v1399
      %v1897 = vpack.c.bf16 %v1402, %v1401
      %v1898 = vpack.c.bf16 %v1404, %v1403
      %s1899 = scalar_lea.vmem %s4, 4
      %v1900 = vld [vmem:[%s1899] sm:$0x3]
      %v1902 = vsel %vm690, %v1883, 0
      %v1905 = vsel %vm690, %v1884, 0
      %v1908 = vsel %vm690, %v1885, 0
      %v1911 = vsel %vm690, %v1886, 0
      %v1914 = vsel %vm690, %v1887, 0
      %v1917 = vsel %vm690, %v1888, 0
      %v1920 = vsel %vm690, %v1889, 0
      %v1923 = vsel %vm690, %v1890, 0
      %v1926 = vsel %vm690, %v1891, 0
      %v1929 = vsel %vm690, %v1892, 0
      %v1932 = vsel %vm690, %v1893, 0
      %v1935 = vsel %vm690, %v1894, 0
      %v1938 = vsel %vm690, %v1895, 0
      %v1941 = vsel %vm690, %v1896, 0
      %v1944 = vsel %vm690, %v1897, 0
      %v1947 = vsel %vm690, %v1898, 0
      %v1950 = vsel %vm739, %v1900, 0
      %1952 = vmatprep.subr.bf16.mxu0 0
      %1953 = vmatpush1.bf16.msra.mxu0 0
      %1954 = vmatprep.subr.bf16.mxu0 0
      %1955 = vmatpush1.bf16.msra.mxu0 0
      %1956 = vmatprep.subr.bf16.mxu0 0
      %1957 = vmatpush1.bf16.msra.mxu0 0
      %1958 = vmatprep.subr.bf16.mxu0 0
      %1959 = vmatpush1.bf16.msra.mxu0 0
      %1960 = vmatprep.subr.bf16.mxu0 0
      %1961 = vmatpush1.bf16.msra.mxu0 0
      %1962 = vmatprep.subr.bf16.mxu0 0
      %1963 = vmatpush1.bf16.msra.mxu0 0
      %1964 = vmatprep.subr.bf16.mxu0 0
      %1965 = vmatpush1.bf16.msra.mxu0 0
      %1966 = vmatprep.subr.bf16.mxu0 0
      %1967 = vmatpush1.bf16.msra.mxu0 %v1950
      %1968 = vmatprep.subr.bf16.mxu0 0
      %1969 = vmatpush2.bf16.msra.mxu0 0
      %1970 = vmatprep.subr.bf16.mxu0 0
      %1971 = vmatpush2.bf16.msra.mxu0 0
      %1972 = vmatprep.subr.bf16.mxu0 0
      %1973 = vmatpush2.bf16.msra.mxu0 0
      %1974 = vmatprep.subr.bf16.mxu0 0
      %1975 = vmatpush2.bf16.msra.mxu0 0
      %1976 = vmatprep.subr.bf16.mxu0 0
      %1977 = vmatpush2.bf16.msra.mxu0 0
      %1978 = vmatprep.subr.bf16.mxu0 0
      %1979 = vmatpush2.bf16.msra.mxu0 0
      %1980 = vmatprep.subr.bf16.mxu0 0
      %1981 = vmatpush2.bf16.msra.mxu0 0
      %1982 = vmatprep.subr.bf16.mxu0 0
      %1983 = vmatpush2.bf16.msra.mxu0 0
      %1984 = vmatprep.mubr.bf16.mxu0 0
      %1985 = vmatmul.mubr.bf16.gmra.mxu0 %v1902
      %v1986 = vpop.f32.mrf.mxu0
      %v1987 = vadd.f32 0.0, %v1986
      %v1988 = vpop.f32.mrf.mxu0
      %v1989 = vpop.f32.mrf.mxu0
      %v1990 = vadd.f32 0.0, %v1989
      %v1991 = vpop.f32.mrf.mxu0
      %1992 = vmatprep.mubr.bf16.mxu0 0
      %1993 = vmatmul.mubr.bf16.gmra.mxu0 %v1905
      %v1994 = vpop.f32.mrf.mxu0
      %v1995 = vadd.f32 0.0, %v1994
      %v1996 = vpop.f32.mrf.mxu0
      %v1997 = vpop.f32.mrf.mxu0
      %v1998 = vadd.f32 0.0, %v1997
      %v1999 = vpop.f32.mrf.mxu0
      %2000 = vmatprep.mubr.bf16.mxu0 0
      %2001 = vmatmul.mubr.bf16.gmra.mxu0 %v1908
      %v2002 = vpop.f32.mrf.mxu0
      %v2003 = vadd.f32 0.0, %v2002
      %v2004 = vpop.f32.mrf.mxu0
      %v2005 = vpop.f32.mrf.mxu0
      %v2006 = vadd.f32 0.0, %v2005
      %v2007 = vpop.f32.mrf.mxu0
      %2008 = vmatprep.mubr.bf16.mxu0 0
      %2009 = vmatmul.mubr.bf16.gmra.mxu0 %v1911
      %v2010 = vpop.f32.mrf.mxu0
      %v2011 = vadd.f32 0.0, %v2010
      %v2012 = vpop.f32.mrf.mxu0
      %v2013 = vpop.f32.mrf.mxu0
      %v2014 = vadd.f32 0.0, %v2013
      %v2015 = vpop.f32.mrf.mxu0
      %2016 = vmatprep.mubr.bf16.mxu0 0
      %2017 = vmatmul.mubr.bf16.gmra.mxu0 %v1914
      %v2018 = vpop.f32.mrf.mxu0
      %v2019 = vadd.f32 0.0, %v2018
      %v2020 = vpop.f32.mrf.mxu0
      %v2021 = vpop.f32.mrf.mxu0
      %v2022 = vadd.f32 0.0, %v2021
      %v2023 = vpop.f32.mrf.mxu0
      %2024 = vmatprep.mubr.bf16.mxu0 0
      %2025 = vmatmul.mubr.bf16.gmra.mxu0 %v1917
      %v2026 = vpop.f32.mrf.mxu0
      %v2027 = vadd.f32 0.0, %v2026
      %v2028 = vpop.f32.mrf.mxu0
      %v2029 = vpop.f32.mrf.mxu0
      %v2030 = vadd.f32 0.0, %v2029
      %v2031 = vpop.f32.mrf.mxu0
      %2032 = vmatprep.mubr.bf16.mxu0 0
      %2033 = vmatmul.mubr.bf16.gmra.mxu0 %v1920
      %v2034 = vpop.f32.mrf.mxu0
      %v2035 = vadd.f32 0.0, %v2034
      %v2036 = vpop.f32.mrf.mxu0
      %v2037 = vpop.f32.mrf.mxu0
      %v2038 = vadd.f32 0.0, %v2037
      %v2039 = vpop.f32.mrf.mxu0
      %2040 = vmatprep.mubr.bf16.mxu0 0
      %2041 = vmatmul.mubr.bf16.gmra.mxu0 %v1923
      %v2042 = vpop.f32.mrf.mxu0
      %v2043 = vadd.f32 0.0, %v2042
      %v2044 = vpop.f32.mrf.mxu0
      %v2045 = vpop.f32.mrf.mxu0
      %v2046 = vadd.f32 0.0, %v2045
      %v2047 = vpop.f32.mrf.mxu0
      %2048 = vmatprep.mubr.bf16.mxu0 0
      %2049 = vmatmul.mubr.bf16.gmra.mxu0 %v1926
      %v2050 = vpop.f32.mrf.mxu0
      %v2051 = vadd.f32 0.0, %v2050
      %v2052 = vpop.f32.mrf.mxu0
      %v2053 = vpop.f32.mrf.mxu0
      %v2054 = vadd.f32 0.0, %v2053
      %v2055 = vpop.f32.mrf.mxu0
      %2056 = vmatprep.mubr.bf16.mxu0 0
      %2057 = vmatmul.mubr.bf16.gmra.mxu0 %v1929
      %v2058 = vpop.f32.mrf.mxu0
      %v2059 = vadd.f32 0.0, %v2058
      %v2060 = vpop.f32.mrf.mxu0
      %v2061 = vpop.f32.mrf.mxu0
      %v2062 = vadd.f32 0.0, %v2061
      %v2063 = vpop.f32.mrf.mxu0
      %2064 = vmatprep.mubr.bf16.mxu0 0
      %2065 = vmatmul.mubr.bf16.gmra.mxu0 %v1932
      %v2066 = vpop.f32.mrf.mxu0
      %v2067 = vadd.f32 0.0, %v2066
      %v2068 = vpop.f32.mrf.mxu0
      %v2069 = vpop.f32.mrf.mxu0
      %v2070 = vadd.f32 0.0, %v2069
      %v2071 = vpop.f32.mrf.mxu0
      %2072 = vmatprep.mubr.bf16.mxu0 0
      %2073 = vmatmul.mubr.bf16.gmra.mxu0 %v1935
      %v2074 = vpop.f32.mrf.mxu0
      %v2075 = vadd.f32 0.0, %v2074
      %v2076 = vpop.f32.mrf.mxu0
      %v2077 = vpop.f32.mrf.mxu0
      %v2078 = vadd.f32 0.0, %v2077
      %v2079 = vpop.f32.mrf.mxu0
      %2080 = vmatprep.mubr.bf16.mxu0 0
      %2081 = vmatmul.mubr.bf16.gmra.mxu0 %v1938
      %v2082 = vpop.f32.mrf.mxu0
      %v2083 = vadd.f32 0.0, %v2082
      %v2084 = vpop.f32.mrf.mxu0
      %v2085 = vpop.f32.mrf.mxu0
      %v2086 = vadd.f32 0.0, %v2085
      %v2087 = vpop.f32.mrf.mxu0
      %2088 = vmatprep.mubr.bf16.mxu0 0
      %2089 = vmatmul.mubr.bf16.gmra.mxu0 %v1941
      %v2090 = vpop.f32.mrf.mxu0
      %v2091 = vadd.f32 0.0, %v2090
      %v2092 = vpop.f32.mrf.mxu0
      %v2093 = vpop.f32.mrf.mxu0
      %v2094 = vadd.f32 0.0, %v2093
      %v2095 = vpop.f32.mrf.mxu0
      %2096 = vmatprep.mubr.bf16.mxu0 0
      %2097 = vmatmul.mubr.bf16.gmra.mxu0 %v1944
      %v2098 = vpop.f32.mrf.mxu0
      %v2099 = vadd.f32 0.0, %v2098
      %v2100 = vpop.f32.mrf.mxu0
      %v2101 = vpop.f32.mrf.mxu0
      %v2102 = vadd.f32 0.0, %v2101
      %v2103 = vpop.f32.mrf.mxu0
      %2104 = vmatprep.mubr.bf16.mxu0 0
      %2105 = vmatmul.mubr.bf16.gmra.mxu0 %v1947
      %v2106 = vpop.f32.mrf.mxu0
      %v2107 = vadd.f32 0.0, %v2106
      %v2108 = vpop.f32.mrf.mxu0
      %v2109 = vpop.f32.mrf.mxu0
      %v2110 = vadd.f32 0.0, %v2109
      %v2111 = vpop.f32.mrf.mxu0
      %2112 = vdwg.mxu0
      %v2113 = vadd.f32 %v1757, %v1987
      %v2114 = vadd.f32 %v1760, %v1990
      %v2115 = vadd.f32 %v1765, %v1995
      %v2116 = vadd.f32 %v1768, %v1998
      %v2117 = vadd.f32 %v1773, %v2003
      %v2118 = vadd.f32 %v1776, %v2006
      %v2119 = vadd.f32 %v1781, %v2011
      %v2120 = vadd.f32 %v1784, %v2014
      %v2121 = vadd.f32 %v1789, %v2019
      %v2122 = vadd.f32 %v1792, %v2022
      %v2123 = vadd.f32 %v1797, %v2027
      %v2124 = vadd.f32 %v1800, %v2030
      %v2125 = vadd.f32 %v1805, %v2035
      %v2126 = vadd.f32 %v1808, %v2038
      %v2127 = vadd.f32 %v1813, %v2043
      %v2128 = vadd.f32 %v1816, %v2046
      %v2129 = vadd.f32 %v1821, %v2051
      %v2130 = vadd.f32 %v1824, %v2054
      %v2131 = vadd.f32 %v1829, %v2059
      %v2132 = vadd.f32 %v1832, %v2062
      %v2133 = vadd.f32 %v1837, %v2067
      %v2134 = vadd.f32 %v1840, %v2070
      %v2135 = vadd.f32 %v1845, %v2075
      %v2136 = vadd.f32 %v1848, %v2078
      %v2137 = vadd.f32 %v1853, %v2083
      %v2138 = vadd.f32 %v1856, %v2086
      %v2139 = vadd.f32 %v1861, %v2091
      %v2140 = vadd.f32 %v1864, %v2094
      %v2141 = vadd.f32 %v1869, %v2099
      %v2142 = vadd.f32 %v1872, %v2102
      %v2143 = vadd.f32 %v1877, %v2107
      %v2144 = vadd.f32 %v1880, %v2110
      %v2145 = vpack.c.bf16 %v1412, %v1411
      %s2146 = scalar_lea.vmem %s4, 6
      %v2147 = vld [vmem:[%s2146] sm:$0x3]
      %v2149 = vsel %vm690, %v2145, 0
      %v2152 = vsel %vm739, %v2147, 0
      %2154 = vmatprep.subr.bf16.mxu0 0
      %2155 = vmatpush1.bf16.msra.mxu0 0
      %2156 = vmatprep.subr.bf16.mxu0 0
      %2157 = vmatpush1.bf16.msra.mxu0 0
      %2158 = vmatprep.subr.bf16.mxu0 0
      %2159 = vmatpush1.bf16.msra.mxu0 0
      %2160 = vmatprep.subr.bf16.mxu0 0
      %2161 = vmatpush1.bf16.msra.mxu0 0
      %2162 = vmatprep.subr.bf16.mxu0 0
      %2163 = vmatpush1.bf16.msra.mxu0 0
      %2164 = vmatprep.subr.bf16.mxu0 0
      %2165 = vmatpush1.bf16.msra.mxu0 0
      %2166 = vmatprep.subr.bf16.mxu0 0
      %2167 = vmatpush1.bf16.msra.mxu0 0
      %2168 = vmatprep.subr.bf16.mxu0 0
      %2169 = vmatpush1.bf16.msra.mxu0 %v2152
      %2170 = vmatprep.subr.bf16.mxu0 0
      %2171 = vmatpush2.bf16.msra.mxu0 0
      %2172 = vmatprep.subr.bf16.mxu0 0
      %2173 = vmatpush2.bf16.msra.mxu0 0
      %2174 = vmatprep.subr.bf16.mxu0 0
      %2175 = vmatpush2.bf16.msra.mxu0 0
      %2176 = vmatprep.subr.bf16.mxu0 0
      %2177 = vmatpush2.bf16.msra.mxu0 0
      %2178 = vmatprep.subr.bf16.mxu0 0
      %2179 = vmatpush2.bf16.msra.mxu0 0
      %2180 = vmatprep.subr.bf16.mxu0 0
      %2181 = vmatpush2.bf16.msra.mxu0 0
      %2182 = vmatprep.subr.bf16.mxu0 0
      %2183 = vmatpush2.bf16.msra.mxu0 0
      %2184 = vmatprep.subr.bf16.mxu0 0
      %2185 = vmatpush2.bf16.msra.mxu0 0
      %2186 = vmatprep.mubr.bf16.mxu0 0
      %2187 = vmatmul.mubr.bf16.gmra.mxu0 %v1675
      %v2188 = vpop.f32.mrf.mxu0
      %v2189 = vadd.f32 0.0, %v2188
      %v2190 = vpop.f32.mrf.mxu0
      %v2191 = vpop.f32.mrf.mxu0
      %v2192 = vadd.f32 0.0, %v2191
      %v2193 = vpop.f32.mrf.mxu0
      %2194 = vmatprep.mubr.bf16.mxu0 0
      %2195 = vmatmul.mubr.bf16.gmra.mxu0 %v1678
      %v2196 = vpop.f32.mrf.mxu0
      %v2197 = vadd.f32 0.0, %v2196
      %v2198 = vpop.f32.mrf.mxu0
      %v2199 = vpop.f32.mrf.mxu0
      %v2200 = vadd.f32 0.0, %v2199
      %v2201 = vpop.f32.mrf.mxu0
      %2202 = vmatprep.mubr.bf16.mxu0 0
      %2203 = vmatmul.mubr.bf16.gmra.mxu0 %v1681
      %v2204 = vpop.f32.mrf.mxu0
      %v2205 = vadd.f32 0.0, %v2204
      %v2206 = vpop.f32.mrf.mxu0
      %v2207 = vpop.f32.mrf.mxu0
      %v2208 = vadd.f32 0.0, %v2207
      %v2209 = vpop.f32.mrf.mxu0
      %2210 = vmatprep.mubr.bf16.mxu0 0
      %2211 = vmatmul.mubr.bf16.gmra.mxu0 %v1684
      %v2212 = vpop.f32.mrf.mxu0
      %v2213 = vadd.f32 0.0, %v2212
      %v2214 = vpop.f32.mrf.mxu0
      %v2215 = vpop.f32.mrf.mxu0
      %v2216 = vadd.f32 0.0, %v2215
      %v2217 = vpop.f32.mrf.mxu0
      %2218 = vmatprep.mubr.bf16.mxu0 0
      %2219 = vmatmul.mubr.bf16.gmra.mxu0 %v1687
      %v2220 = vpop.f32.mrf.mxu0
      %v2221 = vadd.f32 0.0, %v2220
      %v2222 = vpop.f32.mrf.mxu0
      %v2223 = vpop.f32.mrf.mxu0
      %v2224 = vadd.f32 0.0, %v2223
      %v2225 = vpop.f32.mrf.mxu0
      %2226 = vmatprep.mubr.bf16.mxu0 0
      %2227 = vmatmul.mubr.bf16.gmra.mxu0 %v1690
      %v2228 = vpop.f32.mrf.mxu0
      %v2229 = vadd.f32 0.0, %v2228
      %v2230 = vpop.f32.mrf.mxu0
      %v2231 = vpop.f32.mrf.mxu0
      %v2232 = vadd.f32 0.0, %v2231
      %v2233 = vpop.f32.mrf.mxu0
      %2234 = vmatprep.mubr.bf16.mxu0 0
      %2235 = vmatmul.mubr.bf16.gmra.mxu0 %v1693
      %v2236 = vpop.f32.mrf.mxu0
      %v2237 = vadd.f32 0.0, %v2236
      %v2238 = vpop.f32.mrf.mxu0
      %v2239 = vpop.f32.mrf.mxu0
      %v2240 = vadd.f32 0.0, %v2239
      %v2241 = vpop.f32.mrf.mxu0
      %2242 = vmatprep.mubr.bf16.mxu0 0
      %2243 = vmatmul.mubr.bf16.gmra.mxu0 %v1696
      %v2244 = vpop.f32.mrf.mxu0
      %v2245 = vadd.f32 0.0, %v2244
      %v2246 = vpop.f32.mrf.mxu0
      %v2247 = vpop.f32.mrf.mxu0
      %v2248 = vadd.f32 0.0, %v2247
      %v2249 = vpop.f32.mrf.mxu0
      %2250 = vmatprep.mubr.bf16.mxu0 0
      %2251 = vmatmul.mubr.bf16.gmra.mxu0 %v1699
      %v2252 = vpop.f32.mrf.mxu0
      %v2253 = vadd.f32 0.0, %v2252
      %v2254 = vpop.f32.mrf.mxu0
      %v2255 = vpop.f32.mrf.mxu0
      %v2256 = vadd.f32 0.0, %v2255
      %v2257 = vpop.f32.mrf.mxu0
      %2258 = vmatprep.mubr.bf16.mxu0 0
      %2259 = vmatmul.mubr.bf16.gmra.mxu0 %v1702
      %v2260 = vpop.f32.mrf.mxu0
      %v2261 = vadd.f32 0.0, %v2260
      %v2262 = vpop.f32.mrf.mxu0
      %v2263 = vpop.f32.mrf.mxu0
      %v2264 = vadd.f32 0.0, %v2263
      %v2265 = vpop.f32.mrf.mxu0
      %2266 = vmatprep.mubr.bf16.mxu0 0
      %2267 = vmatmul.mubr.bf16.gmra.mxu0 %v1705
      %v2268 = vpop.f32.mrf.mxu0
      %v2269 = vadd.f32 0.0, %v2268
      %v2270 = vpop.f32.mrf.mxu0
      %v2271 = vpop.f32.mrf.mxu0
      %v2272 = vadd.f32 0.0, %v2271
      %v2273 = vpop.f32.mrf.mxu0
      %2274 = vmatprep.mubr.bf16.mxu0 0
      %2275 = vmatmul.mubr.bf16.gmra.mxu0 %v1708
      %v2276 = vpop.f32.mrf.mxu0
      %v2277 = vadd.f32 0.0, %v2276
      %v2278 = vpop.f32.mrf.mxu0
      %v2279 = vpop.f32.mrf.mxu0
      %v2280 = vadd.f32 0.0, %v2279
      %v2281 = vpop.f32.mrf.mxu0
      %2282 = vmatprep.mubr.bf16.mxu0 0
      %2283 = vmatmul.mubr.bf16.gmra.mxu0 %v1711
      %v2284 = vpop.f32.mrf.mxu0
      %v2285 = vadd.f32 0.0, %v2284
      %v2286 = vpop.f32.mrf.mxu0
      %v2287 = vpop.f32.mrf.mxu0
      %v2288 = vadd.f32 0.0, %v2287
      %v2289 = vpop.f32.mrf.mxu0
      %2290 = vmatprep.mubr.bf16.mxu0 0
      %2291 = vmatmul.mubr.bf16.gmra.mxu0 %v1714
      %v2292 = vpop.f32.mrf.mxu0
      %v2293 = vadd.f32 0.0, %v2292
      %v2294 = vpop.f32.mrf.mxu0
      %v2295 = vpop.f32.mrf.mxu0
      %v2296 = vadd.f32 0.0, %v2295
      %v2297 = vpop.f32.mrf.mxu0
      %2298 = vmatprep.mubr.bf16.mxu0 0
      %2299 = vmatmul.mubr.bf16.gmra.mxu0 %v1717
      %v2300 = vpop.f32.mrf.mxu0
      %v2301 = vadd.f32 0.0, %v2300
      %v2302 = vpop.f32.mrf.mxu0
      %v2303 = vpop.f32.mrf.mxu0
      %v2304 = vadd.f32 0.0, %v2303
      %v2305 = vpop.f32.mrf.mxu0
      %2306 = vmatprep.mubr.bf16.mxu0 0
      %2307 = vmatmul.mubr.bf16.gmra.mxu0 %v2149
      %v2308 = vpop.f32.mrf.mxu0
      %v2309 = vadd.f32 0.0, %v2308
      %v2310 = vpop.f32.mrf.mxu0
      %v2311 = vpop.f32.mrf.mxu0
      %v2312 = vadd.f32 0.0, %v2311
      %v2313 = vpop.f32.mrf.mxu0
      %2314 = vdwg.mxu0
      %v2315 = vadd.f32 %v2113, %v2189
      %v2316 = vadd.f32 %v2114, %v2192
      %v2317 = vadd.f32 %v2115, %v2197
      %v2318 = vadd.f32 %v2116, %v2200
      %v2319 = vadd.f32 %v2117, %v2205
      %v2320 = vadd.f32 %v2118, %v2208
      %v2321 = vadd.f32 %v2119, %v2213
      %v2322 = vadd.f32 %v2120, %v2216
      %v2323 = vadd.f32 %v2121, %v2221
      %v2324 = vadd.f32 %v2122, %v2224
      %v2325 = vadd.f32 %v2123, %v2229
      %v2326 = vadd.f32 %v2124, %v2232
      %v2327 = vadd.f32 %v2125, %v2237
      %v2328 = vadd.f32 %v2126, %v2240
      %v2329 = vadd.f32 %v2127, %v2245
      %v2330 = vadd.f32 %v2128, %v2248
      %v2331 = vadd.f32 %v2129, %v2253
      %v2332 = vadd.f32 %v2130, %v2256
      %v2333 = vadd.f32 %v2131, %v2261
      %v2334 = vadd.f32 %v2132, %v2264
      %v2335 = vadd.f32 %v2133, %v2269
      %v2336 = vadd.f32 %v2134, %v2272
      %v2337 = vadd.f32 %v2135, %v2277
      %v2338 = vadd.f32 %v2136, %v2280
      %v2339 = vadd.f32 %v2137, %v2285
      %v2340 = vadd.f32 %v2138, %v2288
      %v2341 = vadd.f32 %v2139, %v2293
      %v2342 = vadd.f32 %v2140, %v2296
      %v2343 = vadd.f32 %v2141, %v2301
      %v2344 = vadd.f32 %v2142, %v2304
      %v2345 = vadd.f32 %v2143, %v2309
      %v2346 = vadd.f32 %v2144, %v2312
      %v2347 = vpack.c.bf16 %v1109, %v1107
      %s2348 = scalar_lea.vmem %s4, 8
      %v2349 = vld [vmem:[%s2348] sm:$0x3]
      %v2351 = vsel %vm690, %v2347, 0
      %v2354 = vsel %vm739, %v2349, 0
      %2356 = vmatprep.subr.bf16.mxu0 0
      %2357 = vmatpush1.bf16.msra.mxu0 0
      %2358 = vmatprep.subr.bf16.mxu0 0
      %2359 = vmatpush1.bf16.msra.mxu0 0
      %2360 = vmatprep.subr.bf16.mxu0 0
      %2361 = vmatpush1.bf16.msra.mxu0 0
      %2362 = vmatprep.subr.bf16.mxu0 0
      %2363 = vmatpush1.bf16.msra.mxu0 0
      %2364 = vmatprep.subr.bf16.mxu0 0
      %2365 = vmatpush1.bf16.msra.mxu0 0
      %2366 = vmatprep.subr.bf16.mxu0 0
      %2367 = vmatpush1.bf16.msra.mxu0 0
      %2368 = vmatprep.subr.bf16.mxu0 0
      %2369 = vmatpush1.bf16.msra.mxu0 0
      %2370 = vmatprep.subr.bf16.mxu0 0
      %2371 = vmatpush1.bf16.msra.mxu0 %v2354
      %2372 = vmatprep.subr.bf16.mxu0 0
      %2373 = vmatpush2.bf16.msra.mxu0 0
      %2374 = vmatprep.subr.bf16.mxu0 0
      %2375 = vmatpush2.bf16.msra.mxu0 0
      %2376 = vmatprep.subr.bf16.mxu0 0
      %2377 = vmatpush2.bf16.msra.mxu0 0
      %2378 = vmatprep.subr.bf16.mxu0 0
      %2379 = vmatpush2.bf16.msra.mxu0 0
      %2380 = vmatprep.subr.bf16.mxu0 0
      %2381 = vmatpush2.bf16.msra.mxu0 0
      %2382 = vmatprep.subr.bf16.mxu0 0
      %2383 = vmatpush2.bf16.msra.mxu0 0
      %2384 = vmatprep.subr.bf16.mxu0 0
      %2385 = vmatpush2.bf16.msra.mxu0 0
      %2386 = vmatprep.subr.bf16.mxu0 0
      %2387 = vmatpush2.bf16.msra.mxu0 0
      %2388 = vmatprep.mubr.bf16.mxu0 0
      %2389 = vmatmul.mubr.bf16.gmra.mxu0 %v1463
      %v2390 = vpop.f32.mrf.mxu0
      %v2391 = vadd.f32 0.0, %v2390
      %v2392 = vpop.f32.mrf.mxu0
      %v2393 = vpop.f32.mrf.mxu0
      %v2394 = vadd.f32 0.0, %v2393
      %v2395 = vpop.f32.mrf.mxu0
      %2396 = vmatprep.mubr.bf16.mxu0 0
      %2397 = vmatmul.mubr.bf16.gmra.mxu0 %v1466
      %v2398 = vpop.f32.mrf.mxu0
      %v2399 = vadd.f32 0.0, %v2398
      %v2400 = vpop.f32.mrf.mxu0
      %v2401 = vpop.f32.mrf.mxu0
      %v2402 = vadd.f32 0.0, %v2401
      %v2403 = vpop.f32.mrf.mxu0
      %2404 = vmatprep.mubr.bf16.mxu0 0
      %2405 = vmatmul.mubr.bf16.gmra.mxu0 %v1469
      %v2406 = vpop.f32.mrf.mxu0
      %v2407 = vadd.f32 0.0, %v2406
      %v2408 = vpop.f32.mrf.mxu0
      %v2409 = vpop.f32.mrf.mxu0
      %v2410 = vadd.f32 0.0, %v2409
      %v2411 = vpop.f32.mrf.mxu0
      %2412 = vmatprep.mubr.bf16.mxu0 0
      %2413 = vmatmul.mubr.bf16.gmra.mxu0 %v1472
      %v2414 = vpop.f32.mrf.mxu0
      %v2415 = vadd.f32 0.0, %v2414
      %v2416 = vpop.f32.mrf.mxu0
      %v2417 = vpop.f32.mrf.mxu0
      %v2418 = vadd.f32 0.0, %v2417
      %v2419 = vpop.f32.mrf.mxu0
      %2420 = vmatprep.mubr.bf16.mxu0 0
      %2421 = vmatmul.mubr.bf16.gmra.mxu0 %v1475
      %v2422 = vpop.f32.mrf.mxu0
      %v2423 = vadd.f32 0.0, %v2422
      %v2424 = vpop.f32.mrf.mxu0
      %v2425 = vpop.f32.mrf.mxu0
      %v2426 = vadd.f32 0.0, %v2425
      %v2427 = vpop.f32.mrf.mxu0
      %2428 = vmatprep.mubr.bf16.mxu0 0
      %2429 = vmatmul.mubr.bf16.gmra.mxu0 %v1478
      %v2430 = vpop.f32.mrf.mxu0
      %v2431 = vadd.f32 0.0, %v2430
      %v2432 = vpop.f32.mrf.mxu0
      %v2433 = vpop.f32.mrf.mxu0
      %v2434 = vadd.f32 0.0, %v2433
      %v2435 = vpop.f32.mrf.mxu0
      %2436 = vmatprep.mubr.bf16.mxu0 0
      %2437 = vmatmul.mubr.bf16.gmra.mxu0 %v1481
      %v2438 = vpop.f32.mrf.mxu0
      %v2439 = vadd.f32 0.0, %v2438
      %v2440 = vpop.f32.mrf.mxu0
      %v2441 = vpop.f32.mrf.mxu0
      %v2442 = vadd.f32 0.0, %v2441
      %v2443 = vpop.f32.mrf.mxu0
      %2444 = vmatprep.mubr.bf16.mxu0 0
      %2445 = vmatmul.mubr.bf16.gmra.mxu0 %v1484
      %v2446 = vpop.f32.mrf.mxu0
      %v2447 = vadd.f32 0.0, %v2446
      %v2448 = vpop.f32.mrf.mxu0
      %v2449 = vpop.f32.mrf.mxu0
      %v2450 = vadd.f32 0.0, %v2449
      %v2451 = vpop.f32.mrf.mxu0
      %2452 = vmatprep.mubr.bf16.mxu0 0
      %2453 = vmatmul.mubr.bf16.gmra.mxu0 %v1487
      %v2454 = vpop.f32.mrf.mxu0
      %v2455 = vadd.f32 0.0, %v2454
      %v2456 = vpop.f32.mrf.mxu0
      %v2457 = vpop.f32.mrf.mxu0
      %v2458 = vadd.f32 0.0, %v2457
      %v2459 = vpop.f32.mrf.mxu0
      %2460 = vmatprep.mubr.bf16.mxu0 0
      %2461 = vmatmul.mubr.bf16.gmra.mxu0 %v1490
      %v2462 = vpop.f32.mrf.mxu0
      %v2463 = vadd.f32 0.0, %v2462
      %v2464 = vpop.f32.mrf.mxu0
      %v2465 = vpop.f32.mrf.mxu0
      %v2466 = vadd.f32 0.0, %v2465
      %v2467 = vpop.f32.mrf.mxu0
      %2468 = vmatprep.mubr.bf16.mxu0 0
      %2469 = vmatmul.mubr.bf16.gmra.mxu0 %v1493
      %v2470 = vpop.f32.mrf.mxu0
      %v2471 = vadd.f32 0.0, %v2470
      %v2472 = vpop.f32.mrf.mxu0
      %v2473 = vpop.f32.mrf.mxu0
      %v2474 = vadd.f32 0.0, %v2473
      %v2475 = vpop.f32.mrf.mxu0
      %2476 = vmatprep.mubr.bf16.mxu0 0
      %2477 = vmatmul.mubr.bf16.gmra.mxu0 %v1496
      %v2478 = vpop.f32.mrf.mxu0
      %v2479 = vadd.f32 0.0, %v2478
      %v2480 = vpop.f32.mrf.mxu0
      %v2481 = vpop.f32.mrf.mxu0
      %v2482 = vadd.f32 0.0, %v2481
      %v2483 = vpop.f32.mrf.mxu0
      %2484 = vmatprep.mubr.bf16.mxu0 0
      %2485 = vmatmul.mubr.bf16.gmra.mxu0 %v1499
      %v2486 = vpop.f32.mrf.mxu0
      %v2487 = vadd.f32 0.0, %v2486
      %v2488 = vpop.f32.mrf.mxu0
      %v2489 = vpop.f32.mrf.mxu0
      %v2490 = vadd.f32 0.0, %v2489
      %v2491 = vpop.f32.mrf.mxu0
      %2492 = vmatprep.mubr.bf16.mxu0 0
      %2493 = vmatmul.mubr.bf16.gmra.mxu0 %v1502
      %v2494 = vpop.f32.mrf.mxu0
      %v2495 = vadd.f32 0.0, %v2494
      %v2496 = vpop.f32.mrf.mxu0
      %v2497 = vpop.f32.mrf.mxu0
      %v2498 = vadd.f32 0.0, %v2497
      %v2499 = vpop.f32.mrf.mxu0
      %2500 = vmatprep.mubr.bf16.mxu0 0
      %2501 = vmatmul.mubr.bf16.gmra.mxu0 %v1505
      %v2502 = vpop.f32.mrf.mxu0
      %v2503 = vadd.f32 0.0, %v2502
      %v2504 = vpop.f32.mrf.mxu0
      %v2505 = vpop.f32.mrf.mxu0
      %v2506 = vadd.f32 0.0, %v2505
      %v2507 = vpop.f32.mrf.mxu0
      %2508 = vmatprep.mubr.bf16.mxu0 0
      %2509 = vmatmul.mubr.bf16.gmra.mxu0 %v2351
      %v2510 = vpop.f32.mrf.mxu0
      %v2511 = vadd.f32 0.0, %v2510
      %v2512 = vpop.f32.mrf.mxu0
      %v2513 = vpop.f32.mrf.mxu0
      %v2514 = vadd.f32 0.0, %v2513
      %v2515 = vpop.f32.mrf.mxu0
      %2516 = vdwg.mxu0
      %v2517 = vadd.f32 %v2315, %v2391
      %v2518 = vadd.f32 %v2316, %v2394
      %v2519 = vadd.f32 %v2317, %v2399
      %v2520 = vadd.f32 %v2318, %v2402
      %v2521 = vadd.f32 %v2319, %v2407
      %v2522 = vadd.f32 %v2320, %v2410
      %v2523 = vadd.f32 %v2321, %v2415
      %v2524 = vadd.f32 %v2322, %v2418
      %v2525 = vadd.f32 %v2323, %v2423
      %v2526 = vadd.f32 %v2324, %v2426
      %v2527 = vadd.f32 %v2325, %v2431
      %v2528 = vadd.f32 %v2326, %v2434
      %v2529 = vadd.f32 %v2327, %v2439
      %v2530 = vadd.f32 %v2328, %v2442
      %v2531 = vadd.f32 %v2329, %v2447
      %v2532 = vadd.f32 %v2330, %v2450
      %v2533 = vadd.f32 %v2331, %v2455
      %v2534 = vadd.f32 %v2332, %v2458
      %v2535 = vadd.f32 %v2333, %v2463
      %v2536 = vadd.f32 %v2334, %v2466
      %v2537 = vadd.f32 %v2335, %v2471
      %v2538 = vadd.f32 %v2336, %v2474
      %v2539 = vadd.f32 %v2337, %v2479
      %v2540 = vadd.f32 %v2338, %v2482
      %v2541 = vadd.f32 %v2339, %v2487
      %v2542 = vadd.f32 %v2340, %v2490
      %v2543 = vadd.f32 %v2341, %v2495
      %v2544 = vadd.f32 %v2342, %v2498
      %v2545 = vadd.f32 %v2343, %v2503
      %v2546 = vadd.f32 %v2344, %v2506
      %v2547 = vadd.f32 %v2345, %v2511
      %v2548 = vadd.f32 %v2346, %v2514
      %v2549 = vpack.c.bf16 %v1419, %v1418
      %s2550 = scalar_lea.vmem %s4, 10
      %v2551 = vld [vmem:[%s2550] sm:$0x3]
      %v2553 = vsel %vm690, %v2549, 0
      %v2556 = vsel %vm739, %v2551, 0
      %2558 = vmatprep.subr.bf16.mxu0 0
      %2559 = vmatpush1.bf16.msra.mxu0 0
      %2560 = vmatprep.subr.bf16.mxu0 0
      %2561 = vmatpush1.bf16.msra.mxu0 0
      %2562 = vmatprep.subr.bf16.mxu0 0
      %2563 = vmatpush1.bf16.msra.mxu0 0
      %2564 = vmatprep.subr.bf16.mxu0 0
      %2565 = vmatpush1.bf16.msra.mxu0 0
      %2566 = vmatprep.subr.bf16.mxu0 0
      %2567 = vmatpush1.bf16.msra.mxu0 0
      %2568 = vmatprep.subr.bf16.mxu0 0
      %2569 = vmatpush1.bf16.msra.mxu0 0
      %2570 = vmatprep.subr.bf16.mxu0 0
      %2571 = vmatpush1.bf16.msra.mxu0 0
      %2572 = vmatprep.subr.bf16.mxu0 0
      %2573 = vmatpush1.bf16.msra.mxu0 %v2556
      %2574 = vmatprep.subr.bf16.mxu0 0
      %2575 = vmatpush2.bf16.msra.mxu0 0
      %2576 = vmatprep.subr.bf16.mxu0 0
      %2577 = vmatpush2.bf16.msra.mxu0 0
      %2578 = vmatprep.subr.bf16.mxu0 0
      %2579 = vmatpush2.bf16.msra.mxu0 0
      %2580 = vmatprep.subr.bf16.mxu0 0
      %2581 = vmatpush2.bf16.msra.mxu0 0
      %2582 = vmatprep.subr.bf16.mxu0 0
      %2583 = vmatpush2.bf16.msra.mxu0 0
      %2584 = vmatprep.subr.bf16.mxu0 0
      %2585 = vmatpush2.bf16.msra.mxu0 0
      %2586 = vmatprep.subr.bf16.mxu0 0
      %2587 = vmatpush2.bf16.msra.mxu0 0
      %2588 = vmatprep.subr.bf16.mxu0 0
      %2589 = vmatpush2.bf16.msra.mxu0 0
      %2590 = vmatprep.mubr.bf16.mxu0 0
      %2591 = vmatmul.mubr.bf16.gmra.mxu0 %v1905
      %v2592 = vpop.f32.mrf.mxu0
      %v2593 = vadd.f32 0.0, %v2592
      %v2594 = vpop.f32.mrf.mxu0
      %v2595 = vpop.f32.mrf.mxu0
      %v2596 = vadd.f32 0.0, %v2595
      %v2597 = vpop.f32.mrf.mxu0
      %2598 = vmatprep.mubr.bf16.mxu0 0
      %2599 = vmatmul.mubr.bf16.gmra.mxu0 %v1908
      %v2600 = vpop.f32.mrf.mxu0
      %v2601 = vadd.f32 0.0, %v2600
      %v2602 = vpop.f32.mrf.mxu0
      %v2603 = vpop.f32.mrf.mxu0
      %v2604 = vadd.f32 0.0, %v2603
      %v2605 = vpop.f32.mrf.mxu0
      %2606 = vmatprep.mubr.bf16.mxu0 0
      %2607 = vmatmul.mubr.bf16.gmra.mxu0 %v1911
      %v2608 = vpop.f32.mrf.mxu0
      %v2609 = vadd.f32 0.0, %v2608
      %v2610 = vpop.f32.mrf.mxu0
      %v2611 = vpop.f32.mrf.mxu0
      %v2612 = vadd.f32 0.0, %v2611
      %v2613 = vpop.f32.mrf.mxu0
      %2614 = vmatprep.mubr.bf16.mxu0 0
      %2615 = vmatmul.mubr.bf16.gmra.mxu0 %v1914
      %v2616 = vpop.f32.mrf.mxu0
      %v2617 = vadd.f32 0.0, %v2616
      %v2618 = vpop.f32.mrf.mxu0
      %v2619 = vpop.f32.mrf.mxu0
      %v2620 = vadd.f32 0.0, %v2619
      %v2621 = vpop.f32.mrf.mxu0
      %2622 = vmatprep.mubr.bf16.mxu0 0
      %2623 = vmatmul.mubr.bf16.gmra.mxu0 %v1917
      %v2624 = vpop.f32.mrf.mxu0
      %v2625 = vadd.f32 0.0, %v2624
      %v2626 = vpop.f32.mrf.mxu0
      %v2627 = vpop.f32.mrf.mxu0
      %v2628 = vadd.f32 0.0, %v2627
      %v2629 = vpop.f32.mrf.mxu0
      %2630 = vmatprep.mubr.bf16.mxu0 0
      %2631 = vmatmul.mubr.bf16.gmra.mxu0 %v1920
      %v2632 = vpop.f32.mrf.mxu0
      %v2633 = vadd.f32 0.0, %v2632
      %v2634 = vpop.f32.mrf.mxu0
      %v2635 = vpop.f32.mrf.mxu0
      %v2636 = vadd.f32 0.0, %v2635
      %v2637 = vpop.f32.mrf.mxu0
      %2638 = vmatprep.mubr.bf16.mxu0 0
      %2639 = vmatmul.mubr.bf16.gmra.mxu0 %v1923
      %v2640 = vpop.f32.mrf.mxu0
      %v2641 = vadd.f32 0.0, %v2640
      %v2642 = vpop.f32.mrf.mxu0
      %v2643 = vpop.f32.mrf.mxu0
      %v2644 = vadd.f32 0.0, %v2643
      %v2645 = vpop.f32.mrf.mxu0
      %2646 = vmatprep.mubr.bf16.mxu0 0
      %2647 = vmatmul.mubr.bf16.gmra.mxu0 %v1926
      %v2648 = vpop.f32.mrf.mxu0
      %v2649 = vadd.f32 0.0, %v2648
      %v2650 = vpop.f32.mrf.mxu0
      %v2651 = vpop.f32.mrf.mxu0
      %v2652 = vadd.f32 0.0, %v2651
      %v2653 = vpop.f32.mrf.mxu0
      %2654 = vmatprep.mubr.bf16.mxu0 0
      %2655 = vmatmul.mubr.bf16.gmra.mxu0 %v1929
      %v2656 = vpop.f32.mrf.mxu0
      %v2657 = vadd.f32 0.0, %v2656
      %v2658 = vpop.f32.mrf.mxu0
      %v2659 = vpop.f32.mrf.mxu0
      %v2660 = vadd.f32 0.0, %v2659
      %v2661 = vpop.f32.mrf.mxu0
      %2662 = vmatprep.mubr.bf16.mxu0 0
      %2663 = vmatmul.mubr.bf16.gmra.mxu0 %v1932
      %v2664 = vpop.f32.mrf.mxu0
      %v2665 = vadd.f32 0.0, %v2664
      %v2666 = vpop.f32.mrf.mxu0
      %v2667 = vpop.f32.mrf.mxu0
      %v2668 = vadd.f32 0.0, %v2667
      %v2669 = vpop.f32.mrf.mxu0
      %2670 = vmatprep.mubr.bf16.mxu0 0
      %2671 = vmatmul.mubr.bf16.gmra.mxu0 %v1935
      %v2672 = vpop.f32.mrf.mxu0
      %v2673 = vadd.f32 0.0, %v2672
      %v2674 = vpop.f32.mrf.mxu0
      %v2675 = vpop.f32.mrf.mxu0
      %v2676 = vadd.f32 0.0, %v2675
      %v2677 = vpop.f32.mrf.mxu0
      %2678 = vmatprep.mubr.bf16.mxu0 0
      %2679 = vmatmul.mubr.bf16.gmra.mxu0 %v1938
      %v2680 = vpop.f32.mrf.mxu0
      %v2681 = vadd.f32 0.0, %v2680
      %v2682 = vpop.f32.mrf.mxu0
      %v2683 = vpop.f32.mrf.mxu0
      %v2684 = vadd.f32 0.0, %v2683
      %v2685 = vpop.f32.mrf.mxu0
      %2686 = vmatprep.mubr.bf16.mxu0 0
      %2687 = vmatmul.mubr.bf16.gmra.mxu0 %v1941
      %v2688 = vpop.f32.mrf.mxu0
      %v2689 = vadd.f32 0.0, %v2688
      %v2690 = vpop.f32.mrf.mxu0
      %v2691 = vpop.f32.mrf.mxu0
      %v2692 = vadd.f32 0.0, %v2691
      %v2693 = vpop.f32.mrf.mxu0
      %2694 = vmatprep.mubr.bf16.mxu0 0
      %2695 = vmatmul.mubr.bf16.gmra.mxu0 %v1944
      %v2696 = vpop.f32.mrf.mxu0
      %v2697 = vadd.f32 0.0, %v2696
      %v2698 = vpop.f32.mrf.mxu0
      %v2699 = vpop.f32.mrf.mxu0
      %v2700 = vadd.f32 0.0, %v2699
      %v2701 = vpop.f32.mrf.mxu0
      %2702 = vmatprep.mubr.bf16.mxu0 0
      %2703 = vmatmul.mubr.bf16.gmra.mxu0 %v1947
      %v2704 = vpop.f32.mrf.mxu0
      %v2705 = vadd.f32 0.0, %v2704
      %v2706 = vpop.f32.mrf.mxu0
      %v2707 = vpop.f32.mrf.mxu0
      %v2708 = vadd.f32 0.0, %v2707
      %v2709 = vpop.f32.mrf.mxu0
      %2710 = vmatprep.mubr.bf16.mxu0 0
      %2711 = vmatmul.mubr.bf16.gmra.mxu0 %v2553
      %v2712 = vpop.f32.mrf.mxu0
      %v2713 = vadd.f32 0.0, %v2712
      %v2714 = vpop.f32.mrf.mxu0
      %v2715 = vpop.f32.mrf.mxu0
      %v2716 = vadd.f32 0.0, %v2715
      %v2717 = vpop.f32.mrf.mxu0
      %2718 = vdwg.mxu0
      %v2719 = vadd.f32 %v2517, %v2593
      %v2720 = vadd.f32 %v2518, %v2596
      %v2721 = vadd.f32 %v2519, %v2601
      %v2722 = vadd.f32 %v2520, %v2604
      %v2723 = vadd.f32 %v2521, %v2609
      %v2724 = vadd.f32 %v2522, %v2612
      %v2725 = vadd.f32 %v2523, %v2617
      %v2726 = vadd.f32 %v2524, %v2620
      %v2727 = vadd.f32 %v2525, %v2625
      %v2728 = vadd.f32 %v2526, %v2628
      %v2729 = vadd.f32 %v2527, %v2633
      %v2730 = vadd.f32 %v2528, %v2636
      %v2731 = vadd.f32 %v2529, %v2641
      %v2732 = vadd.f32 %v2530, %v2644
      %v2733 = vadd.f32 %v2531, %v2649
      %v2734 = vadd.f32 %v2532, %v2652
      %v2735 = vadd.f32 %v2533, %v2657
      %v2736 = vadd.f32 %v2534, %v2660
      %v2737 = vadd.f32 %v2535, %v2665
      %v2738 = vadd.f32 %v2536, %v2668
      %v2739 = vadd.f32 %v2537, %v2673
      %v2740 = vadd.f32 %v2538, %v2676
      %v2741 = vadd.f32 %v2539, %v2681
      %v2742 = vadd.f32 %v2540, %v2684
      %v2743 = vadd.f32 %v2541, %v2689
      %v2744 = vadd.f32 %v2542, %v2692
      %v2745 = vadd.f32 %v2543, %v2697
      %v2746 = vadd.f32 %v2544, %v2700
      %v2747 = vadd.f32 %v2545, %v2705
      %v2748 = vadd.f32 %v2546, %v2708
      %v2749 = vadd.f32 %v2547, %v2713
      %v2750 = vadd.f32 %v2548, %v2716
      %v2751 = vpack.c.bf16 %v1245, %v1422
      %s2752 = scalar_lea.vmem %s4, 12
      %v2753 = vld [vmem:[%s2752] sm:$0x3]
      %v2755 = vsel %vm690, %v2751, 0
      %v2758 = vsel %vm739, %v2753, 0
      %2760 = vmatprep.subr.bf16.mxu0 0
      %2761 = vmatpush1.bf16.msra.mxu0 0
      %2762 = vmatprep.subr.bf16.mxu0 0
      %2763 = vmatpush1.bf16.msra.mxu0 0
      %2764 = vmatprep.subr.bf16.mxu0 0
      %2765 = vmatpush1.bf16.msra.mxu0 0
      %2766 = vmatprep.subr.bf16.mxu0 0
      %2767 = vmatpush1.bf16.msra.mxu0 0
      %2768 = vmatprep.subr.bf16.mxu0 0
      %2769 = vmatpush1.bf16.msra.mxu0 0
      %2770 = vmatprep.subr.bf16.mxu0 0
      %2771 = vmatpush1.bf16.msra.mxu0 0
      %2772 = vmatprep.subr.bf16.mxu0 0
      %2773 = vmatpush1.bf16.msra.mxu0 0
      %2774 = vmatprep.subr.bf16.mxu0 0
      %2775 = vmatpush1.bf16.msra.mxu0 %v2758
      %2776 = vmatprep.subr.bf16.mxu0 0
      %2777 = vmatpush2.bf16.msra.mxu0 0
      %2778 = vmatprep.subr.bf16.mxu0 0
      %2779 = vmatpush2.bf16.msra.mxu0 0
      %2780 = vmatprep.subr.bf16.mxu0 0
      %2781 = vmatpush2.bf16.msra.mxu0 0
      %2782 = vmatprep.subr.bf16.mxu0 0
      %2783 = vmatpush2.bf16.msra.mxu0 0
      %2784 = vmatprep.subr.bf16.mxu0 0
      %2785 = vmatpush2.bf16.msra.mxu0 0
      %2786 = vmatprep.subr.bf16.mxu0 0
      %2787 = vmatpush2.bf16.msra.mxu0 0
      %2788 = vmatprep.subr.bf16.mxu0 0
      %2789 = vmatpush2.bf16.msra.mxu0 0
      %2790 = vmatprep.subr.bf16.mxu0 0
      %2791 = vmatpush2.bf16.msra.mxu0 0
      %2792 = vmatprep.mubr.bf16.mxu0 0
      %2793 = vmatmul.mubr.bf16.gmra.mxu0 %v1678
      %v2794 = vpop.f32.mrf.mxu0
      %v2795 = vadd.f32 0.0, %v2794
      %v2796 = vpop.f32.mrf.mxu0
      %v2797 = vpop.f32.mrf.mxu0
      %v2798 = vadd.f32 0.0, %v2797
      %v2799 = vpop.f32.mrf.mxu0
      %2800 = vmatprep.mubr.bf16.mxu0 0
      %2801 = vmatmul.mubr.bf16.gmra.mxu0 %v1681
      %v2802 = vpop.f32.mrf.mxu0
      %v2803 = vadd.f32 0.0, %v2802
      %v2804 = vpop.f32.mrf.mxu0
      %v2805 = vpop.f32.mrf.mxu0
      %v2806 = vadd.f32 0.0, %v2805
      %v2807 = vpop.f32.mrf.mxu0
      %2808 = vmatprep.mubr.bf16.mxu0 0
      %2809 = vmatmul.mubr.bf16.gmra.mxu0 %v1684
      %v2810 = vpop.f32.mrf.mxu0
      %v2811 = vadd.f32 0.0, %v2810
      %v2812 = vpop.f32.mrf.mxu0
      %v2813 = vpop.f32.mrf.mxu0
      %v2814 = vadd.f32 0.0, %v2813
      %v2815 = vpop.f32.mrf.mxu0
      %2816 = vmatprep.mubr.bf16.mxu0 0
      %2817 = vmatmul.mubr.bf16.gmra.mxu0 %v1687
      %v2818 = vpop.f32.mrf.mxu0
      %v2819 = vadd.f32 0.0, %v2818
      %v2820 = vpop.f32.mrf.mxu0
      %v2821 = vpop.f32.mrf.mxu0
      %v2822 = vadd.f32 0.0, %v2821
      %v2823 = vpop.f32.mrf.mxu0
      %2824 = vmatprep.mubr.bf16.mxu0 0
      %2825 = vmatmul.mubr.bf16.gmra.mxu0 %v1690
      %v2826 = vpop.f32.mrf.mxu0
      %v2827 = vadd.f32 0.0, %v2826
      %v2828 = vpop.f32.mrf.mxu0
      %v2829 = vpop.f32.mrf.mxu0
      %v2830 = vadd.f32 0.0, %v2829
      %v2831 = vpop.f32.mrf.mxu0
      %2832 = vmatprep.mubr.bf16.mxu0 0
      %2833 = vmatmul.mubr.bf16.gmra.mxu0 %v1693
      %v2834 = vpop.f32.mrf.mxu0
      %v2835 = vadd.f32 0.0, %v2834
      %v2836 = vpop.f32.mrf.mxu0
      %v2837 = vpop.f32.mrf.mxu0
      %v2838 = vadd.f32 0.0, %v2837
      %v2839 = vpop.f32.mrf.mxu0
      %2840 = vmatprep.mubr.bf16.mxu0 0
      %2841 = vmatmul.mubr.bf16.gmra.mxu0 %v1696
      %v2842 = vpop.f32.mrf.mxu0
      %v2843 = vadd.f32 0.0, %v2842
      %v2844 = vpop.f32.mrf.mxu0
      %v2845 = vpop.f32.mrf.mxu0
      %v2846 = vadd.f32 0.0, %v2845
      %v2847 = vpop.f32.mrf.mxu0
      %2848 = vmatprep.mubr.bf16.mxu0 0
      %2849 = vmatmul.mubr.bf16.gmra.mxu0 %v1699
      %v2850 = vpop.f32.mrf.mxu0
      %v2851 = vadd.f32 0.0, %v2850
      %v2852 = vpop.f32.mrf.mxu0
      %v2853 = vpop.f32.mrf.mxu0
      %v2854 = vadd.f32 0.0, %v2853
      %v2855 = vpop.f32.mrf.mxu0
      %2856 = vmatprep.mubr.bf16.mxu0 0
      %2857 = vmatmul.mubr.bf16.gmra.mxu0 %v1702
      %v2858 = vpop.f32.mrf.mxu0
      %v2859 = vadd.f32 0.0, %v2858
      %v2860 = vpop.f32.mrf.mxu0
      %v2861 = vpop.f32.mrf.mxu0
      %v2862 = vadd.f32 0.0, %v2861
      %v2863 = vpop.f32.mrf.mxu0
      %2864 = vmatprep.mubr.bf16.mxu0 0
      %2865 = vmatmul.mubr.bf16.gmra.mxu0 %v1705
      %v2866 = vpop.f32.mrf.mxu0
      %v2867 = vadd.f32 0.0, %v2866
      %v2868 = vpop.f32.mrf.mxu0
      %v2869 = vpop.f32.mrf.mxu0
      %v2870 = vadd.f32 0.0, %v2869
      %v2871 = vpop.f32.mrf.mxu0
      %2872 = vmatprep.mubr.bf16.mxu0 0
      %2873 = vmatmul.mubr.bf16.gmra.mxu0 %v1708
      %v2874 = vpop.f32.mrf.mxu0
      %v2875 = vadd.f32 0.0, %v2874
      %v2876 = vpop.f32.mrf.mxu0
      %v2877 = vpop.f32.mrf.mxu0
      %v2878 = vadd.f32 0.0, %v2877
      %v2879 = vpop.f32.mrf.mxu0
      %2880 = vmatprep.mubr.bf16.mxu0 0
      %2881 = vmatmul.mubr.bf16.gmra.mxu0 %v1711
      %v2882 = vpop.f32.mrf.mxu0
      %v2883 = vadd.f32 0.0, %v2882
      %v2884 = vpop.f32.mrf.mxu0
      %v2885 = vpop.f32.mrf.mxu0
      %v2886 = vadd.f32 0.0, %v2885
      %v2887 = vpop.f32.mrf.mxu0
      %2888 = vmatprep.mubr.bf16.mxu0 0
      %2889 = vmatmul.mubr.bf16.gmra.mxu0 %v1714
      %v2890 = vpop.f32.mrf.mxu0
      %v2891 = vadd.f32 0.0, %v2890
      %v2892 = vpop.f32.mrf.mxu0
      %v2893 = vpop.f32.mrf.mxu0
      %v2894 = vadd.f32 0.0, %v2893
      %v2895 = vpop.f32.mrf.mxu0
      %2896 = vmatprep.mubr.bf16.mxu0 0
      %2897 = vmatmul.mubr.bf16.gmra.mxu0 %v1717
      %v2898 = vpop.f32.mrf.mxu0
      %v2899 = vadd.f32 0.0, %v2898
      %v2900 = vpop.f32.mrf.mxu0
      %v2901 = vpop.f32.mrf.mxu0
      %v2902 = vadd.f32 0.0, %v2901
      %v2903 = vpop.f32.mrf.mxu0
      %2904 = vmatprep.mubr.bf16.mxu0 0
      %2905 = vmatmul.mubr.bf16.gmra.mxu0 %v2149
      %v2906 = vpop.f32.mrf.mxu0
      %v2907 = vadd.f32 0.0, %v2906
      %v2908 = vpop.f32.mrf.mxu0
      %v2909 = vpop.f32.mrf.mxu0
      %v2910 = vadd.f32 0.0, %v2909
      %v2911 = vpop.f32.mrf.mxu0
      %2912 = vmatprep.mubr.bf16.mxu0 0
      %2913 = vmatmul.mubr.bf16.gmra.mxu0 %v2755
      %v2914 = vpop.f32.mrf.mxu0
      %v2915 = vadd.f32 0.0, %v2914
      %v2916 = vpop.f32.mrf.mxu0
      %v2917 = vpop.f32.mrf.mxu0
      %v2918 = vadd.f32 0.0, %v2917
      %v2919 = vpop.f32.mrf.mxu0
      %2920 = vdwg.mxu0
      %v2921 = vadd.f32 %v2719, %v2795
      %v2922 = vadd.f32 %v2720, %v2798
      %v2923 = vadd.f32 %v2721, %v2803
      %v2924 = vadd.f32 %v2722, %v2806
      %v2925 = vadd.f32 %v2723, %v2811
      %v2926 = vadd.f32 %v2724, %v2814
      %v2927 = vadd.f32 %v2725, %v2819
      %v2928 = vadd.f32 %v2726, %v2822
      %v2929 = vadd.f32 %v2727, %v2827
      %v2930 = vadd.f32 %v2728, %v2830
      %v2931 = vadd.f32 %v2729, %v2835
      %v2932 = vadd.f32 %v2730, %v2838
      %v2933 = vadd.f32 %v2731, %v2843
      %v2934 = vadd.f32 %v2732, %v2846
      %v2935 = vadd.f32 %v2733, %v2851
      %v2936 = vadd.f32 %v2734, %v2854
      %v2937 = vadd.f32 %v2735, %v2859
      %v2938 = vadd.f32 %v2736, %v2862
      %v2939 = vadd.f32 %v2737, %v2867
      %v2940 = vadd.f32 %v2738, %v2870
      %v2941 = vadd.f32 %v2739, %v2875
      %v2942 = vadd.f32 %v2740, %v2878
      %v2943 = vadd.f32 %v2741, %v2883
      %v2944 = vadd.f32 %v2742, %v2886
      %v2945 = vadd.f32 %v2743, %v2891
      %v2946 = vadd.f32 %v2744, %v2894
      %v2947 = vadd.f32 %v2745, %v2899
      %v2948 = vadd.f32 %v2746, %v2902
      %v2949 = vadd.f32 %v2747, %v2907
      %v2950 = vadd.f32 %v2748, %v2910
      %v2951 = vadd.f32 %v2749, %v2915
      %v2952 = vadd.f32 %v2750, %v2918
      %s2953 = scalar_lea.vmem %s4, 14
      %v2954 = vld [vmem:[%s2953] sm:$0x3]
      %v2956 = vsel %vm739, %v2954, 0
      %2958 = vmatprep.subr.bf16.mxu0 0
      %2959 = vmatpush1.bf16.msra.mxu0 0
      %2960 = vmatprep.subr.bf16.mxu0 0
      %2961 = vmatpush1.bf16.msra.mxu0 0
      %2962 = vmatprep.subr.bf16.mxu0 0
      %2963 = vmatpush1.bf16.msra.mxu0 0
      %2964 = vmatprep.subr.bf16.mxu0 0
      %2965 = vmatpush1.bf16.msra.mxu0 0
      %2966 = vmatprep.subr.bf16.mxu0 0
      %2967 = vmatpush1.bf16.msra.mxu0 0
      %2968 = vmatprep.subr.bf16.mxu0 0
      %2969 = vmatpush1.bf16.msra.mxu0 0
      %2970 = vmatprep.subr.bf16.mxu0 0
      %2971 = vmatpush1.bf16.msra.mxu0 0
      %2972 = vmatprep.subr.bf16.mxu0 0
      %2973 = vmatpush1.bf16.msra.mxu0 %v2956
      %2974 = vmatprep.subr.bf16.mxu0 0
      %2975 = vmatpush2.bf16.msra.mxu0 0
      %2976 = vmatprep.subr.bf16.mxu0 0
      %2977 = vmatpush2.bf16.msra.mxu0 0
      %2978 = vmatprep.subr.bf16.mxu0 0
      %2979 = vmatpush2.bf16.msra.mxu0 0
      %2980 = vmatprep.subr.bf16.mxu0 0
      %2981 = vmatpush2.bf16.msra.mxu0 0
      %2982 = vmatprep.subr.bf16.mxu0 0
      %2983 = vmatpush2.bf16.msra.mxu0 0
      %2984 = vmatprep.subr.bf16.mxu0 0
      %2985 = vmatpush2.bf16.msra.mxu0 0
      %2986 = vmatprep.subr.bf16.mxu0 0
      %2987 = vmatpush2.bf16.msra.mxu0 0
      %2988 = vmatprep.subr.bf16.mxu0 0
      %2989 = vmatpush2.bf16.msra.mxu0 0
      %2990 = vmatprep.mubr.bf16.mxu0 0
      %2991 = vmatmul.mubr.bf16.gmra.mxu0 %v1466
      %v2992 = vpop.f32.mrf.mxu0
      %v2993 = vadd.f32 0.0, %v2992
      %v2994 = vpop.f32.mrf.mxu0
      %v2995 = vpop.f32.mrf.mxu0
      %v2996 = vadd.f32 0.0, %v2995
      %v2997 = vpop.f32.mrf.mxu0
      %2998 = vmatprep.mubr.bf16.mxu0 0
      %2999 = vmatmul.mubr.bf16.gmra.mxu0 %v1469
      %v3000 = vpop.f32.mrf.mxu0
      %v3001 = vadd.f32 0.0, %v3000
      %v3002 = vpop.f32.mrf.mxu0
      %v3003 = vpop.f32.mrf.mxu0
      %v3004 = vadd.f32 0.0, %v3003
      %v3005 = vpop.f32.mrf.mxu0
      %3006 = vmatprep.mubr.bf16.mxu0 0
      %3007 = vmatmul.mubr.bf16.gmra.mxu0 %v1472
      %v3008 = vpop.f32.mrf.mxu0
      %v3009 = vadd.f32 0.0, %v3008
      %v3010 = vpop.f32.mrf.mxu0
      %v3011 = vpop.f32.mrf.mxu0
      %v3012 = vadd.f32 0.0, %v3011
      %v3013 = vpop.f32.mrf.mxu0
      %3014 = vmatprep.mubr.bf16.mxu0 0
      %3015 = vmatmul.mubr.bf16.gmra.mxu0 %v1475
      %v3016 = vpop.f32.mrf.mxu0
      %v3017 = vadd.f32 0.0, %v3016
      %v3018 = vpop.f32.mrf.mxu0
      %v3019 = vpop.f32.mrf.mxu0
      %v3020 = vadd.f32 0.0, %v3019
      %v3021 = vpop.f32.mrf.mxu0
      %3022 = vmatprep.mubr.bf16.mxu0 0
      %3023 = vmatmul.mubr.bf16.gmra.mxu0 %v1478
      %v3024 = vpop.f32.mrf.mxu0
      %v3025 = vadd.f32 0.0, %v3024
      %v3026 = vpop.f32.mrf.mxu0
      %v3027 = vpop.f32.mrf.mxu0
      %v3028 = vadd.f32 0.0, %v3027
      %v3029 = vpop.f32.mrf.mxu0
      %3030 = vmatprep.mubr.bf16.mxu0 0
      %3031 = vmatmul.mubr.bf16.gmra.mxu0 %v1481
      %v3032 = vpop.f32.mrf.mxu0
      %v3033 = vadd.f32 0.0, %v3032
      %v3034 = vpop.f32.mrf.mxu0
      %v3035 = vpop.f32.mrf.mxu0
      %v3036 = vadd.f32 0.0, %v3035
      %v3037 = vpop.f32.mrf.mxu0
      %3038 = vmatprep.mubr.bf16.mxu0 0
      %3039 = vmatmul.mubr.bf16.gmra.mxu0 %v1484
      %v3040 = vpop.f32.mrf.mxu0
      %v3041 = vadd.f32 0.0, %v3040
      %v3042 = vpop.f32.mrf.mxu0
      %v3043 = vpop.f32.mrf.mxu0
      %v3044 = vadd.f32 0.0, %v3043
      %v3045 = vpop.f32.mrf.mxu0
      %3046 = vmatprep.mubr.bf16.mxu0 0
      %3047 = vmatmul.mubr.bf16.gmra.mxu0 %v1487
      %v3048 = vpop.f32.mrf.mxu0
      %v3049 = vadd.f32 0.0, %v3048
      %v3050 = vpop.f32.mrf.mxu0
      %v3051 = vpop.f32.mrf.mxu0
      %v3052 = vadd.f32 0.0, %v3051
      %v3053 = vpop.f32.mrf.mxu0
      %3054 = vmatprep.mubr.bf16.mxu0 0
      %3055 = vmatmul.mubr.bf16.gmra.mxu0 %v1490
      %v3056 = vpop.f32.mrf.mxu0
      %v3057 = vadd.f32 0.0, %v3056
      %v3058 = vpop.f32.mrf.mxu0
      %v3059 = vpop.f32.mrf.mxu0
      %v3060 = vadd.f32 0.0, %v3059
      %v3061 = vpop.f32.mrf.mxu0
      %3062 = vmatprep.mubr.bf16.mxu0 0
      %3063 = vmatmul.mubr.bf16.gmra.mxu0 %v1493
      %v3064 = vpop.f32.mrf.mxu0
      %v3065 = vadd.f32 0.0, %v3064
      %v3066 = vpop.f32.mrf.mxu0
      %v3067 = vpop.f32.mrf.mxu0
      %v3068 = vadd.f32 0.0, %v3067
      %v3069 = vpop.f32.mrf.mxu0
      %3070 = vmatprep.mubr.bf16.mxu0 0
      %3071 = vmatmul.mubr.bf16.gmra.mxu0 %v1496
      %v3072 = vpop.f32.mrf.mxu0
      %v3073 = vadd.f32 0.0, %v3072
      %v3074 = vpop.f32.mrf.mxu0
      %v3075 = vpop.f32.mrf.mxu0
      %v3076 = vadd.f32 0.0, %v3075
      %v3077 = vpop.f32.mrf.mxu0
      %3078 = vmatprep.mubr.bf16.mxu0 0
      %3079 = vmatmul.mubr.bf16.gmra.mxu0 %v1499
      %v3080 = vpop.f32.mrf.mxu0
      %v3081 = vadd.f32 0.0, %v3080
      %v3082 = vpop.f32.mrf.mxu0
      %v3083 = vpop.f32.mrf.mxu0
      %v3084 = vadd.f32 0.0, %v3083
      %v3085 = vpop.f32.mrf.mxu0
      %3086 = vmatprep.mubr.bf16.mxu0 0
      %3087 = vmatmul.mubr.bf16.gmra.mxu0 %v1502
      %v3088 = vpop.f32.mrf.mxu0
      %v3089 = vadd.f32 0.0, %v3088
      %v3090 = vpop.f32.mrf.mxu0
      %v3091 = vpop.f32.mrf.mxu0
      %v3092 = vadd.f32 0.0, %v3091
      %v3093 = vpop.f32.mrf.mxu0
      %3094 = vmatprep.mubr.bf16.mxu0 0
      %3095 = vmatmul.mubr.bf16.gmra.mxu0 %v1505
      %v3096 = vpop.f32.mrf.mxu0
      %v3097 = vadd.f32 0.0, %v3096
      %v3098 = vpop.f32.mrf.mxu0
      %v3099 = vpop.f32.mrf.mxu0
      %v3100 = vadd.f32 0.0, %v3099
      %v3101 = vpop.f32.mrf.mxu0
      %3102 = vmatprep.mubr.bf16.mxu0 0
      %3103 = vmatmul.mubr.bf16.gmra.mxu0 %v2351
      %v3104 = vpop.f32.mrf.mxu0
      %v3105 = vadd.f32 0.0, %v3104
      %v3106 = vpop.f32.mrf.mxu0
      %v3107 = vpop.f32.mrf.mxu0
      %v3108 = vadd.f32 0.0, %v3107
      %v3109 = vpop.f32.mrf.mxu0
      %3110 = vmatprep.mubr.bf16.mxu0 0
      %3111 = vmatmul.mubr.bf16.gmra.mxu0 %v1460
      %v3112 = vpop.f32.mrf.mxu0
      %v3113 = vadd.f32 0.0, %v3112
      %v3114 = vpop.f32.mrf.mxu0
      %v3115 = vpop.f32.mrf.mxu0
      %v3116 = vadd.f32 0.0, %v3115
      %v3117 = vpop.f32.mrf.mxu0
      %3118 = vdwg.mxu0
      %v3119 = vadd.f32 %v2921, %v2993
      %v3120 = vadd.f32 %v2922, %v2996
      %v3121 = vadd.f32 %v2923, %v3001
      %v3122 = vadd.f32 %v2924, %v3004
      %v3123 = vadd.f32 %v2925, %v3009
      %v3124 = vadd.f32 %v2926, %v3012
      %v3125 = vadd.f32 %v2927, %v3017
      %v3126 = vadd.f32 %v2928, %v3020
      %v3127 = vadd.f32 %v2929, %v3025
      %v3128 = vadd.f32 %v2930, %v3028
      %v3129 = vadd.f32 %v2931, %v3033
      %v3130 = vadd.f32 %v2932, %v3036
      %v3131 = vadd.f32 %v2933, %v3041
      %v3132 = vadd.f32 %v2934, %v3044
      %v3133 = vadd.f32 %v2935, %v3049
      %v3134 = vadd.f32 %v2936, %v3052
      %v3135 = vadd.f32 %v2937, %v3057
      %v3136 = vadd.f32 %v2938, %v3060
      %v3137 = vadd.f32 %v2939, %v3065
      %v3138 = vadd.f32 %v2940, %v3068
      %v3139 = vadd.f32 %v2941, %v3073
      %v3140 = vadd.f32 %v2942, %v3076
      %v3141 = vadd.f32 %v2943, %v3081
      %v3142 = vadd.f32 %v2944, %v3084
      %v3143 = vadd.f32 %v2945, %v3089
      %v3144 = vadd.f32 %v2946, %v3092
      %v3145 = vadd.f32 %v2947, %v3097
      %v3146 = vadd.f32 %v2948, %v3100
      %v3147 = vadd.f32 %v2949, %v3105
      %v3148 = vadd.f32 %v2950, %v3108
      %v3149 = vadd.f32 %v2951, %v3113
      %v3150 = vadd.f32 %v2952, %v3116
      %v3151 = vpack.c.bf16 %v1423, %v1373
      %s3152 = scalar_lea.vmem %s4, 16
      %v3153 = vld [vmem:[%s3152] sm:$0x3]
      %v3155 = vsel %vm690, %v3151, 0
      %v3158 = vsel %vm739, %v3153, 0
      %3160 = vmatprep.subr.bf16.mxu0 0
      %3161 = vmatpush1.bf16.msra.mxu0 0
      %3162 = vmatprep.subr.bf16.mxu0 0
      %3163 = vmatpush1.bf16.msra.mxu0 0
      %3164 = vmatprep.subr.bf16.mxu0 0
      %3165 = vmatpush1.bf16.msra.mxu0 0
      %3166 = vmatprep.subr.bf16.mxu0 0
      %3167 = vmatpush1.bf16.msra.mxu0 0
      %3168 = vmatprep.subr.bf16.mxu0 0
      %3169 = vmatpush1.bf16.msra.mxu0 0
      %3170 = vmatprep.subr.bf16.mxu0 0
      %3171 = vmatpush1.bf16.msra.mxu0 0
      %3172 = vmatprep.subr.bf16.mxu0 0
      %3173 = vmatpush1.bf16.msra.mxu0 0
      %3174 = vmatprep.subr.bf16.mxu0 0
      %3175 = vmatpush1.bf16.msra.mxu0 %v3158
      %3176 = vmatprep.subr.bf16.mxu0 0
      %3177 = vmatpush2.bf16.msra.mxu0 0
      %3178 = vmatprep.subr.bf16.mxu0 0
      %3179 = vmatpush2.bf16.msra.mxu0 0
      %3180 = vmatprep.subr.bf16.mxu0 0
      %3181 = vmatpush2.bf16.msra.mxu0 0
      %3182 = vmatprep.subr.bf16.mxu0 0
      %3183 = vmatpush2.bf16.msra.mxu0 0
      %3184 = vmatprep.subr.bf16.mxu0 0
      %3185 = vmatpush2.bf16.msra.mxu0 0
      %3186 = vmatprep.subr.bf16.mxu0 0
      %3187 = vmatpush2.bf16.msra.mxu0 0
      %3188 = vmatprep.subr.bf16.mxu0 0
      %3189 = vmatpush2.bf16.msra.mxu0 0
      %3190 = vmatprep.subr.bf16.mxu0 0
      %3191 = vmatpush2.bf16.msra.mxu0 0
      %3192 = vmatprep.mubr.bf16.mxu0 0
      %3193 = vmatmul.mubr.bf16.gmra.mxu0 %v1908
      %v3194 = vpop.f32.mrf.mxu0
      %v3195 = vadd.f32 0.0, %v3194
      %v3196 = vpop.f32.mrf.mxu0
      %v3197 = vpop.f32.mrf.mxu0
      %v3198 = vadd.f32 0.0, %v3197
      %v3199 = vpop.f32.mrf.mxu0
      %3200 = vmatprep.mubr.bf16.mxu0 0
      %3201 = vmatmul.mubr.bf16.gmra.mxu0 %v1911
      %v3202 = vpop.f32.mrf.mxu0
      %v3203 = vadd.f32 0.0, %v3202
      %v3204 = vpop.f32.mrf.mxu0
      %v3205 = vpop.f32.mrf.mxu0
      %v3206 = vadd.f32 0.0, %v3205
      %v3207 = vpop.f32.mrf.mxu0
      %3208 = vmatprep.mubr.bf16.mxu0 0
      %3209 = vmatmul.mubr.bf16.gmra.mxu0 %v1914
      %v3210 = vpop.f32.mrf.mxu0
      %v3211 = vadd.f32 0.0, %v3210
      %v3212 = vpop.f32.mrf.mxu0
      %v3213 = vpop.f32.mrf.mxu0
      %v3214 = vadd.f32 0.0, %v3213
      %v3215 = vpop.f32.mrf.mxu0
      %3216 = vmatprep.mubr.bf16.mxu0 0
      %3217 = vmatmul.mubr.bf16.gmra.mxu0 %v1917
      %v3218 = vpop.f32.mrf.mxu0
      %v3219 = vadd.f32 0.0, %v3218
      %v3220 = vpop.f32.mrf.mxu0
      %v3221 = vpop.f32.mrf.mxu0
      %v3222 = vadd.f32 0.0, %v3221
      %v3223 = vpop.f32.mrf.mxu0
      %3224 = vmatprep.mubr.bf16.mxu0 0
      %3225 = vmatmul.mubr.bf16.gmra.mxu0 %v1920
      %v3226 = vpop.f32.mrf.mxu0
      %v3227 = vadd.f32 0.0, %v3226
      %v3228 = vpop.f32.mrf.mxu0
      %v3229 = vpop.f32.mrf.mxu0
      %v3230 = vadd.f32 0.0, %v3229
      %v3231 = vpop.f32.mrf.mxu0
      %3232 = vmatprep.mubr.bf16.mxu0 0
      %3233 = vmatmul.mubr.bf16.gmra.mxu0 %v1923
      %v3234 = vpop.f32.mrf.mxu0
      %v3235 = vadd.f32 0.0, %v3234
      %v3236 = vpop.f32.mrf.mxu0
      %v3237 = vpop.f32.mrf.mxu0
      %v3238 = vadd.f32 0.0, %v3237
      %v3239 = vpop.f32.mrf.mxu0
      %3240 = vmatprep.mubr.bf16.mxu0 0
      %3241 = vmatmul.mubr.bf16.gmra.mxu0 %v1926
      %v3242 = vpop.f32.mrf.mxu0
      %v3243 = vadd.f32 0.0, %v3242
      %v3244 = vpop.f32.mrf.mxu0
      %v3245 = vpop.f32.mrf.mxu0
      %v3246 = vadd.f32 0.0, %v3245
      %v3247 = vpop.f32.mrf.mxu0
      %3248 = vmatprep.mubr.bf16.mxu0 0
      %3249 = vmatmul.mubr.bf16.gmra.mxu0 %v1929
      %v3250 = vpop.f32.mrf.mxu0
      %v3251 = vadd.f32 0.0, %v3250
      %v3252 = vpop.f32.mrf.mxu0
      %v3253 = vpop.f32.mrf.mxu0
      %v3254 = vadd.f32 0.0, %v3253
      %v3255 = vpop.f32.mrf.mxu0
      %3256 = vmatprep.mubr.bf16.mxu0 0
      %3257 = vmatmul.mubr.bf16.gmra.mxu0 %v1932
      %v3258 = vpop.f32.mrf.mxu0
      %v3259 = vadd.f32 0.0, %v3258
      %v3260 = vpop.f32.mrf.mxu0
      %v3261 = vpop.f32.mrf.mxu0
      %v3262 = vadd.f32 0.0, %v3261
      %v3263 = vpop.f32.mrf.mxu0
      %3264 = vmatprep.mubr.bf16.mxu0 0
      %3265 = vmatmul.mubr.bf16.gmra.mxu0 %v1935
      %v3266 = vpop.f32.mrf.mxu0
      %v3267 = vadd.f32 0.0, %v3266
      %v3268 = vpop.f32.mrf.mxu0
      %v3269 = vpop.f32.mrf.mxu0
      %v3270 = vadd.f32 0.0, %v3269
      %v3271 = vpop.f32.mrf.mxu0
      %3272 = vmatprep.mubr.bf16.mxu0 0
      %3273 = vmatmul.mubr.bf16.gmra.mxu0 %v1938
      %v3274 = vpop.f32.mrf.mxu0
      %v3275 = vadd.f32 0.0, %v3274
      %v3276 = vpop.f32.mrf.mxu0
      %v3277 = vpop.f32.mrf.mxu0
      %v3278 = vadd.f32 0.0, %v3277
      %v3279 = vpop.f32.mrf.mxu0
      %3280 = vmatprep.mubr.bf16.mxu0 0
      %3281 = vmatmul.mubr.bf16.gmra.mxu0 %v1941
      %v3282 = vpop.f32.mrf.mxu0
      %v3283 = vadd.f32 0.0, %v3282
      %v3284 = vpop.f32.mrf.mxu0
      %v3285 = vpop.f32.mrf.mxu0
      %v3286 = vadd.f32 0.0, %v3285
      %v3287 = vpop.f32.mrf.mxu0
      %3288 = vmatprep.mubr.bf16.mxu0 0
      %3289 = vmatmul.mubr.bf16.gmra.mxu0 %v1944
      %v3290 = vpop.f32.mrf.mxu0
      %v3291 = vadd.f32 0.0, %v3290
      %v3292 = vpop.f32.mrf.mxu0
      %v3293 = vpop.f32.mrf.mxu0
      %v3294 = vadd.f32 0.0, %v3293
      %v3295 = vpop.f32.mrf.mxu0
      %3296 = vmatprep.mubr.bf16.mxu0 0
      %3297 = vmatmul.mubr.bf16.gmra.mxu0 %v1947
      %v3298 = vpop.f32.mrf.mxu0
      %v3299 = vadd.f32 0.0, %v3298
      %v3300 = vpop.f32.mrf.mxu0
      %v3301 = vpop.f32.mrf.mxu0
      %v3302 = vadd.f32 0.0, %v3301
      %v3303 = vpop.f32.mrf.mxu0
      %3304 = vmatprep.mubr.bf16.mxu0 0
      %3305 = vmatmul.mubr.bf16.gmra.mxu0 %v2553
      %v3306 = vpop.f32.mrf.mxu0
      %v3307 = vadd.f32 0.0, %v3306
      %v3308 = vpop.f32.mrf.mxu0
      %v3309 = vpop.f32.mrf.mxu0
      %v3310 = vadd.f32 0.0, %v3309
      %v3311 = vpop.f32.mrf.mxu0
      %3312 = vmatprep.mubr.bf16.mxu0 0
      %3313 = vmatmul.mubr.bf16.gmra.mxu0 %v3155
      %v3314 = vpop.f32.mrf.mxu0
      %v3315 = vadd.f32 0.0, %v3314
      %v3316 = vpop.f32.mrf.mxu0
      %v3317 = vpop.f32.mrf.mxu0
      %v3318 = vadd.f32 0.0, %v3317
      %v3319 = vpop.f32.mrf.mxu0
      %3320 = vdwg.mxu0
      %v3321 = vadd.f32 %v3119, %v3195
      %v3322 = vadd.f32 %v3120, %v3198
      %v3323 = vadd.f32 %v3121, %v3203
      %v3324 = vadd.f32 %v3122, %v3206
      %v3325 = vadd.f32 %v3123, %v3211
      %v3326 = vadd.f32 %v3124, %v3214
      %v3327 = vadd.f32 %v3125, %v3219
      %v3328 = vadd.f32 %v3126, %v3222
      %v3329 = vadd.f32 %v3127, %v3227
      %v3330 = vadd.f32 %v3128, %v3230
      %v3331 = vadd.f32 %v3129, %v3235
      %v3332 = vadd.f32 %v3130, %v3238
      %v3333 = vadd.f32 %v3131, %v3243
      %v3334 = vadd.f32 %v3132, %v3246
      %v3335 = vadd.f32 %v3133, %v3251
      %v3336 = vadd.f32 %v3134, %v3254
      %v3337 = vadd.f32 %v3135, %v3259
      %v3338 = vadd.f32 %v3136, %v3262
      %v3339 = vadd.f32 %v3137, %v3267
      %v3340 = vadd.f32 %v3138, %v3270
      %v3341 = vadd.f32 %v3139, %v3275
      %v3342 = vadd.f32 %v3140, %v3278
      %v3343 = vadd.f32 %v3141, %v3283
      %v3344 = vadd.f32 %v3142, %v3286
      %v3345 = vadd.f32 %v3143, %v3291
      %v3346 = vadd.f32 %v3144, %v3294
      %v3347 = vadd.f32 %v3145, %v3299
      %v3348 = vadd.f32 %v3146, %v3302
      %v3349 = vadd.f32 %v3147, %v3307
      %v3350 = vadd.f32 %v3148, %v3310
      %v3351 = vadd.f32 %v3149, %v3315
      %v3352 = vadd.f32 %v3150, %v3318
      %v3353 = vld [vmem:[%s5] sm:$0x1]
      %v3355 = vlaneseq
      %v3356 = vshrl.u32 %v3355, 7
      %v3357 = vsub.s32 0, %v3356
      %v3358 = vrot.slane %v3353, %v3357
      %v3360 = vmul.f32 %v3321, %v3358
      %v3361 = vmul.f32 %v3322, %v3358
      %v3362 = vmul.f32 %v3323, %v3358
      %v3363 = vmul.f32 %v3324, %v3358
      %v3364 = vmul.f32 %v3325, %v3358
      %v3365 = vmul.f32 %v3326, %v3358
      %v3366 = vmul.f32 %v3327, %v3358
      %v3367 = vmul.f32 %v3328, %v3358
      %v3368 = vmul.f32 %v3329, %v3358
      %v3369 = vmul.f32 %v3330, %v3358
      %v3370 = vmul.f32 %v3331, %v3358
      %v3371 = vmul.f32 %v3332, %v3358
      %v3372 = vmul.f32 %v3333, %v3358
      %v3373 = vmul.f32 %v3334, %v3358
      %v3374 = vmul.f32 %v3335, %v3358
      %v3375 = vmul.f32 %v3336, %v3358
      %v3376 = vmul.f32 %v3337, %v3358
      %v3377 = vmul.f32 %v3338, %v3358
      %v3378 = vmul.f32 %v3339, %v3358
      %v3379 = vmul.f32 %v3340, %v3358
      %v3380 = vmul.f32 %v3341, %v3358
      %v3381 = vmul.f32 %v3342, %v3358
      %v3382 = vmul.f32 %v3343, %v3358
      %v3383 = vmul.f32 %v3344, %v3358
      %v3384 = vmul.f32 %v3345, %v3358
      %v3385 = vmul.f32 %v3346, %v3358
      %v3386 = vmul.f32 %v3347, %v3358
      %v3387 = vmul.f32 %v3348, %v3358
      %v3388 = vmul.f32 %v3349, %v3358
      %v3389 = vmul.f32 %v3350, %v3358
      %v3390 = vmul.f32 %v3351, %v3358
      %v3391 = vmul.f32 %v3352, %v3358
      %v3392 = vld [vmem:[%s6] sm:$0x1]
      %v3394 = vlaneseq
      %v3395 = vshrl.u32 %v3394, 7
      %v3396 = vsub.s32 0, %v3395
      %v3397 = vrot.slane %v3392, %v3396
      %v3399 = vadd.f32 %v3360, %v3397
      %v3400 = vadd.f32 %v3361, %v3397
      %v3401 = vadd.f32 %v3362, %v3397
      %v3402 = vadd.f32 %v3363, %v3397
      %v3403 = vadd.f32 %v3364, %v3397
      %v3404 = vadd.f32 %v3365, %v3397
      %v3405 = vadd.f32 %v3366, %v3397
      %v3406 = vadd.f32 %v3367, %v3397
      %v3407 = vadd.f32 %v3368, %v3397
      %v3408 = vadd.f32 %v3369, %v3397
      %v3409 = vadd.f32 %v3370, %v3397
      %v3410 = vadd.f32 %v3371, %v3397
      %v3411 = vadd.f32 %v3372, %v3397
      %v3412 = vadd.f32 %v3373, %v3397
      %v3413 = vadd.f32 %v3374, %v3397
      %v3414 = vadd.f32 %v3375, %v3397
      %v3415 = vadd.f32 %v3376, %v3397
      %v3416 = vadd.f32 %v3377, %v3397
      %v3417 = vadd.f32 %v3378, %v3397
      %v3418 = vadd.f32 %v3379, %v3397
      %v3419 = vadd.f32 %v3380, %v3397
      %v3420 = vadd.f32 %v3381, %v3397
      %v3421 = vadd.f32 %v3382, %v3397
      %v3422 = vadd.f32 %v3383, %v3397
      %v3423 = vadd.f32 %v3384, %v3397
      %v3424 = vadd.f32 %v3385, %v3397
      %v3425 = vadd.f32 %v3386, %v3397
      %v3426 = vadd.f32 %v3387, %v3397
      %v3427 = vadd.f32 %v3388, %v3397
      %v3428 = vadd.f32 %v3389, %v3397
      %v3429 = vadd.f32 %v3390, %v3397
      %v3430 = vadd.f32 %v3391, %v3397
      %v3431 = vmax.f32 %v3399, 0.0
      %v3432 = vmax.f32 %v3400, 0.0
      %v3433 = vmax.f32 %v3401, 0.0
      %v3434 = vmax.f32 %v3402, 0.0
      %v3435 = vmax.f32 %v3403, 0.0
      %v3436 = vmax.f32 %v3404, 0.0
      %v3437 = vmax.f32 %v3405, 0.0
      %v3438 = vmax.f32 %v3406, 0.0
      %v3439 = vmax.f32 %v3407, 0.0
      %v3440 = vmax.f32 %v3408, 0.0
      %v3441 = vmax.f32 %v3409, 0.0
      %v3442 = vmax.f32 %v3410, 0.0
      %v3443 = vmax.f32 %v3411, 0.0
      %v3444 = vmax.f32 %v3412, 0.0
      %v3445 = vmax.f32 %v3413, 0.0
      %v3446 = vmax.f32 %v3414, 0.0
      %v3447 = vmax.f32 %v3415, 0.0
      %v3448 = vmax.f32 %v3416, 0.0
      %v3449 = vmax.f32 %v3417, 0.0
      %v3450 = vmax.f32 %v3418, 0.0
      %v3451 = vmax.f32 %v3419, 0.0
      %v3452 = vmax.f32 %v3420, 0.0
      %v3453 = vmax.f32 %v3421, 0.0
      %v3454 = vmax.f32 %v3422, 0.0
      %v3455 = vmax.f32 %v3423, 0.0
      %v3456 = vmax.f32 %v3424, 0.0
      %v3457 = vmax.f32 %v3425, 0.0
      %v3458 = vmax.f32 %v3426, 0.0
      %v3459 = vmax.f32 %v3427, 0.0
      %v3460 = vmax.f32 %v3428, 0.0
      %v3461 = vmax.f32 %v3429, 0.0
      %v3462 = vmax.f32 %v3430, 0.0
      %3463 = vrot.lane.b32.xlu0 %v982, 116
      %v3464 = vpop.permute.xlu0 %3463
      %3465 = vrot.lane.b32.xlu0 %v983, 116
      %v3466 = vpop.permute.xlu0 %3465
      %3467 = vrot.lane.b32.xlu0 %v984, 116
      %v3468 = vpop.permute.xlu0 %3467
      %3469 = vrot.lane.b32.xlu0 %v985, 116
      %v3470 = vpop.permute.xlu0 %3469
      %3471 = vrot.lane.b32.xlu0 %v986, 116
      %v3472 = vpop.permute.xlu0 %3471
      %3473 = vrot.lane.b32.xlu0 %v987, 116
      %v3474 = vpop.permute.xlu0 %3473
      %3475 = vrot.lane.b32.xlu0 %v988, 116
      %v3476 = vpop.permute.xlu0 %3475
      %3477 = vrot.lane.b32.xlu0 %v989, 116
      %v3478 = vpop.permute.xlu0 %3477
      %3479 = vrot.lane.b32.xlu0 %v990, 116
      %v3480 = vpop.permute.xlu0 %3479
      %3481 = vrot.lane.b32.xlu0 %v991, 116
      %v3482 = vpop.permute.xlu0 %3481
      %3483 = vrot.lane.b32.xlu0 %v992, 116
      %v3484 = vpop.permute.xlu0 %3483
      %3485 = vrot.lane.b32.xlu0 %v993, 116
      %v3486 = vpop.permute.xlu0 %3485
      %3487 = vrot.lane.b32.xlu0 %v994, 116
      %v3488 = vpop.permute.xlu0 %3487
      %3489 = vrot.lane.b32.xlu0 %v995, 116
      %v3490 = vpop.permute.xlu0 %3489
      %3491 = vrot.lane.b32.xlu0 %v996, 116
      %v3492 = vpop.permute.xlu0 %3491
      %3493 = vrot.lane.b32.xlu0 %v997, 116
      %v3494 = vpop.permute.xlu0 %3493
      %3495 = vrot.lane.b32.xlu0 %v998, 116
      %v3496 = vpop.permute.xlu0 %3495
      %3497 = vrot.lane.b32.xlu0 %v999, 116
      %v3498 = vpop.permute.xlu0 %3497
      %3499 = vrot.lane.b32.xlu0 %v1000, 116
      %v3500 = vpop.permute.xlu0 %3499
      %3501 = vrot.lane.b32.xlu0 %v1001, 116
      %v3502 = vpop.permute.xlu0 %3501
      %3503 = vrot.lane.b32.xlu0 %v1002, 116
      %v3504 = vpop.permute.xlu0 %3503
      %3505 = vrot.lane.b32.xlu0 %v1003, 116
      %v3506 = vpop.permute.xlu0 %3505
      %3507 = vrot.lane.b32.xlu0 %v1004, 116
      %v3508 = vpop.permute.xlu0 %3507
      %3509 = vrot.lane.b32.xlu0 %v1005, 116
      %v3510 = vpop.permute.xlu0 %3509
      %3511 = vrot.lane.b32.xlu0 %v1006, 116
      %v3512 = vpop.permute.xlu0 %3511
      %3513 = vrot.lane.b32.xlu0 %v1007, 116
      %v3514 = vpop.permute.xlu0 %3513
      %3515 = vrot.lane.b32.xlu0 %v1008, 116
      %v3516 = vpop.permute.xlu0 %3515
      %3517 = vrot.lane.b32.xlu0 %v1009, 116
      %v3518 = vpop.permute.xlu0 %3517
      %3519 = vrot.lane.b32.xlu0 %v1010, 116
      %v3520 = vpop.permute.xlu0 %3519
      %3521 = vrot.lane.b32.xlu0 %v1011, 116
      %v3522 = vpop.permute.xlu0 %3521
      %3523 = vrot.lane.b32.xlu0 %v1012, 116
      %v3524 = vpop.permute.xlu0 %3523
      %3525 = vrot.lane.b32.xlu0 %v1013, 116
      %v3526 = vpop.permute.xlu0 %3525
      %v3559 = vrot.slane %v3464, 7
      %v3560 = vsel %vm1150, %v1151, %v3559
      %v3561 = vrot.slane %v3466, 7
      %v3562 = vsel %vm1150, %v3559, %v3561
      %v3563 = vrot.slane %v3468, 7
      %v3564 = vsel %vm1150, %v3561, %v3563
      %v3565 = vrot.slane %v3470, 7
      %v3566 = vsel %vm1150, %v3563, %v3565
      %v3567 = vrot.slane %v3472, 7
      %v3568 = vsel %vm1150, %v3565, %v3567
      %v3569 = vrot.slane %v3474, 7
      %v3570 = vsel %vm1150, %v3567, %v3569
      %v3571 = vrot.slane %v3476, 7
      %v3572 = vsel %vm1150, %v3569, %v3571
      %v3573 = vrot.slane %v3478, 7
      %v3574 = vsel %vm1150, %v3571, %v3573
      %v3575 = vrot.slane %v3480, 7
      %v3576 = vsel %vm1150, %v3573, %v3575
      %v3577 = vrot.slane %v3482, 7
      %v3578 = vsel %vm1150, %v3575, %v3577
      %v3579 = vrot.slane %v3484, 7
      %v3580 = vsel %vm1150, %v3577, %v3579
      %v3581 = vrot.slane %v3486, 7
      %v3582 = vsel %vm1150, %v3579, %v3581
      %v3583 = vrot.slane %v3488, 7
      %v3584 = vsel %vm1150, %v3581, %v3583
      %v3585 = vrot.slane %v3490, 7
      %v3586 = vsel %vm1150, %v3583, %v3585
      %v3587 = vrot.slane %v3492, 7
      %v3588 = vsel %vm1150, %v3585, %v3587
      %v3589 = vrot.slane %v3494, 7
      %v3590 = vsel %vm1150, %v3587, %v3589
      %v3591 = vrot.slane %v3496, 7
      %v3592 = vsel %vm1150, %v3589, %v3591
      %v3593 = vrot.slane %v3498, 7
      %v3594 = vsel %vm1150, %v3591, %v3593
      %v3595 = vrot.slane %v3500, 7
      %v3596 = vsel %vm1150, %v3593, %v3595
      %v3597 = vrot.slane %v3502, 7
      %v3598 = vsel %vm1150, %v3595, %v3597
      %v3599 = vrot.slane %v3504, 7
      %v3600 = vsel %vm1150, %v3597, %v3599
      %v3601 = vrot.slane %v3506, 7
      %v3602 = vsel %vm1150, %v3599, %v3601
      %v3603 = vrot.slane %v3508, 7
      %v3604 = vsel %vm1150, %v3601, %v3603
      %v3605 = vrot.slane %v3510, 7
      %v3606 = vsel %vm1150, %v3603, %v3605
      %v3607 = vrot.slane %v3512, 7
      %v3608 = vsel %vm1150, %v3605, %v3607
      %v3609 = vrot.slane %v3514, 7
      %v3610 = vsel %vm1150, %v3607, %v3609
      %v3611 = vrot.slane %v3516, 7
      %v3612 = vsel %vm1150, %v3609, %v3611
      %v3613 = vrot.slane %v3518, 7
      %v3614 = vsel %vm1150, %v3611, %v3613
      %v3615 = vrot.slane %v3520, 7
      %v3616 = vsel %vm1150, %v3613, %v3615
      %v3617 = vrot.slane %v3522, 7
      %v3618 = vsel %vm1150, %v3615, %v3617
      %v3649 = vsel %vm1145, %v3560, 0.0
      %v3650 = vsel %vm1146, %v3562, 0.0
      %v3651 = vsel %vm1145, %v3564, 0.0
      %v3652 = vsel %vm1146, %v3566, 0.0
      %v3653 = vsel %vm1145, %v3568, 0.0
      %v3654 = vsel %vm1146, %v3570, 0.0
      %v3655 = vsel %vm1145, %v3572, 0.0
      %v3656 = vsel %vm1146, %v3574, 0.0
      %v3657 = vsel %vm1145, %v3576, 0.0
      %v3658 = vsel %vm1146, %v3578, 0.0
      %v3659 = vsel %vm1145, %v3580, 0.0
      %v3660 = vsel %vm1146, %v3582, 0.0
      %v3661 = vsel %vm1145, %v3584, 0.0
      %v3662 = vsel %vm1146, %v3586, 0.0
      %v3663 = vsel %vm1145, %v3588, 0.0
      %v3664 = vsel %vm1146, %v3590, 0.0
      %v3665 = vsel %vm1145, %v3592, 0.0
      %v3666 = vsel %vm1146, %v3594, 0.0
      %v3667 = vsel %vm1145, %v3596, 0.0
      %v3668 = vsel %vm1146, %v3598, 0.0
      %v3669 = vsel %vm1145, %v3600, 0.0
      %v3670 = vsel %vm1146, %v3602, 0.0
      %v3671 = vsel %vm1145, %v3604, 0.0
      %v3672 = vsel %vm1146, %v3606, 0.0
      %v3673 = vsel %vm1145, %v3608, 0.0
      %v3674 = vsel %vm1146, %v3610, 0.0
      %v3675 = vsel %vm1145, %v3612, 0.0
      %v3676 = vsel %vm1146, %v3614, 0.0
      %v3677 = vsel %vm1145, %v3616, 0.0
      %v3678 = vsel %vm1146, %v3618, 0.0
      %v3679 = vrot.slane %v3464, 1
      %v3680 = vsel %vm1276, %v1277, %v3679
      %v3681 = vrot.slane %v3466, 1
      %v3682 = vsel %vm1276, %v3679, %v3681
      %v3683 = vrot.slane %v3468, 1
      %v3684 = vsel %vm1276, %v3681, %v3683
      %v3685 = vrot.slane %v3470, 1
      %v3686 = vsel %vm1276, %v3683, %v3685
      %v3687 = vrot.slane %v3472, 1
      %v3688 = vsel %vm1276, %v3685, %v3687
      %v3689 = vrot.slane %v3474, 1
      %v3690 = vsel %vm1276, %v3687, %v3689
      %v3691 = vrot.slane %v3476, 1
      %v3692 = vsel %vm1276, %v3689, %v3691
      %v3693 = vrot.slane %v3478, 1
      %v3694 = vsel %vm1276, %v3691, %v3693
      %v3695 = vrot.slane %v3480, 1
      %v3696 = vsel %vm1276, %v3693, %v3695
      %v3697 = vrot.slane %v3482, 1
      %v3698 = vsel %vm1276, %v3695, %v3697
      %v3699 = vrot.slane %v3484, 1
      %v3700 = vsel %vm1276, %v3697, %v3699
      %v3701 = vrot.slane %v3486, 1
      %v3702 = vsel %vm1276, %v3699, %v3701
      %v3703 = vrot.slane %v3488, 1
      %v3704 = vsel %vm1276, %v3701, %v3703
      %v3705 = vrot.slane %v3490, 1
      %v3706 = vsel %vm1276, %v3703, %v3705
      %v3707 = vrot.slane %v3492, 1
      %v3708 = vsel %vm1276, %v3705, %v3707
      %v3709 = vrot.slane %v3494, 1
      %v3710 = vsel %vm1276, %v3707, %v3709
      %v3711 = vrot.slane %v3496, 1
      %v3712 = vsel %vm1276, %v3709, %v3711
      %v3713 = vrot.slane %v3498, 1
      %v3714 = vsel %vm1276, %v3711, %v3713
      %v3715 = vrot.slane %v3500, 1
      %v3716 = vsel %vm1276, %v3713, %v3715
      %v3717 = vrot.slane %v3502, 1
      %v3718 = vsel %vm1276, %v3715, %v3717
      %v3719 = vrot.slane %v3504, 1
      %v3720 = vsel %vm1276, %v3717, %v3719
      %v3721 = vrot.slane %v3506, 1
      %v3722 = vsel %vm1276, %v3719, %v3721
      %v3723 = vrot.slane %v3508, 1
      %v3724 = vsel %vm1276, %v3721, %v3723
      %v3725 = vrot.slane %v3510, 1
      %v3726 = vsel %vm1276, %v3723, %v3725
      %v3727 = vrot.slane %v3512, 1
      %v3728 = vsel %vm1276, %v3725, %v3727
      %v3729 = vrot.slane %v3514, 1
      %v3730 = vsel %vm1276, %v3727, %v3729
      %v3731 = vrot.slane %v3516, 1
      %v3732 = vsel %vm1276, %v3729, %v3731
      %v3733 = vrot.slane %v3518, 1
      %v3734 = vsel %vm1276, %v3731, %v3733
      %v3735 = vrot.slane %v3520, 1
      %v3736 = vsel %vm1276, %v3733, %v3735
      %v3737 = vrot.slane %v3522, 1
      %v3738 = vsel %vm1276, %v3735, %v3737
      %v3739 = vrot.slane %v3524, 1
      %v3740 = vsel %vm1276, %v3737, %v3739
      %v3772 = vsel %vm1148, %v3680, 0.0
      %v3773 = vsel %vm1147, %v3682, 0.0
      %v3774 = vsel %vm1148, %v3684, 0.0
      %v3775 = vsel %vm1147, %v3686, 0.0
      %v3776 = vsel %vm1148, %v3688, 0.0
      %v3777 = vsel %vm1147, %v3690, 0.0
      %v3778 = vsel %vm1148, %v3692, 0.0
      %v3779 = vsel %vm1147, %v3694, 0.0
      %v3780 = vsel %vm1148, %v3696, 0.0
      %v3781 = vsel %vm1147, %v3698, 0.0
      %v3782 = vsel %vm1148, %v3700, 0.0
      %v3783 = vsel %vm1147, %v3702, 0.0
      %v3784 = vsel %vm1148, %v3704, 0.0
      %v3785 = vsel %vm1147, %v3706, 0.0
      %v3786 = vsel %vm1148, %v3708, 0.0
      %v3787 = vsel %vm1147, %v3710, 0.0
      %v3788 = vsel %vm1148, %v3712, 0.0
      %v3789 = vsel %vm1147, %v3714, 0.0
      %v3790 = vsel %vm1148, %v3716, 0.0
      %v3791 = vsel %vm1147, %v3718, 0.0
      %v3792 = vsel %vm1148, %v3720, 0.0
      %v3793 = vsel %vm1147, %v3722, 0.0
      %v3794 = vsel %vm1148, %v3724, 0.0
      %v3795 = vsel %vm1147, %v3726, 0.0
      %v3796 = vsel %vm1148, %v3728, 0.0
      %v3797 = vsel %vm1147, %v3730, 0.0
      %v3798 = vsel %vm1148, %v3732, 0.0
      %v3799 = vsel %vm1147, %v3734, 0.0
      %v3800 = vsel %vm1148, %v3736, 0.0
      %v3801 = vsel %vm1147, %v3738, 0.0
      %v3802 = vsel %vm1148, %v3740, 0.0
      %v3803 = vrot.slane %v3524, 7
      %v3804 = vsel %vm1150, %v3617, %v3803
      %v3805 = vrot.slane %v3526, 7
      %v3806 = vsel %vm1150, %v3803, %v3805
      %v3809 = vsel %vm1145, %v3804, 0.0
      %v3810 = vsel %vm1146, %v3806, 0.0
      %v3811 = vrot.slane %v3526, 1
      %v3812 = vsel %vm1276, %v3739, %v3811
      %v3813 = vsel %vm1276, %v3811, %v1277
      %v3816 = vsel %vm1147, %v3812, 0.0
      %v3817 = vsel %vm1148, %v3813, 0.0
      %v3818 = vsel %vm1150, %v3805, %v1151
      %v3820 = vsel %vm1145, %v3818, 0.0
      %v3821 = vpack.c.bf16 %v3650, %v3649
      %v3822 = vpack.c.bf16 %v3652, %v3651
      %v3823 = vpack.c.bf16 %v3654, %v3653
      %v3824 = vpack.c.bf16 %v3656, %v3655
      %v3825 = vpack.c.bf16 %v3658, %v3657
      %v3826 = vpack.c.bf16 %v3660, %v3659
      %v3827 = vpack.c.bf16 %v3662, %v3661
      %v3828 = vpack.c.bf16 %v3664, %v3663
      %v3829 = vpack.c.bf16 %v3666, %v3665
      %v3830 = vpack.c.bf16 %v3668, %v3667
      %v3831 = vpack.c.bf16 %v3670, %v3669
      %v3832 = vpack.c.bf16 %v3672, %v3671
      %v3833 = vpack.c.bf16 %v3674, %v3673
      %v3834 = vpack.c.bf16 %v3676, %v3675
      %v3835 = vpack.c.bf16 %v3678, %v3677
      %v3836 = vld [vmem:[%s7] sm:$0x3]
      %v3837 = vpack.c.bf16 %v3466, %v3464
      %v3838 = vpack.c.bf16 %v3470, %v3468
      %v3839 = vpack.c.bf16 %v3474, %v3472
      %v3840 = vpack.c.bf16 %v3478, %v3476
      %v3841 = vpack.c.bf16 %v3482, %v3480
      %v3842 = vpack.c.bf16 %v3486, %v3484
      %v3843 = vpack.c.bf16 %v3490, %v3488
      %v3844 = vpack.c.bf16 %v3494, %v3492
      %v3845 = vpack.c.bf16 %v3498, %v3496
      %v3846 = vpack.c.bf16 %v3502, %v3500
      %v3847 = vpack.c.bf16 %v3506, %v3504
      %v3848 = vpack.c.bf16 %v3510, %v3508
      %v3849 = vpack.c.bf16 %v3514, %v3512
      %v3850 = vpack.c.bf16 %v3518, %v3516
      %v3851 = vpack.c.bf16 %v3522, %v3520
      %s3852 = scalar_lea.vmem %s7, 2
      %v3853 = vld [vmem:[%s3852] sm:$0x3]
      %v3855 = vsel %vm690, %v3837, 0
      %v3858 = vsel %vm690, %v3838, 0
      %v3861 = vsel %vm690, %v3839, 0
      %v3864 = vsel %vm690, %v3840, 0
      %v3867 = vsel %vm690, %v3841, 0
      %v3870 = vsel %vm690, %v3842, 0
      %v3873 = vsel %vm690, %v3843, 0
      %v3876 = vsel %vm690, %v3844, 0
      %v3879 = vsel %vm690, %v3845, 0
      %v3882 = vsel %vm690, %v3846, 0
      %v3885 = vsel %vm690, %v3847, 0
      %v3888 = vsel %vm690, %v3848, 0
      %v3891 = vsel %vm690, %v3849, 0
      %v3894 = vsel %vm690, %v3850, 0
      %v3897 = vsel %vm690, %v3851, 0
      %v3900 = vsel %vm739, %v3853, 0
      %3902 = vmatprep.subr.bf16.mxu0 0
      %3903 = vmatpush1.bf16.msra.mxu0 0
      %3904 = vmatprep.subr.bf16.mxu0 0
      %3905 = vmatpush1.bf16.msra.mxu0 0
      %3906 = vmatprep.subr.bf16.mxu0 0
      %3907 = vmatpush1.bf16.msra.mxu0 0
      %3908 = vmatprep.subr.bf16.mxu0 0
      %3909 = vmatpush1.bf16.msra.mxu0 0
      %3910 = vmatprep.subr.bf16.mxu0 0
      %3911 = vmatpush1.bf16.msra.mxu0 0
      %3912 = vmatprep.subr.bf16.mxu0 0
      %3913 = vmatpush1.bf16.msra.mxu0 0
      %3914 = vmatprep.subr.bf16.mxu0 0
      %3915 = vmatpush1.bf16.msra.mxu0 0
      %3916 = vmatprep.subr.bf16.mxu0 0
      %3917 = vmatpush1.bf16.msra.mxu0 %v3900
      %3918 = vmatprep.subr.bf16.mxu0 0
      %3919 = vmatpush2.bf16.msra.mxu0 0
      %3920 = vmatprep.subr.bf16.mxu0 0
      %3921 = vmatpush2.bf16.msra.mxu0 0
      %3922 = vmatprep.subr.bf16.mxu0 0
      %3923 = vmatpush2.bf16.msra.mxu0 0
      %3924 = vmatprep.subr.bf16.mxu0 0
      %3925 = vmatpush2.bf16.msra.mxu0 0
      %3926 = vmatprep.subr.bf16.mxu0 0
      %3927 = vmatpush2.bf16.msra.mxu0 0
      %3928 = vmatprep.subr.bf16.mxu0 0
      %3929 = vmatpush2.bf16.msra.mxu0 0
      %3930 = vmatprep.subr.bf16.mxu0 0
      %3931 = vmatpush2.bf16.msra.mxu0 0
      %3932 = vmatprep.subr.bf16.mxu0 0
      %3933 = vmatpush2.bf16.msra.mxu0 0
      %3934 = vmatprep.mubr.bf16.mxu0 0
      %3935 = vmatmul.mubr.bf16.gmra.mxu0 %v1460
      %v3936 = vpop.f32.mrf.mxu0
      %v3937 = vadd.f32 0.0, %v3936
      %v3938 = vpop.f32.mrf.mxu0
      %v3939 = vpop.f32.mrf.mxu0
      %v3940 = vadd.f32 0.0, %v3939
      %v3941 = vpop.f32.mrf.mxu0
      %3942 = vmatprep.mubr.bf16.mxu0 0
      %3943 = vmatmul.mubr.bf16.gmra.mxu0 %v3855
      %v3944 = vpop.f32.mrf.mxu0
      %v3945 = vadd.f32 0.0, %v3944
      %v3946 = vpop.f32.mrf.mxu0
      %v3947 = vpop.f32.mrf.mxu0
      %v3948 = vadd.f32 0.0, %v3947
      %v3949 = vpop.f32.mrf.mxu0
      %3950 = vmatprep.mubr.bf16.mxu0 0
      %3951 = vmatmul.mubr.bf16.gmra.mxu0 %v3858
      %v3952 = vpop.f32.mrf.mxu0
      %v3953 = vadd.f32 0.0, %v3952
      %v3954 = vpop.f32.mrf.mxu0
      %v3955 = vpop.f32.mrf.mxu0
      %v3956 = vadd.f32 0.0, %v3955
      %v3957 = vpop.f32.mrf.mxu0
      %3958 = vmatprep.mubr.bf16.mxu0 0
      %3959 = vmatmul.mubr.bf16.gmra.mxu0 %v3861
      %v3960 = vpop.f32.mrf.mxu0
      %v3961 = vadd.f32 0.0, %v3960
      %v3962 = vpop.f32.mrf.mxu0
      %v3963 = vpop.f32.mrf.mxu0
      %v3964 = vadd.f32 0.0, %v3963
      %v3965 = vpop.f32.mrf.mxu0
      %3966 = vmatprep.mubr.bf16.mxu0 0
      %3967 = vmatmul.mubr.bf16.gmra.mxu0 %v3864
      %v3968 = vpop.f32.mrf.mxu0
      %v3969 = vadd.f32 0.0, %v3968
      %v3970 = vpop.f32.mrf.mxu0
      %v3971 = vpop.f32.mrf.mxu0
      %v3972 = vadd.f32 0.0, %v3971
      %v3973 = vpop.f32.mrf.mxu0
      %3974 = vmatprep.mubr.bf16.mxu0 0
      %3975 = vmatmul.mubr.bf16.gmra.mxu0 %v3867
      %v3976 = vpop.f32.mrf.mxu0
      %v3977 = vadd.f32 0.0, %v3976
      %v3978 = vpop.f32.mrf.mxu0
      %v3979 = vpop.f32.mrf.mxu0
      %v3980 = vadd.f32 0.0, %v3979
      %v3981 = vpop.f32.mrf.mxu0
      %3982 = vmatprep.mubr.bf16.mxu0 0
      %3983 = vmatmul.mubr.bf16.gmra.mxu0 %v3870
      %v3984 = vpop.f32.mrf.mxu0
      %v3985 = vadd.f32 0.0, %v3984
      %v3986 = vpop.f32.mrf.mxu0
      %v3987 = vpop.f32.mrf.mxu0
      %v3988 = vadd.f32 0.0, %v3987
      %v3989 = vpop.f32.mrf.mxu0
      %3990 = vmatprep.mubr.bf16.mxu0 0
      %3991 = vmatmul.mubr.bf16.gmra.mxu0 %v3873
      %v3992 = vpop.f32.mrf.mxu0
      %v3993 = vadd.f32 0.0, %v3992
      %v3994 = vpop.f32.mrf.mxu0
      %v3995 = vpop.f32.mrf.mxu0
      %v3996 = vadd.f32 0.0, %v3995
      %v3997 = vpop.f32.mrf.mxu0
      %3998 = vmatprep.mubr.bf16.mxu0 0
      %3999 = vmatmul.mubr.bf16.gmra.mxu0 %v3876
      %v4000 = vpop.f32.mrf.mxu0
      %v4001 = vadd.f32 0.0, %v4000
      %v4002 = vpop.f32.mrf.mxu0
      %v4003 = vpop.f32.mrf.mxu0
      %v4004 = vadd.f32 0.0, %v4003
      %v4005 = vpop.f32.mrf.mxu0
      %4006 = vmatprep.mubr.bf16.mxu0 0
      %4007 = vmatmul.mubr.bf16.gmra.mxu0 %v3879
      %v4008 = vpop.f32.mrf.mxu0
      %v4009 = vadd.f32 0.0, %v4008
      %v4010 = vpop.f32.mrf.mxu0
      %v4011 = vpop.f32.mrf.mxu0
      %v4012 = vadd.f32 0.0, %v4011
      %v4013 = vpop.f32.mrf.mxu0
      %4014 = vmatprep.mubr.bf16.mxu0 0
      %4015 = vmatmul.mubr.bf16.gmra.mxu0 %v3882
      %v4016 = vpop.f32.mrf.mxu0
      %v4017 = vadd.f32 0.0, %v4016
      %v4018 = vpop.f32.mrf.mxu0
      %v4019 = vpop.f32.mrf.mxu0
      %v4020 = vadd.f32 0.0, %v4019
      %v4021 = vpop.f32.mrf.mxu0
      %4022 = vmatprep.mubr.bf16.mxu0 0
      %4023 = vmatmul.mubr.bf16.gmra.mxu0 %v3885
      %v4024 = vpop.f32.mrf.mxu0
      %v4025 = vadd.f32 0.0, %v4024
      %v4026 = vpop.f32.mrf.mxu0
      %v4027 = vpop.f32.mrf.mxu0
      %v4028 = vadd.f32 0.0, %v4027
      %v4029 = vpop.f32.mrf.mxu0
      %4030 = vmatprep.mubr.bf16.mxu0 0
      %4031 = vmatmul.mubr.bf16.gmra.mxu0 %v3888
      %v4032 = vpop.f32.mrf.mxu0
      %v4033 = vadd.f32 0.0, %v4032
      %v4034 = vpop.f32.mrf.mxu0
      %v4035 = vpop.f32.mrf.mxu0
      %v4036 = vadd.f32 0.0, %v4035
      %v4037 = vpop.f32.mrf.mxu0
      %4038 = vmatprep.mubr.bf16.mxu0 0
      %4039 = vmatmul.mubr.bf16.gmra.mxu0 %v3891
      %v4040 = vpop.f32.mrf.mxu0
      %v4041 = vadd.f32 0.0, %v4040
      %v4042 = vpop.f32.mrf.mxu0
      %v4043 = vpop.f32.mrf.mxu0
      %v4044 = vadd.f32 0.0, %v4043
      %v4045 = vpop.f32.mrf.mxu0
      %4046 = vmatprep.mubr.bf16.mxu0 0
      %4047 = vmatmul.mubr.bf16.gmra.mxu0 %v3894
      %v4048 = vpop.f32.mrf.mxu0
      %v4049 = vadd.f32 0.0, %v4048
      %v4050 = vpop.f32.mrf.mxu0
      %v4051 = vpop.f32.mrf.mxu0
      %v4052 = vadd.f32 0.0, %v4051
      %v4053 = vpop.f32.mrf.mxu0
      %4054 = vmatprep.mubr.bf16.mxu0 0
      %4055 = vmatmul.mubr.bf16.gmra.mxu0 %v3897
      %v4056 = vpop.f32.mrf.mxu0
      %v4057 = vadd.f32 0.0, %v4056
      %v4058 = vpop.f32.mrf.mxu0
      %v4059 = vpop.f32.mrf.mxu0
      %v4060 = vadd.f32 0.0, %v4059
      %v4061 = vpop.f32.mrf.mxu0
      %4062 = vdwg.mxu0
      %v4064 = vsel %vm690, %v3821, 0
      %v4067 = vsel %vm690, %v3822, 0
      %v4070 = vsel %vm690, %v3823, 0
      %v4073 = vsel %vm690, %v3824, 0
      %v4076 = vsel %vm690, %v3825, 0
      %v4079 = vsel %vm690, %v3826, 0
      %v4082 = vsel %vm690, %v3827, 0
      %v4085 = vsel %vm690, %v3828, 0
      %v4088 = vsel %vm690, %v3829, 0
      %v4091 = vsel %vm690, %v3830, 0
      %v4094 = vsel %vm690, %v3831, 0
      %v4097 = vsel %vm690, %v3832, 0
      %v4100 = vsel %vm690, %v3833, 0
      %v4103 = vsel %vm690, %v3834, 0
      %v4106 = vsel %vm690, %v3835, 0
      %v4109 = vsel %vm739, %v3836, 0
      %4111 = vmatprep.subr.bf16.mxu0 0
      %4112 = vmatpush1.bf16.msra.mxu0 0
      %4113 = vmatprep.subr.bf16.mxu0 0
      %4114 = vmatpush1.bf16.msra.mxu0 0
      %4115 = vmatprep.subr.bf16.mxu0 0
      %4116 = vmatpush1.bf16.msra.mxu0 0
      %4117 = vmatprep.subr.bf16.mxu0 0
      %4118 = vmatpush1.bf16.msra.mxu0 0
      %4119 = vmatprep.subr.bf16.mxu0 0
      %4120 = vmatpush1.bf16.msra.mxu0 0
      %4121 = vmatprep.subr.bf16.mxu0 0
      %4122 = vmatpush1.bf16.msra.mxu0 0
      %4123 = vmatprep.subr.bf16.mxu0 0
      %4124 = vmatpush1.bf16.msra.mxu0 0
      %4125 = vmatprep.subr.bf16.mxu0 0
      %4126 = vmatpush1.bf16.msra.mxu0 %v4109
      %4127 = vmatprep.subr.bf16.mxu0 0
      %4128 = vmatpush2.bf16.msra.mxu0 0
      %4129 = vmatprep.subr.bf16.mxu0 0
      %4130 = vmatpush2.bf16.msra.mxu0 0
      %4131 = vmatprep.subr.bf16.mxu0 0
      %4132 = vmatpush2.bf16.msra.mxu0 0
      %4133 = vmatprep.subr.bf16.mxu0 0
      %4134 = vmatpush2.bf16.msra.mxu0 0
      %4135 = vmatprep.subr.bf16.mxu0 0
      %4136 = vmatpush2.bf16.msra.mxu0 0
      %4137 = vmatprep.subr.bf16.mxu0 0
      %4138 = vmatpush2.bf16.msra.mxu0 0
      %4139 = vmatprep.subr.bf16.mxu0 0
      %4140 = vmatpush2.bf16.msra.mxu0 0
      %4141 = vmatprep.subr.bf16.mxu0 0
      %4142 = vmatpush2.bf16.msra.mxu0 0
      %4143 = vmatprep.mubr.bf16.mxu0 0
      %4144 = vmatmul.mubr.bf16.gmra.mxu0 %v1672
      %v4145 = vpop.f32.mrf.mxu0
      %v4146 = vadd.f32 %v3937, %v4145
      %v4147 = vpop.f32.mrf.mxu0
      %v4148 = vpop.f32.mrf.mxu0
      %v4149 = vadd.f32 %v3940, %v4148
      %v4150 = vpop.f32.mrf.mxu0
      %4151 = vmatprep.mubr.bf16.mxu0 0
      %4152 = vmatmul.mubr.bf16.gmra.mxu0 %v4064
      %v4153 = vpop.f32.mrf.mxu0
      %v4154 = vadd.f32 %v3945, %v4153
      %v4155 = vpop.f32.mrf.mxu0
      %v4156 = vpop.f32.mrf.mxu0
      %v4157 = vadd.f32 %v3948, %v4156
      %v4158 = vpop.f32.mrf.mxu0
      %4159 = vmatprep.mubr.bf16.mxu0 0
      %4160 = vmatmul.mubr.bf16.gmra.mxu0 %v4067
      %v4161 = vpop.f32.mrf.mxu0
      %v4162 = vadd.f32 %v3953, %v4161
      %v4163 = vpop.f32.mrf.mxu0
      %v4164 = vpop.f32.mrf.mxu0
      %v4165 = vadd.f32 %v3956, %v4164
      %v4166 = vpop.f32.mrf.mxu0
      %4167 = vmatprep.mubr.bf16.mxu0 0
      %4168 = vmatmul.mubr.bf16.gmra.mxu0 %v4070
      %v4169 = vpop.f32.mrf.mxu0
      %v4170 = vadd.f32 %v3961, %v4169
      %v4171 = vpop.f32.mrf.mxu0
      %v4172 = vpop.f32.mrf.mxu0
      %v4173 = vadd.f32 %v3964, %v4172
      %v4174 = vpop.f32.mrf.mxu0
      %4175 = vmatprep.mubr.bf16.mxu0 0
      %4176 = vmatmul.mubr.bf16.gmra.mxu0 %v4073
      %v4177 = vpop.f32.mrf.mxu0
      %v4178 = vadd.f32 %v3969, %v4177
      %v4179 = vpop.f32.mrf.mxu0
      %v4180 = vpop.f32.mrf.mxu0
      %v4181 = vadd.f32 %v3972, %v4180
      %v4182 = vpop.f32.mrf.mxu0
      %4183 = vmatprep.mubr.bf16.mxu0 0
      %4184 = vmatmul.mubr.bf16.gmra.mxu0 %v4076
      %v4185 = vpop.f32.mrf.mxu0
      %v4186 = vadd.f32 %v3977, %v4185
      %v4187 = vpop.f32.mrf.mxu0
      %v4188 = vpop.f32.mrf.mxu0
      %v4189 = vadd.f32 %v3980, %v4188
      %v4190 = vpop.f32.mrf.mxu0
      %4191 = vmatprep.mubr.bf16.mxu0 0
      %4192 = vmatmul.mubr.bf16.gmra.mxu0 %v4079
      %v4193 = vpop.f32.mrf.mxu0
      %v4194 = vadd.f32 %v3985, %v4193
      %v4195 = vpop.f32.mrf.mxu0
      %v4196 = vpop.f32.mrf.mxu0
      %v4197 = vadd.f32 %v3988, %v4196
      %v4198 = vpop.f32.mrf.mxu0
      %4199 = vmatprep.mubr.bf16.mxu0 0
      %4200 = vmatmul.mubr.bf16.gmra.mxu0 %v4082
      %v4201 = vpop.f32.mrf.mxu0
      %v4202 = vadd.f32 %v3993, %v4201
      %v4203 = vpop.f32.mrf.mxu0
      %v4204 = vpop.f32.mrf.mxu0
      %v4205 = vadd.f32 %v3996, %v4204
      %v4206 = vpop.f32.mrf.mxu0
      %4207 = vmatprep.mubr.bf16.mxu0 0
      %4208 = vmatmul.mubr.bf16.gmra.mxu0 %v4085
      %v4209 = vpop.f32.mrf.mxu0
      %v4210 = vadd.f32 %v4001, %v4209
      %v4211 = vpop.f32.mrf.mxu0
      %v4212 = vpop.f32.mrf.mxu0
      %v4213 = vadd.f32 %v4004, %v4212
      %v4214 = vpop.f32.mrf.mxu0
      %4215 = vmatprep.mubr.bf16.mxu0 0
      %4216 = vmatmul.mubr.bf16.gmra.mxu0 %v4088
      %v4217 = vpop.f32.mrf.mxu0
      %v4218 = vadd.f32 %v4009, %v4217
      %v4219 = vpop.f32.mrf.mxu0
      %v4220 = vpop.f32.mrf.mxu0
      %v4221 = vadd.f32 %v4012, %v4220
      %v4222 = vpop.f32.mrf.mxu0
      %4223 = vmatprep.mubr.bf16.mxu0 0
      %4224 = vmatmul.mubr.bf16.gmra.mxu0 %v4091
      %v4225 = vpop.f32.mrf.mxu0
      %v4226 = vadd.f32 %v4017, %v4225
      %v4227 = vpop.f32.mrf.mxu0
      %v4228 = vpop.f32.mrf.mxu0
      %v4229 = vadd.f32 %v4020, %v4228
      %v4230 = vpop.f32.mrf.mxu0
      %4231 = vmatprep.mubr.bf16.mxu0 0
      %4232 = vmatmul.mubr.bf16.gmra.mxu0 %v4094
      %v4233 = vpop.f32.mrf.mxu0
      %v4234 = vadd.f32 %v4025, %v4233
      %v4235 = vpop.f32.mrf.mxu0
      %v4236 = vpop.f32.mrf.mxu0
      %v4237 = vadd.f32 %v4028, %v4236
      %v4238 = vpop.f32.mrf.mxu0
      %4239 = vmatprep.mubr.bf16.mxu0 0
      %4240 = vmatmul.mubr.bf16.gmra.mxu0 %v4097
      %v4241 = vpop.f32.mrf.mxu0
      %v4242 = vadd.f32 %v4033, %v4241
      %v4243 = vpop.f32.mrf.mxu0
      %v4244 = vpop.f32.mrf.mxu0
      %v4245 = vadd.f32 %v4036, %v4244
      %v4246 = vpop.f32.mrf.mxu0
      %4247 = vmatprep.mubr.bf16.mxu0 0
      %4248 = vmatmul.mubr.bf16.gmra.mxu0 %v4100
      %v4249 = vpop.f32.mrf.mxu0
      %v4250 = vadd.f32 %v4041, %v4249
      %v4251 = vpop.f32.mrf.mxu0
      %v4252 = vpop.f32.mrf.mxu0
      %v4253 = vadd.f32 %v4044, %v4252
      %v4254 = vpop.f32.mrf.mxu0
      %4255 = vmatprep.mubr.bf16.mxu0 0
      %4256 = vmatmul.mubr.bf16.gmra.mxu0 %v4103
      %v4257 = vpop.f32.mrf.mxu0
      %v4258 = vadd.f32 %v4049, %v4257
      %v4259 = vpop.f32.mrf.mxu0
      %v4260 = vpop.f32.mrf.mxu0
      %v4261 = vadd.f32 %v4052, %v4260
      %v4262 = vpop.f32.mrf.mxu0
      %4263 = vmatprep.mubr.bf16.mxu0 0
      %4264 = vmatmul.mubr.bf16.gmra.mxu0 %v4106
      %v4265 = vpop.f32.mrf.mxu0
      %v4266 = vadd.f32 %v4057, %v4265
      %v4267 = vpop.f32.mrf.mxu0
      %v4268 = vpop.f32.mrf.mxu0
      %v4269 = vadd.f32 %v4060, %v4268
      %v4270 = vpop.f32.mrf.mxu0
      %4271 = vdwg.mxu0
      %v4272 = vpack.c.bf16 %v3772, %v1373
      %v4273 = vpack.c.bf16 %v3774, %v3773
      %v4274 = vpack.c.bf16 %v3776, %v3775
      %v4275 = vpack.c.bf16 %v3778, %v3777
      %v4276 = vpack.c.bf16 %v3780, %v3779
      %v4277 = vpack.c.bf16 %v3782, %v3781
      %v4278 = vpack.c.bf16 %v3784, %v3783
      %v4279 = vpack.c.bf16 %v3786, %v3785
      %v4280 = vpack.c.bf16 %v3788, %v3787
      %v4281 = vpack.c.bf16 %v3790, %v3789
      %v4282 = vpack.c.bf16 %v3792, %v3791
      %v4283 = vpack.c.bf16 %v3794, %v3793
      %v4284 = vpack.c.bf16 %v3796, %v3795
      %v4285 = vpack.c.bf16 %v3798, %v3797
      %v4286 = vpack.c.bf16 %v3800, %v3799
      %v4287 = vpack.c.bf16 %v3802, %v3801
      %s4288 = scalar_lea.vmem %s7, 4
      %v4289 = vld [vmem:[%s4288] sm:$0x3]
      %v4291 = vsel %vm690, %v4272, 0
      %v4294 = vsel %vm690, %v4273, 0
      %v4297 = vsel %vm690, %v4274, 0
      %v4300 = vsel %vm690, %v4275, 0
      %v4303 = vsel %vm690, %v4276, 0
      %v4306 = vsel %vm690, %v4277, 0
      %v4309 = vsel %vm690, %v4278, 0
      %v4312 = vsel %vm690, %v4279, 0
      %v4315 = vsel %vm690, %v4280, 0
      %v4318 = vsel %vm690, %v4281, 0
      %v4321 = vsel %vm690, %v4282, 0
      %v4324 = vsel %vm690, %v4283, 0
      %v4327 = vsel %vm690, %v4284, 0
      %v4330 = vsel %vm690, %v4285, 0
      %v4333 = vsel %vm690, %v4286, 0
      %v4336 = vsel %vm690, %v4287, 0
      %v4339 = vsel %vm739, %v4289, 0
      %4341 = vmatprep.subr.bf16.mxu0 0
      %4342 = vmatpush1.bf16.msra.mxu0 0
      %4343 = vmatprep.subr.bf16.mxu0 0
      %4344 = vmatpush1.bf16.msra.mxu0 0
      %4345 = vmatprep.subr.bf16.mxu0 0
      %4346 = vmatpush1.bf16.msra.mxu0 0
      %4347 = vmatprep.subr.bf16.mxu0 0
      %4348 = vmatpush1.bf16.msra.mxu0 0
      %4349 = vmatprep.subr.bf16.mxu0 0
      %4350 = vmatpush1.bf16.msra.mxu0 0
      %4351 = vmatprep.subr.bf16.mxu0 0
      %4352 = vmatpush1.bf16.msra.mxu0 0
      %4353 = vmatprep.subr.bf16.mxu0 0
      %4354 = vmatpush1.bf16.msra.mxu0 0
      %4355 = vmatprep.subr.bf16.mxu0 0
      %4356 = vmatpush1.bf16.msra.mxu0 %v4339
      %4357 = vmatprep.subr.bf16.mxu0 0
      %4358 = vmatpush2.bf16.msra.mxu0 0
      %4359 = vmatprep.subr.bf16.mxu0 0
      %4360 = vmatpush2.bf16.msra.mxu0 0
      %4361 = vmatprep.subr.bf16.mxu0 0
      %4362 = vmatpush2.bf16.msra.mxu0 0
      %4363 = vmatprep.subr.bf16.mxu0 0
      %4364 = vmatpush2.bf16.msra.mxu0 0
      %4365 = vmatprep.subr.bf16.mxu0 0
      %4366 = vmatpush2.bf16.msra.mxu0 0
      %4367 = vmatprep.subr.bf16.mxu0 0
      %4368 = vmatpush2.bf16.msra.mxu0 0
      %4369 = vmatprep.subr.bf16.mxu0 0
      %4370 = vmatpush2.bf16.msra.mxu0 0
      %4371 = vmatprep.subr.bf16.mxu0 0
      %4372 = vmatpush2.bf16.msra.mxu0 0
      %4373 = vmatprep.mubr.bf16.mxu0 0
      %4374 = vmatmul.mubr.bf16.gmra.mxu0 %v4291
      %v4375 = vpop.f32.mrf.mxu0
      %v4376 = vadd.f32 0.0, %v4375
      %v4377 = vpop.f32.mrf.mxu0
      %v4378 = vpop.f32.mrf.mxu0
      %v4379 = vadd.f32 0.0, %v4378
      %v4380 = vpop.f32.mrf.mxu0
      %4381 = vmatprep.mubr.bf16.mxu0 0
      %4382 = vmatmul.mubr.bf16.gmra.mxu0 %v4294
      %v4383 = vpop.f32.mrf.mxu0
      %v4384 = vadd.f32 0.0, %v4383
      %v4385 = vpop.f32.mrf.mxu0
      %v4386 = vpop.f32.mrf.mxu0
      %v4387 = vadd.f32 0.0, %v4386
      %v4388 = vpop.f32.mrf.mxu0
      %4389 = vmatprep.mubr.bf16.mxu0 0
      %4390 = vmatmul.mubr.bf16.gmra.mxu0 %v4297
      %v4391 = vpop.f32.mrf.mxu0
      %v4392 = vadd.f32 0.0, %v4391
      %v4393 = vpop.f32.mrf.mxu0
      %v4394 = vpop.f32.mrf.mxu0
      %v4395 = vadd.f32 0.0, %v4394
      %v4396 = vpop.f32.mrf.mxu0
      %4397 = vmatprep.mubr.bf16.mxu0 0
      %4398 = vmatmul.mubr.bf16.gmra.mxu0 %v4300
      %v4399 = vpop.f32.mrf.mxu0
      %v4400 = vadd.f32 0.0, %v4399
      %v4401 = vpop.f32.mrf.mxu0
      %v4402 = vpop.f32.mrf.mxu0
      %v4403 = vadd.f32 0.0, %v4402
      %v4404 = vpop.f32.mrf.mxu0
      %4405 = vmatprep.mubr.bf16.mxu0 0
      %4406 = vmatmul.mubr.bf16.gmra.mxu0 %v4303
      %v4407 = vpop.f32.mrf.mxu0
      %v4408 = vadd.f32 0.0, %v4407
      %v4409 = vpop.f32.mrf.mxu0
      %v4410 = vpop.f32.mrf.mxu0
      %v4411 = vadd.f32 0.0, %v4410
      %v4412 = vpop.f32.mrf.mxu0
      %4413 = vmatprep.mubr.bf16.mxu0 0
      %4414 = vmatmul.mubr.bf16.gmra.mxu0 %v4306
      %v4415 = vpop.f32.mrf.mxu0
      %v4416 = vadd.f32 0.0, %v4415
      %v4417 = vpop.f32.mrf.mxu0
      %v4418 = vpop.f32.mrf.mxu0
      %v4419 = vadd.f32 0.0, %v4418
      %v4420 = vpop.f32.mrf.mxu0
      %4421 = vmatprep.mubr.bf16.mxu0 0
      %4422 = vmatmul.mubr.bf16.gmra.mxu0 %v4309
      %v4423 = vpop.f32.mrf.mxu0
      %v4424 = vadd.f32 0.0, %v4423
      %v4425 = vpop.f32.mrf.mxu0
      %v4426 = vpop.f32.mrf.mxu0
      %v4427 = vadd.f32 0.0, %v4426
      %v4428 = vpop.f32.mrf.mxu0
      %4429 = vmatprep.mubr.bf16.mxu0 0
      %4430 = vmatmul.mubr.bf16.gmra.mxu0 %v4312
      %v4431 = vpop.f32.mrf.mxu0
      %v4432 = vadd.f32 0.0, %v4431
      %v4433 = vpop.f32.mrf.mxu0
      %v4434 = vpop.f32.mrf.mxu0
      %v4435 = vadd.f32 0.0, %v4434
      %v4436 = vpop.f32.mrf.mxu0
      %4437 = vmatprep.mubr.bf16.mxu0 0
      %4438 = vmatmul.mubr.bf16.gmra.mxu0 %v4315
      %v4439 = vpop.f32.mrf.mxu0
      %v4440 = vadd.f32 0.0, %v4439
      %v4441 = vpop.f32.mrf.mxu0
      %v4442 = vpop.f32.mrf.mxu0
      %v4443 = vadd.f32 0.0, %v4442
      %v4444 = vpop.f32.mrf.mxu0
      %4445 = vmatprep.mubr.bf16.mxu0 0
      %4446 = vmatmul.mubr.bf16.gmra.mxu0 %v4318
      %v4447 = vpop.f32.mrf.mxu0
      %v4448 = vadd.f32 0.0, %v4447
      %v4449 = vpop.f32.mrf.mxu0
      %v4450 = vpop.f32.mrf.mxu0
      %v4451 = vadd.f32 0.0, %v4450
      %v4452 = vpop.f32.mrf.mxu0
      %4453 = vmatprep.mubr.bf16.mxu0 0
      %4454 = vmatmul.mubr.bf16.gmra.mxu0 %v4321
      %v4455 = vpop.f32.mrf.mxu0
      %v4456 = vadd.f32 0.0, %v4455
      %v4457 = vpop.f32.mrf.mxu0
      %v4458 = vpop.f32.mrf.mxu0
      %v4459 = vadd.f32 0.0, %v4458
      %v4460 = vpop.f32.mrf.mxu0
      %4461 = vmatprep.mubr.bf16.mxu0 0
      %4462 = vmatmul.mubr.bf16.gmra.mxu0 %v4324
      %v4463 = vpop.f32.mrf.mxu0
      %v4464 = vadd.f32 0.0, %v4463
      %v4465 = vpop.f32.mrf.mxu0
      %v4466 = vpop.f32.mrf.mxu0
      %v4467 = vadd.f32 0.0, %v4466
      %v4468 = vpop.f32.mrf.mxu0
      %4469 = vmatprep.mubr.bf16.mxu0 0
      %4470 = vmatmul.mubr.bf16.gmra.mxu0 %v4327
      %v4471 = vpop.f32.mrf.mxu0
      %v4472 = vadd.f32 0.0, %v4471
      %v4473 = vpop.f32.mrf.mxu0
      %v4474 = vpop.f32.mrf.mxu0
      %v4475 = vadd.f32 0.0, %v4474
      %v4476 = vpop.f32.mrf.mxu0
      %4477 = vmatprep.mubr.bf16.mxu0 0
      %4478 = vmatmul.mubr.bf16.gmra.mxu0 %v4330
      %v4479 = vpop.f32.mrf.mxu0
      %v4480 = vadd.f32 0.0, %v4479
      %v4481 = vpop.f32.mrf.mxu0
      %v4482 = vpop.f32.mrf.mxu0
      %v4483 = vadd.f32 0.0, %v4482
      %v4484 = vpop.f32.mrf.mxu0
      %4485 = vmatprep.mubr.bf16.mxu0 0
      %4486 = vmatmul.mubr.bf16.gmra.mxu0 %v4333
      %v4487 = vpop.f32.mrf.mxu0
      %v4488 = vadd.f32 0.0, %v4487
      %v4489 = vpop.f32.mrf.mxu0
      %v4490 = vpop.f32.mrf.mxu0
      %v4491 = vadd.f32 0.0, %v4490
      %v4492 = vpop.f32.mrf.mxu0
      %4493 = vmatprep.mubr.bf16.mxu0 0
      %4494 = vmatmul.mubr.bf16.gmra.mxu0 %v4336
      %v4495 = vpop.f32.mrf.mxu0
      %v4496 = vadd.f32 0.0, %v4495
      %v4497 = vpop.f32.mrf.mxu0
      %v4498 = vpop.f32.mrf.mxu0
      %v4499 = vadd.f32 0.0, %v4498
      %v4500 = vpop.f32.mrf.mxu0
      %4501 = vdwg.mxu0
      %v4502 = vadd.f32 %v4146, %v4376
      %v4503 = vadd.f32 %v4149, %v4379
      %v4504 = vadd.f32 %v4154, %v4384
      %v4505 = vadd.f32 %v4157, %v4387
      %v4506 = vadd.f32 %v4162, %v4392
      %v4507 = vadd.f32 %v4165, %v4395
      %v4508 = vadd.f32 %v4170, %v4400
      %v4509 = vadd.f32 %v4173, %v4403
      %v4510 = vadd.f32 %v4178, %v4408
      %v4511 = vadd.f32 %v4181, %v4411
      %v4512 = vadd.f32 %v4186, %v4416
      %v4513 = vadd.f32 %v4189, %v4419
      %v4514 = vadd.f32 %v4194, %v4424
      %v4515 = vadd.f32 %v4197, %v4427
      %v4516 = vadd.f32 %v4202, %v4432
      %v4517 = vadd.f32 %v4205, %v4435
      %v4518 = vadd.f32 %v4210, %v4440
      %v4519 = vadd.f32 %v4213, %v4443
      %v4520 = vadd.f32 %v4218, %v4448
      %v4521 = vadd.f32 %v4221, %v4451
      %v4522 = vadd.f32 %v4226, %v4456
      %v4523 = vadd.f32 %v4229, %v4459
      %v4524 = vadd.f32 %v4234, %v4464
      %v4525 = vadd.f32 %v4237, %v4467
      %v4526 = vadd.f32 %v4242, %v4472
      %v4527 = vadd.f32 %v4245, %v4475
      %v4528 = vadd.f32 %v4250, %v4480
      %v4529 = vadd.f32 %v4253, %v4483
      %v4530 = vadd.f32 %v4258, %v4488
      %v4531 = vadd.f32 %v4261, %v4491
      %v4532 = vadd.f32 %v4266, %v4496
      %v4533 = vadd.f32 %v4269, %v4499
      %v4534 = vpack.c.bf16 %v3810, %v3809
      %s4535 = scalar_lea.vmem %s7, 6
      %v4536 = vld [vmem:[%s4535] sm:$0x3]
      %v4538 = vsel %vm690, %v4534, 0
      %v4541 = vsel %vm739, %v4536, 0
      %4543 = vmatprep.subr.bf16.mxu0 0
      %4544 = vmatpush1.bf16.msra.mxu0 0
      %4545 = vmatprep.subr.bf16.mxu0 0
      %4546 = vmatpush1.bf16.msra.mxu0 0
      %4547 = vmatprep.subr.bf16.mxu0 0
      %4548 = vmatpush1.bf16.msra.mxu0 0
      %4549 = vmatprep.subr.bf16.mxu0 0
      %4550 = vmatpush1.bf16.msra.mxu0 0
      %4551 = vmatprep.subr.bf16.mxu0 0
      %4552 = vmatpush1.bf16.msra.mxu0 0
      %4553 = vmatprep.subr.bf16.mxu0 0
      %4554 = vmatpush1.bf16.msra.mxu0 0
      %4555 = vmatprep.subr.bf16.mxu0 0
      %4556 = vmatpush1.bf16.msra.mxu0 0
      %4557 = vmatprep.subr.bf16.mxu0 0
      %4558 = vmatpush1.bf16.msra.mxu0 %v4541
      %4559 = vmatprep.subr.bf16.mxu0 0
      %4560 = vmatpush2.bf16.msra.mxu0 0
      %4561 = vmatprep.subr.bf16.mxu0 0
      %4562 = vmatpush2.bf16.msra.mxu0 0
      %4563 = vmatprep.subr.bf16.mxu0 0
      %4564 = vmatpush2.bf16.msra.mxu0 0
      %4565 = vmatprep.subr.bf16.mxu0 0
      %4566 = vmatpush2.bf16.msra.mxu0 0
      %4567 = vmatprep.subr.bf16.mxu0 0
      %4568 = vmatpush2.bf16.msra.mxu0 0
      %4569 = vmatprep.subr.bf16.mxu0 0
      %4570 = vmatpush2.bf16.msra.mxu0 0
      %4571 = vmatprep.subr.bf16.mxu0 0
      %4572 = vmatpush2.bf16.msra.mxu0 0
      %4573 = vmatprep.subr.bf16.mxu0 0
      %4574 = vmatpush2.bf16.msra.mxu0 0
      %4575 = vmatprep.mubr.bf16.mxu0 0
      %4576 = vmatmul.mubr.bf16.gmra.mxu0 %v4064
      %v4577 = vpop.f32.mrf.mxu0
      %v4578 = vadd.f32 0.0, %v4577
      %v4579 = vpop.f32.mrf.mxu0
      %v4580 = vpop.f32.mrf.mxu0
      %v4581 = vadd.f32 0.0, %v4580
      %v4582 = vpop.f32.mrf.mxu0
      %4583 = vmatprep.mubr.bf16.mxu0 0
      %4584 = vmatmul.mubr.bf16.gmra.mxu0 %v4067
      %v4585 = vpop.f32.mrf.mxu0
      %v4586 = vadd.f32 0.0, %v4585
      %v4587 = vpop.f32.mrf.mxu0
      %v4588 = vpop.f32.mrf.mxu0
      %v4589 = vadd.f32 0.0, %v4588
      %v4590 = vpop.f32.mrf.mxu0
      %4591 = vmatprep.mubr.bf16.mxu0 0
      %4592 = vmatmul.mubr.bf16.gmra.mxu0 %v4070
      %v4593 = vpop.f32.mrf.mxu0
      %v4594 = vadd.f32 0.0, %v4593
      %v4595 = vpop.f32.mrf.mxu0
      %v4596 = vpop.f32.mrf.mxu0
      %v4597 = vadd.f32 0.0, %v4596
      %v4598 = vpop.f32.mrf.mxu0
      %4599 = vmatprep.mubr.bf16.mxu0 0
      %4600 = vmatmul.mubr.bf16.gmra.mxu0 %v4073
      %v4601 = vpop.f32.mrf.mxu0
      %v4602 = vadd.f32 0.0, %v4601
      %v4603 = vpop.f32.mrf.mxu0
      %v4604 = vpop.f32.mrf.mxu0
      %v4605 = vadd.f32 0.0, %v4604
      %v4606 = vpop.f32.mrf.mxu0
      %4607 = vmatprep.mubr.bf16.mxu0 0
      %4608 = vmatmul.mubr.bf16.gmra.mxu0 %v4076
      %v4609 = vpop.f32.mrf.mxu0
      %v4610 = vadd.f32 0.0, %v4609
      %v4611 = vpop.f32.mrf.mxu0
      %v4612 = vpop.f32.mrf.mxu0
      %v4613 = vadd.f32 0.0, %v4612
      %v4614 = vpop.f32.mrf.mxu0
      %4615 = vmatprep.mubr.bf16.mxu0 0
      %4616 = vmatmul.mubr.bf16.gmra.mxu0 %v4079
      %v4617 = vpop.f32.mrf.mxu0
      %v4618 = vadd.f32 0.0, %v4617
      %v4619 = vpop.f32.mrf.mxu0
      %v4620 = vpop.f32.mrf.mxu0
      %v4621 = vadd.f32 0.0, %v4620
      %v4622 = vpop.f32.mrf.mxu0
      %4623 = vmatprep.mubr.bf16.mxu0 0
      %4624 = vmatmul.mubr.bf16.gmra.mxu0 %v4082
      %v4625 = vpop.f32.mrf.mxu0
      %v4626 = vadd.f32 0.0, %v4625
      %v4627 = vpop.f32.mrf.mxu0
      %v4628 = vpop.f32.mrf.mxu0
      %v4629 = vadd.f32 0.0, %v4628
      %v4630 = vpop.f32.mrf.mxu0
      %4631 = vmatprep.mubr.bf16.mxu0 0
      %4632 = vmatmul.mubr.bf16.gmra.mxu0 %v4085
      %v4633 = vpop.f32.mrf.mxu0
      %v4634 = vadd.f32 0.0, %v4633
      %v4635 = vpop.f32.mrf.mxu0
      %v4636 = vpop.f32.mrf.mxu0
      %v4637 = vadd.f32 0.0, %v4636
      %v4638 = vpop.f32.mrf.mxu0
      %4639 = vmatprep.mubr.bf16.mxu0 0
      %4640 = vmatmul.mubr.bf16.gmra.mxu0 %v4088
      %v4641 = vpop.f32.mrf.mxu0
      %v4642 = vadd.f32 0.0, %v4641
      %v4643 = vpop.f32.mrf.mxu0
      %v4644 = vpop.f32.mrf.mxu0
      %v4645 = vadd.f32 0.0, %v4644
      %v4646 = vpop.f32.mrf.mxu0
      %4647 = vmatprep.mubr.bf16.mxu0 0
      %4648 = vmatmul.mubr.bf16.gmra.mxu0 %v4091
      %v4649 = vpop.f32.mrf.mxu0
      %v4650 = vadd.f32 0.0, %v4649
      %v4651 = vpop.f32.mrf.mxu0
      %v4652 = vpop.f32.mrf.mxu0
      %v4653 = vadd.f32 0.0, %v4652
      %v4654 = vpop.f32.mrf.mxu0
      %4655 = vmatprep.mubr.bf16.mxu0 0
      %4656 = vmatmul.mubr.bf16.gmra.mxu0 %v4094
      %v4657 = vpop.f32.mrf.mxu0
      %v4658 = vadd.f32 0.0, %v4657
      %v4659 = vpop.f32.mrf.mxu0
      %v4660 = vpop.f32.mrf.mxu0
      %v4661 = vadd.f32 0.0, %v4660
      %v4662 = vpop.f32.mrf.mxu0
      %4663 = vmatprep.mubr.bf16.mxu0 0
      %4664 = vmatmul.mubr.bf16.gmra.mxu0 %v4097
      %v4665 = vpop.f32.mrf.mxu0
      %v4666 = vadd.f32 0.0, %v4665
      %v4667 = vpop.f32.mrf.mxu0
      %v4668 = vpop.f32.mrf.mxu0
      %v4669 = vadd.f32 0.0, %v4668
      %v4670 = vpop.f32.mrf.mxu0
      %4671 = vmatprep.mubr.bf16.mxu0 0
      %4672 = vmatmul.mubr.bf16.gmra.mxu0 %v4100
      %v4673 = vpop.f32.mrf.mxu0
      %v4674 = vadd.f32 0.0, %v4673
      %v4675 = vpop.f32.mrf.mxu0
      %v4676 = vpop.f32.mrf.mxu0
      %v4677 = vadd.f32 0.0, %v4676
      %v4678 = vpop.f32.mrf.mxu0
      %4679 = vmatprep.mubr.bf16.mxu0 0
      %4680 = vmatmul.mubr.bf16.gmra.mxu0 %v4103
      %v4681 = vpop.f32.mrf.mxu0
      %v4682 = vadd.f32 0.0, %v4681
      %v4683 = vpop.f32.mrf.mxu0
      %v4684 = vpop.f32.mrf.mxu0
      %v4685 = vadd.f32 0.0, %v4684
      %v4686 = vpop.f32.mrf.mxu0
      %4687 = vmatprep.mubr.bf16.mxu0 0
      %4688 = vmatmul.mubr.bf16.gmra.mxu0 %v4106
      %v4689 = vpop.f32.mrf.mxu0
      %v4690 = vadd.f32 0.0, %v4689
      %v4691 = vpop.f32.mrf.mxu0
      %v4692 = vpop.f32.mrf.mxu0
      %v4693 = vadd.f32 0.0, %v4692
      %v4694 = vpop.f32.mrf.mxu0
      %4695 = vmatprep.mubr.bf16.mxu0 0
      %4696 = vmatmul.mubr.bf16.gmra.mxu0 %v4538
      %v4697 = vpop.f32.mrf.mxu0
      %v4698 = vadd.f32 0.0, %v4697
      %v4699 = vpop.f32.mrf.mxu0
      %v4700 = vpop.f32.mrf.mxu0
      %v4701 = vadd.f32 0.0, %v4700
      %v4702 = vpop.f32.mrf.mxu0
      %4703 = vdwg.mxu0
      %v4704 = vadd.f32 %v4502, %v4578
      %v4705 = vadd.f32 %v4503, %v4581
      %v4706 = vadd.f32 %v4504, %v4586
      %v4707 = vadd.f32 %v4505, %v4589
      %v4708 = vadd.f32 %v4506, %v4594
      %v4709 = vadd.f32 %v4507, %v4597
      %v4710 = vadd.f32 %v4508, %v4602
      %v4711 = vadd.f32 %v4509, %v4605
      %v4712 = vadd.f32 %v4510, %v4610
      %v4713 = vadd.f32 %v4511, %v4613
      %v4714 = vadd.f32 %v4512, %v4618
      %v4715 = vadd.f32 %v4513, %v4621
      %v4716 = vadd.f32 %v4514, %v4626
      %v4717 = vadd.f32 %v4515, %v4629
      %v4718 = vadd.f32 %v4516, %v4634
      %v4719 = vadd.f32 %v4517, %v4637
      %v4720 = vadd.f32 %v4518, %v4642
      %v4721 = vadd.f32 %v4519, %v4645
      %v4722 = vadd.f32 %v4520, %v4650
      %v4723 = vadd.f32 %v4521, %v4653
      %v4724 = vadd.f32 %v4522, %v4658
      %v4725 = vadd.f32 %v4523, %v4661
      %v4726 = vadd.f32 %v4524, %v4666
      %v4727 = vadd.f32 %v4525, %v4669
      %v4728 = vadd.f32 %v4526, %v4674
      %v4729 = vadd.f32 %v4527, %v4677
      %v4730 = vadd.f32 %v4528, %v4682
      %v4731 = vadd.f32 %v4529, %v4685
      %v4732 = vadd.f32 %v4530, %v4690
      %v4733 = vadd.f32 %v4531, %v4693
      %v4734 = vadd.f32 %v4532, %v4698
      %v4735 = vadd.f32 %v4533, %v4701
      %v4736 = vpack.c.bf16 %v3526, %v3524
      %s4737 = scalar_lea.vmem %s7, 8
      %v4738 = vld [vmem:[%s4737] sm:$0x3]
      %v4740 = vsel %vm690, %v4736, 0
      %v4743 = vsel %vm739, %v4738, 0
      %4745 = vmatprep.subr.bf16.mxu0 0
      %4746 = vmatpush1.bf16.msra.mxu0 0
      %4747 = vmatprep.subr.bf16.mxu0 0
      %4748 = vmatpush1.bf16.msra.mxu0 0
      %4749 = vmatprep.subr.bf16.mxu0 0
      %4750 = vmatpush1.bf16.msra.mxu0 0
      %4751 = vmatprep.subr.bf16.mxu0 0
      %4752 = vmatpush1.bf16.msra.mxu0 0
      %4753 = vmatprep.subr.bf16.mxu0 0
      %4754 = vmatpush1.bf16.msra.mxu0 0
      %4755 = vmatprep.subr.bf16.mxu0 0
      %4756 = vmatpush1.bf16.msra.mxu0 0
      %4757 = vmatprep.subr.bf16.mxu0 0
      %4758 = vmatpush1.bf16.msra.mxu0 0
      %4759 = vmatprep.subr.bf16.mxu0 0
      %4760 = vmatpush1.bf16.msra.mxu0 %v4743
      %4761 = vmatprep.subr.bf16.mxu0 0
      %4762 = vmatpush2.bf16.msra.mxu0 0
      %4763 = vmatprep.subr.bf16.mxu0 0
      %4764 = vmatpush2.bf16.msra.mxu0 0
      %4765 = vmatprep.subr.bf16.mxu0 0
      %4766 = vmatpush2.bf16.msra.mxu0 0
      %4767 = vmatprep.subr.bf16.mxu0 0
      %4768 = vmatpush2.bf16.msra.mxu0 0
      %4769 = vmatprep.subr.bf16.mxu0 0
      %4770 = vmatpush2.bf16.msra.mxu0 0
      %4771 = vmatprep.subr.bf16.mxu0 0
      %4772 = vmatpush2.bf16.msra.mxu0 0
      %4773 = vmatprep.subr.bf16.mxu0 0
      %4774 = vmatpush2.bf16.msra.mxu0 0
      %4775 = vmatprep.subr.bf16.mxu0 0
      %4776 = vmatpush2.bf16.msra.mxu0 0
      %4777 = vmatprep.mubr.bf16.mxu0 0
      %4778 = vmatmul.mubr.bf16.gmra.mxu0 %v3855
      %v4779 = vpop.f32.mrf.mxu0
      %v4780 = vadd.f32 0.0, %v4779
      %v4781 = vpop.f32.mrf.mxu0
      %v4782 = vpop.f32.mrf.mxu0
      %v4783 = vadd.f32 0.0, %v4782
      %v4784 = vpop.f32.mrf.mxu0
      %4785 = vmatprep.mubr.bf16.mxu0 0
      %4786 = vmatmul.mubr.bf16.gmra.mxu0 %v3858
      %v4787 = vpop.f32.mrf.mxu0
      %v4788 = vadd.f32 0.0, %v4787
      %v4789 = vpop.f32.mrf.mxu0
      %v4790 = vpop.f32.mrf.mxu0
      %v4791 = vadd.f32 0.0, %v4790
      %v4792 = vpop.f32.mrf.mxu0
      %4793 = vmatprep.mubr.bf16.mxu0 0
      %4794 = vmatmul.mubr.bf16.gmra.mxu0 %v3861
      %v4795 = vpop.f32.mrf.mxu0
      %v4796 = vadd.f32 0.0, %v4795
      %v4797 = vpop.f32.mrf.mxu0
      %v4798 = vpop.f32.mrf.mxu0
      %v4799 = vadd.f32 0.0, %v4798
      %v4800 = vpop.f32.mrf.mxu0
      %4801 = vmatprep.mubr.bf16.mxu0 0
      %4802 = vmatmul.mubr.bf16.gmra.mxu0 %v3864
      %v4803 = vpop.f32.mrf.mxu0
      %v4804 = vadd.f32 0.0, %v4803
      %v4805 = vpop.f32.mrf.mxu0
      %v4806 = vpop.f32.mrf.mxu0
      %v4807 = vadd.f32 0.0, %v4806
      %v4808 = vpop.f32.mrf.mxu0
      %4809 = vmatprep.mubr.bf16.mxu0 0
      %4810 = vmatmul.mubr.bf16.gmra.mxu0 %v3867
      %v4811 = vpop.f32.mrf.mxu0
      %v4812 = vadd.f32 0.0, %v4811
      %v4813 = vpop.f32.mrf.mxu0
      %v4814 = vpop.f32.mrf.mxu0
      %v4815 = vadd.f32 0.0, %v4814
      %v4816 = vpop.f32.mrf.mxu0
      %4817 = vmatprep.mubr.bf16.mxu0 0
      %4818 = vmatmul.mubr.bf16.gmra.mxu0 %v3870
      %v4819 = vpop.f32.mrf.mxu0
      %v4820 = vadd.f32 0.0, %v4819
      %v4821 = vpop.f32.mrf.mxu0
      %v4822 = vpop.f32.mrf.mxu0
      %v4823 = vadd.f32 0.0, %v4822
      %v4824 = vpop.f32.mrf.mxu0
      %4825 = vmatprep.mubr.bf16.mxu0 0
      %4826 = vmatmul.mubr.bf16.gmra.mxu0 %v3873
      %v4827 = vpop.f32.mrf.mxu0
      %v4828 = vadd.f32 0.0, %v4827
      %v4829 = vpop.f32.mrf.mxu0
      %v4830 = vpop.f32.mrf.mxu0
      %v4831 = vadd.f32 0.0, %v4830
      %v4832 = vpop.f32.mrf.mxu0
      %4833 = vmatprep.mubr.bf16.mxu0 0
      %4834 = vmatmul.mubr.bf16.gmra.mxu0 %v3876
      %v4835 = vpop.f32.mrf.mxu0
      %v4836 = vadd.f32 0.0, %v4835
      %v4837 = vpop.f32.mrf.mxu0
      %v4838 = vpop.f32.mrf.mxu0
      %v4839 = vadd.f32 0.0, %v4838
      %v4840 = vpop.f32.mrf.mxu0
      %4841 = vmatprep.mubr.bf16.mxu0 0
      %4842 = vmatmul.mubr.bf16.gmra.mxu0 %v3879
      %v4843 = vpop.f32.mrf.mxu0
      %v4844 = vadd.f32 0.0, %v4843
      %v4845 = vpop.f32.mrf.mxu0
      %v4846 = vpop.f32.mrf.mxu0
      %v4847 = vadd.f32 0.0, %v4846
      %v4848 = vpop.f32.mrf.mxu0
      %4849 = vmatprep.mubr.bf16.mxu0 0
      %4850 = vmatmul.mubr.bf16.gmra.mxu0 %v3882
      %v4851 = vpop.f32.mrf.mxu0
      %v4852 = vadd.f32 0.0, %v4851
      %v4853 = vpop.f32.mrf.mxu0
      %v4854 = vpop.f32.mrf.mxu0
      %v4855 = vadd.f32 0.0, %v4854
      %v4856 = vpop.f32.mrf.mxu0
      %4857 = vmatprep.mubr.bf16.mxu0 0
      %4858 = vmatmul.mubr.bf16.gmra.mxu0 %v3885
      %v4859 = vpop.f32.mrf.mxu0
      %v4860 = vadd.f32 0.0, %v4859
      %v4861 = vpop.f32.mrf.mxu0
      %v4862 = vpop.f32.mrf.mxu0
      %v4863 = vadd.f32 0.0, %v4862
      %v4864 = vpop.f32.mrf.mxu0
      %4865 = vmatprep.mubr.bf16.mxu0 0
      %4866 = vmatmul.mubr.bf16.gmra.mxu0 %v3888
      %v4867 = vpop.f32.mrf.mxu0
      %v4868 = vadd.f32 0.0, %v4867
      %v4869 = vpop.f32.mrf.mxu0
      %v4870 = vpop.f32.mrf.mxu0
      %v4871 = vadd.f32 0.0, %v4870
      %v4872 = vpop.f32.mrf.mxu0
      %4873 = vmatprep.mubr.bf16.mxu0 0
      %4874 = vmatmul.mubr.bf16.gmra.mxu0 %v3891
      %v4875 = vpop.f32.mrf.mxu0
      %v4876 = vadd.f32 0.0, %v4875
      %v4877 = vpop.f32.mrf.mxu0
      %v4878 = vpop.f32.mrf.mxu0
      %v4879 = vadd.f32 0.0, %v4878
      %v4880 = vpop.f32.mrf.mxu0
      %4881 = vmatprep.mubr.bf16.mxu0 0
      %4882 = vmatmul.mubr.bf16.gmra.mxu0 %v3894
      %v4883 = vpop.f32.mrf.mxu0
      %v4884 = vadd.f32 0.0, %v4883
      %v4885 = vpop.f32.mrf.mxu0
      %v4886 = vpop.f32.mrf.mxu0
      %v4887 = vadd.f32 0.0, %v4886
      %v4888 = vpop.f32.mrf.mxu0
      %4889 = vmatprep.mubr.bf16.mxu0 0
      %4890 = vmatmul.mubr.bf16.gmra.mxu0 %v3897
      %v4891 = vpop.f32.mrf.mxu0
      %v4892 = vadd.f32 0.0, %v4891
      %v4893 = vpop.f32.mrf.mxu0
      %v4894 = vpop.f32.mrf.mxu0
      %v4895 = vadd.f32 0.0, %v4894
      %v4896 = vpop.f32.mrf.mxu0
      %4897 = vmatprep.mubr.bf16.mxu0 0
      %4898 = vmatmul.mubr.bf16.gmra.mxu0 %v4740
      %v4899 = vpop.f32.mrf.mxu0
      %v4900 = vadd.f32 0.0, %v4899
      %v4901 = vpop.f32.mrf.mxu0
      %v4902 = vpop.f32.mrf.mxu0
      %v4903 = vadd.f32 0.0, %v4902
      %v4904 = vpop.f32.mrf.mxu0
      %4905 = vdwg.mxu0
      %v4906 = vadd.f32 %v4704, %v4780
      %v4907 = vadd.f32 %v4705, %v4783
      %v4908 = vadd.f32 %v4706, %v4788
      %v4909 = vadd.f32 %v4707, %v4791
      %v4910 = vadd.f32 %v4708, %v4796
      %v4911 = vadd.f32 %v4709, %v4799
      %v4912 = vadd.f32 %v4710, %v4804
      %v4913 = vadd.f32 %v4711, %v4807
      %v4914 = vadd.f32 %v4712, %v4812
      %v4915 = vadd.f32 %v4713, %v4815
      %v4916 = vadd.f32 %v4714, %v4820
      %v4917 = vadd.f32 %v4715, %v4823
      %v4918 = vadd.f32 %v4716, %v4828
      %v4919 = vadd.f32 %v4717, %v4831
      %v4920 = vadd.f32 %v4718, %v4836
      %v4921 = vadd.f32 %v4719, %v4839
      %v4922 = vadd.f32 %v4720, %v4844
      %v4923 = vadd.f32 %v4721, %v4847
      %v4924 = vadd.f32 %v4722, %v4852
      %v4925 = vadd.f32 %v4723, %v4855
      %v4926 = vadd.f32 %v4724, %v4860
      %v4927 = vadd.f32 %v4725, %v4863
      %v4928 = vadd.f32 %v4726, %v4868
      %v4929 = vadd.f32 %v4727, %v4871
      %v4930 = vadd.f32 %v4728, %v4876
      %v4931 = vadd.f32 %v4729, %v4879
      %v4932 = vadd.f32 %v4730, %v4884
      %v4933 = vadd.f32 %v4731, %v4887
      %v4934 = vadd.f32 %v4732, %v4892
      %v4935 = vadd.f32 %v4733, %v4895
      %v4936 = vadd.f32 %v4734, %v4900
      %v4937 = vadd.f32 %v4735, %v4903
      %v4938 = vpack.c.bf16 %v3817, %v3816
      %s4939 = scalar_lea.vmem %s7, 10
      %v4940 = vld [vmem:[%s4939] sm:$0x3]
      %v4942 = vsel %vm690, %v4938, 0
      %v4945 = vsel %vm739, %v4940, 0
      %4947 = vmatprep.subr.bf16.mxu0 0
      %4948 = vmatpush1.bf16.msra.mxu0 0
      %4949 = vmatprep.subr.bf16.mxu0 0
      %4950 = vmatpush1.bf16.msra.mxu0 0
      %4951 = vmatprep.subr.bf16.mxu0 0
      %4952 = vmatpush1.bf16.msra.mxu0 0
      %4953 = vmatprep.subr.bf16.mxu0 0
      %4954 = vmatpush1.bf16.msra.mxu0 0
      %4955 = vmatprep.subr.bf16.mxu0 0
      %4956 = vmatpush1.bf16.msra.mxu0 0
      %4957 = vmatprep.subr.bf16.mxu0 0
      %4958 = vmatpush1.bf16.msra.mxu0 0
      %4959 = vmatprep.subr.bf16.mxu0 0
      %4960 = vmatpush1.bf16.msra.mxu0 0
      %4961 = vmatprep.subr.bf16.mxu0 0
      %4962 = vmatpush1.bf16.msra.mxu0 %v4945
      %4963 = vmatprep.subr.bf16.mxu0 0
      %4964 = vmatpush2.bf16.msra.mxu0 0
      %4965 = vmatprep.subr.bf16.mxu0 0
      %4966 = vmatpush2.bf16.msra.mxu0 0
      %4967 = vmatprep.subr.bf16.mxu0 0
      %4968 = vmatpush2.bf16.msra.mxu0 0
      %4969 = vmatprep.subr.bf16.mxu0 0
      %4970 = vmatpush2.bf16.msra.mxu0 0
      %4971 = vmatprep.subr.bf16.mxu0 0
      %4972 = vmatpush2.bf16.msra.mxu0 0
      %4973 = vmatprep.subr.bf16.mxu0 0
      %4974 = vmatpush2.bf16.msra.mxu0 0
      %4975 = vmatprep.subr.bf16.mxu0 0
      %4976 = vmatpush2.bf16.msra.mxu0 0
      %4977 = vmatprep.subr.bf16.mxu0 0
      %4978 = vmatpush2.bf16.msra.mxu0 0
      %4979 = vmatprep.mubr.bf16.mxu0 0
      %4980 = vmatmul.mubr.bf16.gmra.mxu0 %v4294
      %v4981 = vpop.f32.mrf.mxu0
      %v4982 = vadd.f32 0.0, %v4981
      %v4983 = vpop.f32.mrf.mxu0
      %v4984 = vpop.f32.mrf.mxu0
      %v4985 = vadd.f32 0.0, %v4984
      %v4986 = vpop.f32.mrf.mxu0
      %4987 = vmatprep.mubr.bf16.mxu0 0
      %4988 = vmatmul.mubr.bf16.gmra.mxu0 %v4297
      %v4989 = vpop.f32.mrf.mxu0
      %v4990 = vadd.f32 0.0, %v4989
      %v4991 = vpop.f32.mrf.mxu0
      %v4992 = vpop.f32.mrf.mxu0
      %v4993 = vadd.f32 0.0, %v4992
      %v4994 = vpop.f32.mrf.mxu0
      %4995 = vmatprep.mubr.bf16.mxu0 0
      %4996 = vmatmul.mubr.bf16.gmra.mxu0 %v4300
      %v4997 = vpop.f32.mrf.mxu0
      %v4998 = vadd.f32 0.0, %v4997
      %v4999 = vpop.f32.mrf.mxu0
      %v5000 = vpop.f32.mrf.mxu0
      %v5001 = vadd.f32 0.0, %v5000
      %v5002 = vpop.f32.mrf.mxu0
      %5003 = vmatprep.mubr.bf16.mxu0 0
      %5004 = vmatmul.mubr.bf16.gmra.mxu0 %v4303
      %v5005 = vpop.f32.mrf.mxu0
      %v5006 = vadd.f32 0.0, %v5005
      %v5007 = vpop.f32.mrf.mxu0
      %v5008 = vpop.f32.mrf.mxu0
      %v5009 = vadd.f32 0.0, %v5008
      %v5010 = vpop.f32.mrf.mxu0
      %5011 = vmatprep.mubr.bf16.mxu0 0
      %5012 = vmatmul.mubr.bf16.gmra.mxu0 %v4306
      %v5013 = vpop.f32.mrf.mxu0
      %v5014 = vadd.f32 0.0, %v5013
      %v5015 = vpop.f32.mrf.mxu0
      %v5016 = vpop.f32.mrf.mxu0
      %v5017 = vadd.f32 0.0, %v5016
      %v5018 = vpop.f32.mrf.mxu0
      %5019 = vmatprep.mubr.bf16.mxu0 0
      %5020 = vmatmul.mubr.bf16.gmra.mxu0 %v4309
      %v5021 = vpop.f32.mrf.mxu0
      %v5022 = vadd.f32 0.0, %v5021
      %v5023 = vpop.f32.mrf.mxu0
      %v5024 = vpop.f32.mrf.mxu0
      %v5025 = vadd.f32 0.0, %v5024
      %v5026 = vpop.f32.mrf.mxu0
      %5027 = vmatprep.mubr.bf16.mxu0 0
      %5028 = vmatmul.mubr.bf16.gmra.mxu0 %v4312
      %v5029 = vpop.f32.mrf.mxu0
      %v5030 = vadd.f32 0.0, %v5029
      %v5031 = vpop.f32.mrf.mxu0
      %v5032 = vpop.f32.mrf.mxu0
      %v5033 = vadd.f32 0.0, %v5032
      %v5034 = vpop.f32.mrf.mxu0
      %5035 = vmatprep.mubr.bf16.mxu0 0
      %5036 = vmatmul.mubr.bf16.gmra.mxu0 %v4315
      %v5037 = vpop.f32.mrf.mxu0
      %v5038 = vadd.f32 0.0, %v5037
      %v5039 = vpop.f32.mrf.mxu0
      %v5040 = vpop.f32.mrf.mxu0
      %v5041 = vadd.f32 0.0, %v5040
      %v5042 = vpop.f32.mrf.mxu0
      %5043 = vmatprep.mubr.bf16.mxu0 0
      %5044 = vmatmul.mubr.bf16.gmra.mxu0 %v4318
      %v5045 = vpop.f32.mrf.mxu0
      %v5046 = vadd.f32 0.0, %v5045
      %v5047 = vpop.f32.mrf.mxu0
      %v5048 = vpop.f32.mrf.mxu0
      %v5049 = vadd.f32 0.0, %v5048
      %v5050 = vpop.f32.mrf.mxu0
      %5051 = vmatprep.mubr.bf16.mxu0 0
      %5052 = vmatmul.mubr.bf16.gmra.mxu0 %v4321
      %v5053 = vpop.f32.mrf.mxu0
      %v5054 = vadd.f32 0.0, %v5053
      %v5055 = vpop.f32.mrf.mxu0
      %v5056 = vpop.f32.mrf.mxu0
      %v5057 = vadd.f32 0.0, %v5056
      %v5058 = vpop.f32.mrf.mxu0
      %5059 = vmatprep.mubr.bf16.mxu0 0
      %5060 = vmatmul.mubr.bf16.gmra.mxu0 %v4324
      %v5061 = vpop.f32.mrf.mxu0
      %v5062 = vadd.f32 0.0, %v5061
      %v5063 = vpop.f32.mrf.mxu0
      %v5064 = vpop.f32.mrf.mxu0
      %v5065 = vadd.f32 0.0, %v5064
      %v5066 = vpop.f32.mrf.mxu0
      %5067 = vmatprep.mubr.bf16.mxu0 0
      %5068 = vmatmul.mubr.bf16.gmra.mxu0 %v4327
      %v5069 = vpop.f32.mrf.mxu0
      %v5070 = vadd.f32 0.0, %v5069
      %v5071 = vpop.f32.mrf.mxu0
      %v5072 = vpop.f32.mrf.mxu0
      %v5073 = vadd.f32 0.0, %v5072
      %v5074 = vpop.f32.mrf.mxu0
      %5075 = vmatprep.mubr.bf16.mxu0 0
      %5076 = vmatmul.mubr.bf16.gmra.mxu0 %v4330
      %v5077 = vpop.f32.mrf.mxu0
      %v5078 = vadd.f32 0.0, %v5077
      %v5079 = vpop.f32.mrf.mxu0
      %v5080 = vpop.f32.mrf.mxu0
      %v5081 = vadd.f32 0.0, %v5080
      %v5082 = vpop.f32.mrf.mxu0
      %5083 = vmatprep.mubr.bf16.mxu0 0
      %5084 = vmatmul.mubr.bf16.gmra.mxu0 %v4333
      %v5085 = vpop.f32.mrf.mxu0
      %v5086 = vadd.f32 0.0, %v5085
      %v5087 = vpop.f32.mrf.mxu0
      %v5088 = vpop.f32.mrf.mxu0
      %v5089 = vadd.f32 0.0, %v5088
      %v5090 = vpop.f32.mrf.mxu0
      %5091 = vmatprep.mubr.bf16.mxu0 0
      %5092 = vmatmul.mubr.bf16.gmra.mxu0 %v4336
      %v5093 = vpop.f32.mrf.mxu0
      %v5094 = vadd.f32 0.0, %v5093
      %v5095 = vpop.f32.mrf.mxu0
      %v5096 = vpop.f32.mrf.mxu0
      %v5097 = vadd.f32 0.0, %v5096
      %v5098 = vpop.f32.mrf.mxu0
      %5099 = vmatprep.mubr.bf16.mxu0 0
      %5100 = vmatmul.mubr.bf16.gmra.mxu0 %v4942
      %v5101 = vpop.f32.mrf.mxu0
      %v5102 = vadd.f32 0.0, %v5101
      %v5103 = vpop.f32.mrf.mxu0
      %v5104 = vpop.f32.mrf.mxu0
      %v5105 = vadd.f32 0.0, %v5104
      %v5106 = vpop.f32.mrf.mxu0
      %5107 = vdwg.mxu0
      %v5108 = vadd.f32 %v4906, %v4982
      %v5109 = vadd.f32 %v4907, %v4985
      %v5110 = vadd.f32 %v4908, %v4990
      %v5111 = vadd.f32 %v4909, %v4993
      %v5112 = vadd.f32 %v4910, %v4998
      %v5113 = vadd.f32 %v4911, %v5001
      %v5114 = vadd.f32 %v4912, %v5006
      %v5115 = vadd.f32 %v4913, %v5009
      %v5116 = vadd.f32 %v4914, %v5014
      %v5117 = vadd.f32 %v4915, %v5017
      %v5118 = vadd.f32 %v4916, %v5022
      %v5119 = vadd.f32 %v4917, %v5025
      %v5120 = vadd.f32 %v4918, %v5030
      %v5121 = vadd.f32 %v4919, %v5033
      %v5122 = vadd.f32 %v4920, %v5038
      %v5123 = vadd.f32 %v4921, %v5041
      %v5124 = vadd.f32 %v4922, %v5046
      %v5125 = vadd.f32 %v4923, %v5049
      %v5126 = vadd.f32 %v4924, %v5054
      %v5127 = vadd.f32 %v4925, %v5057
      %v5128 = vadd.f32 %v4926, %v5062
      %v5129 = vadd.f32 %v4927, %v5065
      %v5130 = vadd.f32 %v4928, %v5070
      %v5131 = vadd.f32 %v4929, %v5073
      %v5132 = vadd.f32 %v4930, %v5078
      %v5133 = vadd.f32 %v4931, %v5081
      %v5134 = vadd.f32 %v4932, %v5086
      %v5135 = vadd.f32 %v4933, %v5089
      %v5136 = vadd.f32 %v4934, %v5094
      %v5137 = vadd.f32 %v4935, %v5097
      %v5138 = vadd.f32 %v4936, %v5102
      %v5139 = vadd.f32 %v4937, %v5105
      %v5140 = vpack.c.bf16 %v1245, %v3820
      %s5141 = scalar_lea.vmem %s7, 12
      %v5142 = vld [vmem:[%s5141] sm:$0x3]
      %v5144 = vsel %vm690, %v5140, 0
      %v5147 = vsel %vm739, %v5142, 0
      %5149 = vmatprep.subr.bf16.mxu0 0
      %5150 = vmatpush1.bf16.msra.mxu0 0
      %5151 = vmatprep.subr.bf16.mxu0 0
      %5152 = vmatpush1.bf16.msra.mxu0 0
      %5153 = vmatprep.subr.bf16.mxu0 0
      %5154 = vmatpush1.bf16.msra.mxu0 0
      %5155 = vmatprep.subr.bf16.mxu0 0
      %5156 = vmatpush1.bf16.msra.mxu0 0
      %5157 = vmatprep.subr.bf16.mxu0 0
      %5158 = vmatpush1.bf16.msra.mxu0 0
      %5159 = vmatprep.subr.bf16.mxu0 0
      %5160 = vmatpush1.bf16.msra.mxu0 0
      %5161 = vmatprep.subr.bf16.mxu0 0
      %5162 = vmatpush1.bf16.msra.mxu0 0
      %5163 = vmatprep.subr.bf16.mxu0 0
      %5164 = vmatpush1.bf16.msra.mxu0 %v5147
      %5165 = vmatprep.subr.bf16.mxu0 0
      %5166 = vmatpush2.bf16.msra.mxu0 0
      %5167 = vmatprep.subr.bf16.mxu0 0
      %5168 = vmatpush2.bf16.msra.mxu0 0
      %5169 = vmatprep.subr.bf16.mxu0 0
      %5170 = vmatpush2.bf16.msra.mxu0 0
      %5171 = vmatprep.subr.bf16.mxu0 0
      %5172 = vmatpush2.bf16.msra.mxu0 0
      %5173 = vmatprep.subr.bf16.mxu0 0
      %5174 = vmatpush2.bf16.msra.mxu0 0
      %5175 = vmatprep.subr.bf16.mxu0 0
      %5176 = vmatpush2.bf16.msra.mxu0 0
      %5177 = vmatprep.subr.bf16.mxu0 0
      %5178 = vmatpush2.bf16.msra.mxu0 0
      %5179 = vmatprep.subr.bf16.mxu0 0
      %5180 = vmatpush2.bf16.msra.mxu0 0
      %5181 = vmatprep.mubr.bf16.mxu0 0
      %5182 = vmatmul.mubr.bf16.gmra.mxu0 %v4067
      %v5183 = vpop.f32.mrf.mxu0
      %v5184 = vadd.f32 0.0, %v5183
      %v5185 = vpop.f32.mrf.mxu0
      %v5186 = vpop.f32.mrf.mxu0
      %v5187 = vadd.f32 0.0, %v5186
      %v5188 = vpop.f32.mrf.mxu0
      %5189 = vmatprep.mubr.bf16.mxu0 0
      %5190 = vmatmul.mubr.bf16.gmra.mxu0 %v4070
      %v5191 = vpop.f32.mrf.mxu0
      %v5192 = vadd.f32 0.0, %v5191
      %v5193 = vpop.f32.mrf.mxu0
      %v5194 = vpop.f32.mrf.mxu0
      %v5195 = vadd.f32 0.0, %v5194
      %v5196 = vpop.f32.mrf.mxu0
      %5197 = vmatprep.mubr.bf16.mxu0 0
      %5198 = vmatmul.mubr.bf16.gmra.mxu0 %v4073
      %v5199 = vpop.f32.mrf.mxu0
      %v5200 = vadd.f32 0.0, %v5199
      %v5201 = vpop.f32.mrf.mxu0
      %v5202 = vpop.f32.mrf.mxu0
      %v5203 = vadd.f32 0.0, %v5202
      %v5204 = vpop.f32.mrf.mxu0
      %5205 = vmatprep.mubr.bf16.mxu0 0
      %5206 = vmatmul.mubr.bf16.gmra.mxu0 %v4076
      %v5207 = vpop.f32.mrf.mxu0
      %v5208 = vadd.f32 0.0, %v5207
      %v5209 = vpop.f32.mrf.mxu0
      %v5210 = vpop.f32.mrf.mxu0
      %v5211 = vadd.f32 0.0, %v5210
      %v5212 = vpop.f32.mrf.mxu0
      %5213 = vmatprep.mubr.bf16.mxu0 0
      %5214 = vmatmul.mubr.bf16.gmra.mxu0 %v4079
      %v5215 = vpop.f32.mrf.mxu0
      %v5216 = vadd.f32 0.0, %v5215
      %v5217 = vpop.f32.mrf.mxu0
      %v5218 = vpop.f32.mrf.mxu0
      %v5219 = vadd.f32 0.0, %v5218
      %v5220 = vpop.f32.mrf.mxu0
      %5221 = vmatprep.mubr.bf16.mxu0 0
      %5222 = vmatmul.mubr.bf16.gmra.mxu0 %v4082
      %v5223 = vpop.f32.mrf.mxu0
      %v5224 = vadd.f32 0.0, %v5223
      %v5225 = vpop.f32.mrf.mxu0
      %v5226 = vpop.f32.mrf.mxu0
      %v5227 = vadd.f32 0.0, %v5226
      %v5228 = vpop.f32.mrf.mxu0
      %5229 = vmatprep.mubr.bf16.mxu0 0
      %5230 = vmatmul.mubr.bf16.gmra.mxu0 %v4085
      %v5231 = vpop.f32.mrf.mxu0
      %v5232 = vadd.f32 0.0, %v5231
      %v5233 = vpop.f32.mrf.mxu0
      %v5234 = vpop.f32.mrf.mxu0
      %v5235 = vadd.f32 0.0, %v5234
      %v5236 = vpop.f32.mrf.mxu0
      %5237 = vmatprep.mubr.bf16.mxu0 0
      %5238 = vmatmul.mubr.bf16.gmra.mxu0 %v4088
      %v5239 = vpop.f32.mrf.mxu0
      %v5240 = vadd.f32 0.0, %v5239
      %v5241 = vpop.f32.mrf.mxu0
      %v5242 = vpop.f32.mrf.mxu0
      %v5243 = vadd.f32 0.0, %v5242
      %v5244 = vpop.f32.mrf.mxu0
      %5245 = vmatprep.mubr.bf16.mxu0 0
      %5246 = vmatmul.mubr.bf16.gmra.mxu0 %v4091
      %v5247 = vpop.f32.mrf.mxu0
      %v5248 = vadd.f32 0.0, %v5247
      %v5249 = vpop.f32.mrf.mxu0
      %v5250 = vpop.f32.mrf.mxu0
      %v5251 = vadd.f32 0.0, %v5250
      %v5252 = vpop.f32.mrf.mxu0
      %5253 = vmatprep.mubr.bf16.mxu0 0
      %5254 = vmatmul.mubr.bf16.gmra.mxu0 %v4094
      %v5255 = vpop.f32.mrf.mxu0
      %v5256 = vadd.f32 0.0, %v5255
      %v5257 = vpop.f32.mrf.mxu0
      %v5258 = vpop.f32.mrf.mxu0
      %v5259 = vadd.f32 0.0, %v5258
      %v5260 = vpop.f32.mrf.mxu0
      %5261 = vmatprep.mubr.bf16.mxu0 0
      %5262 = vmatmul.mubr.bf16.gmra.mxu0 %v4097
      %v5263 = vpop.f32.mrf.mxu0
      %v5264 = vadd.f32 0.0, %v5263
      %v5265 = vpop.f32.mrf.mxu0
      %v5266 = vpop.f32.mrf.mxu0
      %v5267 = vadd.f32 0.0, %v5266
      %v5268 = vpop.f32.mrf.mxu0
      %5269 = vmatprep.mubr.bf16.mxu0 0
      %5270 = vmatmul.mubr.bf16.gmra.mxu0 %v4100
      %v5271 = vpop.f32.mrf.mxu0
      %v5272 = vadd.f32 0.0, %v5271
      %v5273 = vpop.f32.mrf.mxu0
      %v5274 = vpop.f32.mrf.mxu0
      %v5275 = vadd.f32 0.0, %v5274
      %v5276 = vpop.f32.mrf.mxu0
      %5277 = vmatprep.mubr.bf16.mxu0 0
      %5278 = vmatmul.mubr.bf16.gmra.mxu0 %v4103
      %v5279 = vpop.f32.mrf.mxu0
      %v5280 = vadd.f32 0.0, %v5279
      %v5281 = vpop.f32.mrf.mxu0
      %v5282 = vpop.f32.mrf.mxu0
      %v5283 = vadd.f32 0.0, %v5282
      %v5284 = vpop.f32.mrf.mxu0
      %5285 = vmatprep.mubr.bf16.mxu0 0
      %5286 = vmatmul.mubr.bf16.gmra.mxu0 %v4106
      %v5287 = vpop.f32.mrf.mxu0
      %v5288 = vadd.f32 0.0, %v5287
      %v5289 = vpop.f32.mrf.mxu0
      %v5290 = vpop.f32.mrf.mxu0
      %v5291 = vadd.f32 0.0, %v5290
      %v5292 = vpop.f32.mrf.mxu0
      %5293 = vmatprep.mubr.bf16.mxu0 0
      %5294 = vmatmul.mubr.bf16.gmra.mxu0 %v4538
      %v5295 = vpop.f32.mrf.mxu0
      %v5296 = vadd.f32 0.0, %v5295
      %v5297 = vpop.f32.mrf.mxu0
      %v5298 = vpop.f32.mrf.mxu0
      %v5299 = vadd.f32 0.0, %v5298
      %v5300 = vpop.f32.mrf.mxu0
      %5301 = vmatprep.mubr.bf16.mxu0 0
      %5302 = vmatmul.mubr.bf16.gmra.mxu0 %v5144
      %v5303 = vpop.f32.mrf.mxu0
      %v5304 = vadd.f32 0.0, %v5303
      %v5305 = vpop.f32.mrf.mxu0
      %v5306 = vpop.f32.mrf.mxu0
      %v5307 = vadd.f32 0.0, %v5306
      %v5308 = vpop.f32.mrf.mxu0
      %5309 = vdwg.mxu0
      %v5310 = vadd.f32 %v5108, %v5184
      %v5311 = vadd.f32 %v5109, %v5187
      %v5312 = vadd.f32 %v5110, %v5192
      %v5313 = vadd.f32 %v5111, %v5195
      %v5314 = vadd.f32 %v5112, %v5200
      %v5315 = vadd.f32 %v5113, %v5203
      %v5316 = vadd.f32 %v5114, %v5208
      %v5317 = vadd.f32 %v5115, %v5211
      %v5318 = vadd.f32 %v5116, %v5216
      %v5319 = vadd.f32 %v5117, %v5219
      %v5320 = vadd.f32 %v5118, %v5224
      %v5321 = vadd.f32 %v5119, %v5227
      %v5322 = vadd.f32 %v5120, %v5232
      %v5323 = vadd.f32 %v5121, %v5235
      %v5324 = vadd.f32 %v5122, %v5240
      %v5325 = vadd.f32 %v5123, %v5243
      %v5326 = vadd.f32 %v5124, %v5248
      %v5327 = vadd.f32 %v5125, %v5251
      %v5328 = vadd.f32 %v5126, %v5256
      %v5329 = vadd.f32 %v5127, %v5259
      %v5330 = vadd.f32 %v5128, %v5264
      %v5331 = vadd.f32 %v5129, %v5267
      %v5332 = vadd.f32 %v5130, %v5272
      %v5333 = vadd.f32 %v5131, %v5275
      %v5334 = vadd.f32 %v5132, %v5280
      %v5335 = vadd.f32 %v5133, %v5283
      %v5336 = vadd.f32 %v5134, %v5288
      %v5337 = vadd.f32 %v5135, %v5291
      %v5338 = vadd.f32 %v5136, %v5296
      %v5339 = vadd.f32 %v5137, %v5299
      %v5340 = vadd.f32 %v5138, %v5304
      %v5341 = vadd.f32 %v5139, %v5307
      %s5342 = scalar_lea.vmem %s7, 14
      %v5343 = vld [vmem:[%s5342] sm:$0x3]
      %v5345 = vsel %vm739, %v5343, 0
      %5347 = vmatprep.subr.bf16.mxu0 0
      %5348 = vmatpush1.bf16.msra.mxu0 0
      %5349 = vmatprep.subr.bf16.mxu0 0
      %5350 = vmatpush1.bf16.msra.mxu0 0
      %5351 = vmatprep.subr.bf16.mxu0 0
      %5352 = vmatpush1.bf16.msra.mxu0 0
      %5353 = vmatprep.subr.bf16.mxu0 0
      %5354 = vmatpush1.bf16.msra.mxu0 0
      %5355 = vmatprep.subr.bf16.mxu0 0
      %5356 = vmatpush1.bf16.msra.mxu0 0
      %5357 = vmatprep.subr.bf16.mxu0 0
      %5358 = vmatpush1.bf16.msra.mxu0 0
      %5359 = vmatprep.subr.bf16.mxu0 0
      %5360 = vmatpush1.bf16.msra.mxu0 0
      %5361 = vmatprep.subr.bf16.mxu0 0
      %5362 = vmatpush1.bf16.msra.mxu0 %v5345
      %5363 = vmatprep.subr.bf16.mxu0 0
      %5364 = vmatpush2.bf16.msra.mxu0 0
      %5365 = vmatprep.subr.bf16.mxu0 0
      %5366 = vmatpush2.bf16.msra.mxu0 0
      %5367 = vmatprep.subr.bf16.mxu0 0
      %5368 = vmatpush2.bf16.msra.mxu0 0
      %5369 = vmatprep.subr.bf16.mxu0 0
      %5370 = vmatpush2.bf16.msra.mxu0 0
      %5371 = vmatprep.subr.bf16.mxu0 0
      %5372 = vmatpush2.bf16.msra.mxu0 0
      %5373 = vmatprep.subr.bf16.mxu0 0
      %5374 = vmatpush2.bf16.msra.mxu0 0
      %5375 = vmatprep.subr.bf16.mxu0 0
      %5376 = vmatpush2.bf16.msra.mxu0 0
      %5377 = vmatprep.subr.bf16.mxu0 0
      %5378 = vmatpush2.bf16.msra.mxu0 0
      %5379 = vmatprep.mubr.bf16.mxu0 0
      %5380 = vmatmul.mubr.bf16.gmra.mxu0 %v3858
      %v5381 = vpop.f32.mrf.mxu0
      %v5382 = vadd.f32 0.0, %v5381
      %v5383 = vpop.f32.mrf.mxu0
      %v5384 = vpop.f32.mrf.mxu0
      %v5385 = vadd.f32 0.0, %v5384
      %v5386 = vpop.f32.mrf.mxu0
      %5387 = vmatprep.mubr.bf16.mxu0 0
      %5388 = vmatmul.mubr.bf16.gmra.mxu0 %v3861
      %v5389 = vpop.f32.mrf.mxu0
      %v5390 = vadd.f32 0.0, %v5389
      %v5391 = vpop.f32.mrf.mxu0
      %v5392 = vpop.f32.mrf.mxu0
      %v5393 = vadd.f32 0.0, %v5392
      %v5394 = vpop.f32.mrf.mxu0
      %5395 = vmatprep.mubr.bf16.mxu0 0
      %5396 = vmatmul.mubr.bf16.gmra.mxu0 %v3864
      %v5397 = vpop.f32.mrf.mxu0
      %v5398 = vadd.f32 0.0, %v5397
      %v5399 = vpop.f32.mrf.mxu0
      %v5400 = vpop.f32.mrf.mxu0
      %v5401 = vadd.f32 0.0, %v5400
      %v5402 = vpop.f32.mrf.mxu0
      %5403 = vmatprep.mubr.bf16.mxu0 0
      %5404 = vmatmul.mubr.bf16.gmra.mxu0 %v3867
      %v5405 = vpop.f32.mrf.mxu0
      %v5406 = vadd.f32 0.0, %v5405
      %v5407 = vpop.f32.mrf.mxu0
      %v5408 = vpop.f32.mrf.mxu0
      %v5409 = vadd.f32 0.0, %v5408
      %v5410 = vpop.f32.mrf.mxu0
      %5411 = vmatprep.mubr.bf16.mxu0 0
      %5412 = vmatmul.mubr.bf16.gmra.mxu0 %v3870
      %v5413 = vpop.f32.mrf.mxu0
      %v5414 = vadd.f32 0.0, %v5413
      %v5415 = vpop.f32.mrf.mxu0
      %v5416 = vpop.f32.mrf.mxu0
      %v5417 = vadd.f32 0.0, %v5416
      %v5418 = vpop.f32.mrf.mxu0
      %5419 = vmatprep.mubr.bf16.mxu0 0
      %5420 = vmatmul.mubr.bf16.gmra.mxu0 %v3873
      %v5421 = vpop.f32.mrf.mxu0
      %v5422 = vadd.f32 0.0, %v5421
      %v5423 = vpop.f32.mrf.mxu0
      %v5424 = vpop.f32.mrf.mxu0
      %v5425 = vadd.f32 0.0, %v5424
      %v5426 = vpop.f32.mrf.mxu0
      %5427 = vmatprep.mubr.bf16.mxu0 0
      %5428 = vmatmul.mubr.bf16.gmra.mxu0 %v3876
      %v5429 = vpop.f32.mrf.mxu0
      %v5430 = vadd.f32 0.0, %v5429
      %v5431 = vpop.f32.mrf.mxu0
      %v5432 = vpop.f32.mrf.mxu0
      %v5433 = vadd.f32 0.0, %v5432
      %v5434 = vpop.f32.mrf.mxu0
      %5435 = vmatprep.mubr.bf16.mxu0 0
      %5436 = vmatmul.mubr.bf16.gmra.mxu0 %v3879
      %v5437 = vpop.f32.mrf.mxu0
      %v5438 = vadd.f32 0.0, %v5437
      %v5439 = vpop.f32.mrf.mxu0
      %v5440 = vpop.f32.mrf.mxu0
      %v5441 = vadd.f32 0.0, %v5440
      %v5442 = vpop.f32.mrf.mxu0
      %5443 = vmatprep.mubr.bf16.mxu0 0
      %5444 = vmatmul.mubr.bf16.gmra.mxu0 %v3882
      %v5445 = vpop.f32.mrf.mxu0
      %v5446 = vadd.f32 0.0, %v5445
      %v5447 = vpop.f32.mrf.mxu0
      %v5448 = vpop.f32.mrf.mxu0
      %v5449 = vadd.f32 0.0, %v5448
      %v5450 = vpop.f32.mrf.mxu0
      %5451 = vmatprep.mubr.bf16.mxu0 0
      %5452 = vmatmul.mubr.bf16.gmra.mxu0 %v3885
      %v5453 = vpop.f32.mrf.mxu0
      %v5454 = vadd.f32 0.0, %v5453
      %v5455 = vpop.f32.mrf.mxu0
      %v5456 = vpop.f32.mrf.mxu0
      %v5457 = vadd.f32 0.0, %v5456
      %v5458 = vpop.f32.mrf.mxu0
      %5459 = vmatprep.mubr.bf16.mxu0 0
      %5460 = vmatmul.mubr.bf16.gmra.mxu0 %v3888
      %v5461 = vpop.f32.mrf.mxu0
      %v5462 = vadd.f32 0.0, %v5461
      %v5463 = vpop.f32.mrf.mxu0
      %v5464 = vpop.f32.mrf.mxu0
      %v5465 = vadd.f32 0.0, %v5464
      %v5466 = vpop.f32.mrf.mxu0
      %5467 = vmatprep.mubr.bf16.mxu0 0
      %5468 = vmatmul.mubr.bf16.gmra.mxu0 %v3891
      %v5469 = vpop.f32.mrf.mxu0
      %v5470 = vadd.f32 0.0, %v5469
      %v5471 = vpop.f32.mrf.mxu0
      %v5472 = vpop.f32.mrf.mxu0
      %v5473 = vadd.f32 0.0, %v5472
      %v5474 = vpop.f32.mrf.mxu0
      %5475 = vmatprep.mubr.bf16.mxu0 0
      %5476 = vmatmul.mubr.bf16.gmra.mxu0 %v3894
      %v5477 = vpop.f32.mrf.mxu0
      %v5478 = vadd.f32 0.0, %v5477
      %v5479 = vpop.f32.mrf.mxu0
      %v5480 = vpop.f32.mrf.mxu0
      %v5481 = vadd.f32 0.0, %v5480
      %v5482 = vpop.f32.mrf.mxu0
      %5483 = vmatprep.mubr.bf16.mxu0 0
      %5484 = vmatmul.mubr.bf16.gmra.mxu0 %v3897
      %v5485 = vpop.f32.mrf.mxu0
      %v5486 = vadd.f32 0.0, %v5485
      %v5487 = vpop.f32.mrf.mxu0
      %v5488 = vpop.f32.mrf.mxu0
      %v5489 = vadd.f32 0.0, %v5488
      %v5490 = vpop.f32.mrf.mxu0
      %5491 = vmatprep.mubr.bf16.mxu0 0
      %5492 = vmatmul.mubr.bf16.gmra.mxu0 %v4740
      %v5493 = vpop.f32.mrf.mxu0
      %v5494 = vadd.f32 0.0, %v5493
      %v5495 = vpop.f32.mrf.mxu0
      %v5496 = vpop.f32.mrf.mxu0
      %v5497 = vadd.f32 0.0, %v5496
      %v5498 = vpop.f32.mrf.mxu0
      %5499 = vmatprep.mubr.bf16.mxu0 0
      %5500 = vmatmul.mubr.bf16.gmra.mxu0 %v1460
      %v5501 = vpop.f32.mrf.mxu0
      %v5502 = vadd.f32 0.0, %v5501
      %v5503 = vpop.f32.mrf.mxu0
      %v5504 = vpop.f32.mrf.mxu0
      %v5505 = vadd.f32 0.0, %v5504
      %v5506 = vpop.f32.mrf.mxu0
      %5507 = vdwg.mxu0
      %v5508 = vadd.f32 %v5310, %v5382
      %v5509 = vadd.f32 %v5311, %v5385
      %v5510 = vadd.f32 %v5312, %v5390
      %v5511 = vadd.f32 %v5313, %v5393
      %v5512 = vadd.f32 %v5314, %v5398
      %v5513 = vadd.f32 %v5315, %v5401
      %v5514 = vadd.f32 %v5316, %v5406
      %v5515 = vadd.f32 %v5317, %v5409
      %v5516 = vadd.f32 %v5318, %v5414
      %v5517 = vadd.f32 %v5319, %v5417
      %v5518 = vadd.f32 %v5320, %v5422
      %v5519 = vadd.f32 %v5321, %v5425
      %v5520 = vadd.f32 %v5322, %v5430
      %v5521 = vadd.f32 %v5323, %v5433
      %v5522 = vadd.f32 %v5324, %v5438
      %v5523 = vadd.f32 %v5325, %v5441
      %v5524 = vadd.f32 %v5326, %v5446
      %v5525 = vadd.f32 %v5327, %v5449
      %v5526 = vadd.f32 %v5328, %v5454
      %v5527 = vadd.f32 %v5329, %v5457
      %v5528 = vadd.f32 %v5330, %v5462
      %v5529 = vadd.f32 %v5331, %v5465
      %v5530 = vadd.f32 %v5332, %v5470
      %v5531 = vadd.f32 %v5333, %v5473
      %v5532 = vadd.f32 %v5334, %v5478
      %v5533 = vadd.f32 %v5335, %v5481
      %v5534 = vadd.f32 %v5336, %v5486
      %v5535 = vadd.f32 %v5337, %v5489
      %v5536 = vadd.f32 %v5338, %v5494
      %v5537 = vadd.f32 %v5339, %v5497
      %v5538 = vadd.f32 %v5340, %v5502
      %v5539 = vadd.f32 %v5341, %v5505
      %s5540 = scalar_lea.vmem %s7, 16
      %v5541 = vld [vmem:[%s5540] sm:$0x3]
      %v5543 = vsel %vm739, %v5541, 0
      %5545 = vmatprep.subr.bf16.mxu0 0
      %5546 = vmatpush1.bf16.msra.mxu0 0
      %5547 = vmatprep.subr.bf16.mxu0 0
      %5548 = vmatpush1.bf16.msra.mxu0 0
      %5549 = vmatprep.subr.bf16.mxu0 0
      %5550 = vmatpush1.bf16.msra.mxu0 0
      %5551 = vmatprep.subr.bf16.mxu0 0
      %5552 = vmatpush1.bf16.msra.mxu0 0
      %5553 = vmatprep.subr.bf16.mxu0 0
      %5554 = vmatpush1.bf16.msra.mxu0 0
      %5555 = vmatprep.subr.bf16.mxu0 0
      %5556 = vmatpush1.bf16.msra.mxu0 0
      %5557 = vmatprep.subr.bf16.mxu0 0
      %5558 = vmatpush1.bf16.msra.mxu0 0
      %5559 = vmatprep.subr.bf16.mxu0 0
      %5560 = vmatpush1.bf16.msra.mxu0 %v5543
      %5561 = vmatprep.subr.bf16.mxu0 0
      %5562 = vmatpush2.bf16.msra.mxu0 0
      %5563 = vmatprep.subr.bf16.mxu0 0
      %5564 = vmatpush2.bf16.msra.mxu0 0
      %5565 = vmatprep.subr.bf16.mxu0 0
      %5566 = vmatpush2.bf16.msra.mxu0 0
      %5567 = vmatprep.subr.bf16.mxu0 0
      %5568 = vmatpush2.bf16.msra.mxu0 0
      %5569 = vmatprep.subr.bf16.mxu0 0
      %5570 = vmatpush2.bf16.msra.mxu0 0
      %5571 = vmatprep.subr.bf16.mxu0 0
      %5572 = vmatpush2.bf16.msra.mxu0 0
      %5573 = vmatprep.subr.bf16.mxu0 0
      %5574 = vmatpush2.bf16.msra.mxu0 0
      %5575 = vmatprep.subr.bf16.mxu0 0
      %5576 = vmatpush2.bf16.msra.mxu0 0
      %5577 = vmatprep.mubr.bf16.mxu0 0
      %5578 = vmatmul.mubr.bf16.gmra.mxu0 %v4297
      %v5579 = vpop.f32.mrf.mxu0
      %v5580 = vadd.f32 0.0, %v5579
      %v5581 = vpop.f32.mrf.mxu0
      %v5582 = vpop.f32.mrf.mxu0
      %v5583 = vadd.f32 0.0, %v5582
      %v5584 = vpop.f32.mrf.mxu0
      %5585 = vmatprep.mubr.bf16.mxu0 0
      %5586 = vmatmul.mubr.bf16.gmra.mxu0 %v4300
      %v5587 = vpop.f32.mrf.mxu0
      %v5588 = vadd.f32 0.0, %v5587
      %v5589 = vpop.f32.mrf.mxu0
      %v5590 = vpop.f32.mrf.mxu0
      %v5591 = vadd.f32 0.0, %v5590
      %v5592 = vpop.f32.mrf.mxu0
      %5593 = vmatprep.mubr.bf16.mxu0 0
      %5594 = vmatmul.mubr.bf16.gmra.mxu0 %v4303
      %v5595 = vpop.f32.mrf.mxu0
      %v5596 = vadd.f32 0.0, %v5595
      %v5597 = vpop.f32.mrf.mxu0
      %v5598 = vpop.f32.mrf.mxu0
      %v5599 = vadd.f32 0.0, %v5598
      %v5600 = vpop.f32.mrf.mxu0
      %5601 = vmatprep.mubr.bf16.mxu0 0
      %5602 = vmatmul.mubr.bf16.gmra.mxu0 %v4306
      %v5603 = vpop.f32.mrf.mxu0
      %v5604 = vadd.f32 0.0, %v5603
      %v5605 = vpop.f32.mrf.mxu0
      %v5606 = vpop.f32.mrf.mxu0
      %v5607 = vadd.f32 0.0, %v5606
      %v5608 = vpop.f32.mrf.mxu0
      %5609 = vmatprep.mubr.bf16.mxu0 0
      %5610 = vmatmul.mubr.bf16.gmra.mxu0 %v4309
      %v5611 = vpop.f32.mrf.mxu0
      %v5612 = vadd.f32 0.0, %v5611
      %v5613 = vpop.f32.mrf.mxu0
      %v5614 = vpop.f32.mrf.mxu0
      %v5615 = vadd.f32 0.0, %v5614
      %v5616 = vpop.f32.mrf.mxu0
      %5617 = vmatprep.mubr.bf16.mxu0 0
      %5618 = vmatmul.mubr.bf16.gmra.mxu0 %v4312
      %v5619 = vpop.f32.mrf.mxu0
      %v5620 = vadd.f32 0.0, %v5619
      %v5621 = vpop.f32.mrf.mxu0
      %v5622 = vpop.f32.mrf.mxu0
      %v5623 = vadd.f32 0.0, %v5622
      %v5624 = vpop.f32.mrf.mxu0
      %5625 = vmatprep.mubr.bf16.mxu0 0
      %5626 = vmatmul.mubr.bf16.gmra.mxu0 %v4315
      %v5627 = vpop.f32.mrf.mxu0
      %v5628 = vadd.f32 0.0, %v5627
      %v5629 = vpop.f32.mrf.mxu0
      %v5630 = vpop.f32.mrf.mxu0
      %v5631 = vadd.f32 0.0, %v5630
      %v5632 = vpop.f32.mrf.mxu0
      %5633 = vmatprep.mubr.bf16.mxu0 0
      %5634 = vmatmul.mubr.bf16.gmra.mxu0 %v4318
      %v5635 = vpop.f32.mrf.mxu0
      %v5636 = vadd.f32 0.0, %v5635
      %v5637 = vpop.f32.mrf.mxu0
      %v5638 = vpop.f32.mrf.mxu0
      %v5639 = vadd.f32 0.0, %v5638
      %v5640 = vpop.f32.mrf.mxu0
      %5641 = vmatprep.mubr.bf16.mxu0 0
      %5642 = vmatmul.mubr.bf16.gmra.mxu0 %v4321
      %v5643 = vpop.f32.mrf.mxu0
      %v5644 = vadd.f32 0.0, %v5643
      %v5645 = vpop.f32.mrf.mxu0
      %v5646 = vpop.f32.mrf.mxu0
      %v5647 = vadd.f32 0.0, %v5646
      %v5648 = vpop.f32.mrf.mxu0
      %5649 = vmatprep.mubr.bf16.mxu0 0
      %5650 = vmatmul.mubr.bf16.gmra.mxu0 %v4324
      %v5651 = vpop.f32.mrf.mxu0
      %v5652 = vadd.f32 0.0, %v5651
      %v5653 = vpop.f32.mrf.mxu0
      %v5654 = vpop.f32.mrf.mxu0
      %v5655 = vadd.f32 0.0, %v5654
      %v5656 = vpop.f32.mrf.mxu0
      %5657 = vmatprep.mubr.bf16.mxu0 0
      %5658 = vmatmul.mubr.bf16.gmra.mxu0 %v4327
      %v5659 = vpop.f32.mrf.mxu0
      %v5660 = vadd.f32 0.0, %v5659
      %v5661 = vpop.f32.mrf.mxu0
      %v5662 = vpop.f32.mrf.mxu0
      %v5663 = vadd.f32 0.0, %v5662
      %v5664 = vpop.f32.mrf.mxu0
      %5665 = vmatprep.mubr.bf16.mxu0 0
      %5666 = vmatmul.mubr.bf16.gmra.mxu0 %v4330
      %v5667 = vpop.f32.mrf.mxu0
      %v5668 = vadd.f32 0.0, %v5667
      %v5669 = vpop.f32.mrf.mxu0
      %v5670 = vpop.f32.mrf.mxu0
      %v5671 = vadd.f32 0.0, %v5670
      %v5672 = vpop.f32.mrf.mxu0
      %5673 = vmatprep.mubr.bf16.mxu0 0
      %5674 = vmatmul.mubr.bf16.gmra.mxu0 %v4333
      %v5675 = vpop.f32.mrf.mxu0
      %v5676 = vadd.f32 0.0, %v5675
      %v5677 = vpop.f32.mrf.mxu0
      %v5678 = vpop.f32.mrf.mxu0
      %v5679 = vadd.f32 0.0, %v5678
      %v5680 = vpop.f32.mrf.mxu0
      %5681 = vmatprep.mubr.bf16.mxu0 0
      %5682 = vmatmul.mubr.bf16.gmra.mxu0 %v4336
      %v5683 = vpop.f32.mrf.mxu0
      %v5684 = vadd.f32 0.0, %v5683
      %v5685 = vpop.f32.mrf.mxu0
      %v5686 = vpop.f32.mrf.mxu0
      %v5687 = vadd.f32 0.0, %v5686
      %v5688 = vpop.f32.mrf.mxu0
      %5689 = vmatprep.mubr.bf16.mxu0 0
      %5690 = vmatmul.mubr.bf16.gmra.mxu0 %v4942
      %v5691 = vpop.f32.mrf.mxu0
      %v5692 = vadd.f32 0.0, %v5691
      %v5693 = vpop.f32.mrf.mxu0
      %v5694 = vpop.f32.mrf.mxu0
      %v5695 = vadd.f32 0.0, %v5694
      %v5696 = vpop.f32.mrf.mxu0
      %5697 = vmatprep.mubr.bf16.mxu0 0
      %5698 = vmatmul.mubr.bf16.gmra.mxu0 %v3155
      %v5699 = vpop.f32.mrf.mxu0
      %v5700 = vadd.f32 0.0, %v5699
      %v5701 = vpop.f32.mrf.mxu0
      %v5702 = vpop.f32.mrf.mxu0
      %v5703 = vadd.f32 0.0, %v5702
      %v5704 = vpop.f32.mrf.mxu0
      %5705 = vdwg.mxu0
      %v5706 = vadd.f32 %v5508, %v5580
      %v5707 = vadd.f32 %v5509, %v5583
      %v5708 = vadd.f32 %v5510, %v5588
      %v5709 = vadd.f32 %v5511, %v5591
      %v5710 = vadd.f32 %v5512, %v5596
      %v5711 = vadd.f32 %v5513, %v5599
      %v5712 = vadd.f32 %v5514, %v5604
      %v5713 = vadd.f32 %v5515, %v5607
      %v5714 = vadd.f32 %v5516, %v5612
      %v5715 = vadd.f32 %v5517, %v5615
      %v5716 = vadd.f32 %v5518, %v5620
      %v5717 = vadd.f32 %v5519, %v5623
      %v5718 = vadd.f32 %v5520, %v5628
      %v5719 = vadd.f32 %v5521, %v5631
      %v5720 = vadd.f32 %v5522, %v5636
      %v5721 = vadd.f32 %v5523, %v5639
      %v5722 = vadd.f32 %v5524, %v5644
      %v5723 = vadd.f32 %v5525, %v5647
      %v5724 = vadd.f32 %v5526, %v5652
      %v5725 = vadd.f32 %v5527, %v5655
      %v5726 = vadd.f32 %v5528, %v5660
      %v5727 = vadd.f32 %v5529, %v5663
      %v5728 = vadd.f32 %v5530, %v5668
      %v5729 = vadd.f32 %v5531, %v5671
      %v5730 = vadd.f32 %v5532, %v5676
      %v5731 = vadd.f32 %v5533, %v5679
      %v5732 = vadd.f32 %v5534, %v5684
      %v5733 = vadd.f32 %v5535, %v5687
      %v5734 = vadd.f32 %v5536, %v5692
      %v5735 = vadd.f32 %v5537, %v5695
      %v5736 = vadd.f32 %v5538, %v5700
      %v5737 = vadd.f32 %v5539, %v5703
      %v5738 = vld [vmem:[%s8] sm:$0x1]
      %v5740 = vlaneseq
      %v5741 = vshrl.u32 %v5740, 7
      %v5742 = vsub.s32 0, %v5741
      %v5743 = vrot.slane %v5738, %v5742
      %v5745 = vmul.f32 %v5706, %v5743
      %v5746 = vmul.f32 %v5707, %v5743
      %v5747 = vmul.f32 %v5708, %v5743
      %v5748 = vmul.f32 %v5709, %v5743
      %v5749 = vmul.f32 %v5710, %v5743
      %v5750 = vmul.f32 %v5711, %v5743
      %v5751 = vmul.f32 %v5712, %v5743
      %v5752 = vmul.f32 %v5713, %v5743
      %v5753 = vmul.f32 %v5714, %v5743
      %v5754 = vmul.f32 %v5715, %v5743
      %v5755 = vmul.f32 %v5716, %v5743
      %v5756 = vmul.f32 %v5717, %v5743
      %v5757 = vmul.f32 %v5718, %v5743
      %v5758 = vmul.f32 %v5719, %v5743
      %v5759 = vmul.f32 %v5720, %v5743
      %v5760 = vmul.f32 %v5721, %v5743
      %v5761 = vmul.f32 %v5722, %v5743
      %v5762 = vmul.f32 %v5723, %v5743
      %v5763 = vmul.f32 %v5724, %v5743
      %v5764 = vmul.f32 %v5725, %v5743
      %v5765 = vmul.f32 %v5726, %v5743
      %v5766 = vmul.f32 %v5727, %v5743
      %v5767 = vmul.f32 %v5728, %v5743
      %v5768 = vmul.f32 %v5729, %v5743
      %v5769 = vmul.f32 %v5730, %v5743
      %v5770 = vmul.f32 %v5731, %v5743
      %v5771 = vmul.f32 %v5732, %v5743
      %v5772 = vmul.f32 %v5733, %v5743
      %v5773 = vmul.f32 %v5734, %v5743
      %v5774 = vmul.f32 %v5735, %v5743
      %v5775 = vmul.f32 %v5736, %v5743
      %v5776 = vmul.f32 %v5737, %v5743
      %v5777 = vld [vmem:[%s9] sm:$0x1]
      %v5779 = vlaneseq
      %v5780 = vshrl.u32 %v5779, 7
      %v5781 = vsub.s32 0, %v5780
      %v5782 = vrot.slane %v5777, %v5781
      %v5784 = vadd.f32 %v5745, %v5782
      %v5785 = vadd.f32 %v5746, %v5782
      %v5786 = vadd.f32 %v5747, %v5782
      %v5787 = vadd.f32 %v5748, %v5782
      %v5788 = vadd.f32 %v5749, %v5782
      %v5789 = vadd.f32 %v5750, %v5782
      %v5790 = vadd.f32 %v5751, %v5782
      %v5791 = vadd.f32 %v5752, %v5782
      %v5792 = vadd.f32 %v5753, %v5782
      %v5793 = vadd.f32 %v5754, %v5782
      %v5794 = vadd.f32 %v5755, %v5782
      %v5795 = vadd.f32 %v5756, %v5782
      %v5796 = vadd.f32 %v5757, %v5782
      %v5797 = vadd.f32 %v5758, %v5782
      %v5798 = vadd.f32 %v5759, %v5782
      %v5799 = vadd.f32 %v5760, %v5782
      %v5800 = vadd.f32 %v5761, %v5782
      %v5801 = vadd.f32 %v5762, %v5782
      %v5802 = vadd.f32 %v5763, %v5782
      %v5803 = vadd.f32 %v5764, %v5782
      %v5804 = vadd.f32 %v5765, %v5782
      %v5805 = vadd.f32 %v5766, %v5782
      %v5806 = vadd.f32 %v5767, %v5782
      %v5807 = vadd.f32 %v5768, %v5782
      %v5808 = vadd.f32 %v5769, %v5782
      %v5809 = vadd.f32 %v5770, %v5782
      %v5810 = vadd.f32 %v5771, %v5782
      %v5811 = vadd.f32 %v5772, %v5782
      %v5812 = vadd.f32 %v5773, %v5782
      %v5813 = vadd.f32 %v5774, %v5782
      %v5814 = vadd.f32 %v5775, %v5782
      %v5815 = vadd.f32 %v5776, %v5782
      %v5816 = vmax.f32 %v5784, 0.0
      %v5817 = vmax.f32 %v5785, 0.0
      %v5818 = vmax.f32 %v5786, 0.0
      %v5819 = vmax.f32 %v5787, 0.0
      %v5820 = vmax.f32 %v5788, 0.0
      %v5821 = vmax.f32 %v5789, 0.0
      %v5822 = vmax.f32 %v5790, 0.0
      %v5823 = vmax.f32 %v5791, 0.0
      %v5824 = vmax.f32 %v5792, 0.0
      %v5825 = vmax.f32 %v5793, 0.0
      %v5826 = vmax.f32 %v5794, 0.0
      %v5827 = vmax.f32 %v5795, 0.0
      %v5828 = vmax.f32 %v5796, 0.0
      %v5829 = vmax.f32 %v5797, 0.0
      %v5830 = vmax.f32 %v5798, 0.0
      %v5831 = vmax.f32 %v5799, 0.0
      %v5832 = vmax.f32 %v5800, 0.0
      %v5833 = vmax.f32 %v5801, 0.0
      %v5834 = vmax.f32 %v5802, 0.0
      %v5835 = vmax.f32 %v5803, 0.0
      %v5836 = vmax.f32 %v5804, 0.0
      %v5837 = vmax.f32 %v5805, 0.0
      %v5838 = vmax.f32 %v5806, 0.0
      %v5839 = vmax.f32 %v5807, 0.0
      %v5840 = vmax.f32 %v5808, 0.0
      %v5841 = vmax.f32 %v5809, 0.0
      %v5842 = vmax.f32 %v5810, 0.0
      %v5843 = vmax.f32 %v5811, 0.0
      %v5844 = vmax.f32 %v5812, 0.0
      %v5845 = vmax.f32 %v5813, 0.0
      %v5846 = vmax.f32 %v5814, 0.0
      %v5847 = vmax.f32 %v5815, 0.0
      %v5878 = vrot.slane %v5816, 7
      %v5879 = vsel %vm1150, %v1151, %v5878
      %v5880 = vrot.slane %v5817, 7
      %v5881 = vsel %vm1150, %v5878, %v5880
      %v5882 = vrot.slane %v5818, 7
      %v5883 = vsel %vm1150, %v5880, %v5882
      %v5884 = vrot.slane %v5819, 7
      %v5885 = vsel %vm1150, %v5882, %v5884
      %v5886 = vrot.slane %v5820, 7
      %v5887 = vsel %vm1150, %v5884, %v5886
      %v5888 = vrot.slane %v5821, 7
      %v5889 = vsel %vm1150, %v5886, %v5888
      %v5890 = vrot.slane %v5822, 7
      %v5891 = vsel %vm1150, %v5888, %v5890
      %v5892 = vrot.slane %v5823, 7
      %v5893 = vsel %vm1150, %v5890, %v5892
      %v5894 = vrot.slane %v5824, 7
      %v5895 = vsel %vm1150, %v5892, %v5894
      %v5896 = vrot.slane %v5825, 7
      %v5897 = vsel %vm1150, %v5894, %v5896
      %v5898 = vrot.slane %v5826, 7
      %v5899 = vsel %vm1150, %v5896, %v5898
      %v5900 = vrot.slane %v5827, 7
      %v5901 = vsel %vm1150, %v5898, %v5900
      %v5902 = vrot.slane %v5828, 7
      %v5903 = vsel %vm1150, %v5900, %v5902
      %v5904 = vrot.slane %v5829, 7
      %v5905 = vsel %vm1150, %v5902, %v5904
      %v5906 = vrot.slane %v5830, 7
      %v5907 = vsel %vm1150, %v5904, %v5906
      %v5908 = vrot.slane %v5831, 7
      %v5909 = vsel %vm1150, %v5906, %v5908
      %v5910 = vrot.slane %v5832, 7
      %v5911 = vsel %vm1150, %v5908, %v5910
      %v5912 = vrot.slane %v5833, 7
      %v5913 = vsel %vm1150, %v5910, %v5912
      %v5914 = vrot.slane %v5834, 7
      %v5915 = vsel %vm1150, %v5912, %v5914
      %v5916 = vrot.slane %v5835, 7
      %v5917 = vsel %vm1150, %v5914, %v5916
      %v5918 = vrot.slane %v5836, 7
      %v5919 = vsel %vm1150, %v5916, %v5918
      %v5920 = vrot.slane %v5837, 7
      %v5921 = vsel %vm1150, %v5918, %v5920
      %v5922 = vrot.slane %v5838, 7
      %v5923 = vsel %vm1150, %v5920, %v5922
      %v5924 = vrot.slane %v5839, 7
      %v5925 = vsel %vm1150, %v5922, %v5924
      %v5926 = vrot.slane %v5840, 7
      %v5927 = vsel %vm1150, %v5924, %v5926
      %v5928 = vrot.slane %v5841, 7
      %v5929 = vsel %vm1150, %v5926, %v5928
      %v5930 = vrot.slane %v5842, 7
      %v5931 = vsel %vm1150, %v5928, %v5930
      %v5932 = vrot.slane %v5843, 7
      %v5933 = vsel %vm1150, %v5930, %v5932
      %v5934 = vrot.slane %v5844, 7
      %v5935 = vsel %vm1150, %v5932, %v5934
      %v5936 = vrot.slane %v5845, 7
      %v5937 = vsel %vm1150, %v5934, %v5936
      %v5968 = vsel %vm1145, %v5879, 0.0
      %v5969 = vsel %vm1146, %v5881, 0.0
      %v5970 = vsel %vm1145, %v5883, 0.0
      %v5971 = vsel %vm1146, %v5885, 0.0
      %v5972 = vsel %vm1145, %v5887, 0.0
      %v5973 = vsel %vm1146, %v5889, 0.0
      %v5974 = vsel %vm1145, %v5891, 0.0
      %v5975 = vsel %vm1146, %v5893, 0.0
      %v5976 = vsel %vm1145, %v5895, 0.0
      %v5977 = vsel %vm1146, %v5897, 0.0
      %v5978 = vsel %vm1145, %v5899, 0.0
      %v5979 = vsel %vm1146, %v5901, 0.0
      %v5980 = vsel %vm1145, %v5903, 0.0
      %v5981 = vsel %vm1146, %v5905, 0.0
      %v5982 = vsel %vm1145, %v5907, 0.0
      %v5983 = vsel %vm1146, %v5909, 0.0
      %v5984 = vsel %vm1145, %v5911, 0.0
      %v5985 = vsel %vm1146, %v5913, 0.0
      %v5986 = vsel %vm1145, %v5915, 0.0
      %v5987 = vsel %vm1146, %v5917, 0.0
      %v5988 = vsel %vm1145, %v5919, 0.0
      %v5989 = vsel %vm1146, %v5921, 0.0
      %v5990 = vsel %vm1145, %v5923, 0.0
      %v5991 = vsel %vm1146, %v5925, 0.0
      %v5992 = vsel %vm1145, %v5927, 0.0
      %v5993 = vsel %vm1146, %v5929, 0.0
      %v5994 = vsel %vm1145, %v5931, 0.0
      %v5995 = vsel %vm1146, %v5933, 0.0
      %v5996 = vsel %vm1145, %v5935, 0.0
      %v5997 = vsel %vm1146, %v5937, 0.0
      %v5999 = vrot.slane %v5816, 1
      %v6000 = vsel %vm1276, %v1277, %v5999
      %v6001 = vrot.slane %v5817, 1
      %v6002 = vsel %vm1276, %v5999, %v6001
      %v6003 = vrot.slane %v5818, 1
      %v6004 = vsel %vm1276, %v6001, %v6003
      %v6005 = vrot.slane %v5819, 1
      %v6006 = vsel %vm1276, %v6003, %v6005
      %v6007 = vrot.slane %v5820, 1
      %v6008 = vsel %vm1276, %v6005, %v6007
      %v6009 = vrot.slane %v5821, 1
      %v6010 = vsel %vm1276, %v6007, %v6009
      %v6011 = vrot.slane %v5822, 1
      %v6012 = vsel %vm1276, %v6009, %v6011
      %v6013 = vrot.slane %v5823, 1
      %v6014 = vsel %vm1276, %v6011, %v6013
      %v6015 = vrot.slane %v5824, 1
      %v6016 = vsel %vm1276, %v6013, %v6015
      %v6017 = vrot.slane %v5825, 1
      %v6018 = vsel %vm1276, %v6015, %v6017
      %v6019 = vrot.slane %v5826, 1
      %v6020 = vsel %vm1276, %v6017, %v6019
      %v6021 = vrot.slane %v5827, 1
      %v6022 = vsel %vm1276, %v6019, %v6021
      %v6023 = vrot.slane %v5828, 1
      %v6024 = vsel %vm1276, %v6021, %v6023
      %v6025 = vrot.slane %v5829, 1
      %v6026 = vsel %vm1276, %v6023, %v6025
      %v6027 = vrot.slane %v5830, 1
      %v6028 = vsel %vm1276, %v6025, %v6027
      %v6029 = vrot.slane %v5831, 1
      %v6030 = vsel %vm1276, %v6027, %v6029
      %v6031 = vrot.slane %v5832, 1
      %v6032 = vsel %vm1276, %v6029, %v6031
      %v6033 = vrot.slane %v5833, 1
      %v6034 = vsel %vm1276, %v6031, %v6033
      %v6035 = vrot.slane %v5834, 1
      %v6036 = vsel %vm1276, %v6033, %v6035
      %v6037 = vrot.slane %v5835, 1
      %v6038 = vsel %vm1276, %v6035, %v6037
      %v6039 = vrot.slane %v5836, 1
      %v6040 = vsel %vm1276, %v6037, %v6039
      %v6041 = vrot.slane %v5837, 1
      %v6042 = vsel %vm1276, %v6039, %v6041
      %v6043 = vrot.slane %v5838, 1
      %v6044 = vsel %vm1276, %v6041, %v6043
      %v6045 = vrot.slane %v5839, 1
      %v6046 = vsel %vm1276, %v6043, %v6045
      %v6047 = vrot.slane %v5840, 1
      %v6048 = vsel %vm1276, %v6045, %v6047
      %v6049 = vrot.slane %v5841, 1
      %v6050 = vsel %vm1276, %v6047, %v6049
      %v6051 = vrot.slane %v5842, 1
      %v6052 = vsel %vm1276, %v6049, %v6051
      %v6053 = vrot.slane %v5843, 1
      %v6054 = vsel %vm1276, %v6051, %v6053
      %v6055 = vrot.slane %v5844, 1
      %v6056 = vsel %vm1276, %v6053, %v6055
      %v6057 = vrot.slane %v5845, 1
      %v6058 = vsel %vm1276, %v6055, %v6057
      %v6059 = vrot.slane %v5846, 1
      %v6060 = vsel %vm1276, %v6057, %v6059
      %v6092 = vsel %vm1148, %v6000, 0.0
      %v6093 = vsel %vm1147, %v6002, 0.0
      %v6094 = vsel %vm1148, %v6004, 0.0
      %v6095 = vsel %vm1147, %v6006, 0.0
      %v6096 = vsel %vm1148, %v6008, 0.0
      %v6097 = vsel %vm1147, %v6010, 0.0
      %v6098 = vsel %vm1148, %v6012, 0.0
      %v6099 = vsel %vm1147, %v6014, 0.0
      %v6100 = vsel %vm1148, %v6016, 0.0
      %v6101 = vsel %vm1147, %v6018, 0.0
      %v6102 = vsel %vm1148, %v6020, 0.0
      %v6103 = vsel %vm1147, %v6022, 0.0
      %v6104 = vsel %vm1148, %v6024, 0.0
      %v6105 = vsel %vm1147, %v6026, 0.0
      %v6106 = vsel %vm1148, %v6028, 0.0
      %v6107 = vsel %vm1147, %v6030, 0.0
      %v6108 = vsel %vm1148, %v6032, 0.0
      %v6109 = vsel %vm1147, %v6034, 0.0
      %v6110 = vsel %vm1148, %v6036, 0.0
      %v6111 = vsel %vm1147, %v6038, 0.0
      %v6112 = vsel %vm1148, %v6040, 0.0
      %v6113 = vsel %vm1147, %v6042, 0.0
      %v6114 = vsel %vm1148, %v6044, 0.0
      %v6115 = vsel %vm1147, %v6046, 0.0
      %v6116 = vsel %vm1148, %v6048, 0.0
      %v6117 = vsel %vm1147, %v6050, 0.0
      %v6118 = vsel %vm1148, %v6052, 0.0
      %v6119 = vsel %vm1147, %v6054, 0.0
      %v6120 = vsel %vm1148, %v6056, 0.0
      %v6121 = vsel %vm1147, %v6058, 0.0
      %v6122 = vsel %vm1148, %v6060, 0.0
      %v6124 = vrot.slane %v5846, 7
      %v6125 = vsel %vm1150, %v5936, %v6124
      %v6126 = vrot.slane %v5847, 7
      %v6127 = vsel %vm1150, %v6124, %v6126
      %v6130 = vsel %vm1145, %v6125, 0.0
      %v6131 = vsel %vm1146, %v6127, 0.0
      %v6132 = vrot.slane %v5847, 1
      %v6133 = vsel %vm1276, %v6059, %v6132
      %v6134 = vsel %vm1276, %v6132, %v1277
      %v6137 = vsel %vm1147, %v6133, 0.0
      %v6138 = vsel %vm1148, %v6134, 0.0
      %v6139 = vsel %vm1150, %v6126, %v1151
      %v6141 = vsel %vm1145, %v6139, 0.0
      %v6142 = vpack.c.bf16 %v5969, %v5968
      %v6143 = vpack.c.bf16 %v5971, %v5970
      %v6144 = vpack.c.bf16 %v5973, %v5972
      %v6145 = vpack.c.bf16 %v5975, %v5974
      %v6146 = vpack.c.bf16 %v5977, %v5976
      %v6147 = vpack.c.bf16 %v5979, %v5978
      %v6148 = vpack.c.bf16 %v5981, %v5980
      %v6149 = vpack.c.bf16 %v5983, %v5982
      %v6150 = vpack.c.bf16 %v5985, %v5984
      %v6151 = vpack.c.bf16 %v5987, %v5986
      %v6152 = vpack.c.bf16 %v5989, %v5988
      %v6153 = vpack.c.bf16 %v5991, %v5990
      %v6154 = vpack.c.bf16 %v5993, %v5992
      %v6155 = vpack.c.bf16 %v5995, %v5994
      %v6156 = vpack.c.bf16 %v5997, %v5996
      %v6157 = vld [vmem:[%s10] sm:$0xf]
      %v6158 = vpack.c.bf16 %v5817, %v5816
      %v6159 = vpack.c.bf16 %v5819, %v5818
      %v6160 = vpack.c.bf16 %v5821, %v5820
      %v6161 = vpack.c.bf16 %v5823, %v5822
      %v6162 = vpack.c.bf16 %v5825, %v5824
      %v6163 = vpack.c.bf16 %v5827, %v5826
      %v6164 = vpack.c.bf16 %v5829, %v5828
      %v6165 = vpack.c.bf16 %v5831, %v5830
      %v6166 = vpack.c.bf16 %v5833, %v5832
      %v6167 = vpack.c.bf16 %v5835, %v5834
      %v6168 = vpack.c.bf16 %v5837, %v5836
      %v6169 = vpack.c.bf16 %v5839, %v5838
      %v6170 = vpack.c.bf16 %v5841, %v5840
      %v6171 = vpack.c.bf16 %v5843, %v5842
      %v6172 = vpack.c.bf16 %v5845, %v5844
      %s6173 = scalar_lea.vmem %s10, 4
      %v6174 = vld [vmem:[%s6173] sm:$0xf]
      %vm6175 = vcmask 64512
      %v6176 = vsel %vm6175, %v1441, 0
      %v6179 = vsel %vm6175, %v6158, 0
      %v6182 = vsel %vm6175, %v6159, 0
      %v6185 = vsel %vm6175, %v6160, 0
      %v6188 = vsel %vm6175, %v6161, 0
      %v6191 = vsel %vm6175, %v6162, 0
      %v6194 = vsel %vm6175, %v6163, 0
      %v6197 = vsel %vm6175, %v6164, 0
      %v6200 = vsel %vm6175, %v6165, 0
      %v6203 = vsel %vm6175, %v6166, 0
      %v6206 = vsel %vm6175, %v6167, 0
      %v6209 = vsel %vm6175, %v6168, 0
      %v6212 = vsel %vm6175, %v6169, 0
      %v6215 = vsel %vm6175, %v6170, 0
      %v6218 = vsel %vm6175, %v6171, 0
      %v6221 = vsel %vm6175, %v6172, 0
      %vm6223 = vcmask 1043456
      %v6225 = vsel %vm6223, %v6174, 0
      %6227 = vmatprep.subr.bf16.mxu0 0
      %6228 = vmatpush1.bf16.msra.mxu0 0
      %6229 = vmatprep.subr.bf16.mxu0 0
      %6230 = vmatpush1.bf16.msra.mxu0 0
      %6231 = vmatprep.subr.bf16.mxu0 0
      %6232 = vmatpush1.bf16.msra.mxu0 0
      %6233 = vmatprep.subr.bf16.mxu0 0
      %6234 = vmatpush1.bf16.msra.mxu0 0
      %6235 = vmatprep.subr.bf16.mxu0 0
      %6236 = vmatpush1.bf16.msra.mxu0 0
      %6237 = vmatprep.subr.bf16.mxu0 0
      %6238 = vmatpush1.bf16.msra.mxu0 0
      %6239 = vmatprep.subr.bf16.mxu0 0
      %6240 = vmatpush1.bf16.msra.mxu0 0
      %6241 = vmatprep.subr.bf16.mxu0 0
      %6242 = vmatpush1.bf16.msra.mxu0 %v6225
      %6243 = vmatprep.subr.bf16.mxu0 0
      %6244 = vmatpush2.bf16.msra.mxu0 0
      %6245 = vmatprep.subr.bf16.mxu0 0
      %6246 = vmatpush2.bf16.msra.mxu0 0
      %6247 = vmatprep.subr.bf16.mxu0 0
      %6248 = vmatpush2.bf16.msra.mxu0 0
      %6249 = vmatprep.subr.bf16.mxu0 0
      %6250 = vmatpush2.bf16.msra.mxu0 0
      %6251 = vmatprep.subr.bf16.mxu0 0
      %6252 = vmatpush2.bf16.msra.mxu0 0
      %6253 = vmatprep.subr.bf16.mxu0 0
      %6254 = vmatpush2.bf16.msra.mxu0 0
      %6255 = vmatprep.subr.bf16.mxu0 0
      %6256 = vmatpush2.bf16.msra.mxu0 0
      %6257 = vmatprep.subr.bf16.mxu0 0
      %6258 = vmatpush2.bf16.msra.mxu0 0
      %6259 = vmatprep.mubr.bf16.mxu0 0
      %6260 = vmatmul.mubr.bf16.gmra.mxu0 %v6176
      %v6261 = vpop.f32.mrf.mxu0
      %v6262 = vadd.f32 0.0, %v6261
      %v6263 = vpop.f32.mrf.mxu0
      %v6264 = vpop.f32.mrf.mxu0
      %v6265 = vadd.f32 0.0, %v6264
      %v6266 = vpop.f32.mrf.mxu0
      %6267 = vmatprep.mubr.bf16.mxu0 0
      %6268 = vmatmul.mubr.bf16.gmra.mxu0 %v6179
      %v6269 = vpop.f32.mrf.mxu0
      %v6270 = vadd.f32 0.0, %v6269
      %v6271 = vpop.f32.mrf.mxu0
      %v6272 = vpop.f32.mrf.mxu0
      %v6273 = vadd.f32 0.0, %v6272
      %v6274 = vpop.f32.mrf.mxu0
      %6275 = vmatprep.mubr.bf16.mxu0 0
      %6276 = vmatmul.mubr.bf16.gmra.mxu0 %v6182
      %v6277 = vpop.f32.mrf.mxu0
      %v6278 = vadd.f32 0.0, %v6277
      %v6279 = vpop.f32.mrf.mxu0
      %v6280 = vpop.f32.mrf.mxu0
      %v6281 = vadd.f32 0.0, %v6280
      %v6282 = vpop.f32.mrf.mxu0
      %6283 = vmatprep.mubr.bf16.mxu0 0
      %6284 = vmatmul.mubr.bf16.gmra.mxu0 %v6185
      %v6285 = vpop.f32.mrf.mxu0
      %v6286 = vadd.f32 0.0, %v6285
      %v6287 = vpop.f32.mrf.mxu0
      %v6288 = vpop.f32.mrf.mxu0
      %v6289 = vadd.f32 0.0, %v6288
      %v6290 = vpop.f32.mrf.mxu0
      %6291 = vmatprep.mubr.bf16.mxu0 0
      %6292 = vmatmul.mubr.bf16.gmra.mxu0 %v6188
      %v6293 = vpop.f32.mrf.mxu0
      %v6294 = vadd.f32 0.0, %v6293
      %v6295 = vpop.f32.mrf.mxu0
      %v6296 = vpop.f32.mrf.mxu0
      %v6297 = vadd.f32 0.0, %v6296
      %v6298 = vpop.f32.mrf.mxu0
      %6299 = vmatprep.mubr.bf16.mxu0 0
      %6300 = vmatmul.mubr.bf16.gmra.mxu0 %v6191
      %v6301 = vpop.f32.mrf.mxu0
      %v6302 = vadd.f32 0.0, %v6301
      %v6303 = vpop.f32.mrf.mxu0
      %v6304 = vpop.f32.mrf.mxu0
      %v6305 = vadd.f32 0.0, %v6304
      %v6306 = vpop.f32.mrf.mxu0
      %6307 = vmatprep.mubr.bf16.mxu0 0
      %6308 = vmatmul.mubr.bf16.gmra.mxu0 %v6194
      %v6309 = vpop.f32.mrf.mxu0
      %v6310 = vadd.f32 0.0, %v6309
      %v6311 = vpop.f32.mrf.mxu0
      %v6312 = vpop.f32.mrf.mxu0
      %v6313 = vadd.f32 0.0, %v6312
      %v6314 = vpop.f32.mrf.mxu0
      %6315 = vmatprep.mubr.bf16.mxu0 0
      %6316 = vmatmul.mubr.bf16.gmra.mxu0 %v6197
      %v6317 = vpop.f32.mrf.mxu0
      %v6318 = vadd.f32 0.0, %v6317
      %v6319 = vpop.f32.mrf.mxu0
      %v6320 = vpop.f32.mrf.mxu0
      %v6321 = vadd.f32 0.0, %v6320
      %v6322 = vpop.f32.mrf.mxu0
      %6323 = vmatprep.mubr.bf16.mxu0 0
      %6324 = vmatmul.mubr.bf16.gmra.mxu0 %v6200
      %v6325 = vpop.f32.mrf.mxu0
      %v6326 = vadd.f32 0.0, %v6325
      %v6327 = vpop.f32.mrf.mxu0
      %v6328 = vpop.f32.mrf.mxu0
      %v6329 = vadd.f32 0.0, %v6328
      %v6330 = vpop.f32.mrf.mxu0
      %6331 = vmatprep.mubr.bf16.mxu0 0
      %6332 = vmatmul.mubr.bf16.gmra.mxu0 %v6203
      %v6333 = vpop.f32.mrf.mxu0
      %v6334 = vadd.f32 0.0, %v6333
      %v6335 = vpop.f32.mrf.mxu0
      %v6336 = vpop.f32.mrf.mxu0
      %v6337 = vadd.f32 0.0, %v6336
      %v6338 = vpop.f32.mrf.mxu0
      %6339 = vmatprep.mubr.bf16.mxu0 0
      %6340 = vmatmul.mubr.bf16.gmra.mxu0 %v6206
      %v6341 = vpop.f32.mrf.mxu0
      %v6342 = vadd.f32 0.0, %v6341
      %v6343 = vpop.f32.mrf.mxu0
      %v6344 = vpop.f32.mrf.mxu0
      %v6345 = vadd.f32 0.0, %v6344
      %v6346 = vpop.f32.mrf.mxu0
      %6347 = vmatprep.mubr.bf16.mxu0 0
      %6348 = vmatmul.mubr.bf16.gmra.mxu0 %v6209
      %v6349 = vpop.f32.mrf.mxu0
      %v6350 = vadd.f32 0.0, %v6349
      %v6351 = vpop.f32.mrf.mxu0
      %v6352 = vpop.f32.mrf.mxu0
      %v6353 = vadd.f32 0.0, %v6352
      %v6354 = vpop.f32.mrf.mxu0
      %6355 = vmatprep.mubr.bf16.mxu0 0
      %6356 = vmatmul.mubr.bf16.gmra.mxu0 %v6212
      %v6357 = vpop.f32.mrf.mxu0
      %v6358 = vadd.f32 0.0, %v6357
      %v6359 = vpop.f32.mrf.mxu0
      %v6360 = vpop.f32.mrf.mxu0
      %v6361 = vadd.f32 0.0, %v6360
      %v6362 = vpop.f32.mrf.mxu0
      %6363 = vmatprep.mubr.bf16.mxu0 0
      %6364 = vmatmul.mubr.bf16.gmra.mxu0 %v6215
      %v6365 = vpop.f32.mrf.mxu0
      %v6366 = vadd.f32 0.0, %v6365
      %v6367 = vpop.f32.mrf.mxu0
      %v6368 = vpop.f32.mrf.mxu0
      %v6369 = vadd.f32 0.0, %v6368
      %v6370 = vpop.f32.mrf.mxu0
      %6371 = vmatprep.mubr.bf16.mxu0 0
      %6372 = vmatmul.mubr.bf16.gmra.mxu0 %v6218
      %v6373 = vpop.f32.mrf.mxu0
      %v6374 = vadd.f32 0.0, %v6373
      %v6375 = vpop.f32.mrf.mxu0
      %v6376 = vpop.f32.mrf.mxu0
      %v6377 = vadd.f32 0.0, %v6376
      %v6378 = vpop.f32.mrf.mxu0
      %6379 = vmatprep.mubr.bf16.mxu0 0
      %6380 = vmatmul.mubr.bf16.gmra.mxu0 %v6221
      %v6381 = vpop.f32.mrf.mxu0
      %v6382 = vadd.f32 0.0, %v6381
      %v6383 = vpop.f32.mrf.mxu0
      %v6384 = vpop.f32.mrf.mxu0
      %v6385 = vadd.f32 0.0, %v6384
      %v6386 = vpop.f32.mrf.mxu0
      %6387 = vdwg.mxu0
      %v6388 = vsel %vm6175, %v1424, 0
      %v6391 = vsel %vm6175, %v6142, 0
      %v6394 = vsel %vm6175, %v6143, 0
      %v6397 = vsel %vm6175, %v6144, 0
      %v6400 = vsel %vm6175, %v6145, 0
      %v6403 = vsel %vm6175, %v6146, 0
      %v6406 = vsel %vm6175, %v6147, 0
      %v6409 = vsel %vm6175, %v6148, 0
      %v6412 = vsel %vm6175, %v6149, 0
      %v6415 = vsel %vm6175, %v6150, 0
      %v6418 = vsel %vm6175, %v6151, 0
      %v6421 = vsel %vm6175, %v6152, 0
      %v6424 = vsel %vm6175, %v6153, 0
      %v6427 = vsel %vm6175, %v6154, 0
      %v6430 = vsel %vm6175, %v6155, 0
      %v6433 = vsel %vm6175, %v6156, 0
      %v6436 = vsel %vm6223, %v6157, 0
      %6438 = vmatprep.subr.bf16.mxu0 0
      %6439 = vmatpush1.bf16.msra.mxu0 0
      %6440 = vmatprep.subr.bf16.mxu0 0
      %6441 = vmatpush1.bf16.msra.mxu0 0
      %6442 = vmatprep.subr.bf16.mxu0 0
      %6443 = vmatpush1.bf16.msra.mxu0 0
      %6444 = vmatprep.subr.bf16.mxu0 0
      %6445 = vmatpush1.bf16.msra.mxu0 0
      %6446 = vmatprep.subr.bf16.mxu0 0
      %6447 = vmatpush1.bf16.msra.mxu0 0
      %6448 = vmatprep.subr.bf16.mxu0 0
      %6449 = vmatpush1.bf16.msra.mxu0 0
      %6450 = vmatprep.subr.bf16.mxu0 0
      %6451 = vmatpush1.bf16.msra.mxu0 0
      %6452 = vmatprep.subr.bf16.mxu0 0
      %6453 = vmatpush1.bf16.msra.mxu0 %v6436
      %6454 = vmatprep.subr.bf16.mxu0 0
      %6455 = vmatpush2.bf16.msra.mxu0 0
      %6456 = vmatprep.subr.bf16.mxu0 0
      %6457 = vmatpush2.bf16.msra.mxu0 0
      %6458 = vmatprep.subr.bf16.mxu0 0
      %6459 = vmatpush2.bf16.msra.mxu0 0
      %6460 = vmatprep.subr.bf16.mxu0 0
      %6461 = vmatpush2.bf16.msra.mxu0 0
      %6462 = vmatprep.subr.bf16.mxu0 0
      %6463 = vmatpush2.bf16.msra.mxu0 0
      %6464 = vmatprep.subr.bf16.mxu0 0
      %6465 = vmatpush2.bf16.msra.mxu0 0
      %6466 = vmatprep.subr.bf16.mxu0 0
      %6467 = vmatpush2.bf16.msra.mxu0 0
      %6468 = vmatprep.subr.bf16.mxu0 0
      %6469 = vmatpush2.bf16.msra.mxu0 0
      %6470 = vmatprep.mubr.bf16.mxu0 0
      %6471 = vmatmul.mubr.bf16.gmra.mxu0 %v6388
      %v6472 = vpop.f32.mrf.mxu0
      %v6473 = vadd.f32 %v6262, %v6472
      %v6474 = vpop.f32.mrf.mxu0
      %v6475 = vpop.f32.mrf.mxu0
      %v6476 = vadd.f32 %v6265, %v6475
      %v6477 = vpop.f32.mrf.mxu0
      %6478 = vmatprep.mubr.bf16.mxu0 0
      %6479 = vmatmul.mubr.bf16.gmra.mxu0 %v6391
      %v6480 = vpop.f32.mrf.mxu0
      %v6481 = vadd.f32 %v6270, %v6480
      %v6482 = vpop.f32.mrf.mxu0
      %v6483 = vpop.f32.mrf.mxu0
      %v6484 = vadd.f32 %v6273, %v6483
      %v6485 = vpop.f32.mrf.mxu0
      %6486 = vmatprep.mubr.bf16.mxu0 0
      %6487 = vmatmul.mubr.bf16.gmra.mxu0 %v6394
      %v6488 = vpop.f32.mrf.mxu0
      %v6489 = vadd.f32 %v6278, %v6488
      %v6490 = vpop.f32.mrf.mxu0
      %v6491 = vpop.f32.mrf.mxu0
      %v6492 = vadd.f32 %v6281, %v6491
      %v6493 = vpop.f32.mrf.mxu0
      %6494 = vmatprep.mubr.bf16.mxu0 0
      %6495 = vmatmul.mubr.bf16.gmra.mxu0 %v6397
      %v6496 = vpop.f32.mrf.mxu0
      %v6497 = vadd.f32 %v6286, %v6496
      %v6498 = vpop.f32.mrf.mxu0
      %v6499 = vpop.f32.mrf.mxu0
      %v6500 = vadd.f32 %v6289, %v6499
      %v6501 = vpop.f32.mrf.mxu0
      %6502 = vmatprep.mubr.bf16.mxu0 0
      %6503 = vmatmul.mubr.bf16.gmra.mxu0 %v6400
      %v6504 = vpop.f32.mrf.mxu0
      %v6505 = vadd.f32 %v6294, %v6504
      %v6506 = vpop.f32.mrf.mxu0
      %v6507 = vpop.f32.mrf.mxu0
      %v6508 = vadd.f32 %v6297, %v6507
      %v6509 = vpop.f32.mrf.mxu0
      %6510 = vmatprep.mubr.bf16.mxu0 0
      %6511 = vmatmul.mubr.bf16.gmra.mxu0 %v6403
      %v6512 = vpop.f32.mrf.mxu0
      %v6513 = vadd.f32 %v6302, %v6512
      %v6514 = vpop.f32.mrf.mxu0
      %v6515 = vpop.f32.mrf.mxu0
      %v6516 = vadd.f32 %v6305, %v6515
      %v6517 = vpop.f32.mrf.mxu0
      %6518 = vmatprep.mubr.bf16.mxu0 0
      %6519 = vmatmul.mubr.bf16.gmra.mxu0 %v6406
      %v6520 = vpop.f32.mrf.mxu0
      %v6521 = vadd.f32 %v6310, %v6520
      %v6522 = vpop.f32.mrf.mxu0
      %v6523 = vpop.f32.mrf.mxu0
      %v6524 = vadd.f32 %v6313, %v6523
      %v6525 = vpop.f32.mrf.mxu0
      %6526 = vmatprep.mubr.bf16.mxu0 0
      %6527 = vmatmul.mubr.bf16.gmra.mxu0 %v6409
      %v6528 = vpop.f32.mrf.mxu0
      %v6529 = vadd.f32 %v6318, %v6528
      %v6530 = vpop.f32.mrf.mxu0
      %v6531 = vpop.f32.mrf.mxu0
      %v6532 = vadd.f32 %v6321, %v6531
      %v6533 = vpop.f32.mrf.mxu0
      %6534 = vmatprep.mubr.bf16.mxu0 0
      %6535 = vmatmul.mubr.bf16.gmra.mxu0 %v6412
      %v6536 = vpop.f32.mrf.mxu0
      %v6537 = vadd.f32 %v6326, %v6536
      %v6538 = vpop.f32.mrf.mxu0
      %v6539 = vpop.f32.mrf.mxu0
      %v6540 = vadd.f32 %v6329, %v6539
      %v6541 = vpop.f32.mrf.mxu0
      %6542 = vmatprep.mubr.bf16.mxu0 0
      %6543 = vmatmul.mubr.bf16.gmra.mxu0 %v6415
      %v6544 = vpop.f32.mrf.mxu0
      %v6545 = vadd.f32 %v6334, %v6544
      %v6546 = vpop.f32.mrf.mxu0
      %v6547 = vpop.f32.mrf.mxu0
      %v6548 = vadd.f32 %v6337, %v6547
      %v6549 = vpop.f32.mrf.mxu0
      %6550 = vmatprep.mubr.bf16.mxu0 0
      %6551 = vmatmul.mubr.bf16.gmra.mxu0 %v6418
      %v6552 = vpop.f32.mrf.mxu0
      %v6553 = vadd.f32 %v6342, %v6552
      %v6554 = vpop.f32.mrf.mxu0
      %v6555 = vpop.f32.mrf.mxu0
      %v6556 = vadd.f32 %v6345, %v6555
      %v6557 = vpop.f32.mrf.mxu0
      %6558 = vmatprep.mubr.bf16.mxu0 0
      %6559 = vmatmul.mubr.bf16.gmra.mxu0 %v6421
      %v6560 = vpop.f32.mrf.mxu0
      %v6561 = vadd.f32 %v6350, %v6560
      %v6562 = vpop.f32.mrf.mxu0
      %v6563 = vpop.f32.mrf.mxu0
      %v6564 = vadd.f32 %v6353, %v6563
      %v6565 = vpop.f32.mrf.mxu0
      %6566 = vmatprep.mubr.bf16.mxu0 0
      %6567 = vmatmul.mubr.bf16.gmra.mxu0 %v6424
      %v6568 = vpop.f32.mrf.mxu0
      %v6569 = vadd.f32 %v6358, %v6568
      %v6570 = vpop.f32.mrf.mxu0
      %v6571 = vpop.f32.mrf.mxu0
      %v6572 = vadd.f32 %v6361, %v6571
      %v6573 = vpop.f32.mrf.mxu0
      %6574 = vmatprep.mubr.bf16.mxu0 0
      %6575 = vmatmul.mubr.bf16.gmra.mxu0 %v6427
      %v6576 = vpop.f32.mrf.mxu0
      %v6577 = vadd.f32 %v6366, %v6576
      %v6578 = vpop.f32.mrf.mxu0
      %v6579 = vpop.f32.mrf.mxu0
      %v6580 = vadd.f32 %v6369, %v6579
      %v6581 = vpop.f32.mrf.mxu0
      %6582 = vmatprep.mubr.bf16.mxu0 0
      %6583 = vmatmul.mubr.bf16.gmra.mxu0 %v6430
      %v6584 = vpop.f32.mrf.mxu0
      %v6585 = vadd.f32 %v6374, %v6584
      %v6586 = vpop.f32.mrf.mxu0
      %v6587 = vpop.f32.mrf.mxu0
      %v6588 = vadd.f32 %v6377, %v6587
      %v6589 = vpop.f32.mrf.mxu0
      %6590 = vmatprep.mubr.bf16.mxu0 0
      %6591 = vmatmul.mubr.bf16.gmra.mxu0 %v6433
      %v6592 = vpop.f32.mrf.mxu0
      %v6593 = vadd.f32 %v6382, %v6592
      %v6594 = vpop.f32.mrf.mxu0
      %v6595 = vpop.f32.mrf.mxu0
      %v6596 = vadd.f32 %v6385, %v6595
      %v6597 = vpop.f32.mrf.mxu0
      %6598 = vdwg.mxu0
      %v6599 = vpack.c.bf16 %v6092, %v1373
      %v6600 = vpack.c.bf16 %v6094, %v6093
      %v6601 = vpack.c.bf16 %v6096, %v6095
      %v6602 = vpack.c.bf16 %v6098, %v6097
      %v6603 = vpack.c.bf16 %v6100, %v6099
      %v6604 = vpack.c.bf16 %v6102, %v6101
      %v6605 = vpack.c.bf16 %v6104, %v6103
      %v6606 = vpack.c.bf16 %v6106, %v6105
      %v6607 = vpack.c.bf16 %v6108, %v6107
      %v6608 = vpack.c.bf16 %v6110, %v6109
      %v6609 = vpack.c.bf16 %v6112, %v6111
      %v6610 = vpack.c.bf16 %v6114, %v6113
      %v6611 = vpack.c.bf16 %v6116, %v6115
      %v6612 = vpack.c.bf16 %v6118, %v6117
      %v6613 = vpack.c.bf16 %v6120, %v6119
      %v6614 = vpack.c.bf16 %v6122, %v6121
      %s6615 = scalar_lea.vmem %s10, 8
      %v6616 = vld [vmem:[%s6615] sm:$0xf]
      %v6618 = vsel %vm6175, %v6599, 0
      %v6621 = vsel %vm6175, %v6600, 0
      %v6624 = vsel %vm6175, %v6601, 0
      %v6627 = vsel %vm6175, %v6602, 0
      %v6630 = vsel %vm6175, %v6603, 0
      %v6633 = vsel %vm6175, %v6604, 0
      %v6636 = vsel %vm6175, %v6605, 0
      %v6639 = vsel %vm6175, %v6606, 0
      %v6642 = vsel %vm6175, %v6607, 0
      %v6645 = vsel %vm6175, %v6608, 0
      %v6648 = vsel %vm6175, %v6609, 0
      %v6651 = vsel %vm6175, %v6610, 0
      %v6654 = vsel %vm6175, %v6611, 0
      %v6657 = vsel %vm6175, %v6612, 0
      %v6660 = vsel %vm6175, %v6613, 0
      %v6663 = vsel %vm6175, %v6614, 0
      %v6666 = vsel %vm6223, %v6616, 0
      %6668 = vmatprep.subr.bf16.mxu0 0
      %6669 = vmatpush1.bf16.msra.mxu0 0
      %6670 = vmatprep.subr.bf16.mxu0 0
      %6671 = vmatpush1.bf16.msra.mxu0 0
      %6672 = vmatprep.subr.bf16.mxu0 0
      %6673 = vmatpush1.bf16.msra.mxu0 0
      %6674 = vmatprep.subr.bf16.mxu0 0
      %6675 = vmatpush1.bf16.msra.mxu0 0
      %6676 = vmatprep.subr.bf16.mxu0 0
      %6677 = vmatpush1.bf16.msra.mxu0 0
      %6678 = vmatprep.subr.bf16.mxu0 0
      %6679 = vmatpush1.bf16.msra.mxu0 0
      %6680 = vmatprep.subr.bf16.mxu0 0
      %6681 = vmatpush1.bf16.msra.mxu0 0
      %6682 = vmatprep.subr.bf16.mxu0 0
      %6683 = vmatpush1.bf16.msra.mxu0 %v6666
      %6684 = vmatprep.subr.bf16.mxu0 0
      %6685 = vmatpush2.bf16.msra.mxu0 0
      %6686 = vmatprep.subr.bf16.mxu0 0
      %6687 = vmatpush2.bf16.msra.mxu0 0
      %6688 = vmatprep.subr.bf16.mxu0 0
      %6689 = vmatpush2.bf16.msra.mxu0 0
      %6690 = vmatprep.subr.bf16.mxu0 0
      %6691 = vmatpush2.bf16.msra.mxu0 0
      %6692 = vmatprep.subr.bf16.mxu0 0
      %6693 = vmatpush2.bf16.msra.mxu0 0
      %6694 = vmatprep.subr.bf16.mxu0 0
      %6695 = vmatpush2.bf16.msra.mxu0 0
      %6696 = vmatprep.subr.bf16.mxu0 0
      %6697 = vmatpush2.bf16.msra.mxu0 0
      %6698 = vmatprep.subr.bf16.mxu0 0
      %6699 = vmatpush2.bf16.msra.mxu0 0
      %6700 = vmatprep.mubr.bf16.mxu0 0
      %6701 = vmatmul.mubr.bf16.gmra.mxu0 %v6618
      %v6702 = vpop.f32.mrf.mxu0
      %v6703 = vadd.f32 0.0, %v6702
      %v6704 = vpop.f32.mrf.mxu0
      %v6705 = vpop.f32.mrf.mxu0
      %v6706 = vadd.f32 0.0, %v6705
      %v6707 = vpop.f32.mrf.mxu0
      %6708 = vmatprep.mubr.bf16.mxu0 0
      %6709 = vmatmul.mubr.bf16.gmra.mxu0 %v6621
      %v6710 = vpop.f32.mrf.mxu0
      %v6711 = vadd.f32 0.0, %v6710
      %v6712 = vpop.f32.mrf.mxu0
      %v6713 = vpop.f32.mrf.mxu0
      %v6714 = vadd.f32 0.0, %v6713
      %v6715 = vpop.f32.mrf.mxu0
      %6716 = vmatprep.mubr.bf16.mxu0 0
      %6717 = vmatmul.mubr.bf16.gmra.mxu0 %v6624
      %v6718 = vpop.f32.mrf.mxu0
      %v6719 = vadd.f32 0.0, %v6718
      %v6720 = vpop.f32.mrf.mxu0
      %v6721 = vpop.f32.mrf.mxu0
      %v6722 = vadd.f32 0.0, %v6721
      %v6723 = vpop.f32.mrf.mxu0
      %6724 = vmatprep.mubr.bf16.mxu0 0
      %6725 = vmatmul.mubr.bf16.gmra.mxu0 %v6627
      %v6726 = vpop.f32.mrf.mxu0
      %v6727 = vadd.f32 0.0, %v6726
      %v6728 = vpop.f32.mrf.mxu0
      %v6729 = vpop.f32.mrf.mxu0
      %v6730 = vadd.f32 0.0, %v6729
      %v6731 = vpop.f32.mrf.mxu0
      %6732 = vmatprep.mubr.bf16.mxu0 0
      %6733 = vmatmul.mubr.bf16.gmra.mxu0 %v6630
      %v6734 = vpop.f32.mrf.mxu0
      %v6735 = vadd.f32 0.0, %v6734
      %v6736 = vpop.f32.mrf.mxu0
      %v6737 = vpop.f32.mrf.mxu0
      %v6738 = vadd.f32 0.0, %v6737
      %v6739 = vpop.f32.mrf.mxu0
      %6740 = vmatprep.mubr.bf16.mxu0 0
      %6741 = vmatmul.mubr.bf16.gmra.mxu0 %v6633
      %v6742 = vpop.f32.mrf.mxu0
      %v6743 = vadd.f32 0.0, %v6742
      %v6744 = vpop.f32.mrf.mxu0
      %v6745 = vpop.f32.mrf.mxu0
      %v6746 = vadd.f32 0.0, %v6745
      %v6747 = vpop.f32.mrf.mxu0
      %6748 = vmatprep.mubr.bf16.mxu0 0
      %6749 = vmatmul.mubr.bf16.gmra.mxu0 %v6636
      %v6750 = vpop.f32.mrf.mxu0
      %v6751 = vadd.f32 0.0, %v6750
      %v6752 = vpop.f32.mrf.mxu0
      %v6753 = vpop.f32.mrf.mxu0
      %v6754 = vadd.f32 0.0, %v6753
      %v6755 = vpop.f32.mrf.mxu0
      %6756 = vmatprep.mubr.bf16.mxu0 0
      %6757 = vmatmul.mubr.bf16.gmra.mxu0 %v6639
      %v6758 = vpop.f32.mrf.mxu0
      %v6759 = vadd.f32 0.0, %v6758
      %v6760 = vpop.f32.mrf.mxu0
      %v6761 = vpop.f32.mrf.mxu0
      %v6762 = vadd.f32 0.0, %v6761
      %v6763 = vpop.f32.mrf.mxu0
      %6764 = vmatprep.mubr.bf16.mxu0 0
      %6765 = vmatmul.mubr.bf16.gmra.mxu0 %v6642
      %v6766 = vpop.f32.mrf.mxu0
      %v6767 = vadd.f32 0.0, %v6766
      %v6768 = vpop.f32.mrf.mxu0
      %v6769 = vpop.f32.mrf.mxu0
      %v6770 = vadd.f32 0.0, %v6769
      %v6771 = vpop.f32.mrf.mxu0
      %6772 = vmatprep.mubr.bf16.mxu0 0
      %6773 = vmatmul.mubr.bf16.gmra.mxu0 %v6645
      %v6774 = vpop.f32.mrf.mxu0
      %v6775 = vadd.f32 0.0, %v6774
      %v6776 = vpop.f32.mrf.mxu0
      %v6777 = vpop.f32.mrf.mxu0
      %v6778 = vadd.f32 0.0, %v6777
      %v6779 = vpop.f32.mrf.mxu0
      %6780 = vmatprep.mubr.bf16.mxu0 0
      %6781 = vmatmul.mubr.bf16.gmra.mxu0 %v6648
      %v6782 = vpop.f32.mrf.mxu0
      %v6783 = vadd.f32 0.0, %v6782
      %v6784 = vpop.f32.mrf.mxu0
      %v6785 = vpop.f32.mrf.mxu0
      %v6786 = vadd.f32 0.0, %v6785
      %v6787 = vpop.f32.mrf.mxu0
      %6788 = vmatprep.mubr.bf16.mxu0 0
      %6789 = vmatmul.mubr.bf16.gmra.mxu0 %v6651
      %v6790 = vpop.f32.mrf.mxu0
      %v6791 = vadd.f32 0.0, %v6790
      %v6792 = vpop.f32.mrf.mxu0
      %v6793 = vpop.f32.mrf.mxu0
      %v6794 = vadd.f32 0.0, %v6793
      %v6795 = vpop.f32.mrf.mxu0
      %6796 = vmatprep.mubr.bf16.mxu0 0
      %6797 = vmatmul.mubr.bf16.gmra.mxu0 %v6654
      %v6798 = vpop.f32.mrf.mxu0
      %v6799 = vadd.f32 0.0, %v6798
      %v6800 = vpop.f32.mrf.mxu0
      %v6801 = vpop.f32.mrf.mxu0
      %v6802 = vadd.f32 0.0, %v6801
      %v6803 = vpop.f32.mrf.mxu0
      %6804 = vmatprep.mubr.bf16.mxu0 0
      %6805 = vmatmul.mubr.bf16.gmra.mxu0 %v6657
      %v6806 = vpop.f32.mrf.mxu0
      %v6807 = vadd.f32 0.0, %v6806
      %v6808 = vpop.f32.mrf.mxu0
      %v6809 = vpop.f32.mrf.mxu0
      %v6810 = vadd.f32 0.0, %v6809
      %v6811 = vpop.f32.mrf.mxu0
      %6812 = vmatprep.mubr.bf16.mxu0 0
      %6813 = vmatmul.mubr.bf16.gmra.mxu0 %v6660
      %v6814 = vpop.f32.mrf.mxu0
      %v6815 = vadd.f32 0.0, %v6814
      %v6816 = vpop.f32.mrf.mxu0
      %v6817 = vpop.f32.mrf.mxu0
      %v6818 = vadd.f32 0.0, %v6817
      %v6819 = vpop.f32.mrf.mxu0
      %6820 = vmatprep.mubr.bf16.mxu0 0
      %6821 = vmatmul.mubr.bf16.gmra.mxu0 %v6663
      %v6822 = vpop.f32.mrf.mxu0
      %v6823 = vadd.f32 0.0, %v6822
      %v6824 = vpop.f32.mrf.mxu0
      %v6825 = vpop.f32.mrf.mxu0
      %v6826 = vadd.f32 0.0, %v6825
      %v6827 = vpop.f32.mrf.mxu0
      %6828 = vdwg.mxu0
      %v6829 = vadd.f32 %v6473, %v6703
      %v6830 = vadd.f32 %v6476, %v6706
      %v6831 = vadd.f32 %v6481, %v6711
      %v6832 = vadd.f32 %v6484, %v6714
      %v6833 = vadd.f32 %v6489, %v6719
      %v6834 = vadd.f32 %v6492, %v6722
      %v6835 = vadd.f32 %v6497, %v6727
      %v6836 = vadd.f32 %v6500, %v6730
      %v6837 = vadd.f32 %v6505, %v6735
      %v6838 = vadd.f32 %v6508, %v6738
      %v6839 = vadd.f32 %v6513, %v6743
      %v6840 = vadd.f32 %v6516, %v6746
      %v6841 = vadd.f32 %v6521, %v6751
      %v6842 = vadd.f32 %v6524, %v6754
      %v6843 = vadd.f32 %v6529, %v6759
      %v6844 = vadd.f32 %v6532, %v6762
      %v6845 = vadd.f32 %v6537, %v6767
      %v6846 = vadd.f32 %v6540, %v6770
      %v6847 = vadd.f32 %v6545, %v6775
      %v6848 = vadd.f32 %v6548, %v6778
      %v6849 = vadd.f32 %v6553, %v6783
      %v6850 = vadd.f32 %v6556, %v6786
      %v6851 = vadd.f32 %v6561, %v6791
      %v6852 = vadd.f32 %v6564, %v6794
      %v6853 = vadd.f32 %v6569, %v6799
      %v6854 = vadd.f32 %v6572, %v6802
      %v6855 = vadd.f32 %v6577, %v6807
      %v6856 = vadd.f32 %v6580, %v6810
      %v6857 = vadd.f32 %v6585, %v6815
      %v6858 = vadd.f32 %v6588, %v6818
      %v6859 = vadd.f32 %v6593, %v6823
      %v6860 = vadd.f32 %v6596, %v6826
      %v6861 = vpack.c.bf16 %v6131, %v6130
      %s6862 = scalar_lea.vmem %s10, 12
      %v6863 = vld [vmem:[%s6862] sm:$0xf]
      %v6865 = vsel %vm6175, %v6861, 0
      %v6868 = vsel %vm6223, %v6863, 0
      %6870 = vmatprep.subr.bf16.mxu0 0
      %6871 = vmatpush1.bf16.msra.mxu0 0
      %6872 = vmatprep.subr.bf16.mxu0 0
      %6873 = vmatpush1.bf16.msra.mxu0 0
      %6874 = vmatprep.subr.bf16.mxu0 0
      %6875 = vmatpush1.bf16.msra.mxu0 0
      %6876 = vmatprep.subr.bf16.mxu0 0
      %6877 = vmatpush1.bf16.msra.mxu0 0
      %6878 = vmatprep.subr.bf16.mxu0 0
      %6879 = vmatpush1.bf16.msra.mxu0 0
      %6880 = vmatprep.subr.bf16.mxu0 0
      %6881 = vmatpush1.bf16.msra.mxu0 0
      %6882 = vmatprep.subr.bf16.mxu0 0
      %6883 = vmatpush1.bf16.msra.mxu0 0
      %6884 = vmatprep.subr.bf16.mxu0 0
      %6885 = vmatpush1.bf16.msra.mxu0 %v6868
      %6886 = vmatprep.subr.bf16.mxu0 0
      %6887 = vmatpush2.bf16.msra.mxu0 0
      %6888 = vmatprep.subr.bf16.mxu0 0
      %6889 = vmatpush2.bf16.msra.mxu0 0
      %6890 = vmatprep.subr.bf16.mxu0 0
      %6891 = vmatpush2.bf16.msra.mxu0 0
      %6892 = vmatprep.subr.bf16.mxu0 0
      %6893 = vmatpush2.bf16.msra.mxu0 0
      %6894 = vmatprep.subr.bf16.mxu0 0
      %6895 = vmatpush2.bf16.msra.mxu0 0
      %6896 = vmatprep.subr.bf16.mxu0 0
      %6897 = vmatpush2.bf16.msra.mxu0 0
      %6898 = vmatprep.subr.bf16.mxu0 0
      %6899 = vmatpush2.bf16.msra.mxu0 0
      %6900 = vmatprep.subr.bf16.mxu0 0
      %6901 = vmatpush2.bf16.msra.mxu0 0
      %6902 = vmatprep.mubr.bf16.mxu0 0
      %6903 = vmatmul.mubr.bf16.gmra.mxu0 %v6391
      %v6904 = vpop.f32.mrf.mxu0
      %v6905 = vadd.f32 0.0, %v6904
      %v6906 = vpop.f32.mrf.mxu0
      %v6907 = vpop.f32.mrf.mxu0
      %v6908 = vadd.f32 0.0, %v6907
      %v6909 = vpop.f32.mrf.mxu0
      %6910 = vmatprep.mubr.bf16.mxu0 0
      %6911 = vmatmul.mubr.bf16.gmra.mxu0 %v6394
      %v6912 = vpop.f32.mrf.mxu0
      %v6913 = vadd.f32 0.0, %v6912
      %v6914 = vpop.f32.mrf.mxu0
      %v6915 = vpop.f32.mrf.mxu0
      %v6916 = vadd.f32 0.0, %v6915
      %v6917 = vpop.f32.mrf.mxu0
      %6918 = vmatprep.mubr.bf16.mxu0 0
      %6919 = vmatmul.mubr.bf16.gmra.mxu0 %v6397
      %v6920 = vpop.f32.mrf.mxu0
      %v6921 = vadd.f32 0.0, %v6920
      %v6922 = vpop.f32.mrf.mxu0
      %v6923 = vpop.f32.mrf.mxu0
      %v6924 = vadd.f32 0.0, %v6923
      %v6925 = vpop.f32.mrf.mxu0
      %6926 = vmatprep.mubr.bf16.mxu0 0
      %6927 = vmatmul.mubr.bf16.gmra.mxu0 %v6400
      %v6928 = vpop.f32.mrf.mxu0
      %v6929 = vadd.f32 0.0, %v6928
      %v6930 = vpop.f32.mrf.mxu0
      %v6931 = vpop.f32.mrf.mxu0
      %v6932 = vadd.f32 0.0, %v6931
      %v6933 = vpop.f32.mrf.mxu0
      %6934 = vmatprep.mubr.bf16.mxu0 0
      %6935 = vmatmul.mubr.bf16.gmra.mxu0 %v6403
      %v6936 = vpop.f32.mrf.mxu0
      %v6937 = vadd.f32 0.0, %v6936
      %v6938 = vpop.f32.mrf.mxu0
      %v6939 = vpop.f32.mrf.mxu0
      %v6940 = vadd.f32 0.0, %v6939
      %v6941 = vpop.f32.mrf.mxu0
      %6942 = vmatprep.mubr.bf16.mxu0 0
      %6943 = vmatmul.mubr.bf16.gmra.mxu0 %v6406
      %v6944 = vpop.f32.mrf.mxu0
      %v6945 = vadd.f32 0.0, %v6944
      %v6946 = vpop.f32.mrf.mxu0
      %v6947 = vpop.f32.mrf.mxu0
      %v6948 = vadd.f32 0.0, %v6947
      %v6949 = vpop.f32.mrf.mxu0
      %6950 = vmatprep.mubr.bf16.mxu0 0
      %6951 = vmatmul.mubr.bf16.gmra.mxu0 %v6409
      %v6952 = vpop.f32.mrf.mxu0
      %v6953 = vadd.f32 0.0, %v6952
      %v6954 = vpop.f32.mrf.mxu0
      %v6955 = vpop.f32.mrf.mxu0
      %v6956 = vadd.f32 0.0, %v6955
      %v6957 = vpop.f32.mrf.mxu0
      %6958 = vmatprep.mubr.bf16.mxu0 0
      %6959 = vmatmul.mubr.bf16.gmra.mxu0 %v6412
      %v6960 = vpop.f32.mrf.mxu0
      %v6961 = vadd.f32 0.0, %v6960
      %v6962 = vpop.f32.mrf.mxu0
      %v6963 = vpop.f32.mrf.mxu0
      %v6964 = vadd.f32 0.0, %v6963
      %v6965 = vpop.f32.mrf.mxu0
      %6966 = vmatprep.mubr.bf16.mxu0 0
      %6967 = vmatmul.mubr.bf16.gmra.mxu0 %v6415
      %v6968 = vpop.f32.mrf.mxu0
      %v6969 = vadd.f32 0.0, %v6968
      %v6970 = vpop.f32.mrf.mxu0
      %v6971 = vpop.f32.mrf.mxu0
      %v6972 = vadd.f32 0.0, %v6971
      %v6973 = vpop.f32.mrf.mxu0
      %6974 = vmatprep.mubr.bf16.mxu0 0
      %6975 = vmatmul.mubr.bf16.gmra.mxu0 %v6418
      %v6976 = vpop.f32.mrf.mxu0
      %v6977 = vadd.f32 0.0, %v6976
      %v6978 = vpop.f32.mrf.mxu0
      %v6979 = vpop.f32.mrf.mxu0
      %v6980 = vadd.f32 0.0, %v6979
      %v6981 = vpop.f32.mrf.mxu0
      %6982 = vmatprep.mubr.bf16.mxu0 0
      %6983 = vmatmul.mubr.bf16.gmra.mxu0 %v6421
      %v6984 = vpop.f32.mrf.mxu0
      %v6985 = vadd.f32 0.0, %v6984
      %v6986 = vpop.f32.mrf.mxu0
      %v6987 = vpop.f32.mrf.mxu0
      %v6988 = vadd.f32 0.0, %v6987
      %v6989 = vpop.f32.mrf.mxu0
      %6990 = vmatprep.mubr.bf16.mxu0 0
      %6991 = vmatmul.mubr.bf16.gmra.mxu0 %v6424
      %v6992 = vpop.f32.mrf.mxu0
      %v6993 = vadd.f32 0.0, %v6992
      %v6994 = vpop.f32.mrf.mxu0
      %v6995 = vpop.f32.mrf.mxu0
      %v6996 = vadd.f32 0.0, %v6995
      %v6997 = vpop.f32.mrf.mxu0
      %6998 = vmatprep.mubr.bf16.mxu0 0
      %6999 = vmatmul.mubr.bf16.gmra.mxu0 %v6427
      %v7000 = vpop.f32.mrf.mxu0
      %v7001 = vadd.f32 0.0, %v7000
      %v7002 = vpop.f32.mrf.mxu0
      %v7003 = vpop.f32.mrf.mxu0
      %v7004 = vadd.f32 0.0, %v7003
      %v7005 = vpop.f32.mrf.mxu0
      %7006 = vmatprep.mubr.bf16.mxu0 0
      %7007 = vmatmul.mubr.bf16.gmra.mxu0 %v6430
      %v7008 = vpop.f32.mrf.mxu0
      %v7009 = vadd.f32 0.0, %v7008
      %v7010 = vpop.f32.mrf.mxu0
      %v7011 = vpop.f32.mrf.mxu0
      %v7012 = vadd.f32 0.0, %v7011
      %v7013 = vpop.f32.mrf.mxu0
      %7014 = vmatprep.mubr.bf16.mxu0 0
      %7015 = vmatmul.mubr.bf16.gmra.mxu0 %v6433
      %v7016 = vpop.f32.mrf.mxu0
      %v7017 = vadd.f32 0.0, %v7016
      %v7018 = vpop.f32.mrf.mxu0
      %v7019 = vpop.f32.mrf.mxu0
      %v7020 = vadd.f32 0.0, %v7019
      %v7021 = vpop.f32.mrf.mxu0
      %7022 = vmatprep.mubr.bf16.mxu0 0
      %7023 = vmatmul.mubr.bf16.gmra.mxu0 %v6865
      %v7024 = vpop.f32.mrf.mxu0
      %v7025 = vadd.f32 0.0, %v7024
      %v7026 = vpop.f32.mrf.mxu0
      %v7027 = vpop.f32.mrf.mxu0
      %v7028 = vadd.f32 0.0, %v7027
      %v7029 = vpop.f32.mrf.mxu0
      %7030 = vdwg.mxu0
      %v7031 = vadd.f32 %v6829, %v6905
      %v7032 = vadd.f32 %v6830, %v6908
      %v7033 = vadd.f32 %v6831, %v6913
      %v7034 = vadd.f32 %v6832, %v6916
      %v7035 = vadd.f32 %v6833, %v6921
      %v7036 = vadd.f32 %v6834, %v6924
      %v7037 = vadd.f32 %v6835, %v6929
      %v7038 = vadd.f32 %v6836, %v6932
      %v7039 = vadd.f32 %v6837, %v6937
      %v7040 = vadd.f32 %v6838, %v6940
      %v7041 = vadd.f32 %v6839, %v6945
      %v7042 = vadd.f32 %v6840, %v6948
      %v7043 = vadd.f32 %v6841, %v6953
      %v7044 = vadd.f32 %v6842, %v6956
      %v7045 = vadd.f32 %v6843, %v6961
      %v7046 = vadd.f32 %v6844, %v6964
      %v7047 = vadd.f32 %v6845, %v6969
      %v7048 = vadd.f32 %v6846, %v6972
      %v7049 = vadd.f32 %v6847, %v6977
      %v7050 = vadd.f32 %v6848, %v6980
      %v7051 = vadd.f32 %v6849, %v6985
      %v7052 = vadd.f32 %v6850, %v6988
      %v7053 = vadd.f32 %v6851, %v6993
      %v7054 = vadd.f32 %v6852, %v6996
      %v7055 = vadd.f32 %v6853, %v7001
      %v7056 = vadd.f32 %v6854, %v7004
      %v7057 = vadd.f32 %v6855, %v7009
      %v7058 = vadd.f32 %v6856, %v7012
      %v7059 = vadd.f32 %v6857, %v7017
      %v7060 = vadd.f32 %v6858, %v7020
      %v7061 = vadd.f32 %v6859, %v7025
      %v7062 = vadd.f32 %v6860, %v7028
      %v7063 = vpack.c.bf16 %v5847, %v5846
      %s7064 = scalar_lea.vmem %s10, 16
      %v7065 = vld [vmem:[%s7064] sm:$0xf]
      %v7067 = vsel %vm6175, %v7063, 0
      %v7070 = vsel %vm6223, %v7065, 0
      %7072 = vmatprep.subr.bf16.mxu0 0
      %7073 = vmatpush1.bf16.msra.mxu0 0
      %7074 = vmatprep.subr.bf16.mxu0 0
      %7075 = vmatpush1.bf16.msra.mxu0 0
      %7076 = vmatprep.subr.bf16.mxu0 0
      %7077 = vmatpush1.bf16.msra.mxu0 0
      %7078 = vmatprep.subr.bf16.mxu0 0
      %7079 = vmatpush1.bf16.msra.mxu0 0
      %7080 = vmatprep.subr.bf16.mxu0 0
      %7081 = vmatpush1.bf16.msra.mxu0 0
      %7082 = vmatprep.subr.bf16.mxu0 0
      %7083 = vmatpush1.bf16.msra.mxu0 0
      %7084 = vmatprep.subr.bf16.mxu0 0
      %7085 = vmatpush1.bf16.msra.mxu0 0
      %7086 = vmatprep.subr.bf16.mxu0 0
      %7087 = vmatpush1.bf16.msra.mxu0 %v7070
      %7088 = vmatprep.subr.bf16.mxu0 0
      %7089 = vmatpush2.bf16.msra.mxu0 0
      %7090 = vmatprep.subr.bf16.mxu0 0
      %7091 = vmatpush2.bf16.msra.mxu0 0
      %7092 = vmatprep.subr.bf16.mxu0 0
      %7093 = vmatpush2.bf16.msra.mxu0 0
      %7094 = vmatprep.subr.bf16.mxu0 0
      %7095 = vmatpush2.bf16.msra.mxu0 0
      %7096 = vmatprep.subr.bf16.mxu0 0
      %7097 = vmatpush2.bf16.msra.mxu0 0
      %7098 = vmatprep.subr.bf16.mxu0 0
      %7099 = vmatpush2.bf16.msra.mxu0 0
      %7100 = vmatprep.subr.bf16.mxu0 0
      %7101 = vmatpush2.bf16.msra.mxu0 0
      %7102 = vmatprep.subr.bf16.mxu0 0
      %7103 = vmatpush2.bf16.msra.mxu0 0
      %7104 = vmatprep.mubr.bf16.mxu0 0
      %7105 = vmatmul.mubr.bf16.gmra.mxu0 %v6179
      %v7106 = vpop.f32.mrf.mxu0
      %v7107 = vadd.f32 0.0, %v7106
      %v7108 = vpop.f32.mrf.mxu0
      %v7109 = vpop.f32.mrf.mxu0
      %v7110 = vadd.f32 0.0, %v7109
      %v7111 = vpop.f32.mrf.mxu0
      %7112 = vmatprep.mubr.bf16.mxu0 0
      %7113 = vmatmul.mubr.bf16.gmra.mxu0 %v6182
      %v7114 = vpop.f32.mrf.mxu0
      %v7115 = vadd.f32 0.0, %v7114
      %v7116 = vpop.f32.mrf.mxu0
      %v7117 = vpop.f32.mrf.mxu0
      %v7118 = vadd.f32 0.0, %v7117
      %v7119 = vpop.f32.mrf.mxu0
      %7120 = vmatprep.mubr.bf16.mxu0 0
      %7121 = vmatmul.mubr.bf16.gmra.mxu0 %v6185
      %v7122 = vpop.f32.mrf.mxu0
      %v7123 = vadd.f32 0.0, %v7122
      %v7124 = vpop.f32.mrf.mxu0
      %v7125 = vpop.f32.mrf.mxu0
      %v7126 = vadd.f32 0.0, %v7125
      %v7127 = vpop.f32.mrf.mxu0
      %7128 = vmatprep.mubr.bf16.mxu0 0
      %7129 = vmatmul.mubr.bf16.gmra.mxu0 %v6188
      %v7130 = vpop.f32.mrf.mxu0
      %v7131 = vadd.f32 0.0, %v7130
      %v7132 = vpop.f32.mrf.mxu0
      %v7133 = vpop.f32.mrf.mxu0
      %v7134 = vadd.f32 0.0, %v7133
      %v7135 = vpop.f32.mrf.mxu0
      %7136 = vmatprep.mubr.bf16.mxu0 0
      %7137 = vmatmul.mubr.bf16.gmra.mxu0 %v6191
      %v7138 = vpop.f32.mrf.mxu0
      %v7139 = vadd.f32 0.0, %v7138
      %v7140 = vpop.f32.mrf.mxu0
      %v7141 = vpop.f32.mrf.mxu0
      %v7142 = vadd.f32 0.0, %v7141
      %v7143 = vpop.f32.mrf.mxu0
      %7144 = vmatprep.mubr.bf16.mxu0 0
      %7145 = vmatmul.mubr.bf16.gmra.mxu0 %v6194
      %v7146 = vpop.f32.mrf.mxu0
      %v7147 = vadd.f32 0.0, %v7146
      %v7148 = vpop.f32.mrf.mxu0
      %v7149 = vpop.f32.mrf.mxu0
      %v7150 = vadd.f32 0.0, %v7149
      %v7151 = vpop.f32.mrf.mxu0
      %7152 = vmatprep.mubr.bf16.mxu0 0
      %7153 = vmatmul.mubr.bf16.gmra.mxu0 %v6197
      %v7154 = vpop.f32.mrf.mxu0
      %v7155 = vadd.f32 0.0, %v7154
      %v7156 = vpop.f32.mrf.mxu0
      %v7157 = vpop.f32.mrf.mxu0
      %v7158 = vadd.f32 0.0, %v7157
      %v7159 = vpop.f32.mrf.mxu0
      %7160 = vmatprep.mubr.bf16.mxu0 0
      %7161 = vmatmul.mubr.bf16.gmra.mxu0 %v6200
      %v7162 = vpop.f32.mrf.mxu0
      %v7163 = vadd.f32 0.0, %v7162
      %v7164 = vpop.f32.mrf.mxu0
      %v7165 = vpop.f32.mrf.mxu0
      %v7166 = vadd.f32 0.0, %v7165
      %v7167 = vpop.f32.mrf.mxu0
      %7168 = vmatprep.mubr.bf16.mxu0 0
      %7169 = vmatmul.mubr.bf16.gmra.mxu0 %v6203
      %v7170 = vpop.f32.mrf.mxu0
      %v7171 = vadd.f32 0.0, %v7170
      %v7172 = vpop.f32.mrf.mxu0
      %v7173 = vpop.f32.mrf.mxu0
      %v7174 = vadd.f32 0.0, %v7173
      %v7175 = vpop.f32.mrf.mxu0
      %7176 = vmatprep.mubr.bf16.mxu0 0
      %7177 = vmatmul.mubr.bf16.gmra.mxu0 %v6206
      %v7178 = vpop.f32.mrf.mxu0
      %v7179 = vadd.f32 0.0, %v7178
      %v7180 = vpop.f32.mrf.mxu0
      %v7181 = vpop.f32.mrf.mxu0
      %v7182 = vadd.f32 0.0, %v7181
      %v7183 = vpop.f32.mrf.mxu0
      %7184 = vmatprep.mubr.bf16.mxu0 0
      %7185 = vmatmul.mubr.bf16.gmra.mxu0 %v6209
      %v7186 = vpop.f32.mrf.mxu0
      %v7187 = vadd.f32 0.0, %v7186
      %v7188 = vpop.f32.mrf.mxu0
      %v7189 = vpop.f32.mrf.mxu0
      %v7190 = vadd.f32 0.0, %v7189
      %v7191 = vpop.f32.mrf.mxu0
      %7192 = vmatprep.mubr.bf16.mxu0 0
      %7193 = vmatmul.mubr.bf16.gmra.mxu0 %v6212
      %v7194 = vpop.f32.mrf.mxu0
      %v7195 = vadd.f32 0.0, %v7194
      %v7196 = vpop.f32.mrf.mxu0
      %v7197 = vpop.f32.mrf.mxu0
      %v7198 = vadd.f32 0.0, %v7197
      %v7199 = vpop.f32.mrf.mxu0
      %7200 = vmatprep.mubr.bf16.mxu0 0
      %7201 = vmatmul.mubr.bf16.gmra.mxu0 %v6215
      %v7202 = vpop.f32.mrf.mxu0
      %v7203 = vadd.f32 0.0, %v7202
      %v7204 = vpop.f32.mrf.mxu0
      %v7205 = vpop.f32.mrf.mxu0
      %v7206 = vadd.f32 0.0, %v7205
      %v7207 = vpop.f32.mrf.mxu0
      %7208 = vmatprep.mubr.bf16.mxu0 0
      %7209 = vmatmul.mubr.bf16.gmra.mxu0 %v6218
      %v7210 = vpop.f32.mrf.mxu0
      %v7211 = vadd.f32 0.0, %v7210
      %v7212 = vpop.f32.mrf.mxu0
      %v7213 = vpop.f32.mrf.mxu0
      %v7214 = vadd.f32 0.0, %v7213
      %v7215 = vpop.f32.mrf.mxu0
      %7216 = vmatprep.mubr.bf16.mxu0 0
      %7217 = vmatmul.mubr.bf16.gmra.mxu0 %v6221
      %v7218 = vpop.f32.mrf.mxu0
      %v7219 = vadd.f32 0.0, %v7218
      %v7220 = vpop.f32.mrf.mxu0
      %v7221 = vpop.f32.mrf.mxu0
      %v7222 = vadd.f32 0.0, %v7221
      %v7223 = vpop.f32.mrf.mxu0
      %7224 = vmatprep.mubr.bf16.mxu0 0
      %7225 = vmatmul.mubr.bf16.gmra.mxu0 %v7067
      %v7226 = vpop.f32.mrf.mxu0
      %v7227 = vadd.f32 0.0, %v7226
      %v7228 = vpop.f32.mrf.mxu0
      %v7229 = vpop.f32.mrf.mxu0
      %v7230 = vadd.f32 0.0, %v7229
      %v7231 = vpop.f32.mrf.mxu0
      %7232 = vdwg.mxu0
      %v7233 = vadd.f32 %v7031, %v7107
      %v7234 = vadd.f32 %v7032, %v7110
      %v7235 = vadd.f32 %v7033, %v7115
      %v7236 = vadd.f32 %v7034, %v7118
      %v7237 = vadd.f32 %v7035, %v7123
      %v7238 = vadd.f32 %v7036, %v7126
      %v7239 = vadd.f32 %v7037, %v7131
      %v7240 = vadd.f32 %v7038, %v7134
      %v7241 = vadd.f32 %v7039, %v7139
      %v7242 = vadd.f32 %v7040, %v7142
      %v7243 = vadd.f32 %v7041, %v7147
      %v7244 = vadd.f32 %v7042, %v7150
      %v7245 = vadd.f32 %v7043, %v7155
      %v7246 = vadd.f32 %v7044, %v7158
      %v7247 = vadd.f32 %v7045, %v7163
      %v7248 = vadd.f32 %v7046, %v7166
      %v7249 = vadd.f32 %v7047, %v7171
      %v7250 = vadd.f32 %v7048, %v7174
      %v7251 = vadd.f32 %v7049, %v7179
      %v7252 = vadd.f32 %v7050, %v7182
      %v7253 = vadd.f32 %v7051, %v7187
      %v7254 = vadd.f32 %v7052, %v7190
      %v7255 = vadd.f32 %v7053, %v7195
      %v7256 = vadd.f32 %v7054, %v7198
      %v7257 = vadd.f32 %v7055, %v7203
      %v7258 = vadd.f32 %v7056, %v7206
      %v7259 = vadd.f32 %v7057, %v7211
      %v7260 = vadd.f32 %v7058, %v7214
      %v7261 = vadd.f32 %v7059, %v7219
      %v7262 = vadd.f32 %v7060, %v7222
      %v7263 = vadd.f32 %v7061, %v7227
      %v7264 = vadd.f32 %v7062, %v7230
      %v7265 = vpack.c.bf16 %v6138, %v6137
      %s7266 = scalar_lea.vmem %s10, 20
      %v7267 = vld [vmem:[%s7266] sm:$0xf]
      %v7269 = vsel %vm6175, %v7265, 0
      %v7272 = vsel %vm6223, %v7267, 0
      %7274 = vmatprep.subr.bf16.mxu0 0
      %7275 = vmatpush1.bf16.msra.mxu0 0
      %7276 = vmatprep.subr.bf16.mxu0 0
      %7277 = vmatpush1.bf16.msra.mxu0 0
      %7278 = vmatprep.subr.bf16.mxu0 0
      %7279 = vmatpush1.bf16.msra.mxu0 0
      %7280 = vmatprep.subr.bf16.mxu0 0
      %7281 = vmatpush1.bf16.msra.mxu0 0
      %7282 = vmatprep.subr.bf16.mxu0 0
      %7283 = vmatpush1.bf16.msra.mxu0 0
      %7284 = vmatprep.subr.bf16.mxu0 0
      %7285 = vmatpush1.bf16.msra.mxu0 0
      %7286 = vmatprep.subr.bf16.mxu0 0
      %7287 = vmatpush1.bf16.msra.mxu0 0
      %7288 = vmatprep.subr.bf16.mxu0 0
      %7289 = vmatpush1.bf16.msra.mxu0 %v7272
      %7290 = vmatprep.subr.bf16.mxu0 0
      %7291 = vmatpush2.bf16.msra.mxu0 0
      %7292 = vmatprep.subr.bf16.mxu0 0
      %7293 = vmatpush2.bf16.msra.mxu0 0
      %7294 = vmatprep.subr.bf16.mxu0 0
      %7295 = vmatpush2.bf16.msra.mxu0 0
      %7296 = vmatprep.subr.bf16.mxu0 0
      %7297 = vmatpush2.bf16.msra.mxu0 0
      %7298 = vmatprep.subr.bf16.mxu0 0
      %7299 = vmatpush2.bf16.msra.mxu0 0
      %7300 = vmatprep.subr.bf16.mxu0 0
      %7301 = vmatpush2.bf16.msra.mxu0 0
      %7302 = vmatprep.subr.bf16.mxu0 0
      %7303 = vmatpush2.bf16.msra.mxu0 0
      %7304 = vmatprep.subr.bf16.mxu0 0
      %7305 = vmatpush2.bf16.msra.mxu0 0
      %7306 = vmatprep.mubr.bf16.mxu0 0
      %7307 = vmatmul.mubr.bf16.gmra.mxu0 %v6621
      %v7308 = vpop.f32.mrf.mxu0
      %v7309 = vadd.f32 0.0, %v7308
      %v7310 = vpop.f32.mrf.mxu0
      %v7311 = vpop.f32.mrf.mxu0
      %v7312 = vadd.f32 0.0, %v7311
      %v7313 = vpop.f32.mrf.mxu0
      %7314 = vmatprep.mubr.bf16.mxu0 0
      %7315 = vmatmul.mubr.bf16.gmra.mxu0 %v6624
      %v7316 = vpop.f32.mrf.mxu0
      %v7317 = vadd.f32 0.0, %v7316
      %v7318 = vpop.f32.mrf.mxu0
      %v7319 = vpop.f32.mrf.mxu0
      %v7320 = vadd.f32 0.0, %v7319
      %v7321 = vpop.f32.mrf.mxu0
      %7322 = vmatprep.mubr.bf16.mxu0 0
      %7323 = vmatmul.mubr.bf16.gmra.mxu0 %v6627
      %v7324 = vpop.f32.mrf.mxu0
      %v7325 = vadd.f32 0.0, %v7324
      %v7326 = vpop.f32.mrf.mxu0
      %v7327 = vpop.f32.mrf.mxu0
      %v7328 = vadd.f32 0.0, %v7327
      %v7329 = vpop.f32.mrf.mxu0
      %7330 = vmatprep.mubr.bf16.mxu0 0
      %7331 = vmatmul.mubr.bf16.gmra.mxu0 %v6630
      %v7332 = vpop.f32.mrf.mxu0
      %v7333 = vadd.f32 0.0, %v7332
      %v7334 = vpop.f32.mrf.mxu0
      %v7335 = vpop.f32.mrf.mxu0
      %v7336 = vadd.f32 0.0, %v7335
      %v7337 = vpop.f32.mrf.mxu0
      %7338 = vmatprep.mubr.bf16.mxu0 0
      %7339 = vmatmul.mubr.bf16.gmra.mxu0 %v6633
      %v7340 = vpop.f32.mrf.mxu0
      %v7341 = vadd.f32 0.0, %v7340
      %v7342 = vpop.f32.mrf.mxu0
      %v7343 = vpop.f32.mrf.mxu0
      %v7344 = vadd.f32 0.0, %v7343
      %v7345 = vpop.f32.mrf.mxu0
      %7346 = vmatprep.mubr.bf16.mxu0 0
      %7347 = vmatmul.mubr.bf16.gmra.mxu0 %v6636
      %v7348 = vpop.f32.mrf.mxu0
      %v7349 = vadd.f32 0.0, %v7348
      %v7350 = vpop.f32.mrf.mxu0
      %v7351 = vpop.f32.mrf.mxu0
      %v7352 = vadd.f32 0.0, %v7351
      %v7353 = vpop.f32.mrf.mxu0
      %7354 = vmatprep.mubr.bf16.mxu0 0
      %7355 = vmatmul.mubr.bf16.gmra.mxu0 %v6639
      %v7356 = vpop.f32.mrf.mxu0
      %v7357 = vadd.f32 0.0, %v7356
      %v7358 = vpop.f32.mrf.mxu0
      %v7359 = vpop.f32.mrf.mxu0
      %v7360 = vadd.f32 0.0, %v7359
      %v7361 = vpop.f32.mrf.mxu0
      %7362 = vmatprep.mubr.bf16.mxu0 0
      %7363 = vmatmul.mubr.bf16.gmra.mxu0 %v6642
      %v7364 = vpop.f32.mrf.mxu0
      %v7365 = vadd.f32 0.0, %v7364
      %v7366 = vpop.f32.mrf.mxu0
      %v7367 = vpop.f32.mrf.mxu0
      %v7368 = vadd.f32 0.0, %v7367
      %v7369 = vpop.f32.mrf.mxu0
      %7370 = vmatprep.mubr.bf16.mxu0 0
      %7371 = vmatmul.mubr.bf16.gmra.mxu0 %v6645
      %v7372 = vpop.f32.mrf.mxu0
      %v7373 = vadd.f32 0.0, %v7372
      %v7374 = vpop.f32.mrf.mxu0
      %v7375 = vpop.f32.mrf.mxu0
      %v7376 = vadd.f32 0.0, %v7375
      %v7377 = vpop.f32.mrf.mxu0
      %7378 = vmatprep.mubr.bf16.mxu0 0
      %7379 = vmatmul.mubr.bf16.gmra.mxu0 %v6648
      %v7380 = vpop.f32.mrf.mxu0
      %v7381 = vadd.f32 0.0, %v7380
      %v7382 = vpop.f32.mrf.mxu0
      %v7383 = vpop.f32.mrf.mxu0
      %v7384 = vadd.f32 0.0, %v7383
      %v7385 = vpop.f32.mrf.mxu0
      %7386 = vmatprep.mubr.bf16.mxu0 0
      %7387 = vmatmul.mubr.bf16.gmra.mxu0 %v6651
      %v7388 = vpop.f32.mrf.mxu0
      %v7389 = vadd.f32 0.0, %v7388
      %v7390 = vpop.f32.mrf.mxu0
      %v7391 = vpop.f32.mrf.mxu0
      %v7392 = vadd.f32 0.0, %v7391
      %v7393 = vpop.f32.mrf.mxu0
      %7394 = vmatprep.mubr.bf16.mxu0 0
      %7395 = vmatmul.mubr.bf16.gmra.mxu0 %v6654
      %v7396 = vpop.f32.mrf.mxu0
      %v7397 = vadd.f32 0.0, %v7396
      %v7398 = vpop.f32.mrf.mxu0
      %v7399 = vpop.f32.mrf.mxu0
      %v7400 = vadd.f32 0.0, %v7399
      %v7401 = vpop.f32.mrf.mxu0
      %7402 = vmatprep.mubr.bf16.mxu0 0
      %7403 = vmatmul.mubr.bf16.gmra.mxu0 %v6657
      %v7404 = vpop.f32.mrf.mxu0
      %v7405 = vadd.f32 0.0, %v7404
      %v7406 = vpop.f32.mrf.mxu0
      %v7407 = vpop.f32.mrf.mxu0
      %v7408 = vadd.f32 0.0, %v7407
      %v7409 = vpop.f32.mrf.mxu0
      %7410 = vmatprep.mubr.bf16.mxu0 0
      %7411 = vmatmul.mubr.bf16.gmra.mxu0 %v6660
      %v7412 = vpop.f32.mrf.mxu0
      %v7413 = vadd.f32 0.0, %v7412
      %v7414 = vpop.f32.mrf.mxu0
      %v7415 = vpop.f32.mrf.mxu0
      %v7416 = vadd.f32 0.0, %v7415
      %v7417 = vpop.f32.mrf.mxu0
      %7418 = vmatprep.mubr.bf16.mxu0 0
      %7419 = vmatmul.mubr.bf16.gmra.mxu0 %v6663
      %v7420 = vpop.f32.mrf.mxu0
      %v7421 = vadd.f32 0.0, %v7420
      %v7422 = vpop.f32.mrf.mxu0
      %v7423 = vpop.f32.mrf.mxu0
      %v7424 = vadd.f32 0.0, %v7423
      %v7425 = vpop.f32.mrf.mxu0
      %7426 = vmatprep.mubr.bf16.mxu0 0
      %7427 = vmatmul.mubr.bf16.gmra.mxu0 %v7269
      %v7428 = vpop.f32.mrf.mxu0
      %v7429 = vadd.f32 0.0, %v7428
      %v7430 = vpop.f32.mrf.mxu0
      %v7431 = vpop.f32.mrf.mxu0
      %v7432 = vadd.f32 0.0, %v7431
      %v7433 = vpop.f32.mrf.mxu0
      %7434 = vdwg.mxu0
      %v7435 = vadd.f32 %v7233, %v7309
      %v7436 = vadd.f32 %v7234, %v7312
      %v7437 = vadd.f32 %v7235, %v7317
      %v7438 = vadd.f32 %v7236, %v7320
      %v7439 = vadd.f32 %v7237, %v7325
      %v7440 = vadd.f32 %v7238, %v7328
      %v7441 = vadd.f32 %v7239, %v7333
      %v7442 = vadd.f32 %v7240, %v7336
      %v7443 = vadd.f32 %v7241, %v7341
      %v7444 = vadd.f32 %v7242, %v7344
      %v7445 = vadd.f32 %v7243, %v7349
      %v7446 = vadd.f32 %v7244, %v7352
      %v7447 = vadd.f32 %v7245, %v7357
      %v7448 = vadd.f32 %v7246, %v7360
      %v7449 = vadd.f32 %v7247, %v7365
      %v7450 = vadd.f32 %v7248, %v7368
      %v7451 = vadd.f32 %v7249, %v7373
      %v7452 = vadd.f32 %v7250, %v7376
      %v7453 = vadd.f32 %v7251, %v7381
      %v7454 = vadd.f32 %v7252, %v7384
      %v7455 = vadd.f32 %v7253, %v7389
      %v7456 = vadd.f32 %v7254, %v7392
      %v7457 = vadd.f32 %v7255, %v7397
      %v7458 = vadd.f32 %v7256, %v7400
      %v7459 = vadd.f32 %v7257, %v7405
      %v7460 = vadd.f32 %v7258, %v7408
      %v7461 = vadd.f32 %v7259, %v7413
      %v7462 = vadd.f32 %v7260, %v7416
      %v7463 = vadd.f32 %v7261, %v7421
      %v7464 = vadd.f32 %v7262, %v7424
      %v7465 = vadd.f32 %v7263, %v7429
      %v7466 = vadd.f32 %v7264, %v7432
      %v7467 = vpack.c.bf16 %v1245, %v6141
      %s7468 = scalar_lea.vmem %s10, 24
      %v7469 = vld [vmem:[%s7468] sm:$0xf]
      %v7471 = vsel %vm6175, %v7467, 0
      %v7474 = vsel %vm6223, %v7469, 0
      %7476 = vmatprep.subr.bf16.mxu0 0
      %7477 = vmatpush1.bf16.msra.mxu0 0
      %7478 = vmatprep.subr.bf16.mxu0 0
      %7479 = vmatpush1.bf16.msra.mxu0 0
      %7480 = vmatprep.subr.bf16.mxu0 0
      %7481 = vmatpush1.bf16.msra.mxu0 0
      %7482 = vmatprep.subr.bf16.mxu0 0
      %7483 = vmatpush1.bf16.msra.mxu0 0
      %7484 = vmatprep.subr.bf16.mxu0 0
      %7485 = vmatpush1.bf16.msra.mxu0 0
      %7486 = vmatprep.subr.bf16.mxu0 0
      %7487 = vmatpush1.bf16.msra.mxu0 0
      %7488 = vmatprep.subr.bf16.mxu0 0
      %7489 = vmatpush1.bf16.msra.mxu0 0
      %7490 = vmatprep.subr.bf16.mxu0 0
      %7491 = vmatpush1.bf16.msra.mxu0 %v7474
      %7492 = vmatprep.subr.bf16.mxu0 0
      %7493 = vmatpush2.bf16.msra.mxu0 0
      %7494 = vmatprep.subr.bf16.mxu0 0
      %7495 = vmatpush2.bf16.msra.mxu0 0
      %7496 = vmatprep.subr.bf16.mxu0 0
      %7497 = vmatpush2.bf16.msra.mxu0 0
      %7498 = vmatprep.subr.bf16.mxu0 0
      %7499 = vmatpush2.bf16.msra.mxu0 0
      %7500 = vmatprep.subr.bf16.mxu0 0
      %7501 = vmatpush2.bf16.msra.mxu0 0
      %7502 = vmatprep.subr.bf16.mxu0 0
      %7503 = vmatpush2.bf16.msra.mxu0 0
      %7504 = vmatprep.subr.bf16.mxu0 0
      %7505 = vmatpush2.bf16.msra.mxu0 0
      %7506 = vmatprep.subr.bf16.mxu0 0
      %7507 = vmatpush2.bf16.msra.mxu0 0
      %7508 = vmatprep.mubr.bf16.mxu0 0
      %7509 = vmatmul.mubr.bf16.gmra.mxu0 %v6394
      %v7510 = vpop.f32.mrf.mxu0
      %v7511 = vadd.f32 0.0, %v7510
      %v7512 = vpop.f32.mrf.mxu0
      %v7513 = vpop.f32.mrf.mxu0
      %v7514 = vadd.f32 0.0, %v7513
      %v7515 = vpop.f32.mrf.mxu0
      %7516 = vmatprep.mubr.bf16.mxu0 0
      %7517 = vmatmul.mubr.bf16.gmra.mxu0 %v6397
      %v7518 = vpop.f32.mrf.mxu0
      %v7519 = vadd.f32 0.0, %v7518
      %v7520 = vpop.f32.mrf.mxu0
      %v7521 = vpop.f32.mrf.mxu0
      %v7522 = vadd.f32 0.0, %v7521
      %v7523 = vpop.f32.mrf.mxu0
      %7524 = vmatprep.mubr.bf16.mxu0 0
      %7525 = vmatmul.mubr.bf16.gmra.mxu0 %v6400
      %v7526 = vpop.f32.mrf.mxu0
      %v7527 = vadd.f32 0.0, %v7526
      %v7528 = vpop.f32.mrf.mxu0
      %v7529 = vpop.f32.mrf.mxu0
      %v7530 = vadd.f32 0.0, %v7529
      %v7531 = vpop.f32.mrf.mxu0
      %7532 = vmatprep.mubr.bf16.mxu0 0
      %7533 = vmatmul.mubr.bf16.gmra.mxu0 %v6403
      %v7534 = vpop.f32.mrf.mxu0
      %v7535 = vadd.f32 0.0, %v7534
      %v7536 = vpop.f32.mrf.mxu0
      %v7537 = vpop.f32.mrf.mxu0
      %v7538 = vadd.f32 0.0, %v7537
      %v7539 = vpop.f32.mrf.mxu0
      %7540 = vmatprep.mubr.bf16.mxu0 0
      %7541 = vmatmul.mubr.bf16.gmra.mxu0 %v6406
      %v7542 = vpop.f32.mrf.mxu0
      %v7543 = vadd.f32 0.0, %v7542
      %v7544 = vpop.f32.mrf.mxu0
      %v7545 = vpop.f32.mrf.mxu0
      %v7546 = vadd.f32 0.0, %v7545
      %v7547 = vpop.f32.mrf.mxu0
      %7548 = vmatprep.mubr.bf16.mxu0 0
      %7549 = vmatmul.mubr.bf16.gmra.mxu0 %v6409
      %v7550 = vpop.f32.mrf.mxu0
      %v7551 = vadd.f32 0.0, %v7550
      %v7552 = vpop.f32.mrf.mxu0
      %v7553 = vpop.f32.mrf.mxu0
      %v7554 = vadd.f32 0.0, %v7553
      %v7555 = vpop.f32.mrf.mxu0
      %7556 = vmatprep.mubr.bf16.mxu0 0
      %7557 = vmatmul.mubr.bf16.gmra.mxu0 %v6412
      %v7558 = vpop.f32.mrf.mxu0
      %v7559 = vadd.f32 0.0, %v7558
      %v7560 = vpop.f32.mrf.mxu0
      %v7561 = vpop.f32.mrf.mxu0
      %v7562 = vadd.f32 0.0, %v7561
      %v7563 = vpop.f32.mrf.mxu0
      %7564 = vmatprep.mubr.bf16.mxu0 0
      %7565 = vmatmul.mubr.bf16.gmra.mxu0 %v6415
      %v7566 = vpop.f32.mrf.mxu0
      %v7567 = vadd.f32 0.0, %v7566
      %v7568 = vpop.f32.mrf.mxu0
      %v7569 = vpop.f32.mrf.mxu0
      %v7570 = vadd.f32 0.0, %v7569
      %v7571 = vpop.f32.mrf.mxu0
      %7572 = vmatprep.mubr.bf16.mxu0 0
      %7573 = vmatmul.mubr.bf16.gmra.mxu0 %v6418
      %v7574 = vpop.f32.mrf.mxu0
      %v7575 = vadd.f32 0.0, %v7574
      %v7576 = vpop.f32.mrf.mxu0
      %v7577 = vpop.f32.mrf.mxu0
      %v7578 = vadd.f32 0.0, %v7577
      %v7579 = vpop.f32.mrf.mxu0
      %7580 = vmatprep.mubr.bf16.mxu0 0
      %7581 = vmatmul.mubr.bf16.gmra.mxu0 %v6421
      %v7582 = vpop.f32.mrf.mxu0
      %v7583 = vadd.f32 0.0, %v7582
      %v7584 = vpop.f32.mrf.mxu0
      %v7585 = vpop.f32.mrf.mxu0
      %v7586 = vadd.f32 0.0, %v7585
      %v7587 = vpop.f32.mrf.mxu0
      %7588 = vmatprep.mubr.bf16.mxu0 0
      %7589 = vmatmul.mubr.bf16.gmra.mxu0 %v6424
      %v7590 = vpop.f32.mrf.mxu0
      %v7591 = vadd.f32 0.0, %v7590
      %v7592 = vpop.f32.mrf.mxu0
      %v7593 = vpop.f32.mrf.mxu0
      %v7594 = vadd.f32 0.0, %v7593
      %v7595 = vpop.f32.mrf.mxu0
      %7596 = vmatprep.mubr.bf16.mxu0 0
      %7597 = vmatmul.mubr.bf16.gmra.mxu0 %v6427
      %v7598 = vpop.f32.mrf.mxu0
      %v7599 = vadd.f32 0.0, %v7598
      %v7600 = vpop.f32.mrf.mxu0
      %v7601 = vpop.f32.mrf.mxu0
      %v7602 = vadd.f32 0.0, %v7601
      %v7603 = vpop.f32.mrf.mxu0
      %7604 = vmatprep.mubr.bf16.mxu0 0
      %7605 = vmatmul.mubr.bf16.gmra.mxu0 %v6430
      %v7606 = vpop.f32.mrf.mxu0
      %v7607 = vadd.f32 0.0, %v7606
      %v7608 = vpop.f32.mrf.mxu0
      %v7609 = vpop.f32.mrf.mxu0
      %v7610 = vadd.f32 0.0, %v7609
      %v7611 = vpop.f32.mrf.mxu0
      %7612 = vmatprep.mubr.bf16.mxu0 0
      %7613 = vmatmul.mubr.bf16.gmra.mxu0 %v6433
      %v7614 = vpop.f32.mrf.mxu0
      %v7615 = vadd.f32 0.0, %v7614
      %v7616 = vpop.f32.mrf.mxu0
      %v7617 = vpop.f32.mrf.mxu0
      %v7618 = vadd.f32 0.0, %v7617
      %v7619 = vpop.f32.mrf.mxu0
      %7620 = vmatprep.mubr.bf16.mxu0 0
      %7621 = vmatmul.mubr.bf16.gmra.mxu0 %v6865
      %v7622 = vpop.f32.mrf.mxu0
      %v7623 = vadd.f32 0.0, %v7622
      %v7624 = vpop.f32.mrf.mxu0
      %v7625 = vpop.f32.mrf.mxu0
      %v7626 = vadd.f32 0.0, %v7625
      %v7627 = vpop.f32.mrf.mxu0
      %7628 = vmatprep.mubr.bf16.mxu0 0
      %7629 = vmatmul.mubr.bf16.gmra.mxu0 %v7471
      %v7630 = vpop.f32.mrf.mxu0
      %v7631 = vadd.f32 0.0, %v7630
      %v7632 = vpop.f32.mrf.mxu0
      %v7633 = vpop.f32.mrf.mxu0
      %v7634 = vadd.f32 0.0, %v7633
      %v7635 = vpop.f32.mrf.mxu0
      %7636 = vdwg.mxu0
      %v7637 = vadd.f32 %v7435, %v7511
      %v7638 = vadd.f32 %v7436, %v7514
      %v7639 = vadd.f32 %v7437, %v7519
      %v7640 = vadd.f32 %v7438, %v7522
      %v7641 = vadd.f32 %v7439, %v7527
      %v7642 = vadd.f32 %v7440, %v7530
      %v7643 = vadd.f32 %v7441, %v7535
      %v7644 = vadd.f32 %v7442, %v7538
      %v7645 = vadd.f32 %v7443, %v7543
      %v7646 = vadd.f32 %v7444, %v7546
      %v7647 = vadd.f32 %v7445, %v7551
      %v7648 = vadd.f32 %v7446, %v7554
      %v7649 = vadd.f32 %v7447, %v7559
      %v7650 = vadd.f32 %v7448, %v7562
      %v7651 = vadd.f32 %v7449, %v7567
      %v7652 = vadd.f32 %v7450, %v7570
      %v7653 = vadd.f32 %v7451, %v7575
      %v7654 = vadd.f32 %v7452, %v7578
      %v7655 = vadd.f32 %v7453, %v7583
      %v7656 = vadd.f32 %v7454, %v7586
      %v7657 = vadd.f32 %v7455, %v7591
      %v7658 = vadd.f32 %v7456, %v7594
      %v7659 = vadd.f32 %v7457, %v7599
      %v7660 = vadd.f32 %v7458, %v7602
      %v7661 = vadd.f32 %v7459, %v7607
      %v7662 = vadd.f32 %v7460, %v7610
      %v7663 = vadd.f32 %v7461, %v7615
      %v7664 = vadd.f32 %v7462, %v7618
      %v7665 = vadd.f32 %v7463, %v7623
      %v7666 = vadd.f32 %v7464, %v7626
      %v7667 = vadd.f32 %v7465, %v7631
      %v7668 = vadd.f32 %v7466, %v7634
      %s7669 = scalar_lea.vmem %s10, 28
      %v7670 = vld [vmem:[%s7669] sm:$0xf]
      %v7672 = vsel %vm6223, %v7670, 0
      %7674 = vmatprep.subr.bf16.mxu0 0
      %7675 = vmatpush1.bf16.msra.mxu0 0
      %7676 = vmatprep.subr.bf16.mxu0 0
      %7677 = vmatpush1.bf16.msra.mxu0 0
      %7678 = vmatprep.subr.bf16.mxu0 0
      %7679 = vmatpush1.bf16.msra.mxu0 0
      %7680 = vmatprep.subr.bf16.mxu0 0
      %7681 = vmatpush1.bf16.msra.mxu0 0
      %7682 = vmatprep.subr.bf16.mxu0 0
      %7683 = vmatpush1.bf16.msra.mxu0 0
      %7684 = vmatprep.subr.bf16.mxu0 0
      %7685 = vmatpush1.bf16.msra.mxu0 0
      %7686 = vmatprep.subr.bf16.mxu0 0
      %7687 = vmatpush1.bf16.msra.mxu0 0
      %7688 = vmatprep.subr.bf16.mxu0 0
      %7689 = vmatpush1.bf16.msra.mxu0 %v7672
      %7690 = vmatprep.subr.bf16.mxu0 0
      %7691 = vmatpush2.bf16.msra.mxu0 0
      %7692 = vmatprep.subr.bf16.mxu0 0
      %7693 = vmatpush2.bf16.msra.mxu0 0
      %7694 = vmatprep.subr.bf16.mxu0 0
      %7695 = vmatpush2.bf16.msra.mxu0 0
      %7696 = vmatprep.subr.bf16.mxu0 0
      %7697 = vmatpush2.bf16.msra.mxu0 0
      %7698 = vmatprep.subr.bf16.mxu0 0
      %7699 = vmatpush2.bf16.msra.mxu0 0
      %7700 = vmatprep.subr.bf16.mxu0 0
      %7701 = vmatpush2.bf16.msra.mxu0 0
      %7702 = vmatprep.subr.bf16.mxu0 0
      %7703 = vmatpush2.bf16.msra.mxu0 0
      %7704 = vmatprep.subr.bf16.mxu0 0
      %7705 = vmatpush2.bf16.msra.mxu0 0
      %7706 = vmatprep.mubr.bf16.mxu0 0
      %7707 = vmatmul.mubr.bf16.gmra.mxu0 %v6182
      %v7708 = vpop.f32.mrf.mxu0
      %v7709 = vadd.f32 0.0, %v7708
      %v7710 = vpop.f32.mrf.mxu0
      %v7711 = vpop.f32.mrf.mxu0
      %v7712 = vadd.f32 0.0, %v7711
      %v7713 = vpop.f32.mrf.mxu0
      %7714 = vmatprep.mubr.bf16.mxu0 0
      %7715 = vmatmul.mubr.bf16.gmra.mxu0 %v6185
      %v7716 = vpop.f32.mrf.mxu0
      %v7717 = vadd.f32 0.0, %v7716
      %v7718 = vpop.f32.mrf.mxu0
      %v7719 = vpop.f32.mrf.mxu0
      %v7720 = vadd.f32 0.0, %v7719
      %v7721 = vpop.f32.mrf.mxu0
      %7722 = vmatprep.mubr.bf16.mxu0 0
      %7723 = vmatmul.mubr.bf16.gmra.mxu0 %v6188
      %v7724 = vpop.f32.mrf.mxu0
      %v7725 = vadd.f32 0.0, %v7724
      %v7726 = vpop.f32.mrf.mxu0
      %v7727 = vpop.f32.mrf.mxu0
      %v7728 = vadd.f32 0.0, %v7727
      %v7729 = vpop.f32.mrf.mxu0
      %7730 = vmatprep.mubr.bf16.mxu0 0
      %7731 = vmatmul.mubr.bf16.gmra.mxu0 %v6191
      %v7732 = vpop.f32.mrf.mxu0
      %v7733 = vadd.f32 0.0, %v7732
      %v7734 = vpop.f32.mrf.mxu0
      %v7735 = vpop.f32.mrf.mxu0
      %v7736 = vadd.f32 0.0, %v7735
      %v7737 = vpop.f32.mrf.mxu0
      %7738 = vmatprep.mubr.bf16.mxu0 0
      %7739 = vmatmul.mubr.bf16.gmra.mxu0 %v6194
      %v7740 = vpop.f32.mrf.mxu0
      %v7741 = vadd.f32 0.0, %v7740
      %v7742 = vpop.f32.mrf.mxu0
      %v7743 = vpop.f32.mrf.mxu0
      %v7744 = vadd.f32 0.0, %v7743
      %v7745 = vpop.f32.mrf.mxu0
      %7746 = vmatprep.mubr.bf16.mxu0 0
      %7747 = vmatmul.mubr.bf16.gmra.mxu0 %v6197
      %v7748 = vpop.f32.mrf.mxu0
      %v7749 = vadd.f32 0.0, %v7748
      %v7750 = vpop.f32.mrf.mxu0
      %v7751 = vpop.f32.mrf.mxu0
      %v7752 = vadd.f32 0.0, %v7751
      %v7753 = vpop.f32.mrf.mxu0
      %7754 = vmatprep.mubr.bf16.mxu0 0
      %7755 = vmatmul.mubr.bf16.gmra.mxu0 %v6200
      %v7756 = vpop.f32.mrf.mxu0
      %v7757 = vadd.f32 0.0, %v7756
      %v7758 = vpop.f32.mrf.mxu0
      %v7759 = vpop.f32.mrf.mxu0
      %v7760 = vadd.f32 0.0, %v7759
      %v7761 = vpop.f32.mrf.mxu0
      %7762 = vmatprep.mubr.bf16.mxu0 0
      %7763 = vmatmul.mubr.bf16.gmra.mxu0 %v6203
      %v7764 = vpop.f32.mrf.mxu0
      %v7765 = vadd.f32 0.0, %v7764
      %v7766 = vpop.f32.mrf.mxu0
      %v7767 = vpop.f32.mrf.mxu0
      %v7768 = vadd.f32 0.0, %v7767
      %v7769 = vpop.f32.mrf.mxu0
      %7770 = vmatprep.mubr.bf16.mxu0 0
      %7771 = vmatmul.mubr.bf16.gmra.mxu0 %v6206
      %v7772 = vpop.f32.mrf.mxu0
      %v7773 = vadd.f32 0.0, %v7772
      %v7774 = vpop.f32.mrf.mxu0
      %v7775 = vpop.f32.mrf.mxu0
      %v7776 = vadd.f32 0.0, %v7775
      %v7777 = vpop.f32.mrf.mxu0
      %7778 = vmatprep.mubr.bf16.mxu0 0
      %7779 = vmatmul.mubr.bf16.gmra.mxu0 %v6209
      %v7780 = vpop.f32.mrf.mxu0
      %v7781 = vadd.f32 0.0, %v7780
      %v7782 = vpop.f32.mrf.mxu0
      %v7783 = vpop.f32.mrf.mxu0
      %v7784 = vadd.f32 0.0, %v7783
      %v7785 = vpop.f32.mrf.mxu0
      %7786 = vmatprep.mubr.bf16.mxu0 0
      %7787 = vmatmul.mubr.bf16.gmra.mxu0 %v6212
      %v7788 = vpop.f32.mrf.mxu0
      %v7789 = vadd.f32 0.0, %v7788
      %v7790 = vpop.f32.mrf.mxu0
      %v7791 = vpop.f32.mrf.mxu0
      %v7792 = vadd.f32 0.0, %v7791
      %v7793 = vpop.f32.mrf.mxu0
      %7794 = vmatprep.mubr.bf16.mxu0 0
      %7795 = vmatmul.mubr.bf16.gmra.mxu0 %v6215
      %v7796 = vpop.f32.mrf.mxu0
      %v7797 = vadd.f32 0.0, %v7796
      %v7798 = vpop.f32.mrf.mxu0
      %v7799 = vpop.f32.mrf.mxu0
      %v7800 = vadd.f32 0.0, %v7799
      %v7801 = vpop.f32.mrf.mxu0
      %7802 = vmatprep.mubr.bf16.mxu0 0
      %7803 = vmatmul.mubr.bf16.gmra.mxu0 %v6218
      %v7804 = vpop.f32.mrf.mxu0
      %v7805 = vadd.f32 0.0, %v7804
      %v7806 = vpop.f32.mrf.mxu0
      %v7807 = vpop.f32.mrf.mxu0
      %v7808 = vadd.f32 0.0, %v7807
      %v7809 = vpop.f32.mrf.mxu0
      %7810 = vmatprep.mubr.bf16.mxu0 0
      %7811 = vmatmul.mubr.bf16.gmra.mxu0 %v6221
      %v7812 = vpop.f32.mrf.mxu0
      %v7813 = vadd.f32 0.0, %v7812
      %v7814 = vpop.f32.mrf.mxu0
      %v7815 = vpop.f32.mrf.mxu0
      %v7816 = vadd.f32 0.0, %v7815
      %v7817 = vpop.f32.mrf.mxu0
      %7818 = vmatprep.mubr.bf16.mxu0 0
      %7819 = vmatmul.mubr.bf16.gmra.mxu0 %v7067
      %v7820 = vpop.f32.mrf.mxu0
      %v7821 = vadd.f32 0.0, %v7820
      %v7822 = vpop.f32.mrf.mxu0
      %v7823 = vpop.f32.mrf.mxu0
      %v7824 = vadd.f32 0.0, %v7823
      %v7825 = vpop.f32.mrf.mxu0
      %7826 = vmatprep.mubr.bf16.mxu0 0
      %7827 = vmatmul.mubr.bf16.gmra.mxu0 %v6176
      %v7828 = vpop.f32.mrf.mxu0
      %v7829 = vadd.f32 0.0, %v7828
      %v7830 = vpop.f32.mrf.mxu0
      %v7831 = vpop.f32.mrf.mxu0
      %v7832 = vadd.f32 0.0, %v7831
      %v7833 = vpop.f32.mrf.mxu0
      %7834 = vdwg.mxu0
      %v7835 = vadd.f32 %v7637, %v7709
      %v7836 = vadd.f32 %v7638, %v7712
      %v7837 = vadd.f32 %v7639, %v7717
      %v7838 = vadd.f32 %v7640, %v7720
      %v7839 = vadd.f32 %v7641, %v7725
      %v7840 = vadd.f32 %v7642, %v7728
      %v7841 = vadd.f32 %v7643, %v7733
      %v7842 = vadd.f32 %v7644, %v7736
      %v7843 = vadd.f32 %v7645, %v7741
      %v7844 = vadd.f32 %v7646, %v7744
      %v7845 = vadd.f32 %v7647, %v7749
      %v7846 = vadd.f32 %v7648, %v7752
      %v7847 = vadd.f32 %v7649, %v7757
      %v7848 = vadd.f32 %v7650, %v7760
      %v7849 = vadd.f32 %v7651, %v7765
      %v7850 = vadd.f32 %v7652, %v7768
      %v7851 = vadd.f32 %v7653, %v7773
      %v7852 = vadd.f32 %v7654, %v7776
      %v7853 = vadd.f32 %v7655, %v7781
      %v7854 = vadd.f32 %v7656, %v7784
      %v7855 = vadd.f32 %v7657, %v7789
      %v7856 = vadd.f32 %v7658, %v7792
      %v7857 = vadd.f32 %v7659, %v7797
      %v7858 = vadd.f32 %v7660, %v7800
      %v7859 = vadd.f32 %v7661, %v7805
      %v7860 = vadd.f32 %v7662, %v7808
      %v7861 = vadd.f32 %v7663, %v7813
      %v7862 = vadd.f32 %v7664, %v7816
      %v7863 = vadd.f32 %v7665, %v7821
      %v7864 = vadd.f32 %v7666, %v7824
      %v7865 = vadd.f32 %v7667, %v7829
      %v7866 = vadd.f32 %v7668, %v7832
      %s7867 = scalar_lea.vmem %s10, 32
      %v7868 = vld [vmem:[%s7867] sm:$0xf]
      %v7869 = vsel %vm6175, %v3151, 0
      %v7872 = vsel %vm6223, %v7868, 0
      %7874 = vmatprep.subr.bf16.mxu0 0
      %7875 = vmatpush1.bf16.msra.mxu0 0
      %7876 = vmatprep.subr.bf16.mxu0 0
      %7877 = vmatpush1.bf16.msra.mxu0 0
      %7878 = vmatprep.subr.bf16.mxu0 0
      %7879 = vmatpush1.bf16.msra.mxu0 0
      %7880 = vmatprep.subr.bf16.mxu0 0
      %7881 = vmatpush1.bf16.msra.mxu0 0
      %7882 = vmatprep.subr.bf16.mxu0 0
      %7883 = vmatpush1.bf16.msra.mxu0 0
      %7884 = vmatprep.subr.bf16.mxu0 0
      %7885 = vmatpush1.bf16.msra.mxu0 0
      %7886 = vmatprep.subr.bf16.mxu0 0
      %7887 = vmatpush1.bf16.msra.mxu0 0
      %7888 = vmatprep.subr.bf16.mxu0 0
      %7889 = vmatpush1.bf16.msra.mxu0 %v7872
      %7890 = vmatprep.subr.bf16.mxu0 0
      %7891 = vmatpush2.bf16.msra.mxu0 0
      %7892 = vmatprep.subr.bf16.mxu0 0
      %7893 = vmatpush2.bf16.msra.mxu0 0
      %7894 = vmatprep.subr.bf16.mxu0 0
      %7895 = vmatpush2.bf16.msra.mxu0 0
      %7896 = vmatprep.subr.bf16.mxu0 0
      %7897 = vmatpush2.bf16.msra.mxu0 0
      %7898 = vmatprep.subr.bf16.mxu0 0
      %7899 = vmatpush2.bf16.msra.mxu0 0
      %7900 = vmatprep.subr.bf16.mxu0 0
      %7901 = vmatpush2.bf16.msra.mxu0 0
      %7902 = vmatprep.subr.bf16.mxu0 0
      %7903 = vmatpush2.bf16.msra.mxu0 0
      %7904 = vmatprep.subr.bf16.mxu0 0
      %7905 = vmatpush2.bf16.msra.mxu0 0
      %7906 = vmatprep.mubr.bf16.mxu0 0
      %7907 = vmatmul.mubr.bf16.gmra.mxu0 %v6624
      %v7908 = vpop.f32.mrf.mxu0
      %v7909 = vadd.f32 0.0, %v7908
      %v7910 = vpop.f32.mrf.mxu0
      %v7911 = vpop.f32.mrf.mxu0
      %v7912 = vadd.f32 0.0, %v7911
      %v7913 = vpop.f32.mrf.mxu0
      %7914 = vmatprep.mubr.bf16.mxu0 0
      %7915 = vmatmul.mubr.bf16.gmra.mxu0 %v6627
      %v7916 = vpop.f32.mrf.mxu0
      %v7917 = vadd.f32 0.0, %v7916
      %v7918 = vpop.f32.mrf.mxu0
      %v7919 = vpop.f32.mrf.mxu0
      %v7920 = vadd.f32 0.0, %v7919
      %v7921 = vpop.f32.mrf.mxu0
      %7922 = vmatprep.mubr.bf16.mxu0 0
      %7923 = vmatmul.mubr.bf16.gmra.mxu0 %v6630
      %v7924 = vpop.f32.mrf.mxu0
      %v7925 = vadd.f32 0.0, %v7924
      %v7926 = vpop.f32.mrf.mxu0
      %v7927 = vpop.f32.mrf.mxu0
      %v7928 = vadd.f32 0.0, %v7927
      %v7929 = vpop.f32.mrf.mxu0
      %7930 = vmatprep.mubr.bf16.mxu0 0
      %7931 = vmatmul.mubr.bf16.gmra.mxu0 %v6633
      %v7932 = vpop.f32.mrf.mxu0
      %v7933 = vadd.f32 0.0, %v7932
      %v7934 = vpop.f32.mrf.mxu0
      %v7935 = vpop.f32.mrf.mxu0
      %v7936 = vadd.f32 0.0, %v7935
      %v7937 = vpop.f32.mrf.mxu0
      %7938 = vmatprep.mubr.bf16.mxu0 0
      %7939 = vmatmul.mubr.bf16.gmra.mxu0 %v6636
      %v7940 = vpop.f32.mrf.mxu0
      %v7941 = vadd.f32 0.0, %v7940
      %v7942 = vpop.f32.mrf.mxu0
      %v7943 = vpop.f32.mrf.mxu0
      %v7944 = vadd.f32 0.0, %v7943
      %v7945 = vpop.f32.mrf.mxu0
      %7946 = vmatprep.mubr.bf16.mxu0 0
      %7947 = vmatmul.mubr.bf16.gmra.mxu0 %v6639
      %v7948 = vpop.f32.mrf.mxu0
      %v7949 = vadd.f32 0.0, %v7948
      %v7950 = vpop.f32.mrf.mxu0
      %v7951 = vpop.f32.mrf.mxu0
      %v7952 = vadd.f32 0.0, %v7951
      %v7953 = vpop.f32.mrf.mxu0
      %7954 = vmatprep.mubr.bf16.mxu0 0
      %7955 = vmatmul.mubr.bf16.gmra.mxu0 %v6642
      %v7956 = vpop.f32.mrf.mxu0
      %v7957 = vadd.f32 0.0, %v7956
      %v7958 = vpop.f32.mrf.mxu0
      %v7959 = vpop.f32.mrf.mxu0
      %v7960 = vadd.f32 0.0, %v7959
      %v7961 = vpop.f32.mrf.mxu0
      %7962 = vmatprep.mubr.bf16.mxu0 0
      %7963 = vmatmul.mubr.bf16.gmra.mxu0 %v6645
      %v7964 = vpop.f32.mrf.mxu0
      %v7965 = vadd.f32 0.0, %v7964
      %v7966 = vpop.f32.mrf.mxu0
      %v7967 = vpop.f32.mrf.mxu0
      %v7968 = vadd.f32 0.0, %v7967
      %v7969 = vpop.f32.mrf.mxu0
      %7970 = vmatprep.mubr.bf16.mxu0 0
      %7971 = vmatmul.mubr.bf16.gmra.mxu0 %v6648
      %v7972 = vpop.f32.mrf.mxu0
      %v7973 = vadd.f32 0.0, %v7972
      %v7974 = vpop.f32.mrf.mxu0
      %v7975 = vpop.f32.mrf.mxu0
      %v7976 = vadd.f32 0.0, %v7975
      %v7977 = vpop.f32.mrf.mxu0
      %7978 = vmatprep.mubr.bf16.mxu0 0
      %7979 = vmatmul.mubr.bf16.gmra.mxu0 %v6651
      %v7980 = vpop.f32.mrf.mxu0
      %v7981 = vadd.f32 0.0, %v7980
      %v7982 = vpop.f32.mrf.mxu0
      %v7983 = vpop.f32.mrf.mxu0
      %v7984 = vadd.f32 0.0, %v7983
      %v7985 = vpop.f32.mrf.mxu0
      %7986 = vmatprep.mubr.bf16.mxu0 0
      %7987 = vmatmul.mubr.bf16.gmra.mxu0 %v6654
      %v7988 = vpop.f32.mrf.mxu0
      %v7989 = vadd.f32 0.0, %v7988
      %v7990 = vpop.f32.mrf.mxu0
      %v7991 = vpop.f32.mrf.mxu0
      %v7992 = vadd.f32 0.0, %v7991
      %v7993 = vpop.f32.mrf.mxu0
      %7994 = vmatprep.mubr.bf16.mxu0 0
      %7995 = vmatmul.mubr.bf16.gmra.mxu0 %v6657
      %v7996 = vpop.f32.mrf.mxu0
      %v7997 = vadd.f32 0.0, %v7996
      %v7998 = vpop.f32.mrf.mxu0
      %v7999 = vpop.f32.mrf.mxu0
      %v8000 = vadd.f32 0.0, %v7999
      %v8001 = vpop.f32.mrf.mxu0
      %8002 = vmatprep.mubr.bf16.mxu0 0
      %8003 = vmatmul.mubr.bf16.gmra.mxu0 %v6660
      %v8004 = vpop.f32.mrf.mxu0
      %v8005 = vadd.f32 0.0, %v8004
      %v8006 = vpop.f32.mrf.mxu0
      %v8007 = vpop.f32.mrf.mxu0
      %v8008 = vadd.f32 0.0, %v8007
      %v8009 = vpop.f32.mrf.mxu0
      %8010 = vmatprep.mubr.bf16.mxu0 0
      %8011 = vmatmul.mubr.bf16.gmra.mxu0 %v6663
      %v8012 = vpop.f32.mrf.mxu0
      %v8013 = vadd.f32 0.0, %v8012
      %v8014 = vpop.f32.mrf.mxu0
      %v8015 = vpop.f32.mrf.mxu0
      %v8016 = vadd.f32 0.0, %v8015
      %v8017 = vpop.f32.mrf.mxu0
      %8018 = vmatprep.mubr.bf16.mxu0 0
      %8019 = vmatmul.mubr.bf16.gmra.mxu0 %v7269
      %v8020 = vpop.f32.mrf.mxu0
      %v8021 = vadd.f32 0.0, %v8020
      %v8022 = vpop.f32.mrf.mxu0
      %v8023 = vpop.f32.mrf.mxu0
      %v8024 = vadd.f32 0.0, %v8023
      %v8025 = vpop.f32.mrf.mxu0
      %8026 = vmatprep.mubr.bf16.mxu0 0
      %8027 = vmatmul.mubr.bf16.gmra.mxu0 %v7869
      %v8028 = vpop.f32.mrf.mxu0
      %v8029 = vadd.f32 0.0, %v8028
      %v8030 = vpop.f32.mrf.mxu0
      %v8031 = vpop.f32.mrf.mxu0
      %v8032 = vadd.f32 0.0, %v8031
      %v8033 = vpop.f32.mrf.mxu0
      %8034 = vdwg.mxu0
      %v8035 = vadd.f32 %v7835, %v7909
      %v8036 = vadd.f32 %v7836, %v7912
      %v8037 = vadd.f32 %v7837, %v7917
      %v8038 = vadd.f32 %v7838, %v7920
      %v8039 = vadd.f32 %v7839, %v7925
      %v8040 = vadd.f32 %v7840, %v7928
      %v8041 = vadd.f32 %v7841, %v7933
      %v8042 = vadd.f32 %v7842, %v7936
      %v8043 = vadd.f32 %v7843, %v7941
      %v8044 = vadd.f32 %v7844, %v7944
      %v8045 = vadd.f32 %v7845, %v7949
      %v8046 = vadd.f32 %v7846, %v7952
      %v8047 = vadd.f32 %v7847, %v7957
      %v8048 = vadd.f32 %v7848, %v7960
      %v8049 = vadd.f32 %v7849, %v7965
      %v8050 = vadd.f32 %v7850, %v7968
      %v8051 = vadd.f32 %v7851, %v7973
      %v8052 = vadd.f32 %v7852, %v7976
      %v8053 = vadd.f32 %v7853, %v7981
      %v8054 = vadd.f32 %v7854, %v7984
      %v8055 = vadd.f32 %v7855, %v7989
      %v8056 = vadd.f32 %v7856, %v7992
      %v8057 = vadd.f32 %v7857, %v7997
      %v8058 = vadd.f32 %v7858, %v8000
      %v8059 = vadd.f32 %v7859, %v8005
      %v8060 = vadd.f32 %v7860, %v8008
      %v8061 = vadd.f32 %v7861, %v8013
      %v8062 = vadd.f32 %v7862, %v8016
      %v8063 = vadd.f32 %v7863, %v8021
      %v8064 = vadd.f32 %v7864, %v8024
      %v8065 = vadd.f32 %v7865, %v8029
      %v8066 = vadd.f32 %v7866, %v8032
      %v8067 = vld [vmem:[%s11] sm:$0x1]
      %v8069 = vlaneseq
      %v8070 = vshrl.u32 %v8069, 7
      %v8071 = vsub.s32 0, %v8070
      %v8072 = vrot.slane %v8067, %v8071
      %v8074 = vmul.f32 %v8035, %v8072
      %v8075 = vmul.f32 %v8036, %v8072
      %v8076 = vmul.f32 %v8037, %v8072
      %v8077 = vmul.f32 %v8038, %v8072
      %v8078 = vmul.f32 %v8039, %v8072
      %v8079 = vmul.f32 %v8040, %v8072
      %v8080 = vmul.f32 %v8041, %v8072
      %v8081 = vmul.f32 %v8042, %v8072
      %v8082 = vmul.f32 %v8043, %v8072
      %v8083 = vmul.f32 %v8044, %v8072
      %v8084 = vmul.f32 %v8045, %v8072
      %v8085 = vmul.f32 %v8046, %v8072
      %v8086 = vmul.f32 %v8047, %v8072
      %v8087 = vmul.f32 %v8048, %v8072
      %v8088 = vmul.f32 %v8049, %v8072
      %v8089 = vmul.f32 %v8050, %v8072
      %v8090 = vmul.f32 %v8051, %v8072
      %v8091 = vmul.f32 %v8052, %v8072
      %v8092 = vmul.f32 %v8053, %v8072
      %v8093 = vmul.f32 %v8054, %v8072
      %v8094 = vmul.f32 %v8055, %v8072
      %v8095 = vmul.f32 %v8056, %v8072
      %v8096 = vmul.f32 %v8057, %v8072
      %v8097 = vmul.f32 %v8058, %v8072
      %v8098 = vmul.f32 %v8059, %v8072
      %v8099 = vmul.f32 %v8060, %v8072
      %v8100 = vmul.f32 %v8061, %v8072
      %v8101 = vmul.f32 %v8062, %v8072
      %v8102 = vmul.f32 %v8063, %v8072
      %v8103 = vmul.f32 %v8064, %v8072
      %v8104 = vmul.f32 %v8065, %v8072
      %v8105 = vmul.f32 %v8066, %v8072
      %v8106 = vld [vmem:[%s12] sm:$0x1]
      %v8108 = vlaneseq
      %v8109 = vshrl.u32 %v8108, 7
      %v8110 = vsub.s32 0, %v8109
      %v8111 = vrot.slane %v8106, %v8110
      %v8113 = vadd.f32 %v8074, %v8111
      %v8114 = vadd.f32 %v8075, %v8111
      %v8115 = vadd.f32 %v8076, %v8111
      %v8116 = vadd.f32 %v8077, %v8111
      %v8117 = vadd.f32 %v8078, %v8111
      %v8118 = vadd.f32 %v8079, %v8111
      %v8119 = vadd.f32 %v8080, %v8111
      %v8120 = vadd.f32 %v8081, %v8111
      %v8121 = vadd.f32 %v8082, %v8111
      %v8122 = vadd.f32 %v8083, %v8111
      %v8123 = vadd.f32 %v8084, %v8111
      %v8124 = vadd.f32 %v8085, %v8111
      %v8125 = vadd.f32 %v8086, %v8111
      %v8126 = vadd.f32 %v8087, %v8111
      %v8127 = vadd.f32 %v8088, %v8111
      %v8128 = vadd.f32 %v8089, %v8111
      %v8129 = vadd.f32 %v8090, %v8111
      %v8130 = vadd.f32 %v8091, %v8111
      %v8131 = vadd.f32 %v8092, %v8111
      %v8132 = vadd.f32 %v8093, %v8111
      %v8133 = vadd.f32 %v8094, %v8111
      %v8134 = vadd.f32 %v8095, %v8111
      %v8135 = vadd.f32 %v8096, %v8111
      %v8136 = vadd.f32 %v8097, %v8111
      %v8137 = vadd.f32 %v8098, %v8111
      %v8138 = vadd.f32 %v8099, %v8111
      %v8139 = vadd.f32 %v8100, %v8111
      %v8140 = vadd.f32 %v8101, %v8111
      %v8141 = vadd.f32 %v8102, %v8111
      %v8142 = vadd.f32 %v8103, %v8111
      %v8143 = vadd.f32 %v8104, %v8111
      %v8144 = vadd.f32 %v8105, %v8111
      %v8145 = vmax.f32 %v8113, 0.0
      %v8146 = vmax.f32 %v8114, 0.0
      %v8147 = vmax.f32 %v8115, 0.0
      %v8148 = vmax.f32 %v8116, 0.0
      %v8149 = vmax.f32 %v8117, 0.0
      %v8150 = vmax.f32 %v8118, 0.0
      %v8151 = vmax.f32 %v8119, 0.0
      %v8152 = vmax.f32 %v8120, 0.0
      %v8153 = vmax.f32 %v8121, 0.0
      %v8154 = vmax.f32 %v8122, 0.0
      %v8155 = vmax.f32 %v8123, 0.0
      %v8156 = vmax.f32 %v8124, 0.0
      %v8157 = vmax.f32 %v8125, 0.0
      %v8158 = vmax.f32 %v8126, 0.0
      %v8159 = vmax.f32 %v8127, 0.0
      %v8160 = vmax.f32 %v8128, 0.0
      %v8161 = vmax.f32 %v8129, 0.0
      %v8162 = vmax.f32 %v8130, 0.0
      %v8163 = vmax.f32 %v8131, 0.0
      %v8164 = vmax.f32 %v8132, 0.0
      %v8165 = vmax.f32 %v8133, 0.0
      %v8166 = vmax.f32 %v8134, 0.0
      %v8167 = vmax.f32 %v8135, 0.0
      %v8168 = vmax.f32 %v8136, 0.0
      %v8169 = vmax.f32 %v8137, 0.0
      %v8170 = vmax.f32 %v8138, 0.0
      %v8171 = vmax.f32 %v8139, 0.0
      %v8172 = vmax.f32 %v8140, 0.0
      %v8173 = vmax.f32 %v8141, 0.0
      %v8174 = vmax.f32 %v8142, 0.0
      %v8175 = vmax.f32 %v8143, 0.0
      %v8176 = vmax.f32 %v8144, 0.0
      %v8208 = vrot.slane -inf, 7
      %v8209 = vsel %vm1150, %v8208, %v8208
      %v8210 = vrot.slane %v641, 7
      %v8211 = vsel %vm1150, %v8208, %v8210
      %v8212 = vrot.slane %v642, 7
      %v8213 = vsel %vm1150, %v8210, %v8212
      %v8214 = vrot.slane %v643, 7
      %v8215 = vsel %vm1150, %v8212, %v8214
      %v8216 = vrot.slane %v644, 7
      %v8217 = vsel %vm1150, %v8214, %v8216
      %v8218 = vrot.slane %v645, 7
      %v8219 = vsel %vm1150, %v8216, %v8218
      %v8220 = vrot.slane %v646, 7
      %v8221 = vsel %vm1150, %v8218, %v8220
      %v8222 = vrot.slane %v647, 7
      %v8223 = vsel %vm1150, %v8220, %v8222
      %v8224 = vrot.slane %v648, 7
      %v8225 = vsel %vm1150, %v8222, %v8224
      %v8226 = vrot.slane %v649, 7
      %v8227 = vsel %vm1150, %v8224, %v8226
      %v8228 = vrot.slane %v650, 7
      %v8229 = vsel %vm1150, %v8226, %v8228
      %v8230 = vrot.slane %v651, 7
      %v8231 = vsel %vm1150, %v8228, %v8230
      %v8232 = vrot.slane %v652, 7
      %v8233 = vsel %vm1150, %v8230, %v8232
      %v8234 = vrot.slane %v653, 7
      %v8235 = vsel %vm1150, %v8232, %v8234
      %v8236 = vrot.slane %v654, 7
      %v8237 = vsel %vm1150, %v8234, %v8236
      %v8238 = vrot.slane %v655, 7
      %v8239 = vsel %vm1150, %v8236, %v8238
      %v8240 = vrot.slane %v656, 7
      %v8241 = vsel %vm1150, %v8238, %v8240
      %v8242 = vrot.slane %v657, 7
      %v8243 = vsel %vm1150, %v8240, %v8242
      %v8244 = vrot.slane %v658, 7
      %v8245 = vsel %vm1150, %v8242, %v8244
      %v8246 = vrot.slane %v659, 7
      %v8247 = vsel %vm1150, %v8244, %v8246
      %v8248 = vrot.slane %v660, 7
      %v8249 = vsel %vm1150, %v8246, %v8248
      %v8250 = vrot.slane %v661, 7
      %v8251 = vsel %vm1150, %v8248, %v8250
      %v8252 = vrot.slane %v662, 7
      %v8253 = vsel %vm1150, %v8250, %v8252
      %v8254 = vrot.slane %v663, 7
      %v8255 = vsel %vm1150, %v8252, %v8254
      %v8256 = vrot.slane %v664, 7
      %v8257 = vsel %vm1150, %v8254, %v8256
      %v8258 = vrot.slane %v665, 7
      %v8259 = vsel %vm1150, %v8256, %v8258
      %v8260 = vrot.slane %v666, 7
      %v8261 = vsel %vm1150, %v8258, %v8260
      %v8262 = vrot.slane %v667, 7
      %v8263 = vsel %vm1150, %v8260, %v8262
      %v8264 = vrot.slane %v668, 7
      %v8265 = vsel %vm1150, %v8262, %v8264
      %v8266 = vrot.slane %v669, 7
      %v8267 = vsel %vm1150, %v8264, %v8266
      %v8268 = vrot.slane %v670, 7
      %v8269 = vsel %vm1150, %v8266, %v8268
      %v8301 = vsel %vm1145, %v8209, -inf
      %v8302 = vsel %vm1146, %v8209, -inf
      %v8303 = vsel %vm1145, %v8211, -inf
      %v8304 = vsel %vm1146, %v8213, -inf
      %v8305 = vsel %vm1145, %v8215, -inf
      %v8306 = vsel %vm1146, %v8217, -inf
      %v8307 = vsel %vm1145, %v8219, -inf
      %v8308 = vsel %vm1146, %v8221, -inf
      %v8309 = vsel %vm1145, %v8223, -inf
      %v8310 = vsel %vm1146, %v8225, -inf
      %v8311 = vsel %vm1145, %v8227, -inf
      %v8312 = vsel %vm1146, %v8229, -inf
      %v8313 = vsel %vm1145, %v8231, -inf
      %v8314 = vsel %vm1146, %v8233, -inf
      %v8315 = vsel %vm1145, %v8235, -inf
      %v8316 = vsel %vm1146, %v8237, -inf
      %v8317 = vsel %vm1145, %v8239, -inf
      %v8318 = vsel %vm1146, %v8241, -inf
      %v8319 = vsel %vm1145, %v8243, -inf
      %v8320 = vsel %vm1146, %v8245, -inf
      %v8321 = vsel %vm1145, %v8247, -inf
      %v8322 = vsel %vm1146, %v8249, -inf
      %v8323 = vsel %vm1145, %v8251, -inf
      %v8324 = vsel %vm1146, %v8253, -inf
      %v8325 = vsel %vm1145, %v8255, -inf
      %v8326 = vsel %vm1146, %v8257, -inf
      %v8327 = vsel %vm1145, %v8259, -inf
      %v8328 = vsel %vm1146, %v8261, -inf
      %v8329 = vsel %vm1145, %v8263, -inf
      %v8330 = vsel %vm1146, %v8265, -inf
      %v8331 = vsel %vm1145, %v8267, -inf
      %v8332 = vsel %vm1146, %v8269, -inf
      %v8334 = vrot.slane -inf, 1
      %v8335 = vsel %vm1276, %v8334, %v8334
      %v8336 = vrot.slane %v641, 1
      %v8337 = vsel %vm1276, %v8334, %v8336
      %v8338 = vrot.slane %v642, 1
      %v8339 = vsel %vm1276, %v8336, %v8338
      %v8340 = vrot.slane %v643, 1
      %v8341 = vsel %vm1276, %v8338, %v8340
      %v8342 = vrot.slane %v644, 1
      %v8343 = vsel %vm1276, %v8340, %v8342
      %v8344 = vrot.slane %v645, 1
      %v8345 = vsel %vm1276, %v8342, %v8344
      %v8346 = vrot.slane %v646, 1
      %v8347 = vsel %vm1276, %v8344, %v8346
      %v8348 = vrot.slane %v647, 1
      %v8349 = vsel %vm1276, %v8346, %v8348
      %v8350 = vrot.slane %v648, 1
      %v8351 = vsel %vm1276, %v8348, %v8350
      %v8352 = vrot.slane %v649, 1
      %v8353 = vsel %vm1276, %v8350, %v8352
      %v8354 = vrot.slane %v650, 1
      %v8355 = vsel %vm1276, %v8352, %v8354
      %v8356 = vrot.slane %v651, 1
      %v8357 = vsel %vm1276, %v8354, %v8356
      %v8358 = vrot.slane %v652, 1
      %v8359 = vsel %vm1276, %v8356, %v8358
      %v8360 = vrot.slane %v653, 1
      %v8361 = vsel %vm1276, %v8358, %v8360
      %v8362 = vrot.slane %v654, 1
      %v8363 = vsel %vm1276, %v8360, %v8362
      %v8364 = vrot.slane %v655, 1
      %v8365 = vsel %vm1276, %v8362, %v8364
      %v8366 = vrot.slane %v656, 1
      %v8367 = vsel %vm1276, %v8364, %v8366
      %v8368 = vrot.slane %v657, 1
      %v8369 = vsel %vm1276, %v8366, %v8368
      %v8370 = vrot.slane %v658, 1
      %v8371 = vsel %vm1276, %v8368, %v8370
      %v8372 = vrot.slane %v659, 1
      %v8373 = vsel %vm1276, %v8370, %v8372
      %v8374 = vrot.slane %v660, 1
      %v8375 = vsel %vm1276, %v8372, %v8374
      %v8376 = vrot.slane %v661, 1
      %v8377 = vsel %vm1276, %v8374, %v8376
      %v8378 = vrot.slane %v662, 1
      %v8379 = vsel %vm1276, %v8376, %v8378
      %v8380 = vrot.slane %v663, 1
      %v8381 = vsel %vm1276, %v8378, %v8380
      %v8382 = vrot.slane %v664, 1
      %v8383 = vsel %vm1276, %v8380, %v8382
      %v8384 = vrot.slane %v665, 1
      %v8385 = vsel %vm1276, %v8382, %v8384
      %v8386 = vrot.slane %v666, 1
      %v8387 = vsel %vm1276, %v8384, %v8386
      %v8388 = vrot.slane %v667, 1
      %v8389 = vsel %vm1276, %v8386, %v8388
      %v8390 = vrot.slane %v668, 1
      %v8391 = vsel %vm1276, %v8388, %v8390
      %v8392 = vrot.slane %v669, 1
      %v8393 = vsel %vm1276, %v8390, %v8392
      %v8394 = vrot.slane %v670, 1
      %v8395 = vsel %vm1276, %v8392, %v8394
      %v8396 = vrot.slane %v671, 1
      %v8397 = vsel %vm1276, %v8394, %v8396
      %v8430 = vsel %vm1147, %v8335, -inf
      %v8431 = vsel %vm1148, %v8337, -inf
      %v8432 = vsel %vm1147, %v8339, -inf
      %v8433 = vsel %vm1148, %v8341, -inf
      %v8434 = vsel %vm1147, %v8343, -inf
      %v8435 = vsel %vm1148, %v8345, -inf
      %v8436 = vsel %vm1147, %v8347, -inf
      %v8437 = vsel %vm1148, %v8349, -inf
      %v8438 = vsel %vm1147, %v8351, -inf
      %v8439 = vsel %vm1148, %v8353, -inf
      %v8440 = vsel %vm1147, %v8355, -inf
      %v8441 = vsel %vm1148, %v8357, -inf
      %v8442 = vsel %vm1147, %v8359, -inf
      %v8443 = vsel %vm1148, %v8361, -inf
      %v8444 = vsel %vm1147, %v8363, -inf
      %v8445 = vsel %vm1148, %v8365, -inf
      %v8446 = vsel %vm1147, %v8367, -inf
      %v8447 = vsel %vm1148, %v8369, -inf
      %v8448 = vsel %vm1147, %v8371, -inf
      %v8449 = vsel %vm1148, %v8373, -inf
      %v8450 = vsel %vm1147, %v8375, -inf
      %v8451 = vsel %vm1148, %v8377, -inf
      %v8452 = vsel %vm1147, %v8379, -inf
      %v8453 = vsel %vm1148, %v8381, -inf
      %v8454 = vsel %vm1147, %v8383, -inf
      %v8455 = vsel %vm1148, %v8385, -inf
      %v8456 = vsel %vm1147, %v8387, -inf
      %v8457 = vsel %vm1148, %v8389, -inf
      %v8458 = vsel %vm1147, %v8391, -inf
      %v8459 = vsel %vm1148, %v8393, -inf
      %v8460 = vsel %vm1147, %v8395, -inf
      %v8461 = vsel %vm1148, %v8397, -inf
      %v8463 = vrot.slane %v671, 7
      %v8464 = vsel %vm1150, %v8268, %v8463
      %v8465 = vrot.slane %v672, 7
      %v8466 = vsel %vm1150, %v8463, %v8465
      %v8469 = vsel %vm1145, %v8464, -inf
      %v8470 = vsel %vm1146, %v8466, -inf
      %v8471 = vrot.slane %v672, 1
      %v8472 = vsel %vm1276, %v8396, %v8471
      %v8473 = vsel %vm1276, %v8471, %v8334
      %v8476 = vsel %vm1147, %v8472, -inf
      %v8477 = vsel %vm1148, %v8473, -inf
      %v8478 = vsel %vm1150, %v8465, %v8208
      %v8480 = vsel %vm1145, %v8478, -inf
      %v8481 = vsel %vm1148, %v8335, -inf
      %v8482 = vmax.f32 %v8303, %v641
      %v8483 = vmax.f32 %v8304, %v642
      %v8484 = vmax.f32 %v8305, %v643
      %v8485 = vmax.f32 %v8306, %v644
      %v8486 = vmax.f32 %v8307, %v645
      %v8487 = vmax.f32 %v8308, %v646
      %v8488 = vmax.f32 %v8309, %v647
      %v8489 = vmax.f32 %v8310, %v648
      %v8490 = vmax.f32 %v8311, %v649
      %v8491 = vmax.f32 %v8312, %v650
      %v8492 = vmax.f32 %v8313, %v651
      %v8493 = vmax.f32 %v8314, %v652
      %v8494 = vmax.f32 %v8315, %v653
      %v8495 = vmax.f32 %v8316, %v654
      %v8496 = vmax.f32 %v8317, %v655
      %v8497 = vmax.f32 %v8318, %v656
      %v8498 = vmax.f32 %v8319, %v657
      %v8499 = vmax.f32 %v8320, %v658
      %v8500 = vmax.f32 %v8321, %v659
      %v8501 = vmax.f32 %v8322, %v660
      %v8502 = vmax.f32 %v8323, %v661
      %v8503 = vmax.f32 %v8324, %v662
      %v8504 = vmax.f32 %v8325, %v663
      %v8505 = vmax.f32 %v8326, %v664
      %v8506 = vmax.f32 %v8327, %v665
      %v8507 = vmax.f32 %v8328, %v666
      %v8508 = vmax.f32 %v8329, %v667
      %v8509 = vmax.f32 %v8330, %v668
      %v8510 = vmax.f32 %v8331, %v669
      %v8511 = vmax.f32 %v8332, %v670
      %v8512 = vmax.f32 %v8301, %v8430
      %v8513 = vmax.f32 %v8302, %v8431
      %v8514 = vmax.f32 %v8482, %v8432
      %v8515 = vmax.f32 %v8483, %v8433
      %v8516 = vmax.f32 %v8484, %v8434
      %v8517 = vmax.f32 %v8485, %v8435
      %v8518 = vmax.f32 %v8486, %v8436
      %v8519 = vmax.f32 %v8487, %v8437
      %v8520 = vmax.f32 %v8488, %v8438
      %v8521 = vmax.f32 %v8489, %v8439
      %v8522 = vmax.f32 %v8490, %v8440
      %v8523 = vmax.f32 %v8491, %v8441
      %v8524 = vmax.f32 %v8492, %v8442
      %v8525 = vmax.f32 %v8493, %v8443
      %v8526 = vmax.f32 %v8494, %v8444
      %v8527 = vmax.f32 %v8495, %v8445
      %v8528 = vmax.f32 %v8496, %v8446
      %v8529 = vmax.f32 %v8497, %v8447
      %v8530 = vmax.f32 %v8498, %v8448
      %v8531 = vmax.f32 %v8499, %v8449
      %v8532 = vmax.f32 %v8500, %v8450
      %v8533 = vmax.f32 %v8501, %v8451
      %v8534 = vmax.f32 %v8502, %v8452
      %v8535 = vmax.f32 %v8503, %v8453
      %v8536 = vmax.f32 %v8504, %v8454
      %v8537 = vmax.f32 %v8505, %v8455
      %v8538 = vmax.f32 %v8506, %v8456
      %v8539 = vmax.f32 %v8507, %v8457
      %v8540 = vmax.f32 %v8508, %v8458
      %v8541 = vmax.f32 %v8509, %v8459
      %v8542 = vmax.f32 %v8510, %v8460
      %v8543 = vmax.f32 %v8511, %v8461
      %v8544 = vmax.f32 %v8512, %v8303
      %v8545 = vmax.f32 %v8513, %v8304
      %v8546 = vmax.f32 %v8514, %v8305
      %v8547 = vmax.f32 %v8515, %v8306
      %v8548 = vmax.f32 %v8516, %v8307
      %v8549 = vmax.f32 %v8517, %v8308
      %v8550 = vmax.f32 %v8518, %v8309
      %v8551 = vmax.f32 %v8519, %v8310
      %v8552 = vmax.f32 %v8520, %v8311
      %v8553 = vmax.f32 %v8521, %v8312
      %v8554 = vmax.f32 %v8522, %v8313
      %v8555 = vmax.f32 %v8523, %v8314
      %v8556 = vmax.f32 %v8524, %v8315
      %v8557 = vmax.f32 %v8525, %v8316
      %v8558 = vmax.f32 %v8526, %v8317
      %v8559 = vmax.f32 %v8527, %v8318
      %v8560 = vmax.f32 %v8528, %v8319
      %v8561 = vmax.f32 %v8529, %v8320
      %v8562 = vmax.f32 %v8530, %v8321
      %v8563 = vmax.f32 %v8531, %v8322
      %v8564 = vmax.f32 %v8532, %v8323
      %v8565 = vmax.f32 %v8533, %v8324
      %v8566 = vmax.f32 %v8534, %v8325
      %v8567 = vmax.f32 %v8535, %v8326
      %v8568 = vmax.f32 %v8536, %v8327
      %v8569 = vmax.f32 %v8537, %v8328
      %v8570 = vmax.f32 %v8538, %v8329
      %v8571 = vmax.f32 %v8539, %v8330
      %v8572 = vmax.f32 %v8540, %v8331
      %v8573 = vmax.f32 %v8541, %v8332
      %v8574 = vmax.f32 %v8542, %v8469
      %v8575 = vmax.f32 %v8543, %v8470
      %v8576 = vmax.f32 %v8544, %v641
      %v8577 = vmax.f32 %v8545, %v642
      %v8578 = vmax.f32 %v8546, %v643
      %v8579 = vmax.f32 %v8547, %v644
      %v8580 = vmax.f32 %v8548, %v645
      %v8581 = vmax.f32 %v8549, %v646
      %v8582 = vmax.f32 %v8550, %v647
      %v8583 = vmax.f32 %v8551, %v648
      %v8584 = vmax.f32 %v8552, %v649
      %v8585 = vmax.f32 %v8553, %v650
      %v8586 = vmax.f32 %v8554, %v651
      %v8587 = vmax.f32 %v8555, %v652
      %v8588 = vmax.f32 %v8556, %v653
      %v8589 = vmax.f32 %v8557, %v654
      %v8590 = vmax.f32 %v8558, %v655
      %v8591 = vmax.f32 %v8559, %v656
      %v8592 = vmax.f32 %v8560, %v657
      %v8593 = vmax.f32 %v8561, %v658
      %v8594 = vmax.f32 %v8562, %v659
      %v8595 = vmax.f32 %v8563, %v660
      %v8596 = vmax.f32 %v8564, %v661
      %v8597 = vmax.f32 %v8565, %v662
      %v8598 = vmax.f32 %v8566, %v663
      %v8599 = vmax.f32 %v8567, %v664
      %v8600 = vmax.f32 %v8568, %v665
      %v8601 = vmax.f32 %v8569, %v666
      %v8602 = vmax.f32 %v8570, %v667
      %v8603 = vmax.f32 %v8571, %v668
      %v8604 = vmax.f32 %v8572, %v669
      %v8605 = vmax.f32 %v8573, %v670
      %v8606 = vmax.f32 %v8574, %v671
      %v8607 = vmax.f32 %v8575, %v672
      %v8608 = vmax.f32 %v8576, %v8432
      %v8609 = vmax.f32 %v8577, %v8433
      %v8610 = vmax.f32 %v8578, %v8434
      %v8611 = vmax.f32 %v8579, %v8435
      %v8612 = vmax.f32 %v8580, %v8436
      %v8613 = vmax.f32 %v8581, %v8437
      %v8614 = vmax.f32 %v8582, %v8438
      %v8615 = vmax.f32 %v8583, %v8439
      %v8616 = vmax.f32 %v8584, %v8440
      %v8617 = vmax.f32 %v8585, %v8441
      %v8618 = vmax.f32 %v8586, %v8442
      %v8619 = vmax.f32 %v8587, %v8443
      %v8620 = vmax.f32 %v8588, %v8444
      %v8621 = vmax.f32 %v8589, %v8445
      %v8622 = vmax.f32 %v8590, %v8446
      %v8623 = vmax.f32 %v8591, %v8447
      %v8624 = vmax.f32 %v8592, %v8448
      %v8625 = vmax.f32 %v8593, %v8449
      %v8626 = vmax.f32 %v8594, %v8450
      %v8627 = vmax.f32 %v8595, %v8451
      %v8628 = vmax.f32 %v8596, %v8452
      %v8629 = vmax.f32 %v8597, %v8453
      %v8630 = vmax.f32 %v8598, %v8454
      %v8631 = vmax.f32 %v8599, %v8455
      %v8632 = vmax.f32 %v8600, %v8456
      %v8633 = vmax.f32 %v8601, %v8457
      %v8634 = vmax.f32 %v8602, %v8458
      %v8635 = vmax.f32 %v8603, %v8459
      %v8636 = vmax.f32 %v8604, %v8460
      %v8637 = vmax.f32 %v8605, %v8461
      %v8638 = vmax.f32 %v8606, %v8476
      %v8639 = vmax.f32 %v8607, %v8477
      %v8640 = vmax.f32 %v8608, %v8305
      %v8641 = vmax.f32 %v8609, %v8306
      %v8642 = vmax.f32 %v8610, %v8307
      %v8643 = vmax.f32 %v8611, %v8308
      %v8644 = vmax.f32 %v8612, %v8309
      %v8645 = vmax.f32 %v8613, %v8310
      %v8646 = vmax.f32 %v8614, %v8311
      %v8647 = vmax.f32 %v8615, %v8312
      %v8648 = vmax.f32 %v8616, %v8313
      %v8649 = vmax.f32 %v8617, %v8314
      %v8650 = vmax.f32 %v8618, %v8315
      %v8651 = vmax.f32 %v8619, %v8316
      %v8652 = vmax.f32 %v8620, %v8317
      %v8653 = vmax.f32 %v8621, %v8318
      %v8654 = vmax.f32 %v8622, %v8319
      %v8655 = vmax.f32 %v8623, %v8320
      %v8656 = vmax.f32 %v8624, %v8321
      %v8657 = vmax.f32 %v8625, %v8322
      %v8658 = vmax.f32 %v8626, %v8323
      %v8659 = vmax.f32 %v8627, %v8324
      %v8660 = vmax.f32 %v8628, %v8325
      %v8661 = vmax.f32 %v8629, %v8326
      %v8662 = vmax.f32 %v8630, %v8327
      %v8663 = vmax.f32 %v8631, %v8328
      %v8664 = vmax.f32 %v8632, %v8329
      %v8665 = vmax.f32 %v8633, %v8330
      %v8666 = vmax.f32 %v8634, %v8331
      %v8667 = vmax.f32 %v8635, %v8332
      %v8668 = vmax.f32 %v8636, %v8469
      %v8669 = vmax.f32 %v8637, %v8470
      %v8670 = vmax.f32 %v8638, %v8480
      %v8671 = vmax.f32 %v8639, %v8302
      %v8672 = vmax.f32 %v8640, %v643
      %v8673 = vmax.f32 %v8641, %v644
      %v8674 = vmax.f32 %v8642, %v645
      %v8675 = vmax.f32 %v8643, %v646
      %v8676 = vmax.f32 %v8644, %v647
      %v8677 = vmax.f32 %v8645, %v648
      %v8678 = vmax.f32 %v8646, %v649
      %v8679 = vmax.f32 %v8647, %v650
      %v8680 = vmax.f32 %v8648, %v651
      %v8681 = vmax.f32 %v8649, %v652
      %v8682 = vmax.f32 %v8650, %v653
      %v8683 = vmax.f32 %v8651, %v654
      %v8684 = vmax.f32 %v8652, %v655
      %v8685 = vmax.f32 %v8653, %v656
      %v8686 = vmax.f32 %v8654, %v657
      %v8687 = vmax.f32 %v8655, %v658
      %v8688 = vmax.f32 %v8656, %v659
      %v8689 = vmax.f32 %v8657, %v660
      %v8690 = vmax.f32 %v8658, %v661
      %v8691 = vmax.f32 %v8659, %v662
      %v8692 = vmax.f32 %v8660, %v663
      %v8693 = vmax.f32 %v8661, %v664
      %v8694 = vmax.f32 %v8662, %v665
      %v8695 = vmax.f32 %v8663, %v666
      %v8696 = vmax.f32 %v8664, %v667
      %v8697 = vmax.f32 %v8665, %v668
      %v8698 = vmax.f32 %v8666, %v669
      %v8699 = vmax.f32 %v8667, %v670
      %v8700 = vmax.f32 %v8668, %v671
      %v8701 = vmax.f32 %v8669, %v672
      %v8702 = vmax.f32 %v8672, %v8434
      %v8703 = vmax.f32 %v8673, %v8435
      %v8704 = vmax.f32 %v8674, %v8436
      %v8705 = vmax.f32 %v8675, %v8437
      %v8706 = vmax.f32 %v8676, %v8438
      %v8707 = vmax.f32 %v8677, %v8439
      %v8708 = vmax.f32 %v8678, %v8440
      %v8709 = vmax.f32 %v8679, %v8441
      %v8710 = vmax.f32 %v8680, %v8442
      %v8711 = vmax.f32 %v8681, %v8443
      %v8712 = vmax.f32 %v8682, %v8444
      %v8713 = vmax.f32 %v8683, %v8445
      %v8714 = vmax.f32 %v8684, %v8446
      %v8715 = vmax.f32 %v8685, %v8447
      %v8716 = vmax.f32 %v8686, %v8448
      %v8717 = vmax.f32 %v8687, %v8449
      %v8718 = vmax.f32 %v8688, %v8450
      %v8719 = vmax.f32 %v8689, %v8451
      %v8720 = vmax.f32 %v8690, %v8452
      %v8721 = vmax.f32 %v8691, %v8453
      %v8722 = vmax.f32 %v8692, %v8454
      %v8723 = vmax.f32 %v8693, %v8455
      %v8724 = vmax.f32 %v8694, %v8456
      %v8725 = vmax.f32 %v8695, %v8457
      %v8726 = vmax.f32 %v8696, %v8458
      %v8727 = vmax.f32 %v8697, %v8459
      %v8728 = vmax.f32 %v8698, %v8460
      %v8729 = vmax.f32 %v8699, %v8461
      %v8730 = vmax.f32 %v8700, %v8476
      %v8731 = vmax.f32 %v8701, %v8477
      %v8732 = vmax.f32 %v8670, %v8430
      %v8733 = vmax.f32 %v8671, %v8481
      %v8734 = vpack.c.bf16 %v8703, %v8702
      %v8735 = vpack.c.bf16 %v8705, %v8704
      %v8736 = vpack.c.bf16 %v8707, %v8706
      %v8737 = vpack.c.bf16 %v8709, %v8708
      %v8738 = vpack.c.bf16 %v8711, %v8710
      %v8739 = vpack.c.bf16 %v8713, %v8712
      %v8740 = vpack.c.bf16 %v8715, %v8714
      %v8741 = vpack.c.bf16 %v8717, %v8716
      %v8742 = vpack.c.bf16 %v8719, %v8718
      %v8743 = vpack.c.bf16 %v8721, %v8720
      %v8744 = vpack.c.bf16 %v8723, %v8722
      %v8745 = vpack.c.bf16 %v8725, %v8724
      %v8746 = vpack.c.bf16 %v8727, %v8726
      %v8747 = vpack.c.bf16 %v8729, %v8728
      %v8748 = vpack.c.bf16 %v8731, %v8730
      %v8749 = vpack.c.bf16 %v8733, %v8732
      %v8750 = vld [vmem:[%s13] sm:$0x3]
      %v8752 = vsel %vm690, %v8734, 0
      %v8755 = vsel %vm690, %v8735, 0
      %v8758 = vsel %vm690, %v8736, 0
      %v8761 = vsel %vm690, %v8737, 0
      %v8764 = vsel %vm690, %v8738, 0
      %v8767 = vsel %vm690, %v8739, 0
      %v8770 = vsel %vm690, %v8740, 0
      %v8773 = vsel %vm690, %v8741, 0
      %v8776 = vsel %vm690, %v8742, 0
      %v8779 = vsel %vm690, %v8743, 0
      %v8782 = vsel %vm690, %v8744, 0
      %v8785 = vsel %vm690, %v8745, 0
      %v8788 = vsel %vm690, %v8746, 0
      %v8791 = vsel %vm690, %v8747, 0
      %v8794 = vsel %vm690, %v8748, 0
      %v8797 = vsel %vm690, %v8749, 0
      %v8800 = vsel %vm739, %v8750, 0
      %8802 = vmatprep.subr.bf16.mxu0 0
      %8803 = vmatpush1.bf16.msra.mxu0 0
      %8804 = vmatprep.subr.bf16.mxu0 0
      %8805 = vmatpush1.bf16.msra.mxu0 0
      %8806 = vmatprep.subr.bf16.mxu0 0
      %8807 = vmatpush1.bf16.msra.mxu0 0
      %8808 = vmatprep.subr.bf16.mxu0 0
      %8809 = vmatpush1.bf16.msra.mxu0 0
      %8810 = vmatprep.subr.bf16.mxu0 0
      %8811 = vmatpush1.bf16.msra.mxu0 0
      %8812 = vmatprep.subr.bf16.mxu0 0
      %8813 = vmatpush1.bf16.msra.mxu0 0
      %8814 = vmatprep.subr.bf16.mxu0 0
      %8815 = vmatpush1.bf16.msra.mxu0 0
      %8816 = vmatprep.subr.bf16.mxu0 0
      %8817 = vmatpush1.bf16.msra.mxu0 %v8800
      %8818 = vmatprep.subr.bf16.mxu0 0
      %8819 = vmatpush2.bf16.msra.mxu0 0
      %8820 = vmatprep.subr.bf16.mxu0 0
      %8821 = vmatpush2.bf16.msra.mxu0 0
      %8822 = vmatprep.subr.bf16.mxu0 0
      %8823 = vmatpush2.bf16.msra.mxu0 0
      %8824 = vmatprep.subr.bf16.mxu0 0
      %8825 = vmatpush2.bf16.msra.mxu0 0
      %8826 = vmatprep.subr.bf16.mxu0 0
      %8827 = vmatpush2.bf16.msra.mxu0 0
      %8828 = vmatprep.subr.bf16.mxu0 0
      %8829 = vmatpush2.bf16.msra.mxu0 0
      %8830 = vmatprep.subr.bf16.mxu0 0
      %8831 = vmatpush2.bf16.msra.mxu0 0
      %8832 = vmatprep.subr.bf16.mxu0 0
      %8833 = vmatpush2.bf16.msra.mxu0 0
      %8834 = vmatprep.mubr.bf16.mxu0 0
      %8835 = vmatmul.mubr.bf16.gmra.mxu0 %v8752
      %v8836 = vpop.f32.mrf.mxu0
      %v8837 = vadd.f32 0.0, %v8836
      %v8838 = vpop.f32.mrf.mxu0
      %v8839 = vpop.f32.mrf.mxu0
      %v8840 = vadd.f32 0.0, %v8839
      %v8841 = vpop.f32.mrf.mxu0
      %8842 = vmatprep.mubr.bf16.mxu0 0
      %8843 = vmatmul.mubr.bf16.gmra.mxu0 %v8755
      %v8844 = vpop.f32.mrf.mxu0
      %v8845 = vadd.f32 0.0, %v8844
      %v8846 = vpop.f32.mrf.mxu0
      %v8847 = vpop.f32.mrf.mxu0
      %v8848 = vadd.f32 0.0, %v8847
      %v8849 = vpop.f32.mrf.mxu0
      %8850 = vmatprep.mubr.bf16.mxu0 0
      %8851 = vmatmul.mubr.bf16.gmra.mxu0 %v8758
      %v8852 = vpop.f32.mrf.mxu0
      %v8853 = vadd.f32 0.0, %v8852
      %v8854 = vpop.f32.mrf.mxu0
      %v8855 = vpop.f32.mrf.mxu0
      %v8856 = vadd.f32 0.0, %v8855
      %v8857 = vpop.f32.mrf.mxu0
      %8858 = vmatprep.mubr.bf16.mxu0 0
      %8859 = vmatmul.mubr.bf16.gmra.mxu0 %v8761
      %v8860 = vpop.f32.mrf.mxu0
      %v8861 = vadd.f32 0.0, %v8860
      %v8862 = vpop.f32.mrf.mxu0
      %v8863 = vpop.f32.mrf.mxu0
      %v8864 = vadd.f32 0.0, %v8863
      %v8865 = vpop.f32.mrf.mxu0
      %8866 = vmatprep.mubr.bf16.mxu0 0
      %8867 = vmatmul.mubr.bf16.gmra.mxu0 %v8764
      %v8868 = vpop.f32.mrf.mxu0
      %v8869 = vadd.f32 0.0, %v8868
      %v8870 = vpop.f32.mrf.mxu0
      %v8871 = vpop.f32.mrf.mxu0
      %v8872 = vadd.f32 0.0, %v8871
      %v8873 = vpop.f32.mrf.mxu0
      %8874 = vmatprep.mubr.bf16.mxu0 0
      %8875 = vmatmul.mubr.bf16.gmra.mxu0 %v8767
      %v8876 = vpop.f32.mrf.mxu0
      %v8877 = vadd.f32 0.0, %v8876
      %v8878 = vpop.f32.mrf.mxu0
      %v8879 = vpop.f32.mrf.mxu0
      %v8880 = vadd.f32 0.0, %v8879
      %v8881 = vpop.f32.mrf.mxu0
      %8882 = vmatprep.mubr.bf16.mxu0 0
      %8883 = vmatmul.mubr.bf16.gmra.mxu0 %v8770
      %v8884 = vpop.f32.mrf.mxu0
      %v8885 = vadd.f32 0.0, %v8884
      %v8886 = vpop.f32.mrf.mxu0
      %v8887 = vpop.f32.mrf.mxu0
      %v8888 = vadd.f32 0.0, %v8887
      %v8889 = vpop.f32.mrf.mxu0
      %8890 = vmatprep.mubr.bf16.mxu0 0
      %8891 = vmatmul.mubr.bf16.gmra.mxu0 %v8773
      %v8892 = vpop.f32.mrf.mxu0
      %v8893 = vadd.f32 0.0, %v8892
      %v8894 = vpop.f32.mrf.mxu0
      %v8895 = vpop.f32.mrf.mxu0
      %v8896 = vadd.f32 0.0, %v8895
      %v8897 = vpop.f32.mrf.mxu0
      %8898 = vmatprep.mubr.bf16.mxu0 0
      %8899 = vmatmul.mubr.bf16.gmra.mxu0 %v8776
      %v8900 = vpop.f32.mrf.mxu0
      %v8901 = vadd.f32 0.0, %v8900
      %v8902 = vpop.f32.mrf.mxu0
      %v8903 = vpop.f32.mrf.mxu0
      %v8904 = vadd.f32 0.0, %v8903
      %v8905 = vpop.f32.mrf.mxu0
      %8906 = vmatprep.mubr.bf16.mxu0 0
      %8907 = vmatmul.mubr.bf16.gmra.mxu0 %v8779
      %v8908 = vpop.f32.mrf.mxu0
      %v8909 = vadd.f32 0.0, %v8908
      %v8910 = vpop.f32.mrf.mxu0
      %v8911 = vpop.f32.mrf.mxu0
      %v8912 = vadd.f32 0.0, %v8911
      %v8913 = vpop.f32.mrf.mxu0
      %8914 = vmatprep.mubr.bf16.mxu0 0
      %8915 = vmatmul.mubr.bf16.gmra.mxu0 %v8782
      %v8916 = vpop.f32.mrf.mxu0
      %v8917 = vadd.f32 0.0, %v8916
      %v8918 = vpop.f32.mrf.mxu0
      %v8919 = vpop.f32.mrf.mxu0
      %v8920 = vadd.f32 0.0, %v8919
      %v8921 = vpop.f32.mrf.mxu0
      %8922 = vmatprep.mubr.bf16.mxu0 0
      %8923 = vmatmul.mubr.bf16.gmra.mxu0 %v8785
      %v8924 = vpop.f32.mrf.mxu0
      %v8925 = vadd.f32 0.0, %v8924
      %v8926 = vpop.f32.mrf.mxu0
      %v8927 = vpop.f32.mrf.mxu0
      %v8928 = vadd.f32 0.0, %v8927
      %v8929 = vpop.f32.mrf.mxu0
      %8930 = vmatprep.mubr.bf16.mxu0 0
      %8931 = vmatmul.mubr.bf16.gmra.mxu0 %v8788
      %v8932 = vpop.f32.mrf.mxu0
      %v8933 = vadd.f32 0.0, %v8932
      %v8934 = vpop.f32.mrf.mxu0
      %v8935 = vpop.f32.mrf.mxu0
      %v8936 = vadd.f32 0.0, %v8935
      %v8937 = vpop.f32.mrf.mxu0
      %8938 = vmatprep.mubr.bf16.mxu0 0
      %8939 = vmatmul.mubr.bf16.gmra.mxu0 %v8791
      %v8940 = vpop.f32.mrf.mxu0
      %v8941 = vadd.f32 0.0, %v8940
      %v8942 = vpop.f32.mrf.mxu0
      %v8943 = vpop.f32.mrf.mxu0
      %v8944 = vadd.f32 0.0, %v8943
      %v8945 = vpop.f32.mrf.mxu0
      %8946 = vmatprep.mubr.bf16.mxu0 0
      %8947 = vmatmul.mubr.bf16.gmra.mxu0 %v8794
      %v8948 = vpop.f32.mrf.mxu0
      %v8949 = vadd.f32 0.0, %v8948
      %v8950 = vpop.f32.mrf.mxu0
      %v8951 = vpop.f32.mrf.mxu0
      %v8952 = vadd.f32 0.0, %v8951
      %v8953 = vpop.f32.mrf.mxu0
      %8954 = vmatprep.mubr.bf16.mxu0 0
      %8955 = vmatmul.mubr.bf16.gmra.mxu0 %v8797
      %v8956 = vpop.f32.mrf.mxu0
      %v8957 = vadd.f32 0.0, %v8956
      %v8958 = vpop.f32.mrf.mxu0
      %v8959 = vpop.f32.mrf.mxu0
      %v8960 = vadd.f32 0.0, %v8959
      %v8961 = vpop.f32.mrf.mxu0
      %8962 = vdwg.mxu0
      %v8963 = vld [vmem:[%s14] sm:$0x1]
      %v8965 = vlaneseq
      %v8966 = vshrl.u32 %v8965, 7
      %v8967 = vsub.s32 0, %v8966
      %v8968 = vrot.slane %v8963, %v8967
      %v8970 = vmul.f32 %v8837, %v8968
      %v8971 = vmul.f32 %v8840, %v8968
      %v8972 = vmul.f32 %v8845, %v8968
      %v8973 = vmul.f32 %v8848, %v8968
      %v8974 = vmul.f32 %v8853, %v8968
      %v8975 = vmul.f32 %v8856, %v8968
      %v8976 = vmul.f32 %v8861, %v8968
      %v8977 = vmul.f32 %v8864, %v8968
      %v8978 = vmul.f32 %v8869, %v8968
      %v8979 = vmul.f32 %v8872, %v8968
      %v8980 = vmul.f32 %v8877, %v8968
      %v8981 = vmul.f32 %v8880, %v8968
      %v8982 = vmul.f32 %v8885, %v8968
      %v8983 = vmul.f32 %v8888, %v8968
      %v8984 = vmul.f32 %v8893, %v8968
      %v8985 = vmul.f32 %v8896, %v8968
      %v8986 = vmul.f32 %v8901, %v8968
      %v8987 = vmul.f32 %v8904, %v8968
      %v8988 = vmul.f32 %v8909, %v8968
      %v8989 = vmul.f32 %v8912, %v8968
      %v8990 = vmul.f32 %v8917, %v8968
      %v8991 = vmul.f32 %v8920, %v8968
      %v8992 = vmul.f32 %v8925, %v8968
      %v8993 = vmul.f32 %v8928, %v8968
      %v8994 = vmul.f32 %v8933, %v8968
      %v8995 = vmul.f32 %v8936, %v8968
      %v8996 = vmul.f32 %v8941, %v8968
      %v8997 = vmul.f32 %v8944, %v8968
      %v8998 = vmul.f32 %v8949, %v8968
      %v8999 = vmul.f32 %v8952, %v8968
      %v9000 = vmul.f32 %v8957, %v8968
      %v9001 = vmul.f32 %v8960, %v8968
      %v9002 = vld [vmem:[%s15] sm:$0x1]
      %v9004 = vlaneseq
      %v9005 = vshrl.u32 %v9004, 7
      %v9006 = vsub.s32 0, %v9005
      %v9007 = vrot.slane %v9002, %v9006
      %v9009 = vadd.f32 %v8970, %v9007
      %v9010 = vadd.f32 %v8971, %v9007
      %v9011 = vadd.f32 %v8972, %v9007
      %v9012 = vadd.f32 %v8973, %v9007
      %v9013 = vadd.f32 %v8974, %v9007
      %v9014 = vadd.f32 %v8975, %v9007
      %v9015 = vadd.f32 %v8976, %v9007
      %v9016 = vadd.f32 %v8977, %v9007
      %v9017 = vadd.f32 %v8978, %v9007
      %v9018 = vadd.f32 %v8979, %v9007
      %v9019 = vadd.f32 %v8980, %v9007
      %v9020 = vadd.f32 %v8981, %v9007
      %v9021 = vadd.f32 %v8982, %v9007
      %v9022 = vadd.f32 %v8983, %v9007
      %v9023 = vadd.f32 %v8984, %v9007
      %v9024 = vadd.f32 %v8985, %v9007
      %v9025 = vadd.f32 %v8986, %v9007
      %v9026 = vadd.f32 %v8987, %v9007
      %v9027 = vadd.f32 %v8988, %v9007
      %v9028 = vadd.f32 %v8989, %v9007
      %v9029 = vadd.f32 %v8990, %v9007
      %v9030 = vadd.f32 %v8991, %v9007
      %v9031 = vadd.f32 %v8992, %v9007
      %v9032 = vadd.f32 %v8993, %v9007
      %v9033 = vadd.f32 %v8994, %v9007
      %v9034 = vadd.f32 %v8995, %v9007
      %v9035 = vadd.f32 %v8996, %v9007
      %v9036 = vadd.f32 %v8997, %v9007
      %v9037 = vadd.f32 %v8998, %v9007
      %v9038 = vadd.f32 %v8999, %v9007
      %v9039 = vadd.f32 %v9000, %v9007
      %v9040 = vadd.f32 %v9001, %v9007
      %v9041 = vmax.f32 %v9009, 0.0
      %v9042 = vmax.f32 %v9010, 0.0
      %v9043 = vmax.f32 %v9011, 0.0
      %v9044 = vmax.f32 %v9012, 0.0
      %v9045 = vmax.f32 %v9013, 0.0
      %v9046 = vmax.f32 %v9014, 0.0
      %v9047 = vmax.f32 %v9015, 0.0
      %v9048 = vmax.f32 %v9016, 0.0
      %v9049 = vmax.f32 %v9017, 0.0
      %v9050 = vmax.f32 %v9018, 0.0
      %v9051 = vmax.f32 %v9019, 0.0
      %v9052 = vmax.f32 %v9020, 0.0
      %v9053 = vmax.f32 %v9021, 0.0
      %v9054 = vmax.f32 %v9022, 0.0
      %v9055 = vmax.f32 %v9023, 0.0
      %v9056 = vmax.f32 %v9024, 0.0
      %v9057 = vmax.f32 %v9025, 0.0
      %v9058 = vmax.f32 %v9026, 0.0
      %v9059 = vmax.f32 %v9027, 0.0
      %v9060 = vmax.f32 %v9028, 0.0
      %v9061 = vmax.f32 %v9029, 0.0
      %v9062 = vmax.f32 %v9030, 0.0
      %v9063 = vmax.f32 %v9031, 0.0
      %v9064 = vmax.f32 %v9032, 0.0
      %v9065 = vmax.f32 %v9033, 0.0
      %v9066 = vmax.f32 %v9034, 0.0
      %v9067 = vmax.f32 %v9035, 0.0
      %v9068 = vmax.f32 %v9036, 0.0
      %v9069 = vmax.f32 %v9037, 0.0
      %v9070 = vmax.f32 %v9038, 0.0
      %v9071 = vmax.f32 %v9039, 0.0
      %v9072 = vmax.f32 %v9040, 0.0
      %9073 = vst.msk [vmem:[%s624] sm:$0xff] %vm6175, %v982
      %9074 = vst.msk [vmem:[%s624 + $0x8] sm:$0xff] %vm6175, %v983
      %9075 = vst.msk [vmem:[%s624 + $0x10] sm:$0xff] %vm6175, %v984
      %9076 = vst.msk [vmem:[%s624 + $0x18] sm:$0xff] %vm6175, %v985
      %9077 = vst.msk [vmem:[%s624 + $0x20] sm:$0xff] %vm6175, %v986
      %9078 = vst.msk [vmem:[%s624 + $0x28] sm:$0xff] %vm6175, %v987
      %9079 = vst.msk [vmem:[%s624 + $0x30] sm:$0xff] %vm6175, %v988
      %9080 = vst.msk [vmem:[%s624 + $0x38] sm:$0xff] %vm6175, %v989
      %9081 = vst.msk [vmem:[%s624 + $0x40] sm:$0xff] %vm6175, %v990
      %9082 = vst.msk [vmem:[%s624 + $0x48] sm:$0xff] %vm6175, %v991
      %9083 = vst.msk [vmem:[%s624 + $0x50] sm:$0xff] %vm6175, %v992
      %9084 = vst.msk [vmem:[%s624 + $0x58] sm:$0xff] %vm6175, %v993
      %9085 = vst.msk [vmem:[%s624 + $0x60] sm:$0xff] %vm6175, %v994
      %9086 = vst.msk [vmem:[%s624 + $0x68] sm:$0xff] %vm6175, %v995
      %9087 = vst.msk [vmem:[%s624 + $0x70] sm:$0xff] %vm6175, %v996
      %9088 = vst.msk [vmem:[%s624 + $0x78] sm:$0xff] %vm6175, %v997
      %9089 = vst.msk [vmem:[%s624 + $0x80] sm:$0xff] %vm6175, %v998
      %9090 = vst.msk [vmem:[%s624 + $0x88] sm:$0xff] %vm6175, %v999
      %9091 = vst.msk [vmem:[%s624 + $0x90] sm:$0xff] %vm6175, %v1000
      %9092 = vst.msk [vmem:[%s624 + $0x98] sm:$0xff] %vm6175, %v1001
      %9093 = vst.msk [vmem:[%s624 + $0xa0] sm:$0xff] %vm6175, %v1002
      %9094 = vst.msk [vmem:[%s624 + $0xa8] sm:$0xff] %vm6175, %v1003
      %9095 = vst.msk [vmem:[%s624 + $0xb0] sm:$0xff] %vm6175, %v1004
      %9096 = vst.msk [vmem:[%s624 + $0xb8] sm:$0xff] %vm6175, %v1005
      %9097 = vst.msk [vmem:[%s624 + $0xc0] sm:$0xff] %vm6175, %v1006
      %9098 = vst.msk [vmem:[%s624 + $0xc8] sm:$0xff] %vm6175, %v1007
      %9099 = vst.msk [vmem:[%s624 + $0xd0] sm:$0xff] %vm6175, %v1008
      %9100 = vst.msk [vmem:[%s624 + $0xd8] sm:$0xff] %vm6175, %v1009
      %9101 = vst.msk [vmem:[%s624 + $0xe0] sm:$0xff] %vm6175, %v1010
      %9102 = vst.msk [vmem:[%s624 + $0xe8] sm:$0xff] %vm6175, %v1011
      %9103 = vst.msk [vmem:[%s624 + $0xf0] sm:$0xff] %vm6175, %v1012
      %9104 = vst.msk [vmem:[%s624 + $0xf8] sm:$0xff] %vm6175, %v1013
      %9105 = vst.msk [vmem:[%s629] sm:$0xff] %vm6175, %v3431
      %9106 = vst.msk [vmem:[%s629 + $0x8] sm:$0xff] %vm6175, %v3432
      %9107 = vst.msk [vmem:[%s629 + $0x10] sm:$0xff] %vm6175, %v3433
      %9108 = vst.msk [vmem:[%s629 + $0x18] sm:$0xff] %vm6175, %v3434
      %9109 = vst.msk [vmem:[%s629 + $0x20] sm:$0xff] %vm6175, %v3435
      %9110 = vst.msk [vmem:[%s629 + $0x28] sm:$0xff] %vm6175, %v3436
      %9111 = vst.msk [vmem:[%s629 + $0x30] sm:$0xff] %vm6175, %v3437
      %9112 = vst.msk [vmem:[%s629 + $0x38] sm:$0xff] %vm6175, %v3438
      %9113 = vst.msk [vmem:[%s629 + $0x40] sm:$0xff] %vm6175, %v3439
      %9114 = vst.msk [vmem:[%s629 + $0x48] sm:$0xff] %vm6175, %v3440
      %9115 = vst.msk [vmem:[%s629 + $0x50] sm:$0xff] %vm6175, %v3441
      %9116 = vst.msk [vmem:[%s629 + $0x58] sm:$0xff] %vm6175, %v3442
      %9117 = vst.msk [vmem:[%s629 + $0x60] sm:$0xff] %vm6175, %v3443
      %9118 = vst.msk [vmem:[%s629 + $0x68] sm:$0xff] %vm6175, %v3444
      %9119 = vst.msk [vmem:[%s629 + $0x70] sm:$0xff] %vm6175, %v3445
      %9120 = vst.msk [vmem:[%s629 + $0x78] sm:$0xff] %vm6175, %v3446
      %9121 = vst.msk [vmem:[%s629 + $0x80] sm:$0xff] %vm6175, %v3447
      %9122 = vst.msk [vmem:[%s629 + $0x88] sm:$0xff] %vm6175, %v3448
      %9123 = vst.msk [vmem:[%s629 + $0x90] sm:$0xff] %vm6175, %v3449
      %9124 = vst.msk [vmem:[%s629 + $0x98] sm:$0xff] %vm6175, %v3450
      %9125 = vst.msk [vmem:[%s629 + $0xa0] sm:$0xff] %vm6175, %v3451
      %9126 = vst.msk [vmem:[%s629 + $0xa8] sm:$0xff] %vm6175, %v3452
      %9127 = vst.msk [vmem:[%s629 + $0xb0] sm:$0xff] %vm6175, %v3453
      %9128 = vst.msk [vmem:[%s629 + $0xb8] sm:$0xff] %vm6175, %v3454
      %9129 = vst.msk [vmem:[%s629 + $0xc0] sm:$0xff] %vm6175, %v3455
      %9130 = vst.msk [vmem:[%s629 + $0xc8] sm:$0xff] %vm6175, %v3456
      %9131 = vst.msk [vmem:[%s629 + $0xd0] sm:$0xff] %vm6175, %v3457
      %9132 = vst.msk [vmem:[%s629 + $0xd8] sm:$0xff] %vm6175, %v3458
      %9133 = vst.msk [vmem:[%s629 + $0xe0] sm:$0xff] %vm6175, %v3459
      %9134 = vst.msk [vmem:[%s629 + $0xe8] sm:$0xff] %vm6175, %v3460
      %9135 = vst.msk [vmem:[%s629 + $0xf0] sm:$0xff] %vm6175, %v3461
      %9136 = vst.msk [vmem:[%s629 + $0xf8] sm:$0xff] %vm6175, %v3462
      %9137 = vst.msk [vmem:[%s634] sm:$0xff] %vm6175, %v8145
      %9138 = vst.msk [vmem:[%s634 + $0x8] sm:$0xff] %vm6175, %v8146
      %9139 = vst.msk [vmem:[%s634 + $0x10] sm:$0xff] %vm6175, %v8147
      %9140 = vst.msk [vmem:[%s634 + $0x18] sm:$0xff] %vm6175, %v8148
      %9141 = vst.msk [vmem:[%s634 + $0x20] sm:$0xff] %vm6175, %v8149
      %9142 = vst.msk [vmem:[%s634 + $0x28] sm:$0xff] %vm6175, %v8150
      %9143 = vst.msk [vmem:[%s634 + $0x30] sm:$0xff] %vm6175, %v8151
      %9144 = vst.msk [vmem:[%s634 + $0x38] sm:$0xff] %vm6175, %v8152
      %9145 = vst.msk [vmem:[%s634 + $0x40] sm:$0xff] %vm6175, %v8153
      %9146 = vst.msk [vmem:[%s634 + $0x48] sm:$0xff] %vm6175, %v8154
      %9147 = vst.msk [vmem:[%s634 + $0x50] sm:$0xff] %vm6175, %v8155
      %9148 = vst.msk [vmem:[%s634 + $0x58] sm:$0xff] %vm6175, %v8156
      %9149 = vst.msk [vmem:[%s634 + $0x60] sm:$0xff] %vm6175, %v8157
      %9150 = vst.msk [vmem:[%s634 + $0x68] sm:$0xff] %vm6175, %v8158
      %9151 = vst.msk [vmem:[%s634 + $0x70] sm:$0xff] %vm6175, %v8159
      %9152 = vst.msk [vmem:[%s634 + $0x78] sm:$0xff] %vm6175, %v8160
      %9153 = vst.msk [vmem:[%s634 + $0x80] sm:$0xff] %vm6175, %v8161
      %9154 = vst.msk [vmem:[%s634 + $0x88] sm:$0xff] %vm6175, %v8162
      %9155 = vst.msk [vmem:[%s634 + $0x90] sm:$0xff] %vm6175, %v8163
      %9156 = vst.msk [vmem:[%s634 + $0x98] sm:$0xff] %vm6175, %v8164
      %9157 = vst.msk [vmem:[%s634 + $0xa0] sm:$0xff] %vm6175, %v8165
      %9158 = vst.msk [vmem:[%s634 + $0xa8] sm:$0xff] %vm6175, %v8166
      %9159 = vst.msk [vmem:[%s634 + $0xb0] sm:$0xff] %vm6175, %v8167
      %9160 = vst.msk [vmem:[%s634 + $0xb8] sm:$0xff] %vm6175, %v8168
      %9161 = vst.msk [vmem:[%s634 + $0xc0] sm:$0xff] %vm6175, %v8169
      %9162 = vst.msk [vmem:[%s634 + $0xc8] sm:$0xff] %vm6175, %v8170
      %9163 = vst.msk [vmem:[%s634 + $0xd0] sm:$0xff] %vm6175, %v8171
      %9164 = vst.msk [vmem:[%s634 + $0xd8] sm:$0xff] %vm6175, %v8172
      %9165 = vst.msk [vmem:[%s634 + $0xe0] sm:$0xff] %vm6175, %v8173
      %9166 = vst.msk [vmem:[%s634 + $0xe8] sm:$0xff] %vm6175, %v8174
      %9167 = vst.msk [vmem:[%s634 + $0xf0] sm:$0xff] %vm6175, %v8175
      %9168 = vst.msk [vmem:[%s634 + $0xf8] sm:$0xff] %vm6175, %v8176
      %9169 = vst.msk [vmem:[%s639] sm:$0xff] %vm6175, %v9041
      %9170 = vst.msk [vmem:[%s639 + $0x8] sm:$0xff] %vm6175, %v9042
      %9171 = vst.msk [vmem:[%s639 + $0x10] sm:$0xff] %vm6175, %v9043
      %9172 = vst.msk [vmem:[%s639 + $0x18] sm:$0xff] %vm6175, %v9044
      %9173 = vst.msk [vmem:[%s639 + $0x20] sm:$0xff] %vm6175, %v9045
      %9174 = vst.msk [vmem:[%s639 + $0x28] sm:$0xff] %vm6175, %v9046
      %9175 = vst.msk [vmem:[%s639 + $0x30] sm:$0xff] %vm6175, %v9047
      %9176 = vst.msk [vmem:[%s639 + $0x38] sm:$0xff] %vm6175, %v9048
      %9177 = vst.msk [vmem:[%s639 + $0x40] sm:$0xff] %vm6175, %v9049
      %9178 = vst.msk [vmem:[%s639 + $0x48] sm:$0xff] %vm6175, %v9050
      %9179 = vst.msk [vmem:[%s639 + $0x50] sm:$0xff] %vm6175, %v9051
      %9180 = vst.msk [vmem:[%s639 + $0x58] sm:$0xff] %vm6175, %v9052
      %9181 = vst.msk [vmem:[%s639 + $0x60] sm:$0xff] %vm6175, %v9053
      %9182 = vst.msk [vmem:[%s639 + $0x68] sm:$0xff] %vm6175, %v9054
      %9183 = vst.msk [vmem:[%s639 + $0x70] sm:$0xff] %vm6175, %v9055
      %9184 = vst.msk [vmem:[%s639 + $0x78] sm:$0xff] %vm6175, %v9056
      %9185 = vst.msk [vmem:[%s639 + $0x80] sm:$0xff] %vm6175, %v9057
      %9186 = vst.msk [vmem:[%s639 + $0x88] sm:$0xff] %vm6175, %v9058
      %9187 = vst.msk [vmem:[%s639 + $0x90] sm:$0xff] %vm6175, %v9059
      %9188 = vst.msk [vmem:[%s639 + $0x98] sm:$0xff] %vm6175, %v9060
      %9189 = vst.msk [vmem:[%s639 + $0xa0] sm:$0xff] %vm6175, %v9061
      %9190 = vst.msk [vmem:[%s639 + $0xa8] sm:$0xff] %vm6175, %v9062
      %9191 = vst.msk [vmem:[%s639 + $0xb0] sm:$0xff] %vm6175, %v9063
      %9192 = vst.msk [vmem:[%s639 + $0xb8] sm:$0xff] %vm6175, %v9064
      %9193 = vst.msk [vmem:[%s639 + $0xc0] sm:$0xff] %vm6175, %v9065
      %9194 = vst.msk [vmem:[%s639 + $0xc8] sm:$0xff] %vm6175, %v9066
      %9195 = vst.msk [vmem:[%s639 + $0xd0] sm:$0xff] %vm6175, %v9067
      %9196 = vst.msk [vmem:[%s639 + $0xd8] sm:$0xff] %vm6175, %v9068
      %9197 = vst.msk [vmem:[%s639 + $0xe0] sm:$0xff] %vm6175, %v9069
      %9198 = vst.msk [vmem:[%s639 + $0xe8] sm:$0xff] %vm6175, %v9070
      %9199 = vst.msk [vmem:[%s639 + $0xf0] sm:$0xff] %vm6175, %v9071
      %9200 = vst.msk [vmem:[%s639 + $0xf8] sm:$0xff] %vm6175, %v9072
      %p9201 = scmp.lt.s32.totalorder %s31, 1
      %s9202 = scalar_select %p9201, %s31, 1
      %s9203 = smul.addr %s9202, 32
      %s9204 = smul.addr %s9203, 8
      %s9205 = scalar_lea.vmem %s16, %s9204
      %p9206 = scmp.lt.s32.totalorder %s31, 1
      %s9207 = scalar_select %p9206, %s31, 1
      %s9208 = smul.addr %s9207, 32
      %s9209 = smul.addr %s9208, 8
      %s9210 = scalar_lea.vmem %s17, %s9209
      %p9211 = scmp.lt.s32.totalorder %s31, 1
      %s9212 = scalar_select %p9211, %s31, 1
      %s9213 = smul.addr %s9212, 32
      %s9214 = smul.addr %s9213, 8
      %s9215 = scalar_lea.vmem %s18, %s9214
      %p9216 = scmp.lt.s32.totalorder %s31, 1
      %s9217 = scalar_select %p9216, %s31, 1
      %s9218 = smul.addr %s9217, 32
      %s9219 = smul.addr %s9218, 8
      %s9220 = scalar_lea.vmem %s19, %s9219
      // Predicated region
      $region85: #{inception_forward.1} parent=83 // pred_check
        %p9221 = pneg %p390
      $region86: #{inception_forward.1} parent=83 // pred_check_branch
        %9223 = sbr.rel (%p9221) target = $region88
      $region87: #{inception_forward.1} parent=83 // pred_region
        _
      $region88: #{inception_forward.1} parent=83 // pred_fallthru
        _
      // Predicated region
      $region89: #{inception_forward.1} parent=83 // pred_check
        %p9224 = pneg %p416
      $region90: #{inception_forward.1} parent=83 // pred_check_branch
        %9226 = sbr.rel (%p9224) target = $region92
      $region91: #{inception_forward.1} parent=83 // pred_region
        _
      $region92: #{inception_forward.1} parent=83 // pred_fallthru
        _
      // Predicated region
      $region93: #{inception_forward.1} parent=83 // pred_check
        %p9227 = pneg %p442
      $region94: #{inception_forward.1} parent=83 // pred_check_branch
        %9229 = sbr.rel (%p9227) target = $region96
      $region95: #{inception_forward.1} parent=83 // pred_region
        _
      $region96: #{inception_forward.1} parent=83 // pred_fallthru
        _
      // Predicated region
      $region97: #{inception_forward.1} parent=83 // pred_check
        %p9230 = pneg %p468
      $region98: #{inception_forward.1} parent=83 // pred_check_branch
        %9232 = sbr.rel (%p9230) target = $region100
      $region99: #{inception_forward.1} parent=83 // pred_region
        _
      $region100: #{inception_forward.1} parent=83 // pred_fallthru
        _
    $region84: #{inception_forward.1} parent=5 // pred_fallthru
      _
    %p9233 = scmp.le.s32.totalorder 2, %s26
    // Predicated region
    $region101: #{inception_forward.1} parent=5 // pred_check
      %p9234 = pneg %p9233
    $region102: #{inception_forward.1} parent=5 // pred_check_branch
      %9236 = sbr.rel (%p9234) target = $region104
    $region103: #{inception_forward.1} parent=5 // pred_region
      %s9237 = ssub.s32 %s26, 2
      // Predicated region
      $region105: #{inception_forward.1} parent=103 // pred_check
        %p9238 = pneg %p396
      $region106: #{inception_forward.1} parent=103 // pred_check_branch
        %9240 = sbr.rel (%p9238) target = $region108
      $region107: #{inception_forward.1} parent=103 // pred_region
        %p9241 = scmp.lt.s32.totalorder %s32, 1
        %s9242 = scalar_select %p9241, %s32, 1
        %s9243 = smul.addr %s9242, 32
        %s9244 = smul.addr %s9243, 8
        %s9245 = scalar_lea.vmem %s16, %s9244
      $region108: #{inception_forward.1} parent=103 // pred_fallthru
        _
      // Predicated region
      $region109: #{inception_forward.1} parent=103 // pred_check
        %p9246 = pneg %p422
      $region110: #{inception_forward.1} parent=103 // pred_check_branch
        %9248 = sbr.rel (%p9246) target = $region112
      $region111: #{inception_forward.1} parent=103 // pred_region
        %p9249 = scmp.lt.s32.totalorder %s32, 1
        %s9250 = scalar_select %p9249, %s32, 1
        %s9251 = smul.addr %s9250, 32
        %s9252 = smul.addr %s9251, 8
        %s9253 = scalar_lea.vmem %s17, %s9252
      $region112: #{inception_forward.1} parent=103 // pred_fallthru
        _
      // Predicated region
      $region113: #{inception_forward.1} parent=103 // pred_check
        %p9254 = pneg %p448
      $region114: #{inception_forward.1} parent=103 // pred_check_branch
        %9256 = sbr.rel (%p9254) target = $region116
      $region115: #{inception_forward.1} parent=103 // pred_region
        %p9257 = scmp.lt.s32.totalorder %s32, 1
        %s9258 = scalar_select %p9257, %s32, 1
        %s9259 = smul.addr %s9258, 32
        %s9260 = smul.addr %s9259, 8
        %s9261 = scalar_lea.vmem %s18, %s9260
      $region116: #{inception_forward.1} parent=103 // pred_fallthru
        _
      // Predicated region
      $region117: #{inception_forward.1} parent=103 // pred_check
        %p9262 = pneg %p474
      $region118: #{inception_forward.1} parent=103 // pred_check_branch
        %9264 = sbr.rel (%p9262) target = $region120
      $region119: #{inception_forward.1} parent=103 // pred_region
        %p9265 = scmp.lt.s32.totalorder %s32, 1
        %s9266 = scalar_select %p9265, %s32, 1
        %s9267 = smul.addr %s9266, 32
        %s9268 = smul.addr %s9267, 8
        %s9269 = scalar_lea.vmem %s19, %s9268
      $region120: #{inception_forward.1} parent=103 // pred_fallthru
        _
    $region104: #{inception_forward.1} parent=5 // pred_fallthru
      _
  $region6: #{inception_forward.1} parent=0 // loop_footer
    %s30 = sadd.s32 1, %s26
  $region7: #{inception_forward.1} parent=0 // loop_footer_branch
    %25 = sbr.rel target = $region3
  $region8: #{inception_forward.1} parent=0 // loop_exit
    _

</llo_original>
